<compile_context>
chip_gen: v6e
topology: v6e:2x2x1
jax: 0.10.0
libtpu: 0.0.40
codegen_flags: <defaults>
</compile_context>

<pallas_src>
import functools

import jax
import jax.numpy as jnp
import numpy as np
from jax.experimental import pallas as pl
from jax.experimental.pallas import tpu as pltpu

_PREC = jax.lax.Precision.HIGHEST


def _bilstm_fc_kernel(x_ref, wx_ref, whh_ref, b_ref, wfc_ref, bfc_ref, o_ref,
                      *, B, T):
    H2 = whh_ref.shape[0]          # 2H  (hidden, both directions)
    H = H2 // 2
    G = whh_ref.shape[1]           # 8H  (4 gates x 2 directions)

    # Input projection for BOTH directions + bias: one hoisted MXU matmul.
    # x rows carry [x_t | x_{T-1-t}] (wrapper concat), wx is block-structured
    # so forward gate columns read the first D input columns and backward gate
    # columns read the last D.  gx[:, s, :] is therefore the full per-step
    # gate slab -> no per-step select, no second slab read, no in-loop mask.
    gx = (jnp.dot(x_ref[...], wx_ref[...],
                  preferred_element_type=jnp.float32, precision=_PREC)
          + b_ref[...])                            # (B*T, 8H)
    gx = gx.reshape(B, T, G)

    whh = whh_ref[...]                             # (2H, 8H) block-diagonal
    # TODO(synk): hold whh resident on the MXU across steps via
    # pltpu.matmul_push_rhs / matmul_acc_lhs / matmul_pop once that explicit
    # path is validated on the target chip; jnp.dot kept for portability.

    # Gate column layout: [ i_f i_b | f_f f_b | o_f o_b | g_f g_b ], each H
    # wide -> sigmoid gates contiguous (one call over 6H), tanh over 2H.
    h = jnp.zeros((B, H2), jnp.float32)            # [h_f | h_b]
    c = jnp.zeros((B, H2), jnp.float32)            # [c_f | c_b]
    hf_rows = [None] * T
    hb_rows = [None] * T
    for s in range(T):                             # T static & small -> unrolled
        gates = gx[:, s, :] + jnp.dot(h, whh,
                                      preferred_element_type=jnp.float32,
                                      precision=_PREC)
        sig = jax.nn.sigmoid(gates[:, 0:3 * H2])   # i | f | o, both directions
        g_g = jnp.tanh(gates[:, 3 * H2:4 * H2])    # g, both directions
        i_g = sig[:, 0 * H2:1 * H2]
        f_g = sig[:, 1 * H2:2 * H2]
        o_g = sig[:, 2 * H2:3 * H2]
        c = f_g * c + i_g * g_g
        h = o_g * jnp.tanh(c)
        hf_rows[s] = h[:, :H]                      # forward hidden of time s
        hb_rows[T - 1 - s] = h[:, H:]              # backward hidden of time T-1-s

    # Epilogue (off the serial chain): assemble hidden states as values — no
    # lane-masked VMEM scratch round-trip — and run the Linear as two flat
    # matmuls summed.  Rows are (b, t) row-major == PyTorch's out.view(T*B, 2H).
    hid_f = jnp.stack(hf_rows, axis=1).reshape(B * T, H)
    hid_b = jnp.stack(hb_rows, axis=1).reshape(B * T, H)
    wfc = wfc_ref[...]                             # (2H, O)
    y = (jnp.dot(hid_f, wfc[:H, :],
                 preferred_element_type=jnp.float32, precision=_PREC)
         + jnp.dot(hid_b, wfc[H:, :],
                   preferred_element_type=jnp.float32, precision=_PREC)
         + bfc_ref[...])
    o_ref[...] = y.astype(o_ref.dtype)


def _pack_params(p):
    """Build the fused/interleaved weights the kernel consumes (host glue)."""
    H = p['whh_f'].shape[0]

    def interleave(a_f, a_b):
        # (R, 4H) columns in PyTorch gate order [i, f, g, o]  ->
        # (R, 8H) columns [ i_f i_b | f_f f_b | o_f o_b | g_f g_b ].
        R = a_f.shape[0]
        perm = jnp.array([0, 1, 3, 2])             # i, f, o, g
        af = a_f.reshape(R, 4, H)[:, perm, :]
        ab = a_b.reshape(R, 4, H)[:, perm, :]
        return jnp.stack([af, ab], axis=2).reshape(R, 8 * H)

    zx = jnp.zeros_like(p['wih_f'])
    wx = jnp.concatenate([interleave(p['wih_f'], zx),    # rows fed by x_t
                          interleave(zx, p['wih_b'])],   # rows fed by x_{T-1-t}
                         axis=0)                          # (2D, 8H)
    b8 = interleave(p['b_f'], p['b_b'])                   # (1, 8H)
    zh = jnp.zeros_like(p['whh_f'])
    whh = jnp.concatenate([interleave(p['whh_f'], zh),    # h_f -> fwd cols only
                           interleave(zh, p['whh_b'])],   # h_b -> bwd cols only
                          axis=0)                          # (2H, 8H)
    return wx, whh, b8


def bidirectional_lstm(x, params):
    """x: (B, T, D) f32. Returns (T, B, out_size), matching the PyTorch views."""
    B, T, D = x.shape
    H = params['whh_f'].shape[0]
    O = params['wfc'].shape[1]

    wx, whh, b8 = _pack_params(params)
    # Each row carries [x_t | x_{T-1-t}] so the kernel needs no per-step
    # direction select or in-kernel time flip.
    x_cat = jnp.concatenate([x, x[:, ::-1, :]], axis=-1).reshape(B * T, 2 * D)

    kernel = functools.partial(_bilstm_fc_kernel, B=B, T=T)
    y2d = pl.pallas_call(
        kernel,
        out_shape=jax.ShapeDtypeStruct((B * T, O), jnp.float32),
        in_specs=[pl.BlockSpec(memory_space=pltpu.MemorySpace.VMEM)] * 6,
        out_specs=pl.BlockSpec(memory_space=pltpu.MemorySpace.VMEM),
    )(x_cat, wx, whh, b8, params['wfc'], params['bfc'])

    # PyTorch: out.view(T*B, 2H) -> fc (rowwise) -> view(T, B, -1).
    # y2d rows are already in that flat order, so this is a free view.
    return y2d.reshape(T, B, O)


def init_params(key, in_size, hidden_size, out_size):
    """Deterministic PyTorch-style uniform(-1/sqrt(H), 1/sqrt(H)) init."""
    H = hidden_size
    bound = 1.0 / np.sqrt(H)
    keys = jax.random.split(key, 14)
    u = lambda k, shape: jax.random.uniform(k, shape, jnp.float32, -bound, bound)

    # PyTorch stores weight_ih: (4H, D), weight_hh: (4H, H). We pass transposes.
    wih_f = u(keys[0], (4 * H, in_size)).T          # (D, 4H)
    whh_f = u(keys[1], (4 * H, H)).T                # (H, 4H)
    b_f = (u(keys[2], (4 * H,)) + u(keys[3], (4 * H,))).reshape(1, 4 * H)
    wih_b = u(keys[4], (4 * H, in_size)).T
    whh_b = u(keys[5], (4 * H, H)).T
    b_b = (u(keys[6], (4 * H,)) + u(keys[7], (4 * H,))).reshape(1, 4 * H)

    fc_bound = 1.0 / np.sqrt(2 * H)
    wfc = jax.random.uniform(keys[8], (out_size, 2 * H), jnp.float32,
                             -fc_bound, fc_bound).T          # (2H, O)
    bfc = jax.random.uniform(keys[9], (out_size,), jnp.float32,
                             -fc_bound, fc_bound).reshape(1, out_size)
    return dict(wih_f=wih_f, whh_f=whh_f, b_f=b_f,
                wih_b=wih_b, whh_b=whh_b, b_b=b_b,
                wfc=wfc, bfc=bfc)


def _reference(x, p):
    """Pure-JAX reference with identical semantics (for a silent check)."""
    B, T, D = x.shape
    H = p['whh_f'].shape[0]
    dot = functools.partial(jnp.dot, precision=_PREC)

    def run_dir(wih, whh, b, reverse):
        h = jnp.zeros((B, H), jnp.float32)
        c = jnp.zeros((B, H), jnp.float32)
        hs = [None] * T
        order = range(T - 1, -1, -1) if reverse else range(T)
        for t in order:
            g = dot(x[:, t, :], wih) + dot(h, whh) + b
            i_g = jax.nn.sigmoid(g[:, :H])
            f_g = jax.nn.sigmoid(g[:, H:2 * H])
            g_g = jnp.tanh(g[:, 2 * H:3 * H])
            o_g = jax.nn.sigmoid(g[:, 3 * H:])
            c = f_g * c + i_g * g_g
            h = o_g * jnp.tanh(c)
            hs[t] = h
        return jnp.stack(hs, axis=1)

    out = jnp.concatenate([run_dir(p['wih_f'], p['whh_f'], p['b_f'], False),
                           run_dir(p['wih_b'], p['whh_b'], p['b_b'], True)],
                          axis=-1)
    y = dot(out.reshape(B * T, 2 * H), p['wfc']) + p['bfc']
    return y.reshape(T, B, -1)


if __name__ == "__main__":
    B, T = 2, 8
    in_size, hidden_size, out_size = 16, 32, 16

    key = jax.random.PRNGKey(0)
    kx, kp = jax.random.split(key)
    x = jax.random.normal(kx, (B, T, in_size), jnp.float32)
    params = init_params(kp, in_size, hidden_size, out_size)

    out = bidirectional_lstm(x, params)
    out = jax.block_until_ready(out)

    ref = _reference(x, params)
    assert out.shape == (T, B, out_size)
    np.testing.assert_allclose(np.asarray(out), np.asarray(ref),
                               rtol=1e-4, atol=1e-4)
    print("KERNEL_OK")
</pallas_src>

<mosaic_0001>
module attributes {stable_mosaic.version = 11 : i64} {
  func.func @_bilstm_fc_kernel(%arg0: memref<16x32xf32, #tpu.memory_space<vmem>>, %arg1: memref<32x256xf32, #tpu.memory_space<vmem>>, %arg2: memref<64x256xf32, #tpu.memory_space<vmem>>, %arg3: memref<1x256xf32, #tpu.memory_space<vmem>>, %arg4: memref<64x16xf32, #tpu.memory_space<vmem>>, %arg5: memref<1x16xf32, #tpu.memory_space<vmem>>, %arg6: memref<16x16xf32, #tpu.memory_space<vmem>>) attributes {dimension_semantics = [], scalar_prefetch = 0 : i64, scratch_operands = 0 : i64, tpu.core_type = #tpu.core_type<tc>} {
    %c0 = arith.constant 0 : index
    %c0_0 = arith.constant 0 : index
    %0 = vector.load %arg0[%c0, %c0_0] : memref<16x32xf32, #tpu.memory_space<vmem>>, vector<16x32xf32>
    %c0_1 = arith.constant 0 : index
    %c0_2 = arith.constant 0 : index
    %1 = vector.load %arg1[%c0_1, %c0_2] : memref<32x256xf32, #tpu.memory_space<vmem>>, vector<32x256xf32>
    %cst = arith.constant dense<0.000000e+00> : vector<16x256xf32>
    %2 = tpu.matmul %0, %1, %cst {dimension_numbers = #tpu.dot_dimension_numbers<[1], [0], [0], [1], [0, 0, 1, 1], [], []>, precision = #tpu.contract_precision<fp32>} : vector<16x32xf32>, vector<32x256xf32>, vector<16x256xf32> -> vector<16x256xf32>
    %c0_3 = arith.constant 0 : index
    %c0_4 = arith.constant 0 : index
    %3 = vector.load %arg3[%c0_3, %c0_4] : memref<1x256xf32, #tpu.memory_space<vmem>>, vector<1x256xf32>
    %4 = vector.broadcast %3 : vector<1x256xf32> to vector<16x256xf32>
    %5 = arith.addf %2, %4 : vector<16x256xf32>
    %6 = vector.shape_cast %5 : vector<16x256xf32> to vector<2x8x256xf32>
    %c0_5 = arith.constant 0 : index
    %c0_6 = arith.constant 0 : index
    %7 = vector.load %arg2[%c0_5, %c0_6] : memref<64x256xf32, #tpu.memory_space<vmem>>, vector<64x256xf32>
    %cst_7 = arith.constant 0.000000e+00 : f32
    %8 = vector.broadcast %cst_7 : f32 to vector<2x64xf32>
    %cst_8 = arith.constant 0.000000e+00 : f32
    %9 = vector.broadcast %cst_8 : f32 to vector<2x64xf32>
    %10 = vector.extract_strided_slice %6 {offsets = [0, 0, 0], sizes = [2, 1, 256], strides = [1, 1, 1]} : vector<2x8x256xf32> to vector<2x1x256xf32>
    %11 = vector.shape_cast %10 : vector<2x1x256xf32> to vector<2x256xf32>
    %cst_9 = arith.constant dense<0.000000e+00> : vector<2x256xf32>
    %12 = tpu.matmul %8, %7, %cst_9 {dimension_numbers = #tpu.dot_dimension_numbers<[1], [0], [0], [1], [0, 0, 1, 1], [], []>, precision = #tpu.contract_precision<fp32>} : vector<2x64xf32>, vector<64x256xf32>, vector<2x256xf32> -> vector<2x256xf32>
    %13 = arith.addf %11, %12 : vector<2x256xf32>
    %14 = vector.extract_strided_slice %13 {offsets = [0, 0], sizes = [2, 192], strides = [1, 1]} : vector<2x256xf32> to vector<2x192xf32>
    %15 = arith.negf %14 : vector<2x192xf32>
    %16 = math.exp %15 : vector<2x192xf32>
    %cst_10 = arith.constant 1.000000e+00 : f32
    %17 = vector.broadcast %cst_10 : f32 to vector<2x192xf32>
    %18 = arith.addf %17, %16 : vector<2x192xf32>
    %19 = arith.divf %17, %18 : vector<2x192xf32>
    %20 = vector.extract_strided_slice %13 {offsets = [0, 192], sizes = [2, 64], strides = [1, 1]} : vector<2x256xf32> to vector<2x64xf32>
    %21 = math.tanh %20 : vector<2x64xf32>
    %22 = vector.extract_strided_slice %19 {offsets = [0, 0], sizes = [2, 64], strides = [1, 1]} : vector<2x192xf32> to vector<2x64xf32>
    %23 = vector.extract_strided_slice %19 {offsets = [0, 64], sizes = [2, 64], strides = [1, 1]} : vector<2x192xf32> to vector<2x64xf32>
    %24 = vector.extract_strided_slice %19 {offsets = [0, 128], sizes = [2, 64], strides = [1, 1]} : vector<2x192xf32> to vector<2x64xf32>
    %25 = arith.mulf %23, %9 : vector<2x64xf32>
    %26 = arith.mulf %22, %21 : vector<2x64xf32>
    %27 = arith.addf %25, %26 : vector<2x64xf32>
    %28 = math.tanh %27 : vector<2x64xf32>
    %29 = arith.mulf %24, %28 : vector<2x64xf32>
    %30 = vector.extract_strided_slice %29 {offsets = [0, 0], sizes = [2, 32], strides = [1, 1]} : vector<2x64xf32> to vector<2x32xf32>
    %31 = vector.extract_strided_slice %29 {offsets = [0, 32], sizes = [2, 32], strides = [1, 1]} : vector<2x64xf32> to vector<2x32xf32>
    %32 = vector.extract_strided_slice %6 {offsets = [0, 1, 0], sizes = [2, 1, 256], strides = [1, 1, 1]} : vector<2x8x256xf32> to vector<2x1x256xf32>
    %33 = vector.shape_cast %32 : vector<2x1x256xf32> to vector<2x256xf32>
    %cst_11 = arith.constant dense<0.000000e+00> : vector<2x256xf32>
    %34 = tpu.matmul %29, %7, %cst_11 {dimension_numbers = #tpu.dot_dimension_numbers<[1], [0], [0], [1], [0, 0, 1, 1], [], []>, precision = #tpu.contract_precision<fp32>} : vector<2x64xf32>, vector<64x256xf32>, vector<2x256xf32> -> vector<2x256xf32>
    %35 = arith.addf %33, %34 : vector<2x256xf32>
    %36 = vector.extract_strided_slice %35 {offsets = [0, 0], sizes = [2, 192], strides = [1, 1]} : vector<2x256xf32> to vector<2x192xf32>
    %37 = arith.negf %36 : vector<2x192xf32>
    %38 = math.exp %37 : vector<2x192xf32>
    %cst_12 = arith.constant 1.000000e+00 : f32
    %39 = vector.broadcast %cst_12 : f32 to vector<2x192xf32>
    %40 = arith.addf %39, %38 : vector<2x192xf32>
    %41 = arith.divf %39, %40 : vector<2x192xf32>
    %42 = vector.extract_strided_slice %35 {offsets = [0, 192], sizes = [2, 64], strides = [1, 1]} : vector<2x256xf32> to vector<2x64xf32>
    %43 = math.tanh %42 : vector<2x64xf32>
    %44 = vector.extract_strided_slice %41 {offsets = [0, 0], sizes = [2, 64], strides = [1, 1]} : vector<2x192xf32> to vector<2x64xf32>
    %45 = vector.extract_strided_slice %41 {offsets = [0, 64], sizes = [2, 64], strides = [1, 1]} : vector<2x192xf32> to vector<2x64xf32>
    %46 = vector.extract_strided_slice %41 {offsets = [0, 128], sizes = [2, 64], strides = [1, 1]} : vector<2x192xf32> to vector<2x64xf32>
    %47 = arith.mulf %45, %27 : vector<2x64xf32>
    %48 = arith.mulf %44, %43 : vector<2x64xf32>
    %49 = arith.addf %47, %48 : vector<2x64xf32>
    %50 = math.tanh %49 : vector<2x64xf32>
    %51 = arith.mulf %46, %50 : vector<2x64xf32>
    %52 = vector.extract_strided_slice %51 {offsets = [0, 0], sizes = [2, 32], strides = [1, 1]} : vector<2x64xf32> to vector<2x32xf32>
    %53 = vector.extract_strided_slice %51 {offsets = [0, 32], sizes = [2, 32], strides = [1, 1]} : vector<2x64xf32> to vector<2x32xf32>
    %54 = vector.extract_strided_slice %6 {offsets = [0, 2, 0], sizes = [2, 1, 256], strides = [1, 1, 1]} : vector<2x8x256xf32> to vector<2x1x256xf32>
    %55 = vector.shape_cast %54 : vector<2x1x256xf32> to vector<2x256xf32>
    %cst_13 = arith.constant dense<0.000000e+00> : vector<2x256xf32>
    %56 = tpu.matmul %51, %7, %cst_13 {dimension_numbers = #tpu.dot_dimension_numbers<[1], [0], [0], [1], [0, 0, 1, 1], [], []>, precision = #tpu.contract_precision<fp32>} : vector<2x64xf32>, vector<64x256xf32>, vector<2x256xf32> -> vector<2x256xf32>
    %57 = arith.addf %55, %56 : vector<2x256xf32>
    %58 = vector.extract_strided_slice %57 {offsets = [0, 0], sizes = [2, 192], strides = [1, 1]} : vector<2x256xf32> to vector<2x192xf32>
    %59 = arith.negf %58 : vector<2x192xf32>
    %60 = math.exp %59 : vector<2x192xf32>
    %cst_14 = arith.constant 1.000000e+00 : f32
    %61 = vector.broadcast %cst_14 : f32 to vector<2x192xf32>
    %62 = arith.addf %61, %60 : vector<2x192xf32>
    %63 = arith.divf %61, %62 : vector<2x192xf32>
    %64 = vector.extract_strided_slice %57 {offsets = [0, 192], sizes = [2, 64], strides = [1, 1]} : vector<2x256xf32> to vector<2x64xf32>
    %65 = math.tanh %64 : vector<2x64xf32>
    %66 = vector.extract_strided_slice %63 {offsets = [0, 0], sizes = [2, 64], strides = [1, 1]} : vector<2x192xf32> to vector<2x64xf32>
    %67 = vector.extract_strided_slice %63 {offsets = [0, 64], sizes = [2, 64], strides = [1, 1]} : vector<2x192xf32> to vector<2x64xf32>
    %68 = vector.extract_strided_slice %63 {offsets = [0, 128], sizes = [2, 64], strides = [1, 1]} : vector<2x192xf32> to vector<2x64xf32>
    %69 = arith.mulf %67, %49 : vector<2x64xf32>
    %70 = arith.mulf %66, %65 : vector<2x64xf32>
    %71 = arith.addf %69, %70 : vector<2x64xf32>
    %72 = math.tanh %71 : vector<2x64xf32>
    %73 = arith.mulf %68, %72 : vector<2x64xf32>
    %74 = vector.extract_strided_slice %73 {offsets = [0, 0], sizes = [2, 32], strides = [1, 1]} : vector<2x64xf32> to vector<2x32xf32>
    %75 = vector.extract_strided_slice %73 {offsets = [0, 32], sizes = [2, 32], strides = [1, 1]} : vector<2x64xf32> to vector<2x32xf32>
    %76 = vector.extract_strided_slice %6 {offsets = [0, 3, 0], sizes = [2, 1, 256], strides = [1, 1, 1]} : vector<2x8x256xf32> to vector<2x1x256xf32>
    %77 = vector.shape_cast %76 : vector<2x1x256xf32> to vector<2x256xf32>
    %cst_15 = arith.constant dense<0.000000e+00> : vector<2x256xf32>
    %78 = tpu.matmul %73, %7, %cst_15 {dimension_numbers = #tpu.dot_dimension_numbers<[1], [0], [0], [1], [0, 0, 1, 1], [], []>, precision = #tpu.contract_precision<fp32>} : vector<2x64xf32>, vector<64x256xf32>, vector<2x256xf32> -> vector<2x256xf32>
    %79 = arith.addf %77, %78 : vector<2x256xf32>
    %80 = vector.extract_strided_slice %79 {offsets = [0, 0], sizes = [2, 192], strides = [1, 1]} : vector<2x256xf32> to vector<2x192xf32>
    %81 = arith.negf %80 : vector<2x192xf32>
    %82 = math.exp %81 : vector<2x192xf32>
    %cst_16 = arith.constant 1.000000e+00 : f32
    %83 = vector.broadcast %cst_16 : f32 to vector<2x192xf32>
    %84 = arith.addf %83, %82 : vector<2x192xf32>
    %85 = arith.divf %83, %84 : vector<2x192xf32>
    %86 = vector.extract_strided_slice %79 {offsets = [0, 192], sizes = [2, 64], strides = [1, 1]} : vector<2x256xf32> to vector<2x64xf32>
    %87 = math.tanh %86 : vector<2x64xf32>
    %88 = vector.extract_strided_slice %85 {offsets = [0, 0], sizes = [2, 64], strides = [1, 1]} : vector<2x192xf32> to vector<2x64xf32>
    %89 = vector.extract_strided_slice %85 {offsets = [0, 64], sizes = [2, 64], strides = [1, 1]} : vector<2x192xf32> to vector<2x64xf32>
    %90 = vector.extract_strided_slice %85 {offsets = [0, 128], sizes = [2, 64], strides = [1, 1]} : vector<2x192xf32> to vector<2x64xf32>
    %91 = arith.mulf %89, %71 : vector<2x64xf32>
    %92 = arith.mulf %88, %87 : vector<2x64xf32>
    %93 = arith.addf %91, %92 : vector<2x64xf32>
    %94 = math.tanh %93 : vector<2x64xf32>
    %95 = arith.mulf %90, %94 : vector<2x64xf32>
    %96 = vector.extract_strided_slice %95 {offsets = [0, 0], sizes = [2, 32], strides = [1, 1]} : vector<2x64xf32> to vector<2x32xf32>
    %97 = vector.extract_strided_slice %95 {offsets = [0, 32], sizes = [2, 32], strides = [1, 1]} : vector<2x64xf32> to vector<2x32xf32>
    %98 = vector.extract_strided_slice %6 {offsets = [0, 4, 0], sizes = [2, 1, 256], strides = [1, 1, 1]} : vector<2x8x256xf32> to vector<2x1x256xf32>
    %99 = vector.shape_cast %98 : vector<2x1x256xf32> to vector<2x256xf32>
    %cst_17 = arith.constant dense<0.000000e+00> : vector<2x256xf32>
    %100 = tpu.matmul %95, %7, %cst_17 {dimension_numbers = #tpu.dot_dimension_numbers<[1], [0], [0], [1], [0, 0, 1, 1], [], []>, precision = #tpu.contract_precision<fp32>} : vector<2x64xf32>, vector<64x256xf32>, vector<2x256xf32> -> vector<2x256xf32>
    %101 = arith.addf %99, %100 : vector<2x256xf32>
    %102 = vector.extract_strided_slice %101 {offsets = [0, 0], sizes = [2, 192], strides = [1, 1]} : vector<2x256xf32> to vector<2x192xf32>
    %103 = arith.negf %102 : vector<2x192xf32>
    %104 = math.exp %103 : vector<2x192xf32>
    %cst_18 = arith.constant 1.000000e+00 : f32
    %105 = vector.broadcast %cst_18 : f32 to vector<2x192xf32>
    %106 = arith.addf %105, %104 : vector<2x192xf32>
    %107 = arith.divf %105, %106 : vector<2x192xf32>
    %108 = vector.extract_strided_slice %101 {offsets = [0, 192], sizes = [2, 64], strides = [1, 1]} : vector<2x256xf32> to vector<2x64xf32>
    %109 = math.tanh %108 : vector<2x64xf32>
    %110 = vector.extract_strided_slice %107 {offsets = [0, 0], sizes = [2, 64], strides = [1, 1]} : vector<2x192xf32> to vector<2x64xf32>
    %111 = vector.extract_strided_slice %107 {offsets = [0, 64], sizes = [2, 64], strides = [1, 1]} : vector<2x192xf32> to vector<2x64xf32>
    %112 = vector.extract_strided_slice %107 {offsets = [0, 128], sizes = [2, 64], strides = [1, 1]} : vector<2x192xf32> to vector<2x64xf32>
    %113 = arith.mulf %111, %93 : vector<2x64xf32>
    %114 = arith.mulf %110, %109 : vector<2x64xf32>
    %115 = arith.addf %113, %114 : vector<2x64xf32>
    %116 = math.tanh %115 : vector<2x64xf32>
    %117 = arith.mulf %112, %116 : vector<2x64xf32>
    %118 = vector.extract_strided_slice %117 {offsets = [0, 0], sizes = [2, 32], strides = [1, 1]} : vector<2x64xf32> to vector<2x32xf32>
    %119 = vector.extract_strided_slice %117 {offsets = [0, 32], sizes = [2, 32], strides = [1, 1]} : vector<2x64xf32> to vector<2x32xf32>
    %120 = vector.extract_strided_slice %6 {offsets = [0, 5, 0], sizes = [2, 1, 256], strides = [1, 1, 1]} : vector<2x8x256xf32> to vector<2x1x256xf32>
    %121 = vector.shape_cast %120 : vector<2x1x256xf32> to vector<2x256xf32>
    %cst_19 = arith.constant dense<0.000000e+00> : vector<2x256xf32>
    %122 = tpu.matmul %117, %7, %cst_19 {dimension_numbers = #tpu.dot_dimension_numbers<[1], [0], [0], [1], [0, 0, 1, 1], [], []>, precision = #tpu.contract_precision<fp32>} : vector<2x64xf32>, vector<64x256xf32>, vector<2x256xf32> -> vector<2x256xf32>
    %123 = arith.addf %121, %122 : vector<2x256xf32>
    %124 = vector.extract_strided_slice %123 {offsets = [0, 0], sizes = [2, 192], strides = [1, 1]} : vector<2x256xf32> to vector<2x192xf32>
    %125 = arith.negf %124 : vector<2x192xf32>
    %126 = math.exp %125 : vector<2x192xf32>
    %cst_20 = arith.constant 1.000000e+00 : f32
    %127 = vector.broadcast %cst_20 : f32 to vector<2x192xf32>
    %128 = arith.addf %127, %126 : vector<2x192xf32>
    %129 = arith.divf %127, %128 : vector<2x192xf32>
    %130 = vector.extract_strided_slice %123 {offsets = [0, 192], sizes = [2, 64], strides = [1, 1]} : vector<2x256xf32> to vector<2x64xf32>
    %131 = math.tanh %130 : vector<2x64xf32>
    %132 = vector.extract_strided_slice %129 {offsets = [0, 0], sizes = [2, 64], strides = [1, 1]} : vector<2x192xf32> to vector<2x64xf32>
    %133 = vector.extract_strided_slice %129 {offsets = [0, 64], sizes = [2, 64], strides = [1, 1]} : vector<2x192xf32> to vector<2x64xf32>
    %134 = vector.extract_strided_slice %129 {offsets = [0, 128], sizes = [2, 64], strides = [1, 1]} : vector<2x192xf32> to vector<2x64xf32>
    %135 = arith.mulf %133, %115 : vector<2x64xf32>
    %136 = arith.mulf %132, %131 : vector<2x64xf32>
    %137 = arith.addf %135, %136 : vector<2x64xf32>
    %138 = math.tanh %137 : vector<2x64xf32>
    %139 = arith.mulf %134, %138 : vector<2x64xf32>
    %140 = vector.extract_strided_slice %139 {offsets = [0, 0], sizes = [2, 32], strides = [1, 1]} : vector<2x64xf32> to vector<2x32xf32>
    %141 = vector.extract_strided_slice %139 {offsets = [0, 32], sizes = [2, 32], strides = [1, 1]} : vector<2x64xf32> to vector<2x32xf32>
    %142 = vector.extract_strided_slice %6 {offsets = [0, 6, 0], sizes = [2, 1, 256], strides = [1, 1, 1]} : vector<2x8x256xf32> to vector<2x1x256xf32>
    %143 = vector.shape_cast %142 : vector<2x1x256xf32> to vector<2x256xf32>
    %cst_21 = arith.constant dense<0.000000e+00> : vector<2x256xf32>
    %144 = tpu.matmul %139, %7, %cst_21 {dimension_numbers = #tpu.dot_dimension_numbers<[1], [0], [0], [1], [0, 0, 1, 1], [], []>, precision = #tpu.contract_precision<fp32>} : vector<2x64xf32>, vector<64x256xf32>, vector<2x256xf32> -> vector<2x256xf32>
    %145 = arith.addf %143, %144 : vector<2x256xf32>
    %146 = vector.extract_strided_slice %145 {offsets = [0, 0], sizes = [2, 192], strides = [1, 1]} : vector<2x256xf32> to vector<2x192xf32>
    %147 = arith.negf %146 : vector<2x192xf32>
    %148 = math.exp %147 : vector<2x192xf32>
    %cst_22 = arith.constant 1.000000e+00 : f32
    %149 = vector.broadcast %cst_22 : f32 to vector<2x192xf32>
    %150 = arith.addf %149, %148 : vector<2x192xf32>
    %151 = arith.divf %149, %150 : vector<2x192xf32>
    %152 = vector.extract_strided_slice %145 {offsets = [0, 192], sizes = [2, 64], strides = [1, 1]} : vector<2x256xf32> to vector<2x64xf32>
    %153 = math.tanh %152 : vector<2x64xf32>
    %154 = vector.extract_strided_slice %151 {offsets = [0, 0], sizes = [2, 64], strides = [1, 1]} : vector<2x192xf32> to vector<2x64xf32>
    %155 = vector.extract_strided_slice %151 {offsets = [0, 64], sizes = [2, 64], strides = [1, 1]} : vector<2x192xf32> to vector<2x64xf32>
    %156 = vector.extract_strided_slice %151 {offsets = [0, 128], sizes = [2, 64], strides = [1, 1]} : vector<2x192xf32> to vector<2x64xf32>
    %157 = arith.mulf %155, %137 : vector<2x64xf32>
    %158 = arith.mulf %154, %153 : vector<2x64xf32>
    %159 = arith.addf %157, %158 : vector<2x64xf32>
    %160 = math.tanh %159 : vector<2x64xf32>
    %161 = arith.mulf %156, %160 : vector<2x64xf32>
    %162 = vector.extract_strided_slice %161 {offsets = [0, 0], sizes = [2, 32], strides = [1, 1]} : vector<2x64xf32> to vector<2x32xf32>
    %163 = vector.extract_strided_slice %161 {offsets = [0, 32], sizes = [2, 32], strides = [1, 1]} : vector<2x64xf32> to vector<2x32xf32>
    %164 = vector.extract_strided_slice %6 {offsets = [0, 7, 0], sizes = [2, 1, 256], strides = [1, 1, 1]} : vector<2x8x256xf32> to vector<2x1x256xf32>
    %165 = vector.shape_cast %164 : vector<2x1x256xf32> to vector<2x256xf32>
    %cst_23 = arith.constant dense<0.000000e+00> : vector<2x256xf32>
    %166 = tpu.matmul %161, %7, %cst_23 {dimension_numbers = #tpu.dot_dimension_numbers<[1], [0], [0], [1], [0, 0, 1, 1], [], []>, precision = #tpu.contract_precision<fp32>} : vector<2x64xf32>, vector<64x256xf32>, vector<2x256xf32> -> vector<2x256xf32>
    %167 = arith.addf %165, %166 : vector<2x256xf32>
    %168 = vector.extract_strided_slice %167 {offsets = [0, 0], sizes = [2, 192], strides = [1, 1]} : vector<2x256xf32> to vector<2x192xf32>
    %169 = arith.negf %168 : vector<2x192xf32>
    %170 = math.exp %169 : vector<2x192xf32>
    %cst_24 = arith.constant 1.000000e+00 : f32
    %171 = vector.broadcast %cst_24 : f32 to vector<2x192xf32>
    %172 = arith.addf %171, %170 : vector<2x192xf32>
    %173 = arith.divf %171, %172 : vector<2x192xf32>
    %174 = vector.extract_strided_slice %167 {offsets = [0, 192], sizes = [2, 64], strides = [1, 1]} : vector<2x256xf32> to vector<2x64xf32>
    %175 = math.tanh %174 : vector<2x64xf32>
    %176 = vector.extract_strided_slice %173 {offsets = [0, 0], sizes = [2, 64], strides = [1, 1]} : vector<2x192xf32> to vector<2x64xf32>
    %177 = vector.extract_strided_slice %173 {offsets = [0, 64], sizes = [2, 64], strides = [1, 1]} : vector<2x192xf32> to vector<2x64xf32>
    %178 = vector.extract_strided_slice %173 {offsets = [0, 128], sizes = [2, 64], strides = [1, 1]} : vector<2x192xf32> to vector<2x64xf32>
    %179 = arith.mulf %177, %159 : vector<2x64xf32>
    %180 = arith.mulf %176, %175 : vector<2x64xf32>
    %181 = arith.addf %179, %180 : vector<2x64xf32>
    %182 = math.tanh %181 : vector<2x64xf32>
    %183 = arith.mulf %178, %182 : vector<2x64xf32>
    %184 = vector.extract_strided_slice %183 {offsets = [0, 0], sizes = [2, 32], strides = [1, 1]} : vector<2x64xf32> to vector<2x32xf32>
    %185 = vector.extract_strided_slice %183 {offsets = [0, 32], sizes = [2, 32], strides = [1, 1]} : vector<2x64xf32> to vector<2x32xf32>
    %186 = vector.shape_cast %30 : vector<2x32xf32> to vector<2x1x32xf32>
    %187 = vector.shape_cast %52 : vector<2x32xf32> to vector<2x1x32xf32>
    %188 = vector.shape_cast %74 : vector<2x32xf32> to vector<2x1x32xf32>
    %189 = vector.shape_cast %96 : vector<2x32xf32> to vector<2x1x32xf32>
    %190 = vector.shape_cast %118 : vector<2x32xf32> to vector<2x1x32xf32>
    %191 = vector.shape_cast %140 : vector<2x32xf32> to vector<2x1x32xf32>
    %192 = vector.shape_cast %162 : vector<2x32xf32> to vector<2x1x32xf32>
    %193 = vector.shape_cast %184 : vector<2x32xf32> to vector<2x1x32xf32>
    %194 = tpu.concatenate %186, %187, %188, %189, %190, %191, %192, %193 in 1 : vector<2x1x32xf32>, vector<2x1x32xf32>, vector<2x1x32xf32>, vector<2x1x32xf32>, vector<2x1x32xf32>, vector<2x1x32xf32>, vector<2x1x32xf32>, vector<2x1x32xf32> -> vector<2x8x32xf32>
    %195 = vector.shape_cast %194 : vector<2x8x32xf32> to vector<16x32xf32>
    %196 = vector.shape_cast %185 : vector<2x32xf32> to vector<2x1x32xf32>
    %197 = vector.shape_cast %163 : vector<2x32xf32> to vector<2x1x32xf32>
    %198 = vector.shape_cast %141 : vector<2x32xf32> to vector<2x1x32xf32>
    %199 = vector.shape_cast %119 : vector<2x32xf32> to vector<2x1x32xf32>
    %200 = vector.shape_cast %97 : vector<2x32xf32> to vector<2x1x32xf32>
    %201 = vector.shape_cast %75 : vector<2x32xf32> to vector<2x1x32xf32>
    %202 = vector.shape_cast %53 : vector<2x32xf32> to vector<2x1x32xf32>
    %203 = vector.shape_cast %31 : vector<2x32xf32> to vector<2x1x32xf32>
    %204 = tpu.concatenate %196, %197, %198, %199, %200, %201, %202, %203 in 1 : vector<2x1x32xf32>, vector<2x1x32xf32>, vector<2x1x32xf32>, vector<2x1x32xf32>, vector<2x1x32xf32>, vector<2x1x32xf32>, vector<2x1x32xf32>, vector<2x1x32xf32> -> vector<2x8x32xf32>
    %205 = vector.shape_cast %204 : vector<2x8x32xf32> to vector<16x32xf32>
    %c0_25 = arith.constant 0 : index
    %c0_26 = arith.constant 0 : index
    %206 = vector.load %arg4[%c0_25, %c0_26] : memref<64x16xf32, #tpu.memory_space<vmem>>, vector<64x16xf32>
    %207 = vector.extract_strided_slice %206 {offsets = [0, 0], sizes = [32, 16], strides = [1, 1]} : vector<64x16xf32> to vector<32x16xf32>
    %cst_27 = arith.constant dense<0.000000e+00> : vector<16x16xf32>
    %208 = tpu.matmul %195, %207, %cst_27 {dimension_numbers = #tpu.dot_dimension_numbers<[1], [0], [0], [1], [0, 0, 1, 1], [], []>, precision = #tpu.contract_precision<fp32>} : vector<16x32xf32>, vector<32x16xf32>, vector<16x16xf32> -> vector<16x16xf32>
    %209 = vector.extract_strided_slice %206 {offsets = [32, 0], sizes = [32, 16], strides = [1, 1]} : vector<64x16xf32> to vector<32x16xf32>
    %cst_28 = arith.constant dense<0.000000e+00> : vector<16x16xf32>
    %210 = tpu.matmul %205, %209, %cst_28 {dimension_numbers = #tpu.dot_dimension_numbers<[1], [0], [0], [1], [0, 0, 1, 1], [], []>, precision = #tpu.contract_precision<fp32>} : vector<16x32xf32>, vector<32x16xf32>, vector<16x16xf32> -> vector<16x16xf32>
    %211 = arith.addf %208, %210 : vector<16x16xf32>
    %c0_29 = arith.constant 0 : index
    %c0_30 = arith.constant 0 : index
    %212 = vector.load %arg5[%c0_29, %c0_30] : memref<1x16xf32, #tpu.memory_space<vmem>>, vector<1x16xf32>
    %213 = vector.broadcast %212 : vector<1x16xf32> to vector<16x16xf32>
    %214 = arith.addf %211, %213 : vector<16x16xf32>
    %c0_31 = arith.constant 0 : index
    %c0_32 = arith.constant 0 : index
    %215 = vector.load %arg6[%c0_31, %c0_32] : memref<16x16xf32, #tpu.memory_space<vmem>>, vector<16x16xf32>
    tpu.vector_store %arg6[%c0_31, %c0_32], %214 {strides = array<i32>} : memref<16x16xf32, #tpu.memory_space<vmem>>, vector<16x16xf32>,
    return
  }
}

</mosaic_0001>

<llo_original>
// kernel: tpu_custom_call.1
$region0: #{tpu_custom_call.1}
  #allocation0 [shape = 'u32[]', space=smem, size = 0x4, offset = 0x4, fixed_abs, tag = 'smem constant byte address 0x4 - core index']
  #allocation1 [shape = 'u32[144,128]{1,0:T(1,128)}', space=vmem, size = 0x12000, scoped, tag = 'internal scratch']
  %s0 = inlined_call_operand.vmem [shape: f32[16,32], index: 0, kind: input, shape index: {}]
  %s1 = inlined_call_operand.vmem [shape: f32[32,256], index: 1, kind: input, shape index: {}]
  %s2 = inlined_call_operand.hbm [shape: f32[64,256], index: 2, kind: input, shape index: {}]
  %s3 = inlined_call_operand.vmem [shape: f32[1,256], index: 3, kind: input, shape index: {}]
  %s4 = inlined_call_operand.vmem [shape: f32[64,16], index: 4, kind: input, shape index: {}]
  %s5 = inlined_call_operand.vmem [shape: f32[1,16], index: 5, kind: input, shape index: {}]
  %s6 = inlined_call_operand.hbm [shape: f32[16,16], index: 6, kind: output, shape index: {}]
  %s7 = sld [smem:[#allocation0]]
  $region38: #{tpu_custom_call.1} parent=0
    _
  %s9 = ssub.s32 1, %s7
  %s10 = scalar_select 0, %s9, %s7
  $region1: #{tpu_custom_call.1} parent=0
    #allocation2 [shape = 'u8[65536]{0}', space=vmem, size = 0x10000, scoped, tag = 'input window, operand 2, single buffered']
    #allocation3 [shape = 's32[1]{0}', space=sflag, size = 0x4, scoped, tag = 'scoped memory for tpu_custom_call.1']
    #allocation4 [shape = 's32[1]{0}', space=sflag, size = 0x4, scoped, tag = 'scoped memory for tpu_custom_call.1']
    #allocation5 [shape = 'u8[8192]{0}', space=vmem, size = 0x2000, scoped, tag = 'output window, operand 0, single buffered']
    %11 = vsyncpa [#allocation3], 0
    %12 = vsyncpa [#allocation4], 0
    // Predicated region
    $region2: #{tpu_custom_call.1} parent=1 // pred_check
      _
    $region3: #{tpu_custom_call.1} parent=1 // pred_check_branch
      %14 = sbr.rel (0) target = $region5
    $region4: #{tpu_custom_call.1} parent=1 // pred_region
      _
    $region5: #{tpu_custom_call.1} parent=1 // pred_fallthru
      _
    // Predicated region
    $region6: #{tpu_custom_call.1} parent=1 // pred_check
      _
    $region7: #{tpu_custom_call.1} parent=1 // pred_check_branch
      %16 = sbr.rel (0) target = $region9
    $region8: #{tpu_custom_call.1} parent=1 // pred_region
      _
    $region9: #{tpu_custom_call.1} parent=1 // pred_fallthru
      _
    // Predicated region
    $region10: #{tpu_custom_call.1} parent=1 // pred_check
      _
    $region11: #{tpu_custom_call.1} parent=1 // pred_check_branch
      %18 = sbr.rel (0) target = $region13
    $region12: #{tpu_custom_call.1} parent=1 // pred_region
      %s20 = ssub.s32 2048, 2048
      %21 = vsyncadd [#allocation3], %s20
      %s22 = sshll.u32 [#allocation2], 4
      %s23 = int_to_ptr.vmem [resolvable:$true] %s22
      %28 = dma.hbm_to_vmem [thread:$0]  %s2, 2048, %s23, [#allocation3], 256, 256, 16
    $region13: #{tpu_custom_call.1} parent=1 // pred_fallthru
      _
    // Predicated region
    $region14: #{tpu_custom_call.1} parent=1 // pred_check
      _
    $region15: #{tpu_custom_call.1} parent=1 // pred_check_branch
      %30 = sbr.rel (0) target = $region17
    $region16: #{tpu_custom_call.1} parent=1 // pred_region
      _
    $region17: #{tpu_custom_call.1} parent=1 // pred_fallthru
      _
    // Predicated region
    $region18: #{tpu_custom_call.1} parent=1 // pred_check
      _
    $region19: #{tpu_custom_call.1} parent=1 // pred_check_branch
      %32 = sbr.rel (0) target = $region21
    $region20: #{tpu_custom_call.1} parent=1 // pred_region
      _
    $region21: #{tpu_custom_call.1} parent=1 // pred_fallthru
      _
    // Predicated region
    $region22: #{tpu_custom_call.1} parent=1 // pred_check
      _
    $region23: #{tpu_custom_call.1} parent=1 // pred_check_branch
      %34 = sbr.rel (0) target = $region25
    $region24: #{tpu_custom_call.1} parent=1 // pred_region
      _
    $region25: #{tpu_custom_call.1} parent=1 // pred_fallthru
      _
    // Predicated region
    $region26: #{tpu_custom_call.1} parent=1 // pred_check
      _
    $region27: #{tpu_custom_call.1} parent=1 // pred_check_branch
      %36 = sbr.rel (0) target = $region29
    $region28: #{tpu_custom_call.1} parent=1 // pred_region
      %37 = dma.done [#allocation3], 2048
    $region29: #{tpu_custom_call.1} parent=1 // pred_fallthru
      _
    %v38 = vld [vmem:[%s0] sm:$0xff]
    %v39 = vld [vmem:[%s0 + $0x8] sm:$0xff]
    %v40 = vld [vmem:[%s1] sm:$0xff]
    %v41 = vld [vmem:[%s1 + $0x8] sm:$0xff]
    %v42 = vld [vmem:[%s1 + $0x10] sm:$0xff]
    %v43 = vld [vmem:[%s1 + $0x18] sm:$0xff]
    %v44 = vld [vmem:[%s1 + $0x20] sm:$0xff]
    %v45 = vld [vmem:[%s1 + $0x28] sm:$0xff]
    %v46 = vld [vmem:[%s1 + $0x30] sm:$0xff]
    %v47 = vld [vmem:[%s1 + $0x38] sm:$0xff]
    %v48 = vld [vmem:[%s3] sm:$0x3]
    %v50 = vlaneseq
    %v51 = vshrl.u32 %v50, 7
    %v52 = vsub.s32 0, %v51
    %v53 = vrot.slane %v48, %v52
    %v54 = vlaneseq
    %v55 = vshrl.u32 %v54, 7
    %v56 = vsub.s32 1, %v55
    %v57 = vrot.slane %v48, %v56
    %vm60 = vcmask 261120
    %v62 = vsel %vm60, %v38, 0
    %v65 = vsel %vm60, %v39, 0
    %67 = vmatprep.subr.mxu0 0.0
    %68 = vmatpush1.msra.mxu0 0.0
    %69 = vmatprep.subr.mxu0 0.0
    %70 = vmatpush1.msra.mxu0 0.0
    %71 = vmatprep.subr.mxu0 0.0
    %72 = vmatpush1.msra.mxu0 0.0
    %73 = vmatprep.subr.mxu0 0.0
    %74 = vmatpush1.msra.mxu0 0.0
    %75 = vmatprep.subr.mxu0 0.0
    %76 = vmatpush1.msra.mxu0 0.0
    %77 = vmatprep.subr.mxu0 0.0
    %78 = vmatpush1.msra.mxu0 0.0
    %79 = vmatprep.subr.mxu0 0.0
    %80 = vmatpush1.msra.mxu0 0.0
    %81 = vmatprep.subr.mxu0 0.0
    %82 = vmatpush1.msra.mxu0 0.0
    %83 = vmatprep.subr.mxu0 0.0
    %84 = vmatpush1.msra.mxu0 0.0
    %85 = vmatprep.subr.mxu0 0.0
    %86 = vmatpush1.msra.mxu0 0.0
    %87 = vmatprep.subr.mxu0 0.0
    %88 = vmatpush1.msra.mxu0 0.0
    %89 = vmatprep.subr.mxu0 0.0
    %90 = vmatpush1.msra.mxu0 0.0
    %v91 = vand.u32 %v47, 4294901760
    %92 = vmatprep.subr.mxu0 %v91
    %v93 = vand.u32 %v46, 4294901760
    %94 = vmatpush1.msra.mxu0 %v93
    %v95 = vand.u32 %v45, 4294901760
    %96 = vmatprep.subr.mxu0 %v95
    %v97 = vand.u32 %v44, 4294901760
    %98 = vmatpush1.msra.mxu0 %v97
    %v99 = vand.u32 %v43, 4294901760
    %100 = vmatprep.subr.mxu0 %v99
    %v101 = vand.u32 %v42, 4294901760
    %102 = vmatpush1.msra.mxu0 %v101
    %v103 = vand.u32 %v41, 4294901760
    %104 = vmatprep.subr.mxu0 %v103
    %v105 = vand.u32 %v40, 4294901760
    %106 = vmatpush1.msra.mxu0 %v105
    %107 = vmatprep.subr.mxu0 0.0
    %108 = vmatpush2.msra.mxu0 0.0
    %109 = vmatprep.subr.mxu0 0.0
    %110 = vmatpush2.msra.mxu0 0.0
    %111 = vmatprep.subr.mxu0 0.0
    %112 = vmatpush2.msra.mxu0 0.0
    %113 = vmatprep.subr.mxu0 0.0
    %114 = vmatpush2.msra.mxu0 0.0
    %115 = vmatprep.subr.mxu0 0.0
    %116 = vmatpush2.msra.mxu0 0.0
    %117 = vmatprep.subr.mxu0 0.0
    %118 = vmatpush2.msra.mxu0 0.0
    %119 = vmatprep.subr.mxu0 0.0
    %120 = vmatpush2.msra.mxu0 0.0
    %121 = vmatprep.subr.mxu0 0.0
    %122 = vmatpush2.msra.mxu0 0.0
    %123 = vmatprep.subr.mxu0 0.0
    %124 = vmatpush2.msra.mxu0 0.0
    %125 = vmatprep.subr.mxu0 0.0
    %126 = vmatpush2.msra.mxu0 0.0
    %127 = vmatprep.subr.mxu0 0.0
    %128 = vmatpush2.msra.mxu0 0.0
    %129 = vmatprep.subr.mxu0 0.0
    %130 = vmatpush2.msra.mxu0 0.0
    %131 = vmatprep.subr.mxu0 0.0
    %132 = vmatpush2.msra.mxu0 0.0
    %133 = vmatprep.subr.mxu0 0.0
    %134 = vmatpush2.msra.mxu0 0.0
    %135 = vmatprep.subr.mxu0 0.0
    %136 = vmatpush2.msra.mxu0 0.0
    %137 = vmatprep.subr.mxu0 0.0
    %138 = vmatpush2.msra.mxu0 0.0
    %139 = vmatprep.mubr.f32.mxu0 0.0
    %v140 = vand.u32 %v62, 4294901760
    %v141 = vsub.f32 %v62, %v140
    %v142 = vand.u32 %v141, 4294901760
    %v143 = vsub.f32 %v141, %v142
    %v144 = vand.u32 %v143, 4294901760
    %145 = vmatmul.mubr.f32.gmra.mxu0 %v144
    %v146 = vpop.f32.mrf.mxu0
    %v147 = vadd.f32 %v53, %v146
    %v148 = vpop.f32.mrf.mxu0
    %v149 = vadd.f32 %v57, %v148
    %150 = vmatprep.mubr.f32.mxu0 0.0
    %v151 = vand.u32 %v65, 4294901760
    %v152 = vsub.f32 %v65, %v151
    %v153 = vand.u32 %v152, 4294901760
    %v154 = vsub.f32 %v152, %v153
    %v155 = vand.u32 %v154, 4294901760
    %156 = vmatmul.mubr.f32.gmra.mxu0 %v155
    %v157 = vpop.f32.mrf.mxu0
    %v158 = vadd.f32 %v53, %v157
    %v159 = vpop.f32.mrf.mxu0
    %v160 = vadd.f32 %v57, %v159
    %161 = vdwg.mxu0
    %162 = vmatprep.subr.mxu0 0.0
    %163 = vmatpush1.msra.mxu0 0.0
    %164 = vmatprep.subr.mxu0 0.0
    %165 = vmatpush1.msra.mxu0 0.0
    %166 = vmatprep.subr.mxu0 0.0
    %167 = vmatpush1.msra.mxu0 0.0
    %168 = vmatprep.subr.mxu0 0.0
    %169 = vmatpush1.msra.mxu0 0.0
    %170 = vmatprep.subr.mxu0 0.0
    %171 = vmatpush1.msra.mxu0 0.0
    %172 = vmatprep.subr.mxu0 0.0
    %173 = vmatpush1.msra.mxu0 0.0
    %174 = vmatprep.subr.mxu0 0.0
    %175 = vmatpush1.msra.mxu0 0.0
    %176 = vmatprep.subr.mxu0 0.0
    %177 = vmatpush1.msra.mxu0 0.0
    %178 = vmatprep.subr.mxu0 0.0
    %179 = vmatpush1.msra.mxu0 0.0
    %180 = vmatprep.subr.mxu0 0.0
    %181 = vmatpush1.msra.mxu0 0.0
    %182 = vmatprep.subr.mxu0 0.0
    %183 = vmatpush1.msra.mxu0 0.0
    %184 = vmatprep.subr.mxu0 0.0
    %185 = vmatpush1.msra.mxu0 0.0
    %v186 = vand.u32 %v47, 4294901760
    %v187 = vsub.f32 %v47, %v186
    %v188 = vand.u32 %v187, 4294901760
    %v189 = vsub.f32 %v187, %v188
    %v190 = vand.u32 %v189, 4294901760
    %191 = vmatprep.subr.mxu0 %v190
    %v192 = vand.u32 %v46, 4294901760
    %v193 = vsub.f32 %v46, %v192
    %v194 = vand.u32 %v193, 4294901760
    %v195 = vsub.f32 %v193, %v194
    %v196 = vand.u32 %v195, 4294901760
    %197 = vmatpush1.msra.mxu0 %v196
    %v198 = vand.u32 %v45, 4294901760
    %v199 = vsub.f32 %v45, %v198
    %v200 = vand.u32 %v199, 4294901760
    %v201 = vsub.f32 %v199, %v200
    %v202 = vand.u32 %v201, 4294901760
    %203 = vmatprep.subr.mxu0 %v202
    %v204 = vand.u32 %v44, 4294901760
    %v205 = vsub.f32 %v44, %v204
    %v206 = vand.u32 %v205, 4294901760
    %v207 = vsub.f32 %v205, %v206
    %v208 = vand.u32 %v207, 4294901760
    %209 = vmatpush1.msra.mxu0 %v208
    %v210 = vand.u32 %v43, 4294901760
    %v211 = vsub.f32 %v43, %v210
    %v212 = vand.u32 %v211, 4294901760
    %v213 = vsub.f32 %v211, %v212
    %v214 = vand.u32 %v213, 4294901760
    %215 = vmatprep.subr.mxu0 %v214
    %v216 = vand.u32 %v42, 4294901760
    %v217 = vsub.f32 %v42, %v216
    %v218 = vand.u32 %v217, 4294901760
    %v219 = vsub.f32 %v217, %v218
    %v220 = vand.u32 %v219, 4294901760
    %221 = vmatpush1.msra.mxu0 %v220
    %v222 = vand.u32 %v41, 4294901760
    %v223 = vsub.f32 %v41, %v222
    %v224 = vand.u32 %v223, 4294901760
    %v225 = vsub.f32 %v223, %v224
    %v226 = vand.u32 %v225, 4294901760
    %227 = vmatprep.subr.mxu0 %v226
    %v228 = vand.u32 %v40, 4294901760
    %v229 = vsub.f32 %v40, %v228
    %v230 = vand.u32 %v229, 4294901760
    %v231 = vsub.f32 %v229, %v230
    %v232 = vand.u32 %v231, 4294901760
    %233 = vmatpush1.msra.mxu0 %v232
    %234 = vmatprep.subr.mxu0 0.0
    %235 = vmatpush2.msra.mxu0 0.0
    %236 = vmatprep.subr.mxu0 0.0
    %237 = vmatpush2.msra.mxu0 0.0
    %238 = vmatprep.subr.mxu0 0.0
    %239 = vmatpush2.msra.mxu0 0.0
    %240 = vmatprep.subr.mxu0 0.0
    %241 = vmatpush2.msra.mxu0 0.0
    %242 = vmatprep.subr.mxu0 0.0
    %243 = vmatpush2.msra.mxu0 0.0
    %244 = vmatprep.subr.mxu0 0.0
    %245 = vmatpush2.msra.mxu0 0.0
    %246 = vmatprep.subr.mxu0 0.0
    %247 = vmatpush2.msra.mxu0 0.0
    %248 = vmatprep.subr.mxu0 0.0
    %249 = vmatpush2.msra.mxu0 0.0
    %250 = vmatprep.subr.mxu0 0.0
    %251 = vmatpush2.msra.mxu0 0.0
    %252 = vmatprep.subr.mxu0 0.0
    %253 = vmatpush2.msra.mxu0 0.0
    %254 = vmatprep.subr.mxu0 0.0
    %255 = vmatpush2.msra.mxu0 0.0
    %256 = vmatprep.subr.mxu0 0.0
    %257 = vmatpush2.msra.mxu0 0.0
    %258 = vmatprep.subr.mxu0 0.0
    %259 = vmatpush2.msra.mxu0 0.0
    %260 = vmatprep.subr.mxu0 0.0
    %261 = vmatpush2.msra.mxu0 0.0
    %262 = vmatprep.subr.mxu0 0.0
    %263 = vmatpush2.msra.mxu0 0.0
    %264 = vmatprep.subr.mxu0 0.0
    %265 = vmatpush2.msra.mxu0 0.0
    %266 = vmatprep.mubr.f32.mxu0 0.0
    %v267 = vand.u32 %v62, 4294901760
    %268 = vmatmul.mubr.f32.gmra.mxu0 %v267
    %v269 = vpop.f32.mrf.mxu0
    %v270 = vadd.f32 %v147, %v269
    %v271 = vpop.f32.mrf.mxu0
    %v272 = vadd.f32 %v149, %v271
    %273 = vmatprep.mubr.f32.mxu0 0.0
    %v274 = vand.u32 %v65, 4294901760
    %275 = vmatmul.mubr.f32.gmra.mxu0 %v274
    %v276 = vpop.f32.mrf.mxu0
    %v277 = vadd.f32 %v158, %v276
    %v278 = vpop.f32.mrf.mxu0
    %v279 = vadd.f32 %v160, %v278
    %280 = vdwg.mxu0
    %281 = vmatprep.subr.mxu0 0.0
    %282 = vmatpush1.msra.mxu0 0.0
    %283 = vmatprep.subr.mxu0 0.0
    %284 = vmatpush1.msra.mxu0 0.0
    %285 = vmatprep.subr.mxu0 0.0
    %286 = vmatpush1.msra.mxu0 0.0
    %287 = vmatprep.subr.mxu0 0.0
    %288 = vmatpush1.msra.mxu0 0.0
    %289 = vmatprep.subr.mxu0 0.0
    %290 = vmatpush1.msra.mxu0 0.0
    %291 = vmatprep.subr.mxu0 0.0
    %292 = vmatpush1.msra.mxu0 0.0
    %293 = vmatprep.subr.mxu0 0.0
    %294 = vmatpush1.msra.mxu0 0.0
    %295 = vmatprep.subr.mxu0 0.0
    %296 = vmatpush1.msra.mxu0 0.0
    %297 = vmatprep.subr.mxu0 0.0
    %298 = vmatpush1.msra.mxu0 0.0
    %299 = vmatprep.subr.mxu0 0.0
    %300 = vmatpush1.msra.mxu0 0.0
    %301 = vmatprep.subr.mxu0 0.0
    %302 = vmatpush1.msra.mxu0 0.0
    %303 = vmatprep.subr.mxu0 0.0
    %304 = vmatpush1.msra.mxu0 0.0
    %v305 = vand.u32 %v47, 4294901760
    %v306 = vsub.f32 %v47, %v305
    %307 = vmatprep.subr.mxu0 %v306
    %v308 = vand.u32 %v46, 4294901760
    %v309 = vsub.f32 %v46, %v308
    %310 = vmatpush1.msra.mxu0 %v309
    %v311 = vand.u32 %v45, 4294901760
    %v312 = vsub.f32 %v45, %v311
    %313 = vmatprep.subr.mxu0 %v312
    %v314 = vand.u32 %v44, 4294901760
    %v315 = vsub.f32 %v44, %v314
    %316 = vmatpush1.msra.mxu0 %v315
    %v317 = vand.u32 %v43, 4294901760
    %v318 = vsub.f32 %v43, %v317
    %319 = vmatprep.subr.mxu0 %v318
    %v320 = vand.u32 %v42, 4294901760
    %v321 = vsub.f32 %v42, %v320
    %322 = vmatpush1.msra.mxu0 %v321
    %v323 = vand.u32 %v41, 4294901760
    %v324 = vsub.f32 %v41, %v323
    %325 = vmatprep.subr.mxu0 %v324
    %v326 = vand.u32 %v40, 4294901760
    %v327 = vsub.f32 %v40, %v326
    %328 = vmatpush1.msra.mxu0 %v327
    %329 = vmatprep.subr.mxu0 0.0
    %330 = vmatpush2.msra.mxu0 0.0
    %331 = vmatprep.subr.mxu0 0.0
    %332 = vmatpush2.msra.mxu0 0.0
    %333 = vmatprep.subr.mxu0 0.0
    %334 = vmatpush2.msra.mxu0 0.0
    %335 = vmatprep.subr.mxu0 0.0
    %336 = vmatpush2.msra.mxu0 0.0
    %337 = vmatprep.subr.mxu0 0.0
    %338 = vmatpush2.msra.mxu0 0.0
    %339 = vmatprep.subr.mxu0 0.0
    %340 = vmatpush2.msra.mxu0 0.0
    %341 = vmatprep.subr.mxu0 0.0
    %342 = vmatpush2.msra.mxu0 0.0
    %343 = vmatprep.subr.mxu0 0.0
    %344 = vmatpush2.msra.mxu0 0.0
    %345 = vmatprep.subr.mxu0 0.0
    %346 = vmatpush2.msra.mxu0 0.0
    %347 = vmatprep.subr.mxu0 0.0
    %348 = vmatpush2.msra.mxu0 0.0
    %349 = vmatprep.subr.mxu0 0.0
    %350 = vmatpush2.msra.mxu0 0.0
    %351 = vmatprep.subr.mxu0 0.0
    %352 = vmatpush2.msra.mxu0 0.0
    %353 = vmatprep.subr.mxu0 0.0
    %354 = vmatpush2.msra.mxu0 0.0
    %355 = vmatprep.subr.mxu0 0.0
    %356 = vmatpush2.msra.mxu0 0.0
    %357 = vmatprep.subr.mxu0 0.0
    %358 = vmatpush2.msra.mxu0 0.0
    %359 = vmatprep.subr.mxu0 0.0
    %360 = vmatpush2.msra.mxu0 0.0
    %361 = vmatprep.mubr.f32.mxu0 0.0
    %v362 = vand.u32 %v62, 4294901760
    %v363 = vsub.f32 %v62, %v362
    %364 = vmatmul.mubr.f32.gmra.mxu0 %v363
    %v365 = vpop.f32.mrf.mxu0
    %v366 = vadd.f32 %v270, %v365
    %v367 = vpop.f32.mrf.mxu0
    %v368 = vadd.f32 %v272, %v367
    %369 = vmatprep.mubr.f32.mxu0 0.0
    %v370 = vand.u32 %v65, 4294901760
    %v371 = vsub.f32 %v65, %v370
    %372 = vmatmul.mubr.f32.gmra.mxu0 %v371
    %v373 = vpop.f32.mrf.mxu0
    %v374 = vadd.f32 %v277, %v373
    %v375 = vpop.f32.mrf.mxu0
    %v376 = vadd.f32 %v279, %v375
    %377 = vdwg.mxu0
    %378 = vmatprep.subr.mxu0 0.0
    %379 = vmatpush1.msra.mxu0 0.0
    %380 = vmatprep.subr.mxu0 0.0
    %381 = vmatpush1.msra.mxu0 0.0
    %382 = vmatprep.subr.mxu0 0.0
    %383 = vmatpush1.msra.mxu0 0.0
    %384 = vmatprep.subr.mxu0 0.0
    %385 = vmatpush1.msra.mxu0 0.0
    %386 = vmatprep.subr.mxu0 0.0
    %387 = vmatpush1.msra.mxu0 0.0
    %388 = vmatprep.subr.mxu0 0.0
    %389 = vmatpush1.msra.mxu0 0.0
    %390 = vmatprep.subr.mxu0 0.0
    %391 = vmatpush1.msra.mxu0 0.0
    %392 = vmatprep.subr.mxu0 0.0
    %393 = vmatpush1.msra.mxu0 0.0
    %394 = vmatprep.subr.mxu0 0.0
    %395 = vmatpush1.msra.mxu0 0.0
    %396 = vmatprep.subr.mxu0 0.0
    %397 = vmatpush1.msra.mxu0 0.0
    %398 = vmatprep.subr.mxu0 0.0
    %399 = vmatpush1.msra.mxu0 0.0
    %400 = vmatprep.subr.mxu0 0.0
    %401 = vmatpush1.msra.mxu0 0.0
    %v402 = vand.u32 %v47, 4294901760
    %403 = vmatprep.subr.mxu0 %v402
    %v404 = vand.u32 %v46, 4294901760
    %405 = vmatpush1.msra.mxu0 %v404
    %v406 = vand.u32 %v45, 4294901760
    %407 = vmatprep.subr.mxu0 %v406
    %v408 = vand.u32 %v44, 4294901760
    %409 = vmatpush1.msra.mxu0 %v408
    %v410 = vand.u32 %v43, 4294901760
    %411 = vmatprep.subr.mxu0 %v410
    %v412 = vand.u32 %v42, 4294901760
    %413 = vmatpush1.msra.mxu0 %v412
    %v414 = vand.u32 %v41, 4294901760
    %415 = vmatprep.subr.mxu0 %v414
    %v416 = vand.u32 %v40, 4294901760
    %417 = vmatpush1.msra.mxu0 %v416
    %418 = vmatprep.subr.mxu0 0.0
    %419 = vmatpush2.msra.mxu0 0.0
    %420 = vmatprep.subr.mxu0 0.0
    %421 = vmatpush2.msra.mxu0 0.0
    %422 = vmatprep.subr.mxu0 0.0
    %423 = vmatpush2.msra.mxu0 0.0
    %424 = vmatprep.subr.mxu0 0.0
    %425 = vmatpush2.msra.mxu0 0.0
    %426 = vmatprep.subr.mxu0 0.0
    %427 = vmatpush2.msra.mxu0 0.0
    %428 = vmatprep.subr.mxu0 0.0
    %429 = vmatpush2.msra.mxu0 0.0
    %430 = vmatprep.subr.mxu0 0.0
    %431 = vmatpush2.msra.mxu0 0.0
    %432 = vmatprep.subr.mxu0 0.0
    %433 = vmatpush2.msra.mxu0 0.0
    %434 = vmatprep.subr.mxu0 0.0
    %435 = vmatpush2.msra.mxu0 0.0
    %436 = vmatprep.subr.mxu0 0.0
    %437 = vmatpush2.msra.mxu0 0.0
    %438 = vmatprep.subr.mxu0 0.0
    %439 = vmatpush2.msra.mxu0 0.0
    %440 = vmatprep.subr.mxu0 0.0
    %441 = vmatpush2.msra.mxu0 0.0
    %442 = vmatprep.subr.mxu0 0.0
    %443 = vmatpush2.msra.mxu0 0.0
    %444 = vmatprep.subr.mxu0 0.0
    %445 = vmatpush2.msra.mxu0 0.0
    %446 = vmatprep.subr.mxu0 0.0
    %447 = vmatpush2.msra.mxu0 0.0
    %448 = vmatprep.subr.mxu0 0.0
    %449 = vmatpush2.msra.mxu0 0.0
    %450 = vmatprep.mubr.f32.mxu0 0.0
    %v451 = vand.u32 %v62, 4294901760
    %v452 = vsub.f32 %v62, %v451
    %v453 = vand.u32 %v452, 4294901760
    %454 = vmatmul.mubr.f32.gmra.mxu0 %v453
    %v455 = vpop.f32.mrf.mxu0
    %v456 = vadd.f32 %v366, %v455
    %v457 = vpop.f32.mrf.mxu0
    %v458 = vadd.f32 %v368, %v457
    %459 = vmatprep.mubr.f32.mxu0 0.0
    %v460 = vand.u32 %v65, 4294901760
    %v461 = vsub.f32 %v65, %v460
    %v462 = vand.u32 %v461, 4294901760
    %463 = vmatmul.mubr.f32.gmra.mxu0 %v462
    %v464 = vpop.f32.mrf.mxu0
    %v465 = vadd.f32 %v374, %v464
    %v466 = vpop.f32.mrf.mxu0
    %v467 = vadd.f32 %v376, %v466
    %468 = vdwg.mxu0
    %469 = vmatprep.subr.mxu0 0.0
    %470 = vmatpush1.msra.mxu0 0.0
    %471 = vmatprep.subr.mxu0 0.0
    %472 = vmatpush1.msra.mxu0 0.0
    %473 = vmatprep.subr.mxu0 0.0
    %474 = vmatpush1.msra.mxu0 0.0
    %475 = vmatprep.subr.mxu0 0.0
    %476 = vmatpush1.msra.mxu0 0.0
    %477 = vmatprep.subr.mxu0 0.0
    %478 = vmatpush1.msra.mxu0 0.0
    %479 = vmatprep.subr.mxu0 0.0
    %480 = vmatpush1.msra.mxu0 0.0
    %481 = vmatprep.subr.mxu0 0.0
    %482 = vmatpush1.msra.mxu0 0.0
    %483 = vmatprep.subr.mxu0 0.0
    %484 = vmatpush1.msra.mxu0 0.0
    %485 = vmatprep.subr.mxu0 0.0
    %486 = vmatpush1.msra.mxu0 0.0
    %487 = vmatprep.subr.mxu0 0.0
    %488 = vmatpush1.msra.mxu0 0.0
    %489 = vmatprep.subr.mxu0 0.0
    %490 = vmatpush1.msra.mxu0 0.0
    %491 = vmatprep.subr.mxu0 0.0
    %492 = vmatpush1.msra.mxu0 0.0
    %v493 = vand.u32 %v47, 4294901760
    %v494 = vsub.f32 %v47, %v493
    %v495 = vand.u32 %v494, 4294901760
    %496 = vmatprep.subr.mxu0 %v495
    %v497 = vand.u32 %v46, 4294901760
    %v498 = vsub.f32 %v46, %v497
    %v499 = vand.u32 %v498, 4294901760
    %500 = vmatpush1.msra.mxu0 %v499
    %v501 = vand.u32 %v45, 4294901760
    %v502 = vsub.f32 %v45, %v501
    %v503 = vand.u32 %v502, 4294901760
    %504 = vmatprep.subr.mxu0 %v503
    %v505 = vand.u32 %v44, 4294901760
    %v506 = vsub.f32 %v44, %v505
    %v507 = vand.u32 %v506, 4294901760
    %508 = vmatpush1.msra.mxu0 %v507
    %v509 = vand.u32 %v43, 4294901760
    %v510 = vsub.f32 %v43, %v509
    %v511 = vand.u32 %v510, 4294901760
    %512 = vmatprep.subr.mxu0 %v511
    %v513 = vand.u32 %v42, 4294901760
    %v514 = vsub.f32 %v42, %v513
    %v515 = vand.u32 %v514, 4294901760
    %516 = vmatpush1.msra.mxu0 %v515
    %v517 = vand.u32 %v41, 4294901760
    %v518 = vsub.f32 %v41, %v517
    %v519 = vand.u32 %v518, 4294901760
    %520 = vmatprep.subr.mxu0 %v519
    %v521 = vand.u32 %v40, 4294901760
    %v522 = vsub.f32 %v40, %v521
    %v523 = vand.u32 %v522, 4294901760
    %524 = vmatpush1.msra.mxu0 %v523
    %525 = vmatprep.subr.mxu0 0.0
    %526 = vmatpush2.msra.mxu0 0.0
    %527 = vmatprep.subr.mxu0 0.0
    %528 = vmatpush2.msra.mxu0 0.0
    %529 = vmatprep.subr.mxu0 0.0
    %530 = vmatpush2.msra.mxu0 0.0
    %531 = vmatprep.subr.mxu0 0.0
    %532 = vmatpush2.msra.mxu0 0.0
    %533 = vmatprep.subr.mxu0 0.0
    %534 = vmatpush2.msra.mxu0 0.0
    %535 = vmatprep.subr.mxu0 0.0
    %536 = vmatpush2.msra.mxu0 0.0
    %537 = vmatprep.subr.mxu0 0.0
    %538 = vmatpush2.msra.mxu0 0.0
    %539 = vmatprep.subr.mxu0 0.0
    %540 = vmatpush2.msra.mxu0 0.0
    %541 = vmatprep.subr.mxu0 0.0
    %542 = vmatpush2.msra.mxu0 0.0
    %543 = vmatprep.subr.mxu0 0.0
    %544 = vmatpush2.msra.mxu0 0.0
    %545 = vmatprep.subr.mxu0 0.0
    %546 = vmatpush2.msra.mxu0 0.0
    %547 = vmatprep.subr.mxu0 0.0
    %548 = vmatpush2.msra.mxu0 0.0
    %549 = vmatprep.subr.mxu0 0.0
    %550 = vmatpush2.msra.mxu0 0.0
    %551 = vmatprep.subr.mxu0 0.0
    %552 = vmatpush2.msra.mxu0 0.0
    %553 = vmatprep.subr.mxu0 0.0
    %554 = vmatpush2.msra.mxu0 0.0
    %555 = vmatprep.subr.mxu0 0.0
    %556 = vmatpush2.msra.mxu0 0.0
    %557 = vmatprep.mubr.f32.mxu0 0.0
    %v558 = vand.u32 %v62, 4294901760
    %559 = vmatmul.mubr.f32.gmra.mxu0 %v558
    %v560 = vpop.f32.mrf.mxu0
    %v561 = vadd.f32 %v456, %v560
    %v562 = vpop.f32.mrf.mxu0
    %v563 = vadd.f32 %v458, %v562
    %564 = vmatprep.mubr.f32.mxu0 0.0
    %v565 = vand.u32 %v65, 4294901760
    %566 = vmatmul.mubr.f32.gmra.mxu0 %v565
    %v567 = vpop.f32.mrf.mxu0
    %v568 = vadd.f32 %v465, %v567
    %v569 = vpop.f32.mrf.mxu0
    %v570 = vadd.f32 %v467, %v569
    %571 = vdwg.mxu0
    %572 = vmatprep.subr.mxu0 0.0
    %573 = vmatpush1.msra.mxu0 0.0
    %574 = vmatprep.subr.mxu0 0.0
    %575 = vmatpush1.msra.mxu0 0.0
    %576 = vmatprep.subr.mxu0 0.0
    %577 = vmatpush1.msra.mxu0 0.0
    %578 = vmatprep.subr.mxu0 0.0
    %579 = vmatpush1.msra.mxu0 0.0
    %580 = vmatprep.subr.mxu0 0.0
    %581 = vmatpush1.msra.mxu0 0.0
    %582 = vmatprep.subr.mxu0 0.0
    %583 = vmatpush1.msra.mxu0 0.0
    %584 = vmatprep.subr.mxu0 0.0
    %585 = vmatpush1.msra.mxu0 0.0
    %586 = vmatprep.subr.mxu0 0.0
    %587 = vmatpush1.msra.mxu0 0.0
    %588 = vmatprep.subr.mxu0 0.0
    %589 = vmatpush1.msra.mxu0 0.0
    %590 = vmatprep.subr.mxu0 0.0
    %591 = vmatpush1.msra.mxu0 0.0
    %592 = vmatprep.subr.mxu0 0.0
    %593 = vmatpush1.msra.mxu0 0.0
    %594 = vmatprep.subr.mxu0 0.0
    %595 = vmatpush1.msra.mxu0 0.0
    %v596 = vand.u32 %v47, 4294901760
    %597 = vmatprep.subr.mxu0 %v596
    %v598 = vand.u32 %v46, 4294901760
    %599 = vmatpush1.msra.mxu0 %v598
    %v600 = vand.u32 %v45, 4294901760
    %601 = vmatprep.subr.mxu0 %v600
    %v602 = vand.u32 %v44, 4294901760
    %603 = vmatpush1.msra.mxu0 %v602
    %v604 = vand.u32 %v43, 4294901760
    %605 = vmatprep.subr.mxu0 %v604
    %v606 = vand.u32 %v42, 4294901760
    %607 = vmatpush1.msra.mxu0 %v606
    %v608 = vand.u32 %v41, 4294901760
    %609 = vmatprep.subr.mxu0 %v608
    %v610 = vand.u32 %v40, 4294901760
    %611 = vmatpush1.msra.mxu0 %v610
    %612 = vmatprep.subr.mxu0 0.0
    %613 = vmatpush2.msra.mxu0 0.0
    %614 = vmatprep.subr.mxu0 0.0
    %615 = vmatpush2.msra.mxu0 0.0
    %616 = vmatprep.subr.mxu0 0.0
    %617 = vmatpush2.msra.mxu0 0.0
    %618 = vmatprep.subr.mxu0 0.0
    %619 = vmatpush2.msra.mxu0 0.0
    %620 = vmatprep.subr.mxu0 0.0
    %621 = vmatpush2.msra.mxu0 0.0
    %622 = vmatprep.subr.mxu0 0.0
    %623 = vmatpush2.msra.mxu0 0.0
    %624 = vmatprep.subr.mxu0 0.0
    %625 = vmatpush2.msra.mxu0 0.0
    %626 = vmatprep.subr.mxu0 0.0
    %627 = vmatpush2.msra.mxu0 0.0
    %628 = vmatprep.subr.mxu0 0.0
    %629 = vmatpush2.msra.mxu0 0.0
    %630 = vmatprep.subr.mxu0 0.0
    %631 = vmatpush2.msra.mxu0 0.0
    %632 = vmatprep.subr.mxu0 0.0
    %633 = vmatpush2.msra.mxu0 0.0
    %634 = vmatprep.subr.mxu0 0.0
    %635 = vmatpush2.msra.mxu0 0.0
    %636 = vmatprep.subr.mxu0 0.0
    %637 = vmatpush2.msra.mxu0 0.0
    %638 = vmatprep.subr.mxu0 0.0
    %639 = vmatpush2.msra.mxu0 0.0
    %640 = vmatprep.subr.mxu0 0.0
    %641 = vmatpush2.msra.mxu0 0.0
    %642 = vmatprep.subr.mxu0 0.0
    %643 = vmatpush2.msra.mxu0 0.0
    %644 = vmatprep.mubr.f32.mxu0 0.0
    %v645 = vand.u32 %v62, 4294901760
    %646 = vmatmul.mubr.f32.gmra.mxu0 %v645
    %v647 = vpop.f32.mrf.mxu0
    %v648 = vadd.f32 %v561, %v647
    %v649 = vpop.f32.mrf.mxu0
    %v650 = vadd.f32 %v563, %v649
    %651 = vmatprep.mubr.f32.mxu0 0.0
    %v652 = vand.u32 %v65, 4294901760
    %653 = vmatmul.mubr.f32.gmra.mxu0 %v652
    %v654 = vpop.f32.mrf.mxu0
    %v655 = vadd.f32 %v568, %v654
    %v656 = vpop.f32.mrf.mxu0
    %v657 = vadd.f32 %v570, %v656
    %658 = vdwg.mxu0
    %v659 = vld [vmem:[#allocation2] sm:$0xff]
    %v660 = vld [vmem:[#allocation2 + $0x8] sm:$0xff]
    %v661 = vld [vmem:[#allocation2 + $0x10] sm:$0xff]
    %v662 = vld [vmem:[#allocation2 + $0x18] sm:$0xff]
    %v663 = vld [vmem:[#allocation2 + $0x20] sm:$0xff]
    %v664 = vld [vmem:[#allocation2 + $0x28] sm:$0xff]
    %v665 = vld [vmem:[#allocation2 + $0x30] sm:$0xff]
    %v666 = vld [vmem:[#allocation2 + $0x38] sm:$0xff]
    %v667 = vld [vmem:[#allocation2 + $0x40] sm:$0xff]
    %v668 = vld [vmem:[#allocation2 + $0x48] sm:$0xff]
    %v669 = vld [vmem:[#allocation2 + $0x50] sm:$0xff]
    %v670 = vld [vmem:[#allocation2 + $0x58] sm:$0xff]
    %v671 = vld [vmem:[#allocation2 + $0x60] sm:$0xff]
    %v672 = vld [vmem:[#allocation2 + $0x68] sm:$0xff]
    %v673 = vld [vmem:[#allocation2 + $0x70] sm:$0xff]
    %v674 = vld [vmem:[#allocation2 + $0x78] sm:$0xff]
    %vm675 = vcmask 523264
    %v677 = vsel %vm675, 0.0, 0
    %679 = vmatprep.subr.mxu0 0.0
    %680 = vmatpush1.msra.mxu0 0.0
    %681 = vmatprep.subr.mxu0 0.0
    %682 = vmatpush1.msra.mxu0 0.0
    %683 = vmatprep.subr.mxu0 0.0
    %684 = vmatpush1.msra.mxu0 0.0
    %685 = vmatprep.subr.mxu0 0.0
    %686 = vmatpush1.msra.mxu0 0.0
    %687 = vmatprep.subr.mxu0 0.0
    %688 = vmatpush1.msra.mxu0 0.0
    %689 = vmatprep.subr.mxu0 0.0
    %690 = vmatpush1.msra.mxu0 0.0
    %691 = vmatprep.subr.mxu0 0.0
    %692 = vmatpush1.msra.mxu0 0.0
    %693 = vmatprep.subr.mxu0 0.0
    %694 = vmatpush1.msra.mxu0 0.0
    %v695 = vand.u32 %v674, 4294901760
    %696 = vmatprep.subr.mxu0 %v695
    %v697 = vand.u32 %v673, 4294901760
    %698 = vmatpush1.msra.mxu0 %v697
    %v699 = vand.u32 %v672, 4294901760
    %700 = vmatprep.subr.mxu0 %v699
    %v701 = vand.u32 %v671, 4294901760
    %702 = vmatpush1.msra.mxu0 %v701
    %v703 = vand.u32 %v670, 4294901760
    %704 = vmatprep.subr.mxu0 %v703
    %v705 = vand.u32 %v669, 4294901760
    %706 = vmatpush1.msra.mxu0 %v705
    %v707 = vand.u32 %v668, 4294901760
    %708 = vmatprep.subr.mxu0 %v707
    %v709 = vand.u32 %v667, 4294901760
    %710 = vmatpush1.msra.mxu0 %v709
    %v711 = vand.u32 %v666, 4294901760
    %712 = vmatprep.subr.mxu0 %v711
    %v713 = vand.u32 %v665, 4294901760
    %714 = vmatpush1.msra.mxu0 %v713
    %v715 = vand.u32 %v664, 4294901760
    %716 = vmatprep.subr.mxu0 %v715
    %v717 = vand.u32 %v663, 4294901760
    %718 = vmatpush1.msra.mxu0 %v717
    %v719 = vand.u32 %v662, 4294901760
    %720 = vmatprep.subr.mxu0 %v719
    %v721 = vand.u32 %v661, 4294901760
    %722 = vmatpush1.msra.mxu0 %v721
    %v723 = vand.u32 %v660, 4294901760
    %724 = vmatprep.subr.mxu0 %v723
    %v725 = vand.u32 %v659, 4294901760
    %726 = vmatpush1.msra.mxu0 %v725
    %727 = vmatprep.subr.mxu0 0.0
    %728 = vmatpush2.msra.mxu0 0.0
    %729 = vmatprep.subr.mxu0 0.0
    %730 = vmatpush2.msra.mxu0 0.0
    %731 = vmatprep.subr.mxu0 0.0
    %732 = vmatpush2.msra.mxu0 0.0
    %733 = vmatprep.subr.mxu0 0.0
    %734 = vmatpush2.msra.mxu0 0.0
    %735 = vmatprep.subr.mxu0 0.0
    %736 = vmatpush2.msra.mxu0 0.0
    %737 = vmatprep.subr.mxu0 0.0
    %738 = vmatpush2.msra.mxu0 0.0
    %739 = vmatprep.subr.mxu0 0.0
    %740 = vmatpush2.msra.mxu0 0.0
    %741 = vmatprep.subr.mxu0 0.0
    %742 = vmatpush2.msra.mxu0 0.0
    %743 = vmatprep.subr.mxu0 0.0
    %744 = vmatpush2.msra.mxu0 0.0
    %745 = vmatprep.subr.mxu0 0.0
    %746 = vmatpush2.msra.mxu0 0.0
    %747 = vmatprep.subr.mxu0 0.0
    %748 = vmatpush2.msra.mxu0 0.0
    %749 = vmatprep.subr.mxu0 0.0
    %750 = vmatpush2.msra.mxu0 0.0
    %751 = vmatprep.subr.mxu0 0.0
    %752 = vmatpush2.msra.mxu0 0.0
    %753 = vmatprep.subr.mxu0 0.0
    %754 = vmatpush2.msra.mxu0 0.0
    %755 = vmatprep.subr.mxu0 0.0
    %756 = vmatpush2.msra.mxu0 0.0
    %757 = vmatprep.subr.mxu0 0.0
    %758 = vmatpush2.msra.mxu0 0.0
    %759 = vmatprep.mubr.f32.mxu0 0.0
    %v760 = vand.u32 %v677, 4294901760
    %v761 = vsub.f32 %v677, %v760
    %v762 = vand.u32 %v761, 4294901760
    %v763 = vsub.f32 %v761, %v762
    %v764 = vand.u32 %v763, 4294901760
    %765 = vmatmul.mubr.f32.gmra.mxu0 %v764
    %v766 = vpop.f32.mrf.mxu0
    %v767 = vadd.f32 0.0, %v766
    %v768 = vpop.f32.mrf.mxu0
    %v769 = vadd.f32 0.0, %v768
    %770 = vdwg.mxu0
    %771 = vmatprep.subr.mxu0 0.0
    %772 = vmatpush1.msra.mxu0 0.0
    %773 = vmatprep.subr.mxu0 0.0
    %774 = vmatpush1.msra.mxu0 0.0
    %775 = vmatprep.subr.mxu0 0.0
    %776 = vmatpush1.msra.mxu0 0.0
    %777 = vmatprep.subr.mxu0 0.0
    %778 = vmatpush1.msra.mxu0 0.0
    %779 = vmatprep.subr.mxu0 0.0
    %780 = vmatpush1.msra.mxu0 0.0
    %781 = vmatprep.subr.mxu0 0.0
    %782 = vmatpush1.msra.mxu0 0.0
    %783 = vmatprep.subr.mxu0 0.0
    %784 = vmatpush1.msra.mxu0 0.0
    %785 = vmatprep.subr.mxu0 0.0
    %786 = vmatpush1.msra.mxu0 0.0
    %v787 = vand.u32 %v674, 4294901760
    %v788 = vsub.f32 %v674, %v787
    %v789 = vand.u32 %v788, 4294901760
    %v790 = vsub.f32 %v788, %v789
    %v791 = vand.u32 %v790, 4294901760
    %792 = vmatprep.subr.mxu0 %v791
    %v793 = vand.u32 %v673, 4294901760
    %v794 = vsub.f32 %v673, %v793
    %v795 = vand.u32 %v794, 4294901760
    %v796 = vsub.f32 %v794, %v795
    %v797 = vand.u32 %v796, 4294901760
    %798 = vmatpush1.msra.mxu0 %v797
    %v799 = vand.u32 %v672, 4294901760
    %v800 = vsub.f32 %v672, %v799
    %v801 = vand.u32 %v800, 4294901760
    %v802 = vsub.f32 %v800, %v801
    %v803 = vand.u32 %v802, 4294901760
    %804 = vmatprep.subr.mxu0 %v803
    %v805 = vand.u32 %v671, 4294901760
    %v806 = vsub.f32 %v671, %v805
    %v807 = vand.u32 %v806, 4294901760
    %v808 = vsub.f32 %v806, %v807
    %v809 = vand.u32 %v808, 4294901760
    %810 = vmatpush1.msra.mxu0 %v809
    %v811 = vand.u32 %v670, 4294901760
    %v812 = vsub.f32 %v670, %v811
    %v813 = vand.u32 %v812, 4294901760
    %v814 = vsub.f32 %v812, %v813
    %v815 = vand.u32 %v814, 4294901760
    %816 = vmatprep.subr.mxu0 %v815
    %v817 = vand.u32 %v669, 4294901760
    %v818 = vsub.f32 %v669, %v817
    %v819 = vand.u32 %v818, 4294901760
    %v820 = vsub.f32 %v818, %v819
    %v821 = vand.u32 %v820, 4294901760
    %822 = vmatpush1.msra.mxu0 %v821
    %v823 = vand.u32 %v668, 4294901760
    %v824 = vsub.f32 %v668, %v823
    %v825 = vand.u32 %v824, 4294901760
    %v826 = vsub.f32 %v824, %v825
    %v827 = vand.u32 %v826, 4294901760
    %828 = vmatprep.subr.mxu0 %v827
    %v829 = vand.u32 %v667, 4294901760
    %v830 = vsub.f32 %v667, %v829
    %v831 = vand.u32 %v830, 4294901760
    %v832 = vsub.f32 %v830, %v831
    %v833 = vand.u32 %v832, 4294901760
    %834 = vmatpush1.msra.mxu0 %v833
    %v835 = vand.u32 %v666, 4294901760
    %v836 = vsub.f32 %v666, %v835
    %v837 = vand.u32 %v836, 4294901760
    %v838 = vsub.f32 %v836, %v837
    %v839 = vand.u32 %v838, 4294901760
    %840 = vmatprep.subr.mxu0 %v839
    %v841 = vand.u32 %v665, 4294901760
    %v842 = vsub.f32 %v665, %v841
    %v843 = vand.u32 %v842, 4294901760
    %v844 = vsub.f32 %v842, %v843
    %v845 = vand.u32 %v844, 4294901760
    %846 = vmatpush1.msra.mxu0 %v845
    %v847 = vand.u32 %v664, 4294901760
    %v848 = vsub.f32 %v664, %v847
    %v849 = vand.u32 %v848, 4294901760
    %v850 = vsub.f32 %v848, %v849
    %v851 = vand.u32 %v850, 4294901760
    %852 = vmatprep.subr.mxu0 %v851
    %v853 = vand.u32 %v663, 4294901760
    %v854 = vsub.f32 %v663, %v853
    %v855 = vand.u32 %v854, 4294901760
    %v856 = vsub.f32 %v854, %v855
    %v857 = vand.u32 %v856, 4294901760
    %858 = vmatpush1.msra.mxu0 %v857
    %v859 = vand.u32 %v662, 4294901760
    %v860 = vsub.f32 %v662, %v859
    %v861 = vand.u32 %v860, 4294901760
    %v862 = vsub.f32 %v860, %v861
    %v863 = vand.u32 %v862, 4294901760
    %864 = vmatprep.subr.mxu0 %v863
    %v865 = vand.u32 %v661, 4294901760
    %v866 = vsub.f32 %v661, %v865
    %v867 = vand.u32 %v866, 4294901760
    %v868 = vsub.f32 %v866, %v867
    %v869 = vand.u32 %v868, 4294901760
    %870 = vmatpush1.msra.mxu0 %v869
    %v871 = vand.u32 %v660, 4294901760
    %v872 = vsub.f32 %v660, %v871
    %v873 = vand.u32 %v872, 4294901760
    %v874 = vsub.f32 %v872, %v873
    %v875 = vand.u32 %v874, 4294901760
    %876 = vmatprep.subr.mxu0 %v875
    %v877 = vand.u32 %v659, 4294901760
    %v878 = vsub.f32 %v659, %v877
    %v879 = vand.u32 %v878, 4294901760
    %v880 = vsub.f32 %v878, %v879
    %v881 = vand.u32 %v880, 4294901760
    %882 = vmatpush1.msra.mxu0 %v881
    %883 = vmatprep.subr.mxu0 0.0
    %884 = vmatpush2.msra.mxu0 0.0
    %885 = vmatprep.subr.mxu0 0.0
    %886 = vmatpush2.msra.mxu0 0.0
    %887 = vmatprep.subr.mxu0 0.0
    %888 = vmatpush2.msra.mxu0 0.0
    %889 = vmatprep.subr.mxu0 0.0
    %890 = vmatpush2.msra.mxu0 0.0
    %891 = vmatprep.subr.mxu0 0.0
    %892 = vmatpush2.msra.mxu0 0.0
    %893 = vmatprep.subr.mxu0 0.0
    %894 = vmatpush2.msra.mxu0 0.0
    %895 = vmatprep.subr.mxu0 0.0
    %896 = vmatpush2.msra.mxu0 0.0
    %897 = vmatprep.subr.mxu0 0.0
    %898 = vmatpush2.msra.mxu0 0.0
    %899 = vmatprep.subr.mxu0 0.0
    %900 = vmatpush2.msra.mxu0 0.0
    %901 = vmatprep.subr.mxu0 0.0
    %902 = vmatpush2.msra.mxu0 0.0
    %903 = vmatprep.subr.mxu0 0.0
    %904 = vmatpush2.msra.mxu0 0.0
    %905 = vmatprep.subr.mxu0 0.0
    %906 = vmatpush2.msra.mxu0 0.0
    %907 = vmatprep.subr.mxu0 0.0
    %908 = vmatpush2.msra.mxu0 0.0
    %909 = vmatprep.subr.mxu0 0.0
    %910 = vmatpush2.msra.mxu0 0.0
    %911 = vmatprep.subr.mxu0 0.0
    %912 = vmatpush2.msra.mxu0 0.0
    %913 = vmatprep.subr.mxu0 0.0
    %914 = vmatpush2.msra.mxu0 0.0
    %915 = vmatprep.mubr.f32.mxu0 0.0
    %v916 = vand.u32 %v677, 4294901760
    %917 = vmatmul.mubr.f32.gmra.mxu0 %v916
    %v918 = vpop.f32.mrf.mxu0
    %v919 = vadd.f32 %v767, %v918
    %v920 = vpop.f32.mrf.mxu0
    %v921 = vadd.f32 %v769, %v920
    %922 = vdwg.mxu0
    %923 = vmatprep.subr.mxu0 0.0
    %924 = vmatpush1.msra.mxu0 0.0
    %925 = vmatprep.subr.mxu0 0.0
    %926 = vmatpush1.msra.mxu0 0.0
    %927 = vmatprep.subr.mxu0 0.0
    %928 = vmatpush1.msra.mxu0 0.0
    %929 = vmatprep.subr.mxu0 0.0
    %930 = vmatpush1.msra.mxu0 0.0
    %931 = vmatprep.subr.mxu0 0.0
    %932 = vmatpush1.msra.mxu0 0.0
    %933 = vmatprep.subr.mxu0 0.0
    %934 = vmatpush1.msra.mxu0 0.0
    %935 = vmatprep.subr.mxu0 0.0
    %936 = vmatpush1.msra.mxu0 0.0
    %937 = vmatprep.subr.mxu0 0.0
    %938 = vmatpush1.msra.mxu0 0.0
    %v939 = vand.u32 %v674, 4294901760
    %v940 = vsub.f32 %v674, %v939
    %941 = vmatprep.subr.mxu0 %v940
    %v942 = vand.u32 %v673, 4294901760
    %v943 = vsub.f32 %v673, %v942
    %944 = vmatpush1.msra.mxu0 %v943
    %v945 = vand.u32 %v672, 4294901760
    %v946 = vsub.f32 %v672, %v945
    %947 = vmatprep.subr.mxu0 %v946
    %v948 = vand.u32 %v671, 4294901760
    %v949 = vsub.f32 %v671, %v948
    %950 = vmatpush1.msra.mxu0 %v949
    %v951 = vand.u32 %v670, 4294901760
    %v952 = vsub.f32 %v670, %v951
    %953 = vmatprep.subr.mxu0 %v952
    %v954 = vand.u32 %v669, 4294901760
    %v955 = vsub.f32 %v669, %v954
    %956 = vmatpush1.msra.mxu0 %v955
    %v957 = vand.u32 %v668, 4294901760
    %v958 = vsub.f32 %v668, %v957
    %959 = vmatprep.subr.mxu0 %v958
    %v960 = vand.u32 %v667, 4294901760
    %v961 = vsub.f32 %v667, %v960
    %962 = vmatpush1.msra.mxu0 %v961
    %v963 = vand.u32 %v666, 4294901760
    %v964 = vsub.f32 %v666, %v963
    %965 = vmatprep.subr.mxu0 %v964
    %v966 = vand.u32 %v665, 4294901760
    %v967 = vsub.f32 %v665, %v966
    %968 = vmatpush1.msra.mxu0 %v967
    %v969 = vand.u32 %v664, 4294901760
    %v970 = vsub.f32 %v664, %v969
    %971 = vmatprep.subr.mxu0 %v970
    %v972 = vand.u32 %v663, 4294901760
    %v973 = vsub.f32 %v663, %v972
    %974 = vmatpush1.msra.mxu0 %v973
    %v975 = vand.u32 %v662, 4294901760
    %v976 = vsub.f32 %v662, %v975
    %977 = vmatprep.subr.mxu0 %v976
    %v978 = vand.u32 %v661, 4294901760
    %v979 = vsub.f32 %v661, %v978
    %980 = vmatpush1.msra.mxu0 %v979
    %v981 = vand.u32 %v660, 4294901760
    %v982 = vsub.f32 %v660, %v981
    %983 = vmatprep.subr.mxu0 %v982
    %v984 = vand.u32 %v659, 4294901760
    %v985 = vsub.f32 %v659, %v984
    %986 = vmatpush1.msra.mxu0 %v985
    %987 = vmatprep.subr.mxu0 0.0
    %988 = vmatpush2.msra.mxu0 0.0
    %989 = vmatprep.subr.mxu0 0.0
    %990 = vmatpush2.msra.mxu0 0.0
    %991 = vmatprep.subr.mxu0 0.0
    %992 = vmatpush2.msra.mxu0 0.0
    %993 = vmatprep.subr.mxu0 0.0
    %994 = vmatpush2.msra.mxu0 0.0
    %995 = vmatprep.subr.mxu0 0.0
    %996 = vmatpush2.msra.mxu0 0.0
    %997 = vmatprep.subr.mxu0 0.0
    %998 = vmatpush2.msra.mxu0 0.0
    %999 = vmatprep.subr.mxu0 0.0
    %1000 = vmatpush2.msra.mxu0 0.0
    %1001 = vmatprep.subr.mxu0 0.0
    %1002 = vmatpush2.msra.mxu0 0.0
    %1003 = vmatprep.subr.mxu0 0.0
    %1004 = vmatpush2.msra.mxu0 0.0
    %1005 = vmatprep.subr.mxu0 0.0
    %1006 = vmatpush2.msra.mxu0 0.0
    %1007 = vmatprep.subr.mxu0 0.0
    %1008 = vmatpush2.msra.mxu0 0.0
    %1009 = vmatprep.subr.mxu0 0.0
    %1010 = vmatpush2.msra.mxu0 0.0
    %1011 = vmatprep.subr.mxu0 0.0
    %1012 = vmatpush2.msra.mxu0 0.0
    %1013 = vmatprep.subr.mxu0 0.0
    %1014 = vmatpush2.msra.mxu0 0.0
    %1015 = vmatprep.subr.mxu0 0.0
    %1016 = vmatpush2.msra.mxu0 0.0
    %1017 = vmatprep.subr.mxu0 0.0
    %1018 = vmatpush2.msra.mxu0 0.0
    %1019 = vmatprep.mubr.f32.mxu0 0.0
    %v1020 = vand.u32 %v677, 4294901760
    %v1021 = vsub.f32 %v677, %v1020
    %1022 = vmatmul.mubr.f32.gmra.mxu0 %v1021
    %v1023 = vpop.f32.mrf.mxu0
    %v1024 = vadd.f32 %v919, %v1023
    %v1025 = vpop.f32.mrf.mxu0
    %v1026 = vadd.f32 %v921, %v1025
    %1027 = vdwg.mxu0
    %1028 = vmatprep.subr.mxu0 0.0
    %1029 = vmatpush1.msra.mxu0 0.0
    %1030 = vmatprep.subr.mxu0 0.0
    %1031 = vmatpush1.msra.mxu0 0.0
    %1032 = vmatprep.subr.mxu0 0.0
    %1033 = vmatpush1.msra.mxu0 0.0
    %1034 = vmatprep.subr.mxu0 0.0
    %1035 = vmatpush1.msra.mxu0 0.0
    %1036 = vmatprep.subr.mxu0 0.0
    %1037 = vmatpush1.msra.mxu0 0.0
    %1038 = vmatprep.subr.mxu0 0.0
    %1039 = vmatpush1.msra.mxu0 0.0
    %1040 = vmatprep.subr.mxu0 0.0
    %1041 = vmatpush1.msra.mxu0 0.0
    %1042 = vmatprep.subr.mxu0 0.0
    %1043 = vmatpush1.msra.mxu0 0.0
    %v1044 = vand.u32 %v674, 4294901760
    %1045 = vmatprep.subr.mxu0 %v1044
    %v1046 = vand.u32 %v673, 4294901760
    %1047 = vmatpush1.msra.mxu0 %v1046
    %v1048 = vand.u32 %v672, 4294901760
    %1049 = vmatprep.subr.mxu0 %v1048
    %v1050 = vand.u32 %v671, 4294901760
    %1051 = vmatpush1.msra.mxu0 %v1050
    %v1052 = vand.u32 %v670, 4294901760
    %1053 = vmatprep.subr.mxu0 %v1052
    %v1054 = vand.u32 %v669, 4294901760
    %1055 = vmatpush1.msra.mxu0 %v1054
    %v1056 = vand.u32 %v668, 4294901760
    %1057 = vmatprep.subr.mxu0 %v1056
    %v1058 = vand.u32 %v667, 4294901760
    %1059 = vmatpush1.msra.mxu0 %v1058
    %v1060 = vand.u32 %v666, 4294901760
    %1061 = vmatprep.subr.mxu0 %v1060
    %v1062 = vand.u32 %v665, 4294901760
    %1063 = vmatpush1.msra.mxu0 %v1062
    %v1064 = vand.u32 %v664, 4294901760
    %1065 = vmatprep.subr.mxu0 %v1064
    %v1066 = vand.u32 %v663, 4294901760
    %1067 = vmatpush1.msra.mxu0 %v1066
    %v1068 = vand.u32 %v662, 4294901760
    %1069 = vmatprep.subr.mxu0 %v1068
    %v1070 = vand.u32 %v661, 4294901760
    %1071 = vmatpush1.msra.mxu0 %v1070
    %v1072 = vand.u32 %v660, 4294901760
    %1073 = vmatprep.subr.mxu0 %v1072
    %v1074 = vand.u32 %v659, 4294901760
    %1075 = vmatpush1.msra.mxu0 %v1074
    %1076 = vmatprep.subr.mxu0 0.0
    %1077 = vmatpush2.msra.mxu0 0.0
    %1078 = vmatprep.subr.mxu0 0.0
    %1079 = vmatpush2.msra.mxu0 0.0
    %1080 = vmatprep.subr.mxu0 0.0
    %1081 = vmatpush2.msra.mxu0 0.0
    %1082 = vmatprep.subr.mxu0 0.0
    %1083 = vmatpush2.msra.mxu0 0.0
    %1084 = vmatprep.subr.mxu0 0.0
    %1085 = vmatpush2.msra.mxu0 0.0
    %1086 = vmatprep.subr.mxu0 0.0
    %1087 = vmatpush2.msra.mxu0 0.0
    %1088 = vmatprep.subr.mxu0 0.0
    %1089 = vmatpush2.msra.mxu0 0.0
    %1090 = vmatprep.subr.mxu0 0.0
    %1091 = vmatpush2.msra.mxu0 0.0
    %1092 = vmatprep.subr.mxu0 0.0
    %1093 = vmatpush2.msra.mxu0 0.0
    %1094 = vmatprep.subr.mxu0 0.0
    %1095 = vmatpush2.msra.mxu0 0.0
    %1096 = vmatprep.subr.mxu0 0.0
    %1097 = vmatpush2.msra.mxu0 0.0
    %1098 = vmatprep.subr.mxu0 0.0
    %1099 = vmatpush2.msra.mxu0 0.0
    %1100 = vmatprep.subr.mxu0 0.0
    %1101 = vmatpush2.msra.mxu0 0.0
    %1102 = vmatprep.subr.mxu0 0.0
    %1103 = vmatpush2.msra.mxu0 0.0
    %1104 = vmatprep.subr.mxu0 0.0
    %1105 = vmatpush2.msra.mxu0 0.0
    %1106 = vmatprep.subr.mxu0 0.0
    %1107 = vmatpush2.msra.mxu0 0.0
    %1108 = vmatprep.mubr.f32.mxu0 0.0
    %v1109 = vand.u32 %v677, 4294901760
    %v1110 = vsub.f32 %v677, %v1109
    %v1111 = vand.u32 %v1110, 4294901760
    %1112 = vmatmul.mubr.f32.gmra.mxu0 %v1111
    %v1113 = vpop.f32.mrf.mxu0
    %v1114 = vadd.f32 %v1024, %v1113
    %v1115 = vpop.f32.mrf.mxu0
    %v1116 = vadd.f32 %v1026, %v1115
    %1117 = vdwg.mxu0
    %1118 = vmatprep.subr.mxu0 0.0
    %1119 = vmatpush1.msra.mxu0 0.0
    %1120 = vmatprep.subr.mxu0 0.0
    %1121 = vmatpush1.msra.mxu0 0.0
    %1122 = vmatprep.subr.mxu0 0.0
    %1123 = vmatpush1.msra.mxu0 0.0
    %1124 = vmatprep.subr.mxu0 0.0
    %1125 = vmatpush1.msra.mxu0 0.0
    %1126 = vmatprep.subr.mxu0 0.0
    %1127 = vmatpush1.msra.mxu0 0.0
    %1128 = vmatprep.subr.mxu0 0.0
    %1129 = vmatpush1.msra.mxu0 0.0
    %1130 = vmatprep.subr.mxu0 0.0
    %1131 = vmatpush1.msra.mxu0 0.0
    %1132 = vmatprep.subr.mxu0 0.0
    %1133 = vmatpush1.msra.mxu0 0.0
    %v1134 = vand.u32 %v674, 4294901760
    %v1135 = vsub.f32 %v674, %v1134
    %v1136 = vand.u32 %v1135, 4294901760
    %1137 = vmatprep.subr.mxu0 %v1136
    %v1138 = vand.u32 %v673, 4294901760
    %v1139 = vsub.f32 %v673, %v1138
    %v1140 = vand.u32 %v1139, 4294901760
    %1141 = vmatpush1.msra.mxu0 %v1140
    %v1142 = vand.u32 %v672, 4294901760
    %v1143 = vsub.f32 %v672, %v1142
    %v1144 = vand.u32 %v1143, 4294901760
    %1145 = vmatprep.subr.mxu0 %v1144
    %v1146 = vand.u32 %v671, 4294901760
    %v1147 = vsub.f32 %v671, %v1146
    %v1148 = vand.u32 %v1147, 4294901760
    %1149 = vmatpush1.msra.mxu0 %v1148
    %v1150 = vand.u32 %v670, 4294901760
    %v1151 = vsub.f32 %v670, %v1150
    %v1152 = vand.u32 %v1151, 4294901760
    %1153 = vmatprep.subr.mxu0 %v1152
    %v1154 = vand.u32 %v669, 4294901760
    %v1155 = vsub.f32 %v669, %v1154
    %v1156 = vand.u32 %v1155, 4294901760
    %1157 = vmatpush1.msra.mxu0 %v1156
    %v1158 = vand.u32 %v668, 4294901760
    %v1159 = vsub.f32 %v668, %v1158
    %v1160 = vand.u32 %v1159, 4294901760
    %1161 = vmatprep.subr.mxu0 %v1160
    %v1162 = vand.u32 %v667, 4294901760
    %v1163 = vsub.f32 %v667, %v1162
    %v1164 = vand.u32 %v1163, 4294901760
    %1165 = vmatpush1.msra.mxu0 %v1164
    %v1166 = vand.u32 %v666, 4294901760
    %v1167 = vsub.f32 %v666, %v1166
    %v1168 = vand.u32 %v1167, 4294901760
    %1169 = vmatprep.subr.mxu0 %v1168
    %v1170 = vand.u32 %v665, 4294901760
    %v1171 = vsub.f32 %v665, %v1170
    %v1172 = vand.u32 %v1171, 4294901760
    %1173 = vmatpush1.msra.mxu0 %v1172
    %v1174 = vand.u32 %v664, 4294901760
    %v1175 = vsub.f32 %v664, %v1174
    %v1176 = vand.u32 %v1175, 4294901760
    %1177 = vmatprep.subr.mxu0 %v1176
    %v1178 = vand.u32 %v663, 4294901760
    %v1179 = vsub.f32 %v663, %v1178
    %v1180 = vand.u32 %v1179, 4294901760
    %1181 = vmatpush1.msra.mxu0 %v1180
    %v1182 = vand.u32 %v662, 4294901760
    %v1183 = vsub.f32 %v662, %v1182
    %v1184 = vand.u32 %v1183, 4294901760
    %1185 = vmatprep.subr.mxu0 %v1184
    %v1186 = vand.u32 %v661, 4294901760
    %v1187 = vsub.f32 %v661, %v1186
    %v1188 = vand.u32 %v1187, 4294901760
    %1189 = vmatpush1.msra.mxu0 %v1188
    %v1190 = vand.u32 %v660, 4294901760
    %v1191 = vsub.f32 %v660, %v1190
    %v1192 = vand.u32 %v1191, 4294901760
    %1193 = vmatprep.subr.mxu0 %v1192
    %v1194 = vand.u32 %v659, 4294901760
    %v1195 = vsub.f32 %v659, %v1194
    %v1196 = vand.u32 %v1195, 4294901760
    %1197 = vmatpush1.msra.mxu0 %v1196
    %1198 = vmatprep.subr.mxu0 0.0
    %1199 = vmatpush2.msra.mxu0 0.0
    %1200 = vmatprep.subr.mxu0 0.0
    %1201 = vmatpush2.msra.mxu0 0.0
    %1202 = vmatprep.subr.mxu0 0.0
    %1203 = vmatpush2.msra.mxu0 0.0
    %1204 = vmatprep.subr.mxu0 0.0
    %1205 = vmatpush2.msra.mxu0 0.0
    %1206 = vmatprep.subr.mxu0 0.0
    %1207 = vmatpush2.msra.mxu0 0.0
    %1208 = vmatprep.subr.mxu0 0.0
    %1209 = vmatpush2.msra.mxu0 0.0
    %1210 = vmatprep.subr.mxu0 0.0
    %1211 = vmatpush2.msra.mxu0 0.0
    %1212 = vmatprep.subr.mxu0 0.0
    %1213 = vmatpush2.msra.mxu0 0.0
    %1214 = vmatprep.subr.mxu0 0.0
    %1215 = vmatpush2.msra.mxu0 0.0
    %1216 = vmatprep.subr.mxu0 0.0
    %1217 = vmatpush2.msra.mxu0 0.0
    %1218 = vmatprep.subr.mxu0 0.0
    %1219 = vmatpush2.msra.mxu0 0.0
    %1220 = vmatprep.subr.mxu0 0.0
    %1221 = vmatpush2.msra.mxu0 0.0
    %1222 = vmatprep.subr.mxu0 0.0
    %1223 = vmatpush2.msra.mxu0 0.0
    %1224 = vmatprep.subr.mxu0 0.0
    %1225 = vmatpush2.msra.mxu0 0.0
    %1226 = vmatprep.subr.mxu0 0.0
    %1227 = vmatpush2.msra.mxu0 0.0
    %1228 = vmatprep.subr.mxu0 0.0
    %1229 = vmatpush2.msra.mxu0 0.0
    %1230 = vmatprep.mubr.f32.mxu0 0.0
    %v1231 = vand.u32 %v677, 4294901760
    %1232 = vmatmul.mubr.f32.gmra.mxu0 %v1231
    %v1233 = vpop.f32.mrf.mxu0
    %v1234 = vadd.f32 %v1114, %v1233
    %v1235 = vpop.f32.mrf.mxu0
    %v1236 = vadd.f32 %v1116, %v1235
    %1237 = vdwg.mxu0
    %1238 = vmatprep.subr.mxu0 0.0
    %1239 = vmatpush1.msra.mxu0 0.0
    %1240 = vmatprep.subr.mxu0 0.0
    %1241 = vmatpush1.msra.mxu0 0.0
    %1242 = vmatprep.subr.mxu0 0.0
    %1243 = vmatpush1.msra.mxu0 0.0
    %1244 = vmatprep.subr.mxu0 0.0
    %1245 = vmatpush1.msra.mxu0 0.0
    %1246 = vmatprep.subr.mxu0 0.0
    %1247 = vmatpush1.msra.mxu0 0.0
    %1248 = vmatprep.subr.mxu0 0.0
    %1249 = vmatpush1.msra.mxu0 0.0
    %1250 = vmatprep.subr.mxu0 0.0
    %1251 = vmatpush1.msra.mxu0 0.0
    %1252 = vmatprep.subr.mxu0 0.0
    %1253 = vmatpush1.msra.mxu0 0.0
    %v1254 = vand.u32 %v674, 4294901760
    %1255 = vmatprep.subr.mxu0 %v1254
    %v1256 = vand.u32 %v673, 4294901760
    %1257 = vmatpush1.msra.mxu0 %v1256
    %v1258 = vand.u32 %v672, 4294901760
    %1259 = vmatprep.subr.mxu0 %v1258
    %v1260 = vand.u32 %v671, 4294901760
    %1261 = vmatpush1.msra.mxu0 %v1260
    %v1262 = vand.u32 %v670, 4294901760
    %1263 = vmatprep.subr.mxu0 %v1262
    %v1264 = vand.u32 %v669, 4294901760
    %1265 = vmatpush1.msra.mxu0 %v1264
    %v1266 = vand.u32 %v668, 4294901760
    %1267 = vmatprep.subr.mxu0 %v1266
    %v1268 = vand.u32 %v667, 4294901760
    %1269 = vmatpush1.msra.mxu0 %v1268
    %v1270 = vand.u32 %v666, 4294901760
    %1271 = vmatprep.subr.mxu0 %v1270
    %v1272 = vand.u32 %v665, 4294901760
    %1273 = vmatpush1.msra.mxu0 %v1272
    %v1274 = vand.u32 %v664, 4294901760
    %1275 = vmatprep.subr.mxu0 %v1274
    %v1276 = vand.u32 %v663, 4294901760
    %1277 = vmatpush1.msra.mxu0 %v1276
    %v1278 = vand.u32 %v662, 4294901760
    %1279 = vmatprep.subr.mxu0 %v1278
    %v1280 = vand.u32 %v661, 4294901760
    %1281 = vmatpush1.msra.mxu0 %v1280
    %v1282 = vand.u32 %v660, 4294901760
    %1283 = vmatprep.subr.mxu0 %v1282
    %v1284 = vand.u32 %v659, 4294901760
    %1285 = vmatpush1.msra.mxu0 %v1284
    %1286 = vmatprep.subr.mxu0 0.0
    %1287 = vmatpush2.msra.mxu0 0.0
    %1288 = vmatprep.subr.mxu0 0.0
    %1289 = vmatpush2.msra.mxu0 0.0
    %1290 = vmatprep.subr.mxu0 0.0
    %1291 = vmatpush2.msra.mxu0 0.0
    %1292 = vmatprep.subr.mxu0 0.0
    %1293 = vmatpush2.msra.mxu0 0.0
    %1294 = vmatprep.subr.mxu0 0.0
    %1295 = vmatpush2.msra.mxu0 0.0
    %1296 = vmatprep.subr.mxu0 0.0
    %1297 = vmatpush2.msra.mxu0 0.0
    %1298 = vmatprep.subr.mxu0 0.0
    %1299 = vmatpush2.msra.mxu0 0.0
    %1300 = vmatprep.subr.mxu0 0.0
    %1301 = vmatpush2.msra.mxu0 0.0
    %1302 = vmatprep.subr.mxu0 0.0
    %1303 = vmatpush2.msra.mxu0 0.0
    %1304 = vmatprep.subr.mxu0 0.0
    %1305 = vmatpush2.msra.mxu0 0.0
    %1306 = vmatprep.subr.mxu0 0.0
    %1307 = vmatpush2.msra.mxu0 0.0
    %1308 = vmatprep.subr.mxu0 0.0
    %1309 = vmatpush2.msra.mxu0 0.0
    %1310 = vmatprep.subr.mxu0 0.0
    %1311 = vmatpush2.msra.mxu0 0.0
    %1312 = vmatprep.subr.mxu0 0.0
    %1313 = vmatpush2.msra.mxu0 0.0
    %1314 = vmatprep.subr.mxu0 0.0
    %1315 = vmatpush2.msra.mxu0 0.0
    %1316 = vmatprep.subr.mxu0 0.0
    %1317 = vmatpush2.msra.mxu0 0.0
    %1318 = vmatprep.mubr.f32.mxu0 0.0
    %v1319 = vand.u32 %v677, 4294901760
    %1320 = vmatmul.mubr.f32.gmra.mxu0 %v1319
    %v1321 = vpop.f32.mrf.mxu0
    %v1322 = vadd.f32 %v1234, %v1321
    %v1323 = vpop.f32.mrf.mxu0
    %v1324 = vadd.f32 %v1236, %v1323
    %1325 = vdwg.mxu0
    %v1328 = vrot.slane %v1322, 1
    %v1329 = vrot.slane %v1324, 1
    %v1334 = vadd.f32 %v648, %v1322
    %v1335 = vadd.f32 %v650, %v1324
    %v1336 = vadd.f32 %v655, %v1328
    %v1337 = vadd.f32 %v657, %v1329
    %v1338 = vxor.u32 %v1334, 2147483648
    %v1339 = vxor.u32 %v1335, 2147483648
    %v1340 = vxor.u32 %v1336, 2147483648
    %v1341 = vxor.u32 %v1337, 2147483648
    %v1342 = vmul.f32 %v1338, 1.442695
    %v1343 = vpow.pop %v1342
    %v1344 = vmul.f32 %v1339, 1.442695
    %v1345 = vpow.pop %v1344
    %v1346 = vmul.f32 %v1340, 1.442695
    %v1347 = vpow.pop %v1346
    %v1348 = vmul.f32 %v1341, 1.442695
    %v1349 = vpow.pop %v1348
    %v1350 = vadd.f32 %v1343, 1.0
    %v1351 = vadd.f32 %v1345, 1.0
    %v1352 = vadd.f32 %v1347, 1.0
    %v1353 = vadd.f32 %v1349, 1.0
    %v1354 = vrcp.pop %v1350
    %v1355 = vmul.f32 1.0, %v1354
    %v1356 = vrcp.pop %v1351
    %v1357 = vmul.f32 1.0, %v1356
    %v1358 = vrcp.pop %v1352
    %v1359 = vmul.f32 1.0, %v1358
    %v1360 = vrcp.pop %v1353
    %v1361 = vmul.f32 1.0, %v1360
    %v1362 = vtanh.pop %v1335
    %v1363 = vtanh.pop %v1337
    %v1364 = vmul.f32 %v1355, 0.0
    %v1365 = vmul.f32 %v1359, 0.0
    %1368 = vrot.lane.b32.xlu0 %v1362, 64
    %v1369 = vpop.permute.xlu0 %1368
    %1370 = vrot.lane.b32.xlu0 %v1363, 64
    %v1371 = vpop.permute.xlu0 %1370
    %v1374 = vmul.f32 %v1355, %v1369
    %v1375 = vmul.f32 %v1359, %v1371
    %1378 = vrot.lane.b32.xlu0 %v1374, 64
    %v1379 = vpop.permute.xlu0 %1378
    %1380 = vrot.lane.b32.xlu0 %v1375, 64
    %v1381 = vpop.permute.xlu0 %1380
    %v1384 = vadd.f32 %v1364, %v1379
    %v1385 = vadd.f32 %v1365, %v1381
    %v1386 = vtanh.pop %v1384
    %v1387 = vtanh.pop %v1385
    %1390 = vrot.lane.b32.xlu0 %v1386, 64
    %v1391 = vpop.permute.xlu0 %1390
    %1392 = vrot.lane.b32.xlu0 %v1387, 64
    %v1393 = vpop.permute.xlu0 %1392
    %v1396 = vmul.f32 %v1357, %v1391
    %v1397 = vmul.f32 %v1361, %v1393
    %v1400 = vrot.slane %v1397, 7
    %vm1401 = vcmask 1041409
    %v1402 = vsel %vm1401, %v1400, %v1396
    %v1403 = vsel %vm675, %v1402, 0
    %1405 = vmatprep.subr.mxu0 0.0
    %1406 = vmatpush1.msra.mxu0 0.0
    %1407 = vmatprep.subr.mxu0 0.0
    %1408 = vmatpush1.msra.mxu0 0.0
    %1409 = vmatprep.subr.mxu0 0.0
    %1410 = vmatpush1.msra.mxu0 0.0
    %1411 = vmatprep.subr.mxu0 0.0
    %1412 = vmatpush1.msra.mxu0 0.0
    %1413 = vmatprep.subr.mxu0 0.0
    %1414 = vmatpush1.msra.mxu0 0.0
    %1415 = vmatprep.subr.mxu0 0.0
    %1416 = vmatpush1.msra.mxu0 0.0
    %1417 = vmatprep.subr.mxu0 0.0
    %1418 = vmatpush1.msra.mxu0 0.0
    %1419 = vmatprep.subr.mxu0 0.0
    %1420 = vmatpush1.msra.mxu0 0.0
    %v1421 = vand.u32 %v674, 4294901760
    %1422 = vmatprep.subr.mxu0 %v1421
    %v1423 = vand.u32 %v673, 4294901760
    %1424 = vmatpush1.msra.mxu0 %v1423
    %v1425 = vand.u32 %v672, 4294901760
    %1426 = vmatprep.subr.mxu0 %v1425
    %v1427 = vand.u32 %v671, 4294901760
    %1428 = vmatpush1.msra.mxu0 %v1427
    %v1429 = vand.u32 %v670, 4294901760
    %1430 = vmatprep.subr.mxu0 %v1429
    %v1431 = vand.u32 %v669, 4294901760
    %1432 = vmatpush1.msra.mxu0 %v1431
    %v1433 = vand.u32 %v668, 4294901760
    %1434 = vmatprep.subr.mxu0 %v1433
    %v1435 = vand.u32 %v667, 4294901760
    %1436 = vmatpush1.msra.mxu0 %v1435
    %v1437 = vand.u32 %v666, 4294901760
    %1438 = vmatprep.subr.mxu0 %v1437
    %v1439 = vand.u32 %v665, 4294901760
    %1440 = vmatpush1.msra.mxu0 %v1439
    %v1441 = vand.u32 %v664, 4294901760
    %1442 = vmatprep.subr.mxu0 %v1441
    %v1443 = vand.u32 %v663, 4294901760
    %1444 = vmatpush1.msra.mxu0 %v1443
    %v1445 = vand.u32 %v662, 4294901760
    %1446 = vmatprep.subr.mxu0 %v1445
    %v1447 = vand.u32 %v661, 4294901760
    %1448 = vmatpush1.msra.mxu0 %v1447
    %v1449 = vand.u32 %v660, 4294901760
    %1450 = vmatprep.subr.mxu0 %v1449
    %v1451 = vand.u32 %v659, 4294901760
    %1452 = vmatpush1.msra.mxu0 %v1451
    %1453 = vmatprep.subr.mxu0 0.0
    %1454 = vmatpush2.msra.mxu0 0.0
    %1455 = vmatprep.subr.mxu0 0.0
    %1456 = vmatpush2.msra.mxu0 0.0
    %1457 = vmatprep.subr.mxu0 0.0
    %1458 = vmatpush2.msra.mxu0 0.0
    %1459 = vmatprep.subr.mxu0 0.0
    %1460 = vmatpush2.msra.mxu0 0.0
    %1461 = vmatprep.subr.mxu0 0.0
    %1462 = vmatpush2.msra.mxu0 0.0
    %1463 = vmatprep.subr.mxu0 0.0
    %1464 = vmatpush2.msra.mxu0 0.0
    %1465 = vmatprep.subr.mxu0 0.0
    %1466 = vmatpush2.msra.mxu0 0.0
    %1467 = vmatprep.subr.mxu0 0.0
    %1468 = vmatpush2.msra.mxu0 0.0
    %1469 = vmatprep.subr.mxu0 0.0
    %1470 = vmatpush2.msra.mxu0 0.0
    %1471 = vmatprep.subr.mxu0 0.0
    %1472 = vmatpush2.msra.mxu0 0.0
    %1473 = vmatprep.subr.mxu0 0.0
    %1474 = vmatpush2.msra.mxu0 0.0
    %1475 = vmatprep.subr.mxu0 0.0
    %1476 = vmatpush2.msra.mxu0 0.0
    %1477 = vmatprep.subr.mxu0 0.0
    %1478 = vmatpush2.msra.mxu0 0.0
    %1479 = vmatprep.subr.mxu0 0.0
    %1480 = vmatpush2.msra.mxu0 0.0
    %1481 = vmatprep.subr.mxu0 0.0
    %1482 = vmatpush2.msra.mxu0 0.0
    %1483 = vmatprep.subr.mxu0 0.0
    %1484 = vmatpush2.msra.mxu0 0.0
    %1485 = vmatprep.mubr.f32.mxu0 0.0
    %v1486 = vand.u32 %v1403, 4294901760
    %v1487 = vsub.f32 %v1403, %v1486
    %v1488 = vand.u32 %v1487, 4294901760
    %v1489 = vsub.f32 %v1487, %v1488
    %v1490 = vand.u32 %v1489, 4294901760
    %1491 = vmatmul.mubr.f32.gmra.mxu0 %v1490
    %v1492 = vpop.f32.mrf.mxu0
    %v1493 = vadd.f32 0.0, %v1492
    %v1494 = vpop.f32.mrf.mxu0
    %v1495 = vadd.f32 0.0, %v1494
    %1496 = vdwg.mxu0
    %1497 = vmatprep.subr.mxu0 0.0
    %1498 = vmatpush1.msra.mxu0 0.0
    %1499 = vmatprep.subr.mxu0 0.0
    %1500 = vmatpush1.msra.mxu0 0.0
    %1501 = vmatprep.subr.mxu0 0.0
    %1502 = vmatpush1.msra.mxu0 0.0
    %1503 = vmatprep.subr.mxu0 0.0
    %1504 = vmatpush1.msra.mxu0 0.0
    %1505 = vmatprep.subr.mxu0 0.0
    %1506 = vmatpush1.msra.mxu0 0.0
    %1507 = vmatprep.subr.mxu0 0.0
    %1508 = vmatpush1.msra.mxu0 0.0
    %1509 = vmatprep.subr.mxu0 0.0
    %1510 = vmatpush1.msra.mxu0 0.0
    %1511 = vmatprep.subr.mxu0 0.0
    %1512 = vmatpush1.msra.mxu0 0.0
    %v1513 = vand.u32 %v674, 4294901760
    %v1514 = vsub.f32 %v674, %v1513
    %v1515 = vand.u32 %v1514, 4294901760
    %v1516 = vsub.f32 %v1514, %v1515
    %v1517 = vand.u32 %v1516, 4294901760
    %1518 = vmatprep.subr.mxu0 %v1517
    %v1519 = vand.u32 %v673, 4294901760
    %v1520 = vsub.f32 %v673, %v1519
    %v1521 = vand.u32 %v1520, 4294901760
    %v1522 = vsub.f32 %v1520, %v1521
    %v1523 = vand.u32 %v1522, 4294901760
    %1524 = vmatpush1.msra.mxu0 %v1523
    %v1525 = vand.u32 %v672, 4294901760
    %v1526 = vsub.f32 %v672, %v1525
    %v1527 = vand.u32 %v1526, 4294901760
    %v1528 = vsub.f32 %v1526, %v1527
    %v1529 = vand.u32 %v1528, 4294901760
    %1530 = vmatprep.subr.mxu0 %v1529
    %v1531 = vand.u32 %v671, 4294901760
    %v1532 = vsub.f32 %v671, %v1531
    %v1533 = vand.u32 %v1532, 4294901760
    %v1534 = vsub.f32 %v1532, %v1533
    %v1535 = vand.u32 %v1534, 4294901760
    %1536 = vmatpush1.msra.mxu0 %v1535
    %v1537 = vand.u32 %v670, 4294901760
    %v1538 = vsub.f32 %v670, %v1537
    %v1539 = vand.u32 %v1538, 4294901760
    %v1540 = vsub.f32 %v1538, %v1539
    %v1541 = vand.u32 %v1540, 4294901760
    %1542 = vmatprep.subr.mxu0 %v1541
    %v1543 = vand.u32 %v669, 4294901760
    %v1544 = vsub.f32 %v669, %v1543
    %v1545 = vand.u32 %v1544, 4294901760
    %v1546 = vsub.f32 %v1544, %v1545
    %v1547 = vand.u32 %v1546, 4294901760
    %1548 = vmatpush1.msra.mxu0 %v1547
    %v1549 = vand.u32 %v668, 4294901760
    %v1550 = vsub.f32 %v668, %v1549
    %v1551 = vand.u32 %v1550, 4294901760
    %v1552 = vsub.f32 %v1550, %v1551
    %v1553 = vand.u32 %v1552, 4294901760
    %1554 = vmatprep.subr.mxu0 %v1553
    %v1555 = vand.u32 %v667, 4294901760
    %v1556 = vsub.f32 %v667, %v1555
    %v1557 = vand.u32 %v1556, 4294901760
    %v1558 = vsub.f32 %v1556, %v1557
    %v1559 = vand.u32 %v1558, 4294901760
    %1560 = vmatpush1.msra.mxu0 %v1559
    %v1561 = vand.u32 %v666, 4294901760
    %v1562 = vsub.f32 %v666, %v1561
    %v1563 = vand.u32 %v1562, 4294901760
    %v1564 = vsub.f32 %v1562, %v1563
    %v1565 = vand.u32 %v1564, 4294901760
    %1566 = vmatprep.subr.mxu0 %v1565
    %v1567 = vand.u32 %v665, 4294901760
    %v1568 = vsub.f32 %v665, %v1567
    %v1569 = vand.u32 %v1568, 4294901760
    %v1570 = vsub.f32 %v1568, %v1569
    %v1571 = vand.u32 %v1570, 4294901760
    %1572 = vmatpush1.msra.mxu0 %v1571
    %v1573 = vand.u32 %v664, 4294901760
    %v1574 = vsub.f32 %v664, %v1573
    %v1575 = vand.u32 %v1574, 4294901760
    %v1576 = vsub.f32 %v1574, %v1575
    %v1577 = vand.u32 %v1576, 4294901760
    %1578 = vmatprep.subr.mxu0 %v1577
    %v1579 = vand.u32 %v663, 4294901760
    %v1580 = vsub.f32 %v663, %v1579
    %v1581 = vand.u32 %v1580, 4294901760
    %v1582 = vsub.f32 %v1580, %v1581
    %v1583 = vand.u32 %v1582, 4294901760
    %1584 = vmatpush1.msra.mxu0 %v1583
    %v1585 = vand.u32 %v662, 4294901760
    %v1586 = vsub.f32 %v662, %v1585
    %v1587 = vand.u32 %v1586, 4294901760
    %v1588 = vsub.f32 %v1586, %v1587
    %v1589 = vand.u32 %v1588, 4294901760
    %1590 = vmatprep.subr.mxu0 %v1589
    %v1591 = vand.u32 %v661, 4294901760
    %v1592 = vsub.f32 %v661, %v1591
    %v1593 = vand.u32 %v1592, 4294901760
    %v1594 = vsub.f32 %v1592, %v1593
    %v1595 = vand.u32 %v1594, 4294901760
    %1596 = vmatpush1.msra.mxu0 %v1595
    %v1597 = vand.u32 %v660, 4294901760
    %v1598 = vsub.f32 %v660, %v1597
    %v1599 = vand.u32 %v1598, 4294901760
    %v1600 = vsub.f32 %v1598, %v1599
    %v1601 = vand.u32 %v1600, 4294901760
    %1602 = vmatprep.subr.mxu0 %v1601
    %v1603 = vand.u32 %v659, 4294901760
    %v1604 = vsub.f32 %v659, %v1603
    %v1605 = vand.u32 %v1604, 4294901760
    %v1606 = vsub.f32 %v1604, %v1605
    %v1607 = vand.u32 %v1606, 4294901760
    %1608 = vmatpush1.msra.mxu0 %v1607
    %1609 = vmatprep.subr.mxu0 0.0
    %1610 = vmatpush2.msra.mxu0 0.0
    %1611 = vmatprep.subr.mxu0 0.0
    %1612 = vmatpush2.msra.mxu0 0.0
    %1613 = vmatprep.subr.mxu0 0.0
    %1614 = vmatpush2.msra.mxu0 0.0
    %1615 = vmatprep.subr.mxu0 0.0
    %1616 = vmatpush2.msra.mxu0 0.0
    %1617 = vmatprep.subr.mxu0 0.0
    %1618 = vmatpush2.msra.mxu0 0.0
    %1619 = vmatprep.subr.mxu0 0.0
    %1620 = vmatpush2.msra.mxu0 0.0
    %1621 = vmatprep.subr.mxu0 0.0
    %1622 = vmatpush2.msra.mxu0 0.0
    %1623 = vmatprep.subr.mxu0 0.0
    %1624 = vmatpush2.msra.mxu0 0.0
    %1625 = vmatprep.subr.mxu0 0.0
    %1626 = vmatpush2.msra.mxu0 0.0
    %1627 = vmatprep.subr.mxu0 0.0
    %1628 = vmatpush2.msra.mxu0 0.0
    %1629 = vmatprep.subr.mxu0 0.0
    %1630 = vmatpush2.msra.mxu0 0.0
    %1631 = vmatprep.subr.mxu0 0.0
    %1632 = vmatpush2.msra.mxu0 0.0
    %1633 = vmatprep.subr.mxu0 0.0
    %1634 = vmatpush2.msra.mxu0 0.0
    %1635 = vmatprep.subr.mxu0 0.0
    %1636 = vmatpush2.msra.mxu0 0.0
    %1637 = vmatprep.subr.mxu0 0.0
    %1638 = vmatpush2.msra.mxu0 0.0
    %1639 = vmatprep.subr.mxu0 0.0
    %1640 = vmatpush2.msra.mxu0 0.0
    %1641 = vmatprep.mubr.f32.mxu0 0.0
    %v1642 = vand.u32 %v1403, 4294901760
    %1643 = vmatmul.mubr.f32.gmra.mxu0 %v1642
    %v1644 = vpop.f32.mrf.mxu0
    %v1645 = vadd.f32 %v1493, %v1644
    %v1646 = vpop.f32.mrf.mxu0
    %v1647 = vadd.f32 %v1495, %v1646
    %1648 = vdwg.mxu0
    %1649 = vmatprep.subr.mxu0 0.0
    %1650 = vmatpush1.msra.mxu0 0.0
    %1651 = vmatprep.subr.mxu0 0.0
    %1652 = vmatpush1.msra.mxu0 0.0
    %1653 = vmatprep.subr.mxu0 0.0
    %1654 = vmatpush1.msra.mxu0 0.0
    %1655 = vmatprep.subr.mxu0 0.0
    %1656 = vmatpush1.msra.mxu0 0.0
    %1657 = vmatprep.subr.mxu0 0.0
    %1658 = vmatpush1.msra.mxu0 0.0
    %1659 = vmatprep.subr.mxu0 0.0
    %1660 = vmatpush1.msra.mxu0 0.0
    %1661 = vmatprep.subr.mxu0 0.0
    %1662 = vmatpush1.msra.mxu0 0.0
    %1663 = vmatprep.subr.mxu0 0.0
    %1664 = vmatpush1.msra.mxu0 0.0
    %v1665 = vand.u32 %v674, 4294901760
    %v1666 = vsub.f32 %v674, %v1665
    %1667 = vmatprep.subr.mxu0 %v1666
    %v1668 = vand.u32 %v673, 4294901760
    %v1669 = vsub.f32 %v673, %v1668
    %1670 = vmatpush1.msra.mxu0 %v1669
    %v1671 = vand.u32 %v672, 4294901760
    %v1672 = vsub.f32 %v672, %v1671
    %1673 = vmatprep.subr.mxu0 %v1672
    %v1674 = vand.u32 %v671, 4294901760
    %v1675 = vsub.f32 %v671, %v1674
    %1676 = vmatpush1.msra.mxu0 %v1675
    %v1677 = vand.u32 %v670, 4294901760
    %v1678 = vsub.f32 %v670, %v1677
    %1679 = vmatprep.subr.mxu0 %v1678
    %v1680 = vand.u32 %v669, 4294901760
    %v1681 = vsub.f32 %v669, %v1680
    %1682 = vmatpush1.msra.mxu0 %v1681
    %v1683 = vand.u32 %v668, 4294901760
    %v1684 = vsub.f32 %v668, %v1683
    %1685 = vmatprep.subr.mxu0 %v1684
    %v1686 = vand.u32 %v667, 4294901760
    %v1687 = vsub.f32 %v667, %v1686
    %1688 = vmatpush1.msra.mxu0 %v1687
    %v1689 = vand.u32 %v666, 4294901760
    %v1690 = vsub.f32 %v666, %v1689
    %1691 = vmatprep.subr.mxu0 %v1690
    %v1692 = vand.u32 %v665, 4294901760
    %v1693 = vsub.f32 %v665, %v1692
    %1694 = vmatpush1.msra.mxu0 %v1693
    %v1695 = vand.u32 %v664, 4294901760
    %v1696 = vsub.f32 %v664, %v1695
    %1697 = vmatprep.subr.mxu0 %v1696
    %v1698 = vand.u32 %v663, 4294901760
    %v1699 = vsub.f32 %v663, %v1698
    %1700 = vmatpush1.msra.mxu0 %v1699
    %v1701 = vand.u32 %v662, 4294901760
    %v1702 = vsub.f32 %v662, %v1701
    %1703 = vmatprep.subr.mxu0 %v1702
    %v1704 = vand.u32 %v661, 4294901760
    %v1705 = vsub.f32 %v661, %v1704
    %1706 = vmatpush1.msra.mxu0 %v1705
    %v1707 = vand.u32 %v660, 4294901760
    %v1708 = vsub.f32 %v660, %v1707
    %1709 = vmatprep.subr.mxu0 %v1708
    %v1710 = vand.u32 %v659, 4294901760
    %v1711 = vsub.f32 %v659, %v1710
    %1712 = vmatpush1.msra.mxu0 %v1711
    %1713 = vmatprep.subr.mxu0 0.0
    %1714 = vmatpush2.msra.mxu0 0.0
    %1715 = vmatprep.subr.mxu0 0.0
    %1716 = vmatpush2.msra.mxu0 0.0
    %1717 = vmatprep.subr.mxu0 0.0
    %1718 = vmatpush2.msra.mxu0 0.0
    %1719 = vmatprep.subr.mxu0 0.0
    %1720 = vmatpush2.msra.mxu0 0.0
    %1721 = vmatprep.subr.mxu0 0.0
    %1722 = vmatpush2.msra.mxu0 0.0
    %1723 = vmatprep.subr.mxu0 0.0
    %1724 = vmatpush2.msra.mxu0 0.0
    %1725 = vmatprep.subr.mxu0 0.0
    %1726 = vmatpush2.msra.mxu0 0.0
    %1727 = vmatprep.subr.mxu0 0.0
    %1728 = vmatpush2.msra.mxu0 0.0
    %1729 = vmatprep.subr.mxu0 0.0
    %1730 = vmatpush2.msra.mxu0 0.0
    %1731 = vmatprep.subr.mxu0 0.0
    %1732 = vmatpush2.msra.mxu0 0.0
    %1733 = vmatprep.subr.mxu0 0.0
    %1734 = vmatpush2.msra.mxu0 0.0
    %1735 = vmatprep.subr.mxu0 0.0
    %1736 = vmatpush2.msra.mxu0 0.0
    %1737 = vmatprep.subr.mxu0 0.0
    %1738 = vmatpush2.msra.mxu0 0.0
    %1739 = vmatprep.subr.mxu0 0.0
    %1740 = vmatpush2.msra.mxu0 0.0
    %1741 = vmatprep.subr.mxu0 0.0
    %1742 = vmatpush2.msra.mxu0 0.0
    %1743 = vmatprep.subr.mxu0 0.0
    %1744 = vmatpush2.msra.mxu0 0.0
    %1745 = vmatprep.mubr.f32.mxu0 0.0
    %v1746 = vand.u32 %v1403, 4294901760
    %v1747 = vsub.f32 %v1403, %v1746
    %1748 = vmatmul.mubr.f32.gmra.mxu0 %v1747
    %v1749 = vpop.f32.mrf.mxu0
    %v1750 = vadd.f32 %v1645, %v1749
    %v1751 = vpop.f32.mrf.mxu0
    %v1752 = vadd.f32 %v1647, %v1751
    %1753 = vdwg.mxu0
    %1754 = vmatprep.subr.mxu0 0.0
    %1755 = vmatpush1.msra.mxu0 0.0
    %1756 = vmatprep.subr.mxu0 0.0
    %1757 = vmatpush1.msra.mxu0 0.0
    %1758 = vmatprep.subr.mxu0 0.0
    %1759 = vmatpush1.msra.mxu0 0.0
    %1760 = vmatprep.subr.mxu0 0.0
    %1761 = vmatpush1.msra.mxu0 0.0
    %1762 = vmatprep.subr.mxu0 0.0
    %1763 = vmatpush1.msra.mxu0 0.0
    %1764 = vmatprep.subr.mxu0 0.0
    %1765 = vmatpush1.msra.mxu0 0.0
    %1766 = vmatprep.subr.mxu0 0.0
    %1767 = vmatpush1.msra.mxu0 0.0
    %1768 = vmatprep.subr.mxu0 0.0
    %1769 = vmatpush1.msra.mxu0 0.0
    %v1770 = vand.u32 %v674, 4294901760
    %1771 = vmatprep.subr.mxu0 %v1770
    %v1772 = vand.u32 %v673, 4294901760
    %1773 = vmatpush1.msra.mxu0 %v1772
    %v1774 = vand.u32 %v672, 4294901760
    %1775 = vmatprep.subr.mxu0 %v1774
    %v1776 = vand.u32 %v671, 4294901760
    %1777 = vmatpush1.msra.mxu0 %v1776
    %v1778 = vand.u32 %v670, 4294901760
    %1779 = vmatprep.subr.mxu0 %v1778
    %v1780 = vand.u32 %v669, 4294901760
    %1781 = vmatpush1.msra.mxu0 %v1780
    %v1782 = vand.u32 %v668, 4294901760
    %1783 = vmatprep.subr.mxu0 %v1782
    %v1784 = vand.u32 %v667, 4294901760
    %1785 = vmatpush1.msra.mxu0 %v1784
    %v1786 = vand.u32 %v666, 4294901760
    %1787 = vmatprep.subr.mxu0 %v1786
    %v1788 = vand.u32 %v665, 4294901760
    %1789 = vmatpush1.msra.mxu0 %v1788
    %v1790 = vand.u32 %v664, 4294901760
    %1791 = vmatprep.subr.mxu0 %v1790
    %v1792 = vand.u32 %v663, 4294901760
    %1793 = vmatpush1.msra.mxu0 %v1792
    %v1794 = vand.u32 %v662, 4294901760
    %1795 = vmatprep.subr.mxu0 %v1794
    %v1796 = vand.u32 %v661, 4294901760
    %1797 = vmatpush1.msra.mxu0 %v1796
    %v1798 = vand.u32 %v660, 4294901760
    %1799 = vmatprep.subr.mxu0 %v1798
    %v1800 = vand.u32 %v659, 4294901760
    %1801 = vmatpush1.msra.mxu0 %v1800
    %1802 = vmatprep.subr.mxu0 0.0
    %1803 = vmatpush2.msra.mxu0 0.0
    %1804 = vmatprep.subr.mxu0 0.0
    %1805 = vmatpush2.msra.mxu0 0.0
    %1806 = vmatprep.subr.mxu0 0.0
    %1807 = vmatpush2.msra.mxu0 0.0
    %1808 = vmatprep.subr.mxu0 0.0
    %1809 = vmatpush2.msra.mxu0 0.0
    %1810 = vmatprep.subr.mxu0 0.0
    %1811 = vmatpush2.msra.mxu0 0.0
    %1812 = vmatprep.subr.mxu0 0.0
    %1813 = vmatpush2.msra.mxu0 0.0
    %1814 = vmatprep.subr.mxu0 0.0
    %1815 = vmatpush2.msra.mxu0 0.0
    %1816 = vmatprep.subr.mxu0 0.0
    %1817 = vmatpush2.msra.mxu0 0.0
    %1818 = vmatprep.subr.mxu0 0.0
    %1819 = vmatpush2.msra.mxu0 0.0
    %1820 = vmatprep.subr.mxu0 0.0
    %1821 = vmatpush2.msra.mxu0 0.0
    %1822 = vmatprep.subr.mxu0 0.0
    %1823 = vmatpush2.msra.mxu0 0.0
    %1824 = vmatprep.subr.mxu0 0.0
    %1825 = vmatpush2.msra.mxu0 0.0
    %1826 = vmatprep.subr.mxu0 0.0
    %1827 = vmatpush2.msra.mxu0 0.0
    %1828 = vmatprep.subr.mxu0 0.0
    %1829 = vmatpush2.msra.mxu0 0.0
    %1830 = vmatprep.subr.mxu0 0.0
    %1831 = vmatpush2.msra.mxu0 0.0
    %1832 = vmatprep.subr.mxu0 0.0
    %1833 = vmatpush2.msra.mxu0 0.0
    %1834 = vmatprep.mubr.f32.mxu0 0.0
    %v1835 = vand.u32 %v1403, 4294901760
    %v1836 = vsub.f32 %v1403, %v1835
    %v1837 = vand.u32 %v1836, 4294901760
    %1838 = vmatmul.mubr.f32.gmra.mxu0 %v1837
    %v1839 = vpop.f32.mrf.mxu0
    %v1840 = vadd.f32 %v1750, %v1839
    %v1841 = vpop.f32.mrf.mxu0
    %v1842 = vadd.f32 %v1752, %v1841
    %1843 = vdwg.mxu0
    %1844 = vmatprep.subr.mxu0 0.0
    %1845 = vmatpush1.msra.mxu0 0.0
    %1846 = vmatprep.subr.mxu0 0.0
    %1847 = vmatpush1.msra.mxu0 0.0
    %1848 = vmatprep.subr.mxu0 0.0
    %1849 = vmatpush1.msra.mxu0 0.0
    %1850 = vmatprep.subr.mxu0 0.0
    %1851 = vmatpush1.msra.mxu0 0.0
    %1852 = vmatprep.subr.mxu0 0.0
    %1853 = vmatpush1.msra.mxu0 0.0
    %1854 = vmatprep.subr.mxu0 0.0
    %1855 = vmatpush1.msra.mxu0 0.0
    %1856 = vmatprep.subr.mxu0 0.0
    %1857 = vmatpush1.msra.mxu0 0.0
    %1858 = vmatprep.subr.mxu0 0.0
    %1859 = vmatpush1.msra.mxu0 0.0
    %v1860 = vand.u32 %v674, 4294901760
    %v1861 = vsub.f32 %v674, %v1860
    %v1862 = vand.u32 %v1861, 4294901760
    %1863 = vmatprep.subr.mxu0 %v1862
    %v1864 = vand.u32 %v673, 4294901760
    %v1865 = vsub.f32 %v673, %v1864
    %v1866 = vand.u32 %v1865, 4294901760
    %1867 = vmatpush1.msra.mxu0 %v1866
    %v1868 = vand.u32 %v672, 4294901760
    %v1869 = vsub.f32 %v672, %v1868
    %v1870 = vand.u32 %v1869, 4294901760
    %1871 = vmatprep.subr.mxu0 %v1870
    %v1872 = vand.u32 %v671, 4294901760
    %v1873 = vsub.f32 %v671, %v1872
    %v1874 = vand.u32 %v1873, 4294901760
    %1875 = vmatpush1.msra.mxu0 %v1874
    %v1876 = vand.u32 %v670, 4294901760
    %v1877 = vsub.f32 %v670, %v1876
    %v1878 = vand.u32 %v1877, 4294901760
    %1879 = vmatprep.subr.mxu0 %v1878
    %v1880 = vand.u32 %v669, 4294901760
    %v1881 = vsub.f32 %v669, %v1880
    %v1882 = vand.u32 %v1881, 4294901760
    %1883 = vmatpush1.msra.mxu0 %v1882
    %v1884 = vand.u32 %v668, 4294901760
    %v1885 = vsub.f32 %v668, %v1884
    %v1886 = vand.u32 %v1885, 4294901760
    %1887 = vmatprep.subr.mxu0 %v1886
    %v1888 = vand.u32 %v667, 4294901760
    %v1889 = vsub.f32 %v667, %v1888
    %v1890 = vand.u32 %v1889, 4294901760
    %1891 = vmatpush1.msra.mxu0 %v1890
    %v1892 = vand.u32 %v666, 4294901760
    %v1893 = vsub.f32 %v666, %v1892
    %v1894 = vand.u32 %v1893, 4294901760
    %1895 = vmatprep.subr.mxu0 %v1894
    %v1896 = vand.u32 %v665, 4294901760
    %v1897 = vsub.f32 %v665, %v1896
    %v1898 = vand.u32 %v1897, 4294901760
    %1899 = vmatpush1.msra.mxu0 %v1898
    %v1900 = vand.u32 %v664, 4294901760
    %v1901 = vsub.f32 %v664, %v1900
    %v1902 = vand.u32 %v1901, 4294901760
    %1903 = vmatprep.subr.mxu0 %v1902
    %v1904 = vand.u32 %v663, 4294901760
    %v1905 = vsub.f32 %v663, %v1904
    %v1906 = vand.u32 %v1905, 4294901760
    %1907 = vmatpush1.msra.mxu0 %v1906
    %v1908 = vand.u32 %v662, 4294901760
    %v1909 = vsub.f32 %v662, %v1908
    %v1910 = vand.u32 %v1909, 4294901760
    %1911 = vmatprep.subr.mxu0 %v1910
    %v1912 = vand.u32 %v661, 4294901760
    %v1913 = vsub.f32 %v661, %v1912
    %v1914 = vand.u32 %v1913, 4294901760
    %1915 = vmatpush1.msra.mxu0 %v1914
    %v1916 = vand.u32 %v660, 4294901760
    %v1917 = vsub.f32 %v660, %v1916
    %v1918 = vand.u32 %v1917, 4294901760
    %1919 = vmatprep.subr.mxu0 %v1918
    %v1920 = vand.u32 %v659, 4294901760
    %v1921 = vsub.f32 %v659, %v1920
    %v1922 = vand.u32 %v1921, 4294901760
    %1923 = vmatpush1.msra.mxu0 %v1922
    %1924 = vmatprep.subr.mxu0 0.0
    %1925 = vmatpush2.msra.mxu0 0.0
    %1926 = vmatprep.subr.mxu0 0.0
    %1927 = vmatpush2.msra.mxu0 0.0
    %1928 = vmatprep.subr.mxu0 0.0
    %1929 = vmatpush2.msra.mxu0 0.0
    %1930 = vmatprep.subr.mxu0 0.0
    %1931 = vmatpush2.msra.mxu0 0.0
    %1932 = vmatprep.subr.mxu0 0.0
    %1933 = vmatpush2.msra.mxu0 0.0
    %1934 = vmatprep.subr.mxu0 0.0
    %1935 = vmatpush2.msra.mxu0 0.0
    %1936 = vmatprep.subr.mxu0 0.0
    %1937 = vmatpush2.msra.mxu0 0.0
    %1938 = vmatprep.subr.mxu0 0.0
    %1939 = vmatpush2.msra.mxu0 0.0
    %1940 = vmatprep.subr.mxu0 0.0
    %1941 = vmatpush2.msra.mxu0 0.0
    %1942 = vmatprep.subr.mxu0 0.0
    %1943 = vmatpush2.msra.mxu0 0.0
    %1944 = vmatprep.subr.mxu0 0.0
    %1945 = vmatpush2.msra.mxu0 0.0
    %1946 = vmatprep.subr.mxu0 0.0
    %1947 = vmatpush2.msra.mxu0 0.0
    %1948 = vmatprep.subr.mxu0 0.0
    %1949 = vmatpush2.msra.mxu0 0.0
    %1950 = vmatprep.subr.mxu0 0.0
    %1951 = vmatpush2.msra.mxu0 0.0
    %1952 = vmatprep.subr.mxu0 0.0
    %1953 = vmatpush2.msra.mxu0 0.0
    %1954 = vmatprep.subr.mxu0 0.0
    %1955 = vmatpush2.msra.mxu0 0.0
    %1956 = vmatprep.mubr.f32.mxu0 0.0
    %v1957 = vand.u32 %v1403, 4294901760
    %1958 = vmatmul.mubr.f32.gmra.mxu0 %v1957
    %v1959 = vpop.f32.mrf.mxu0
    %v1960 = vadd.f32 %v1840, %v1959
    %v1961 = vpop.f32.mrf.mxu0
    %v1962 = vadd.f32 %v1842, %v1961
    %1963 = vdwg.mxu0
    %1964 = vmatprep.subr.mxu0 0.0
    %1965 = vmatpush1.msra.mxu0 0.0
    %1966 = vmatprep.subr.mxu0 0.0
    %1967 = vmatpush1.msra.mxu0 0.0
    %1968 = vmatprep.subr.mxu0 0.0
    %1969 = vmatpush1.msra.mxu0 0.0
    %1970 = vmatprep.subr.mxu0 0.0
    %1971 = vmatpush1.msra.mxu0 0.0
    %1972 = vmatprep.subr.mxu0 0.0
    %1973 = vmatpush1.msra.mxu0 0.0
    %1974 = vmatprep.subr.mxu0 0.0
    %1975 = vmatpush1.msra.mxu0 0.0
    %1976 = vmatprep.subr.mxu0 0.0
    %1977 = vmatpush1.msra.mxu0 0.0
    %1978 = vmatprep.subr.mxu0 0.0
    %1979 = vmatpush1.msra.mxu0 0.0
    %v1980 = vand.u32 %v674, 4294901760
    %1981 = vmatprep.subr.mxu0 %v1980
    %v1982 = vand.u32 %v673, 4294901760
    %1983 = vmatpush1.msra.mxu0 %v1982
    %v1984 = vand.u32 %v672, 4294901760
    %1985 = vmatprep.subr.mxu0 %v1984
    %v1986 = vand.u32 %v671, 4294901760
    %1987 = vmatpush1.msra.mxu0 %v1986
    %v1988 = vand.u32 %v670, 4294901760
    %1989 = vmatprep.subr.mxu0 %v1988
    %v1990 = vand.u32 %v669, 4294901760
    %1991 = vmatpush1.msra.mxu0 %v1990
    %v1992 = vand.u32 %v668, 4294901760
    %1993 = vmatprep.subr.mxu0 %v1992
    %v1994 = vand.u32 %v667, 4294901760
    %1995 = vmatpush1.msra.mxu0 %v1994
    %v1996 = vand.u32 %v666, 4294901760
    %1997 = vmatprep.subr.mxu0 %v1996
    %v1998 = vand.u32 %v665, 4294901760
    %1999 = vmatpush1.msra.mxu0 %v1998
    %v2000 = vand.u32 %v664, 4294901760
    %2001 = vmatprep.subr.mxu0 %v2000
    %v2002 = vand.u32 %v663, 4294901760
    %2003 = vmatpush1.msra.mxu0 %v2002
    %v2004 = vand.u32 %v662, 4294901760
    %2005 = vmatprep.subr.mxu0 %v2004
    %v2006 = vand.u32 %v661, 4294901760
    %2007 = vmatpush1.msra.mxu0 %v2006
    %v2008 = vand.u32 %v660, 4294901760
    %2009 = vmatprep.subr.mxu0 %v2008
    %v2010 = vand.u32 %v659, 4294901760
    %2011 = vmatpush1.msra.mxu0 %v2010
    %2012 = vmatprep.subr.mxu0 0.0
    %2013 = vmatpush2.msra.mxu0 0.0
    %2014 = vmatprep.subr.mxu0 0.0
    %2015 = vmatpush2.msra.mxu0 0.0
    %2016 = vmatprep.subr.mxu0 0.0
    %2017 = vmatpush2.msra.mxu0 0.0
    %2018 = vmatprep.subr.mxu0 0.0
    %2019 = vmatpush2.msra.mxu0 0.0
    %2020 = vmatprep.subr.mxu0 0.0
    %2021 = vmatpush2.msra.mxu0 0.0
    %2022 = vmatprep.subr.mxu0 0.0
    %2023 = vmatpush2.msra.mxu0 0.0
    %2024 = vmatprep.subr.mxu0 0.0
    %2025 = vmatpush2.msra.mxu0 0.0
    %2026 = vmatprep.subr.mxu0 0.0
    %2027 = vmatpush2.msra.mxu0 0.0
    %2028 = vmatprep.subr.mxu0 0.0
    %2029 = vmatpush2.msra.mxu0 0.0
    %2030 = vmatprep.subr.mxu0 0.0
    %2031 = vmatpush2.msra.mxu0 0.0
    %2032 = vmatprep.subr.mxu0 0.0
    %2033 = vmatpush2.msra.mxu0 0.0
    %2034 = vmatprep.subr.mxu0 0.0
    %2035 = vmatpush2.msra.mxu0 0.0
    %2036 = vmatprep.subr.mxu0 0.0
    %2037 = vmatpush2.msra.mxu0 0.0
    %2038 = vmatprep.subr.mxu0 0.0
    %2039 = vmatpush2.msra.mxu0 0.0
    %2040 = vmatprep.subr.mxu0 0.0
    %2041 = vmatpush2.msra.mxu0 0.0
    %2042 = vmatprep.subr.mxu0 0.0
    %2043 = vmatpush2.msra.mxu0 0.0
    %2044 = vmatprep.mubr.f32.mxu0 0.0
    %v2045 = vand.u32 %v1403, 4294901760
    %2046 = vmatmul.mubr.f32.gmra.mxu0 %v2045
    %v2047 = vpop.f32.mrf.mxu0
    %v2048 = vadd.f32 %v1960, %v2047
    %v2049 = vpop.f32.mrf.mxu0
    %v2050 = vadd.f32 %v1962, %v2049
    %2051 = vdwg.mxu0
    %v2054 = vrot.slane %v2048, 7
    %v2055 = vrot.slane %v2050, 7
    %v2060 = vadd.f32 %v648, %v2054
    %v2061 = vadd.f32 %v650, %v2055
    %v2062 = vadd.f32 %v655, %v2048
    %v2063 = vadd.f32 %v657, %v2050
    %v2064 = vxor.u32 %v2060, 2147483648
    %v2065 = vxor.u32 %v2061, 2147483648
    %v2066 = vxor.u32 %v2062, 2147483648
    %v2067 = vxor.u32 %v2063, 2147483648
    %v2068 = vmul.f32 %v2064, 1.442695
    %v2069 = vpow.pop %v2068
    %v2070 = vmul.f32 %v2065, 1.442695
    %v2071 = vpow.pop %v2070
    %v2072 = vmul.f32 %v2066, 1.442695
    %v2073 = vpow.pop %v2072
    %v2074 = vmul.f32 %v2067, 1.442695
    %v2075 = vpow.pop %v2074
    %v2076 = vadd.f32 %v2069, 1.0
    %v2077 = vadd.f32 %v2071, 1.0
    %v2078 = vadd.f32 %v2073, 1.0
    %v2079 = vadd.f32 %v2075, 1.0
    %v2080 = vrcp.pop %v2076
    %v2081 = vmul.f32 1.0, %v2080
    %v2082 = vrcp.pop %v2077
    %v2083 = vmul.f32 1.0, %v2082
    %v2084 = vrcp.pop %v2078
    %v2085 = vmul.f32 1.0, %v2084
    %v2086 = vrcp.pop %v2079
    %v2087 = vmul.f32 1.0, %v2086
    %v2088 = vtanh.pop %v2061
    %v2089 = vtanh.pop %v2063
    %v2092 = vrot.slane %v1384, 7
    %v2093 = vrot.slane %v1385, 7
    %v2096 = vmul.f32 %v2081, %v2092
    %v2097 = vmul.f32 %v2085, %v2093
    %2100 = vrot.lane.b32.xlu0 %v2088, 64
    %v2101 = vpop.permute.xlu0 %2100
    %2102 = vrot.lane.b32.xlu0 %v2089, 64
    %v2103 = vpop.permute.xlu0 %2102
    %v2106 = vmul.f32 %v2081, %v2101
    %v2107 = vmul.f32 %v2085, %v2103
    %2110 = vrot.lane.b32.xlu0 %v2106, 64
    %v2111 = vpop.permute.xlu0 %2110
    %2112 = vrot.lane.b32.xlu0 %v2107, 64
    %v2113 = vpop.permute.xlu0 %2112
    %v2116 = vadd.f32 %v2096, %v2111
    %v2117 = vadd.f32 %v2097, %v2113
    %v2118 = vtanh.pop %v2116
    %v2119 = vtanh.pop %v2117
    %2122 = vrot.lane.b32.xlu0 %v2118, 64
    %v2123 = vpop.permute.xlu0 %2122
    %2124 = vrot.lane.b32.xlu0 %v2119, 64
    %v2125 = vpop.permute.xlu0 %2124
    %v2128 = vmul.f32 %v2083, %v2123
    %v2129 = vmul.f32 %v2087, %v2125
    %v2132 = vrot.slane %v2128, 1
    %v2133 = vsel %vm1401, %v2129, %v2132
    %v2134 = vsel %vm675, %v2133, 0
    %2136 = vmatprep.subr.mxu0 0.0
    %2137 = vmatpush1.msra.mxu0 0.0
    %2138 = vmatprep.subr.mxu0 0.0
    %2139 = vmatpush1.msra.mxu0 0.0
    %2140 = vmatprep.subr.mxu0 0.0
    %2141 = vmatpush1.msra.mxu0 0.0
    %2142 = vmatprep.subr.mxu0 0.0
    %2143 = vmatpush1.msra.mxu0 0.0
    %2144 = vmatprep.subr.mxu0 0.0
    %2145 = vmatpush1.msra.mxu0 0.0
    %2146 = vmatprep.subr.mxu0 0.0
    %2147 = vmatpush1.msra.mxu0 0.0
    %2148 = vmatprep.subr.mxu0 0.0
    %2149 = vmatpush1.msra.mxu0 0.0
    %2150 = vmatprep.subr.mxu0 0.0
    %2151 = vmatpush1.msra.mxu0 0.0
    %v2152 = vand.u32 %v674, 4294901760
    %2153 = vmatprep.subr.mxu0 %v2152
    %v2154 = vand.u32 %v673, 4294901760
    %2155 = vmatpush1.msra.mxu0 %v2154
    %v2156 = vand.u32 %v672, 4294901760
    %2157 = vmatprep.subr.mxu0 %v2156
    %v2158 = vand.u32 %v671, 4294901760
    %2159 = vmatpush1.msra.mxu0 %v2158
    %v2160 = vand.u32 %v670, 4294901760
    %2161 = vmatprep.subr.mxu0 %v2160
    %v2162 = vand.u32 %v669, 4294901760
    %2163 = vmatpush1.msra.mxu0 %v2162
    %v2164 = vand.u32 %v668, 4294901760
    %2165 = vmatprep.subr.mxu0 %v2164
    %v2166 = vand.u32 %v667, 4294901760
    %2167 = vmatpush1.msra.mxu0 %v2166
    %v2168 = vand.u32 %v666, 4294901760
    %2169 = vmatprep.subr.mxu0 %v2168
    %v2170 = vand.u32 %v665, 4294901760
    %2171 = vmatpush1.msra.mxu0 %v2170
    %v2172 = vand.u32 %v664, 4294901760
    %2173 = vmatprep.subr.mxu0 %v2172
    %v2174 = vand.u32 %v663, 4294901760
    %2175 = vmatpush1.msra.mxu0 %v2174
    %v2176 = vand.u32 %v662, 4294901760
    %2177 = vmatprep.subr.mxu0 %v2176
    %v2178 = vand.u32 %v661, 4294901760
    %2179 = vmatpush1.msra.mxu0 %v2178
    %v2180 = vand.u32 %v660, 4294901760
    %2181 = vmatprep.subr.mxu0 %v2180
    %v2182 = vand.u32 %v659, 4294901760
    %2183 = vmatpush1.msra.mxu0 %v2182
    %2184 = vmatprep.subr.mxu0 0.0
    %2185 = vmatpush2.msra.mxu0 0.0
    %2186 = vmatprep.subr.mxu0 0.0
    %2187 = vmatpush2.msra.mxu0 0.0
    %2188 = vmatprep.subr.mxu0 0.0
    %2189 = vmatpush2.msra.mxu0 0.0
    %2190 = vmatprep.subr.mxu0 0.0
    %2191 = vmatpush2.msra.mxu0 0.0
    %2192 = vmatprep.subr.mxu0 0.0
    %2193 = vmatpush2.msra.mxu0 0.0
    %2194 = vmatprep.subr.mxu0 0.0
    %2195 = vmatpush2.msra.mxu0 0.0
    %2196 = vmatprep.subr.mxu0 0.0
    %2197 = vmatpush2.msra.mxu0 0.0
    %2198 = vmatprep.subr.mxu0 0.0
    %2199 = vmatpush2.msra.mxu0 0.0
    %2200 = vmatprep.subr.mxu0 0.0
    %2201 = vmatpush2.msra.mxu0 0.0
    %2202 = vmatprep.subr.mxu0 0.0
    %2203 = vmatpush2.msra.mxu0 0.0
    %2204 = vmatprep.subr.mxu0 0.0
    %2205 = vmatpush2.msra.mxu0 0.0
    %2206 = vmatprep.subr.mxu0 0.0
    %2207 = vmatpush2.msra.mxu0 0.0
    %2208 = vmatprep.subr.mxu0 0.0
    %2209 = vmatpush2.msra.mxu0 0.0
    %2210 = vmatprep.subr.mxu0 0.0
    %2211 = vmatpush2.msra.mxu0 0.0
    %2212 = vmatprep.subr.mxu0 0.0
    %2213 = vmatpush2.msra.mxu0 0.0
    %2214 = vmatprep.subr.mxu0 0.0
    %2215 = vmatpush2.msra.mxu0 0.0
    %2216 = vmatprep.mubr.f32.mxu0 0.0
    %v2217 = vand.u32 %v2134, 4294901760
    %v2218 = vsub.f32 %v2134, %v2217
    %v2219 = vand.u32 %v2218, 4294901760
    %v2220 = vsub.f32 %v2218, %v2219
    %v2221 = vand.u32 %v2220, 4294901760
    %2222 = vmatmul.mubr.f32.gmra.mxu0 %v2221
    %v2223 = vpop.f32.mrf.mxu0
    %v2224 = vadd.f32 0.0, %v2223
    %v2225 = vpop.f32.mrf.mxu0
    %v2226 = vadd.f32 0.0, %v2225
    %2227 = vdwg.mxu0
    %2228 = vmatprep.subr.mxu0 0.0
    %2229 = vmatpush1.msra.mxu0 0.0
    %2230 = vmatprep.subr.mxu0 0.0
    %2231 = vmatpush1.msra.mxu0 0.0
    %2232 = vmatprep.subr.mxu0 0.0
    %2233 = vmatpush1.msra.mxu0 0.0
    %2234 = vmatprep.subr.mxu0 0.0
    %2235 = vmatpush1.msra.mxu0 0.0
    %2236 = vmatprep.subr.mxu0 0.0
    %2237 = vmatpush1.msra.mxu0 0.0
    %2238 = vmatprep.subr.mxu0 0.0
    %2239 = vmatpush1.msra.mxu0 0.0
    %2240 = vmatprep.subr.mxu0 0.0
    %2241 = vmatpush1.msra.mxu0 0.0
    %2242 = vmatprep.subr.mxu0 0.0
    %2243 = vmatpush1.msra.mxu0 0.0
    %v2244 = vand.u32 %v674, 4294901760
    %v2245 = vsub.f32 %v674, %v2244
    %v2246 = vand.u32 %v2245, 4294901760
    %v2247 = vsub.f32 %v2245, %v2246
    %v2248 = vand.u32 %v2247, 4294901760
    %2249 = vmatprep.subr.mxu0 %v2248
    %v2250 = vand.u32 %v673, 4294901760
    %v2251 = vsub.f32 %v673, %v2250
    %v2252 = vand.u32 %v2251, 4294901760
    %v2253 = vsub.f32 %v2251, %v2252
    %v2254 = vand.u32 %v2253, 4294901760
    %2255 = vmatpush1.msra.mxu0 %v2254
    %v2256 = vand.u32 %v672, 4294901760
    %v2257 = vsub.f32 %v672, %v2256
    %v2258 = vand.u32 %v2257, 4294901760
    %v2259 = vsub.f32 %v2257, %v2258
    %v2260 = vand.u32 %v2259, 4294901760
    %2261 = vmatprep.subr.mxu0 %v2260
    %v2262 = vand.u32 %v671, 4294901760
    %v2263 = vsub.f32 %v671, %v2262
    %v2264 = vand.u32 %v2263, 4294901760
    %v2265 = vsub.f32 %v2263, %v2264
    %v2266 = vand.u32 %v2265, 4294901760
    %2267 = vmatpush1.msra.mxu0 %v2266
    %v2268 = vand.u32 %v670, 4294901760
    %v2269 = vsub.f32 %v670, %v2268
    %v2270 = vand.u32 %v2269, 4294901760
    %v2271 = vsub.f32 %v2269, %v2270
    %v2272 = vand.u32 %v2271, 4294901760
    %2273 = vmatprep.subr.mxu0 %v2272
    %v2274 = vand.u32 %v669, 4294901760
    %v2275 = vsub.f32 %v669, %v2274
    %v2276 = vand.u32 %v2275, 4294901760
    %v2277 = vsub.f32 %v2275, %v2276
    %v2278 = vand.u32 %v2277, 4294901760
    %2279 = vmatpush1.msra.mxu0 %v2278
    %v2280 = vand.u32 %v668, 4294901760
    %v2281 = vsub.f32 %v668, %v2280
    %v2282 = vand.u32 %v2281, 4294901760
    %v2283 = vsub.f32 %v2281, %v2282
    %v2284 = vand.u32 %v2283, 4294901760
    %2285 = vmatprep.subr.mxu0 %v2284
    %v2286 = vand.u32 %v667, 4294901760
    %v2287 = vsub.f32 %v667, %v2286
    %v2288 = vand.u32 %v2287, 4294901760
    %v2289 = vsub.f32 %v2287, %v2288
    %v2290 = vand.u32 %v2289, 4294901760
    %2291 = vmatpush1.msra.mxu0 %v2290
    %v2292 = vand.u32 %v666, 4294901760
    %v2293 = vsub.f32 %v666, %v2292
    %v2294 = vand.u32 %v2293, 4294901760
    %v2295 = vsub.f32 %v2293, %v2294
    %v2296 = vand.u32 %v2295, 4294901760
    %2297 = vmatprep.subr.mxu0 %v2296
    %v2298 = vand.u32 %v665, 4294901760
    %v2299 = vsub.f32 %v665, %v2298
    %v2300 = vand.u32 %v2299, 4294901760
    %v2301 = vsub.f32 %v2299, %v2300
    %v2302 = vand.u32 %v2301, 4294901760
    %2303 = vmatpush1.msra.mxu0 %v2302
    %v2304 = vand.u32 %v664, 4294901760
    %v2305 = vsub.f32 %v664, %v2304
    %v2306 = vand.u32 %v2305, 4294901760
    %v2307 = vsub.f32 %v2305, %v2306
    %v2308 = vand.u32 %v2307, 4294901760
    %2309 = vmatprep.subr.mxu0 %v2308
    %v2310 = vand.u32 %v663, 4294901760
    %v2311 = vsub.f32 %v663, %v2310
    %v2312 = vand.u32 %v2311, 4294901760
    %v2313 = vsub.f32 %v2311, %v2312
    %v2314 = vand.u32 %v2313, 4294901760
    %2315 = vmatpush1.msra.mxu0 %v2314
    %v2316 = vand.u32 %v662, 4294901760
    %v2317 = vsub.f32 %v662, %v2316
    %v2318 = vand.u32 %v2317, 4294901760
    %v2319 = vsub.f32 %v2317, %v2318
    %v2320 = vand.u32 %v2319, 4294901760
    %2321 = vmatprep.subr.mxu0 %v2320
    %v2322 = vand.u32 %v661, 4294901760
    %v2323 = vsub.f32 %v661, %v2322
    %v2324 = vand.u32 %v2323, 4294901760
    %v2325 = vsub.f32 %v2323, %v2324
    %v2326 = vand.u32 %v2325, 4294901760
    %2327 = vmatpush1.msra.mxu0 %v2326
    %v2328 = vand.u32 %v660, 4294901760
    %v2329 = vsub.f32 %v660, %v2328
    %v2330 = vand.u32 %v2329, 4294901760
    %v2331 = vsub.f32 %v2329, %v2330
    %v2332 = vand.u32 %v2331, 4294901760
    %2333 = vmatprep.subr.mxu0 %v2332
    %v2334 = vand.u32 %v659, 4294901760
    %v2335 = vsub.f32 %v659, %v2334
    %v2336 = vand.u32 %v2335, 4294901760
    %v2337 = vsub.f32 %v2335, %v2336
    %v2338 = vand.u32 %v2337, 4294901760
    %2339 = vmatpush1.msra.mxu0 %v2338
    %2340 = vmatprep.subr.mxu0 0.0
    %2341 = vmatpush2.msra.mxu0 0.0
    %2342 = vmatprep.subr.mxu0 0.0
    %2343 = vmatpush2.msra.mxu0 0.0
    %2344 = vmatprep.subr.mxu0 0.0
    %2345 = vmatpush2.msra.mxu0 0.0
    %2346 = vmatprep.subr.mxu0 0.0
    %2347 = vmatpush2.msra.mxu0 0.0
    %2348 = vmatprep.subr.mxu0 0.0
    %2349 = vmatpush2.msra.mxu0 0.0
    %2350 = vmatprep.subr.mxu0 0.0
    %2351 = vmatpush2.msra.mxu0 0.0
    %2352 = vmatprep.subr.mxu0 0.0
    %2353 = vmatpush2.msra.mxu0 0.0
    %2354 = vmatprep.subr.mxu0 0.0
    %2355 = vmatpush2.msra.mxu0 0.0
    %2356 = vmatprep.subr.mxu0 0.0
    %2357 = vmatpush2.msra.mxu0 0.0
    %2358 = vmatprep.subr.mxu0 0.0
    %2359 = vmatpush2.msra.mxu0 0.0
    %2360 = vmatprep.subr.mxu0 0.0
    %2361 = vmatpush2.msra.mxu0 0.0
    %2362 = vmatprep.subr.mxu0 0.0
    %2363 = vmatpush2.msra.mxu0 0.0
    %2364 = vmatprep.subr.mxu0 0.0
    %2365 = vmatpush2.msra.mxu0 0.0
    %2366 = vmatprep.subr.mxu0 0.0
    %2367 = vmatpush2.msra.mxu0 0.0
    %2368 = vmatprep.subr.mxu0 0.0
    %2369 = vmatpush2.msra.mxu0 0.0
    %2370 = vmatprep.subr.mxu0 0.0
    %2371 = vmatpush2.msra.mxu0 0.0
    %2372 = vmatprep.mubr.f32.mxu0 0.0
    %v2373 = vand.u32 %v2134, 4294901760
    %2374 = vmatmul.mubr.f32.gmra.mxu0 %v2373
    %v2375 = vpop.f32.mrf.mxu0
    %v2376 = vadd.f32 %v2224, %v2375
    %v2377 = vpop.f32.mrf.mxu0
    %v2378 = vadd.f32 %v2226, %v2377
    %2379 = vdwg.mxu0
    %2380 = vmatprep.subr.mxu0 0.0
    %2381 = vmatpush1.msra.mxu0 0.0
    %2382 = vmatprep.subr.mxu0 0.0
    %2383 = vmatpush1.msra.mxu0 0.0
    %2384 = vmatprep.subr.mxu0 0.0
    %2385 = vmatpush1.msra.mxu0 0.0
    %2386 = vmatprep.subr.mxu0 0.0
    %2387 = vmatpush1.msra.mxu0 0.0
    %2388 = vmatprep.subr.mxu0 0.0
    %2389 = vmatpush1.msra.mxu0 0.0
    %2390 = vmatprep.subr.mxu0 0.0
    %2391 = vmatpush1.msra.mxu0 0.0
    %2392 = vmatprep.subr.mxu0 0.0
    %2393 = vmatpush1.msra.mxu0 0.0
    %2394 = vmatprep.subr.mxu0 0.0
    %2395 = vmatpush1.msra.mxu0 0.0
    %v2396 = vand.u32 %v674, 4294901760
    %v2397 = vsub.f32 %v674, %v2396
    %2398 = vmatprep.subr.mxu0 %v2397
    %v2399 = vand.u32 %v673, 4294901760
    %v2400 = vsub.f32 %v673, %v2399
    %2401 = vmatpush1.msra.mxu0 %v2400
    %v2402 = vand.u32 %v672, 4294901760
    %v2403 = vsub.f32 %v672, %v2402
    %2404 = vmatprep.subr.mxu0 %v2403
    %v2405 = vand.u32 %v671, 4294901760
    %v2406 = vsub.f32 %v671, %v2405
    %2407 = vmatpush1.msra.mxu0 %v2406
    %v2408 = vand.u32 %v670, 4294901760
    %v2409 = vsub.f32 %v670, %v2408
    %2410 = vmatprep.subr.mxu0 %v2409
    %v2411 = vand.u32 %v669, 4294901760
    %v2412 = vsub.f32 %v669, %v2411
    %2413 = vmatpush1.msra.mxu0 %v2412
    %v2414 = vand.u32 %v668, 4294901760
    %v2415 = vsub.f32 %v668, %v2414
    %2416 = vmatprep.subr.mxu0 %v2415
    %v2417 = vand.u32 %v667, 4294901760
    %v2418 = vsub.f32 %v667, %v2417
    %2419 = vmatpush1.msra.mxu0 %v2418
    %v2420 = vand.u32 %v666, 4294901760
    %v2421 = vsub.f32 %v666, %v2420
    %2422 = vmatprep.subr.mxu0 %v2421
    %v2423 = vand.u32 %v665, 4294901760
    %v2424 = vsub.f32 %v665, %v2423
    %2425 = vmatpush1.msra.mxu0 %v2424
    %v2426 = vand.u32 %v664, 4294901760
    %v2427 = vsub.f32 %v664, %v2426
    %2428 = vmatprep.subr.mxu0 %v2427
    %v2429 = vand.u32 %v663, 4294901760
    %v2430 = vsub.f32 %v663, %v2429
    %2431 = vmatpush1.msra.mxu0 %v2430
    %v2432 = vand.u32 %v662, 4294901760
    %v2433 = vsub.f32 %v662, %v2432
    %2434 = vmatprep.subr.mxu0 %v2433
    %v2435 = vand.u32 %v661, 4294901760
    %v2436 = vsub.f32 %v661, %v2435
    %2437 = vmatpush1.msra.mxu0 %v2436
    %v2438 = vand.u32 %v660, 4294901760
    %v2439 = vsub.f32 %v660, %v2438
    %2440 = vmatprep.subr.mxu0 %v2439
    %v2441 = vand.u32 %v659, 4294901760
    %v2442 = vsub.f32 %v659, %v2441
    %2443 = vmatpush1.msra.mxu0 %v2442
    %2444 = vmatprep.subr.mxu0 0.0
    %2445 = vmatpush2.msra.mxu0 0.0
    %2446 = vmatprep.subr.mxu0 0.0
    %2447 = vmatpush2.msra.mxu0 0.0
    %2448 = vmatprep.subr.mxu0 0.0
    %2449 = vmatpush2.msra.mxu0 0.0
    %2450 = vmatprep.subr.mxu0 0.0
    %2451 = vmatpush2.msra.mxu0 0.0
    %2452 = vmatprep.subr.mxu0 0.0
    %2453 = vmatpush2.msra.mxu0 0.0
    %2454 = vmatprep.subr.mxu0 0.0
    %2455 = vmatpush2.msra.mxu0 0.0
    %2456 = vmatprep.subr.mxu0 0.0
    %2457 = vmatpush2.msra.mxu0 0.0
    %2458 = vmatprep.subr.mxu0 0.0
    %2459 = vmatpush2.msra.mxu0 0.0
    %2460 = vmatprep.subr.mxu0 0.0
    %2461 = vmatpush2.msra.mxu0 0.0
    %2462 = vmatprep.subr.mxu0 0.0
    %2463 = vmatpush2.msra.mxu0 0.0
    %2464 = vmatprep.subr.mxu0 0.0
    %2465 = vmatpush2.msra.mxu0 0.0
    %2466 = vmatprep.subr.mxu0 0.0
    %2467 = vmatpush2.msra.mxu0 0.0
    %2468 = vmatprep.subr.mxu0 0.0
    %2469 = vmatpush2.msra.mxu0 0.0
    %2470 = vmatprep.subr.mxu0 0.0
    %2471 = vmatpush2.msra.mxu0 0.0
    %2472 = vmatprep.subr.mxu0 0.0
    %2473 = vmatpush2.msra.mxu0 0.0
    %2474 = vmatprep.subr.mxu0 0.0
    %2475 = vmatpush2.msra.mxu0 0.0
    %2476 = vmatprep.mubr.f32.mxu0 0.0
    %v2477 = vand.u32 %v2134, 4294901760
    %v2478 = vsub.f32 %v2134, %v2477
    %2479 = vmatmul.mubr.f32.gmra.mxu0 %v2478
    %v2480 = vpop.f32.mrf.mxu0
    %v2481 = vadd.f32 %v2376, %v2480
    %v2482 = vpop.f32.mrf.mxu0
    %v2483 = vadd.f32 %v2378, %v2482
    %2484 = vdwg.mxu0
    %2485 = vmatprep.subr.mxu0 0.0
    %2486 = vmatpush1.msra.mxu0 0.0
    %2487 = vmatprep.subr.mxu0 0.0
    %2488 = vmatpush1.msra.mxu0 0.0
    %2489 = vmatprep.subr.mxu0 0.0
    %2490 = vmatpush1.msra.mxu0 0.0
    %2491 = vmatprep.subr.mxu0 0.0
    %2492 = vmatpush1.msra.mxu0 0.0
    %2493 = vmatprep.subr.mxu0 0.0
    %2494 = vmatpush1.msra.mxu0 0.0
    %2495 = vmatprep.subr.mxu0 0.0
    %2496 = vmatpush1.msra.mxu0 0.0
    %2497 = vmatprep.subr.mxu0 0.0
    %2498 = vmatpush1.msra.mxu0 0.0
    %2499 = vmatprep.subr.mxu0 0.0
    %2500 = vmatpush1.msra.mxu0 0.0
    %v2501 = vand.u32 %v674, 4294901760
    %2502 = vmatprep.subr.mxu0 %v2501
    %v2503 = vand.u32 %v673, 4294901760
    %2504 = vmatpush1.msra.mxu0 %v2503
    %v2505 = vand.u32 %v672, 4294901760
    %2506 = vmatprep.subr.mxu0 %v2505
    %v2507 = vand.u32 %v671, 4294901760
    %2508 = vmatpush1.msra.mxu0 %v2507
    %v2509 = vand.u32 %v670, 4294901760
    %2510 = vmatprep.subr.mxu0 %v2509
    %v2511 = vand.u32 %v669, 4294901760
    %2512 = vmatpush1.msra.mxu0 %v2511
    %v2513 = vand.u32 %v668, 4294901760
    %2514 = vmatprep.subr.mxu0 %v2513
    %v2515 = vand.u32 %v667, 4294901760
    %2516 = vmatpush1.msra.mxu0 %v2515
    %v2517 = vand.u32 %v666, 4294901760
    %2518 = vmatprep.subr.mxu0 %v2517
    %v2519 = vand.u32 %v665, 4294901760
    %2520 = vmatpush1.msra.mxu0 %v2519
    %v2521 = vand.u32 %v664, 4294901760
    %2522 = vmatprep.subr.mxu0 %v2521
    %v2523 = vand.u32 %v663, 4294901760
    %2524 = vmatpush1.msra.mxu0 %v2523
    %v2525 = vand.u32 %v662, 4294901760
    %2526 = vmatprep.subr.mxu0 %v2525
    %v2527 = vand.u32 %v661, 4294901760
    %2528 = vmatpush1.msra.mxu0 %v2527
    %v2529 = vand.u32 %v660, 4294901760
    %2530 = vmatprep.subr.mxu0 %v2529
    %v2531 = vand.u32 %v659, 4294901760
    %2532 = vmatpush1.msra.mxu0 %v2531
    %2533 = vmatprep.subr.mxu0 0.0
    %2534 = vmatpush2.msra.mxu0 0.0
    %2535 = vmatprep.subr.mxu0 0.0
    %2536 = vmatpush2.msra.mxu0 0.0
    %2537 = vmatprep.subr.mxu0 0.0
    %2538 = vmatpush2.msra.mxu0 0.0
    %2539 = vmatprep.subr.mxu0 0.0
    %2540 = vmatpush2.msra.mxu0 0.0
    %2541 = vmatprep.subr.mxu0 0.0
    %2542 = vmatpush2.msra.mxu0 0.0
    %2543 = vmatprep.subr.mxu0 0.0
    %2544 = vmatpush2.msra.mxu0 0.0
    %2545 = vmatprep.subr.mxu0 0.0
    %2546 = vmatpush2.msra.mxu0 0.0
    %2547 = vmatprep.subr.mxu0 0.0
    %2548 = vmatpush2.msra.mxu0 0.0
    %2549 = vmatprep.subr.mxu0 0.0
    %2550 = vmatpush2.msra.mxu0 0.0
    %2551 = vmatprep.subr.mxu0 0.0
    %2552 = vmatpush2.msra.mxu0 0.0
    %2553 = vmatprep.subr.mxu0 0.0
    %2554 = vmatpush2.msra.mxu0 0.0
    %2555 = vmatprep.subr.mxu0 0.0
    %2556 = vmatpush2.msra.mxu0 0.0
    %2557 = vmatprep.subr.mxu0 0.0
    %2558 = vmatpush2.msra.mxu0 0.0
    %2559 = vmatprep.subr.mxu0 0.0
    %2560 = vmatpush2.msra.mxu0 0.0
    %2561 = vmatprep.subr.mxu0 0.0
    %2562 = vmatpush2.msra.mxu0 0.0
    %2563 = vmatprep.subr.mxu0 0.0
    %2564 = vmatpush2.msra.mxu0 0.0
    %2565 = vmatprep.mubr.f32.mxu0 0.0
    %v2566 = vand.u32 %v2134, 4294901760
    %v2567 = vsub.f32 %v2134, %v2566
    %v2568 = vand.u32 %v2567, 4294901760
    %2569 = vmatmul.mubr.f32.gmra.mxu0 %v2568
    %v2570 = vpop.f32.mrf.mxu0
    %v2571 = vadd.f32 %v2481, %v2570
    %v2572 = vpop.f32.mrf.mxu0
    %v2573 = vadd.f32 %v2483, %v2572
    %2574 = vdwg.mxu0
    %2575 = vmatprep.subr.mxu0 0.0
    %2576 = vmatpush1.msra.mxu0 0.0
    %2577 = vmatprep.subr.mxu0 0.0
    %2578 = vmatpush1.msra.mxu0 0.0
    %2579 = vmatprep.subr.mxu0 0.0
    %2580 = vmatpush1.msra.mxu0 0.0
    %2581 = vmatprep.subr.mxu0 0.0
    %2582 = vmatpush1.msra.mxu0 0.0
    %2583 = vmatprep.subr.mxu0 0.0
    %2584 = vmatpush1.msra.mxu0 0.0
    %2585 = vmatprep.subr.mxu0 0.0
    %2586 = vmatpush1.msra.mxu0 0.0
    %2587 = vmatprep.subr.mxu0 0.0
    %2588 = vmatpush1.msra.mxu0 0.0
    %2589 = vmatprep.subr.mxu0 0.0
    %2590 = vmatpush1.msra.mxu0 0.0
    %v2591 = vand.u32 %v674, 4294901760
    %v2592 = vsub.f32 %v674, %v2591
    %v2593 = vand.u32 %v2592, 4294901760
    %2594 = vmatprep.subr.mxu0 %v2593
    %v2595 = vand.u32 %v673, 4294901760
    %v2596 = vsub.f32 %v673, %v2595
    %v2597 = vand.u32 %v2596, 4294901760
    %2598 = vmatpush1.msra.mxu0 %v2597
    %v2599 = vand.u32 %v672, 4294901760
    %v2600 = vsub.f32 %v672, %v2599
    %v2601 = vand.u32 %v2600, 4294901760
    %2602 = vmatprep.subr.mxu0 %v2601
    %v2603 = vand.u32 %v671, 4294901760
    %v2604 = vsub.f32 %v671, %v2603
    %v2605 = vand.u32 %v2604, 4294901760
    %2606 = vmatpush1.msra.mxu0 %v2605
    %v2607 = vand.u32 %v670, 4294901760
    %v2608 = vsub.f32 %v670, %v2607
    %v2609 = vand.u32 %v2608, 4294901760
    %2610 = vmatprep.subr.mxu0 %v2609
    %v2611 = vand.u32 %v669, 4294901760
    %v2612 = vsub.f32 %v669, %v2611
    %v2613 = vand.u32 %v2612, 4294901760
    %2614 = vmatpush1.msra.mxu0 %v2613
    %v2615 = vand.u32 %v668, 4294901760
    %v2616 = vsub.f32 %v668, %v2615
    %v2617 = vand.u32 %v2616, 4294901760
    %2618 = vmatprep.subr.mxu0 %v2617
    %v2619 = vand.u32 %v667, 4294901760
    %v2620 = vsub.f32 %v667, %v2619
    %v2621 = vand.u32 %v2620, 4294901760
    %2622 = vmatpush1.msra.mxu0 %v2621
    %v2623 = vand.u32 %v666, 4294901760
    %v2624 = vsub.f32 %v666, %v2623
    %v2625 = vand.u32 %v2624, 4294901760
    %2626 = vmatprep.subr.mxu0 %v2625
    %v2627 = vand.u32 %v665, 4294901760
    %v2628 = vsub.f32 %v665, %v2627
    %v2629 = vand.u32 %v2628, 4294901760
    %2630 = vmatpush1.msra.mxu0 %v2629
    %v2631 = vand.u32 %v664, 4294901760
    %v2632 = vsub.f32 %v664, %v2631
    %v2633 = vand.u32 %v2632, 4294901760
    %2634 = vmatprep.subr.mxu0 %v2633
    %v2635 = vand.u32 %v663, 4294901760
    %v2636 = vsub.f32 %v663, %v2635
    %v2637 = vand.u32 %v2636, 4294901760
    %2638 = vmatpush1.msra.mxu0 %v2637
    %v2639 = vand.u32 %v662, 4294901760
    %v2640 = vsub.f32 %v662, %v2639
    %v2641 = vand.u32 %v2640, 4294901760
    %2642 = vmatprep.subr.mxu0 %v2641
    %v2643 = vand.u32 %v661, 4294901760
    %v2644 = vsub.f32 %v661, %v2643
    %v2645 = vand.u32 %v2644, 4294901760
    %2646 = vmatpush1.msra.mxu0 %v2645
    %v2647 = vand.u32 %v660, 4294901760
    %v2648 = vsub.f32 %v660, %v2647
    %v2649 = vand.u32 %v2648, 4294901760
    %2650 = vmatprep.subr.mxu0 %v2649
    %v2651 = vand.u32 %v659, 4294901760
    %v2652 = vsub.f32 %v659, %v2651
    %v2653 = vand.u32 %v2652, 4294901760
    %2654 = vmatpush1.msra.mxu0 %v2653
    %2655 = vmatprep.subr.mxu0 0.0
    %2656 = vmatpush2.msra.mxu0 0.0
    %2657 = vmatprep.subr.mxu0 0.0
    %2658 = vmatpush2.msra.mxu0 0.0
    %2659 = vmatprep.subr.mxu0 0.0
    %2660 = vmatpush2.msra.mxu0 0.0
    %2661 = vmatprep.subr.mxu0 0.0
    %2662 = vmatpush2.msra.mxu0 0.0
    %2663 = vmatprep.subr.mxu0 0.0
    %2664 = vmatpush2.msra.mxu0 0.0
    %2665 = vmatprep.subr.mxu0 0.0
    %2666 = vmatpush2.msra.mxu0 0.0
    %2667 = vmatprep.subr.mxu0 0.0
    %2668 = vmatpush2.msra.mxu0 0.0
    %2669 = vmatprep.subr.mxu0 0.0
    %2670 = vmatpush2.msra.mxu0 0.0
    %2671 = vmatprep.subr.mxu0 0.0
    %2672 = vmatpush2.msra.mxu0 0.0
    %2673 = vmatprep.subr.mxu0 0.0
    %2674 = vmatpush2.msra.mxu0 0.0
    %2675 = vmatprep.subr.mxu0 0.0
    %2676 = vmatpush2.msra.mxu0 0.0
    %2677 = vmatprep.subr.mxu0 0.0
    %2678 = vmatpush2.msra.mxu0 0.0
    %2679 = vmatprep.subr.mxu0 0.0
    %2680 = vmatpush2.msra.mxu0 0.0
    %2681 = vmatprep.subr.mxu0 0.0
    %2682 = vmatpush2.msra.mxu0 0.0
    %2683 = vmatprep.subr.mxu0 0.0
    %2684 = vmatpush2.msra.mxu0 0.0
    %2685 = vmatprep.subr.mxu0 0.0
    %2686 = vmatpush2.msra.mxu0 0.0
    %2687 = vmatprep.mubr.f32.mxu0 0.0
    %v2688 = vand.u32 %v2134, 4294901760
    %2689 = vmatmul.mubr.f32.gmra.mxu0 %v2688
    %v2690 = vpop.f32.mrf.mxu0
    %v2691 = vadd.f32 %v2571, %v2690
    %v2692 = vpop.f32.mrf.mxu0
    %v2693 = vadd.f32 %v2573, %v2692
    %2694 = vdwg.mxu0
    %2695 = vmatprep.subr.mxu0 0.0
    %2696 = vmatpush1.msra.mxu0 0.0
    %2697 = vmatprep.subr.mxu0 0.0
    %2698 = vmatpush1.msra.mxu0 0.0
    %2699 = vmatprep.subr.mxu0 0.0
    %2700 = vmatpush1.msra.mxu0 0.0
    %2701 = vmatprep.subr.mxu0 0.0
    %2702 = vmatpush1.msra.mxu0 0.0
    %2703 = vmatprep.subr.mxu0 0.0
    %2704 = vmatpush1.msra.mxu0 0.0
    %2705 = vmatprep.subr.mxu0 0.0
    %2706 = vmatpush1.msra.mxu0 0.0
    %2707 = vmatprep.subr.mxu0 0.0
    %2708 = vmatpush1.msra.mxu0 0.0
    %2709 = vmatprep.subr.mxu0 0.0
    %2710 = vmatpush1.msra.mxu0 0.0
    %v2711 = vand.u32 %v674, 4294901760
    %2712 = vmatprep.subr.mxu0 %v2711
    %v2713 = vand.u32 %v673, 4294901760
    %2714 = vmatpush1.msra.mxu0 %v2713
    %v2715 = vand.u32 %v672, 4294901760
    %2716 = vmatprep.subr.mxu0 %v2715
    %v2717 = vand.u32 %v671, 4294901760
    %2718 = vmatpush1.msra.mxu0 %v2717
    %v2719 = vand.u32 %v670, 4294901760
    %2720 = vmatprep.subr.mxu0 %v2719
    %v2721 = vand.u32 %v669, 4294901760
    %2722 = vmatpush1.msra.mxu0 %v2721
    %v2723 = vand.u32 %v668, 4294901760
    %2724 = vmatprep.subr.mxu0 %v2723
    %v2725 = vand.u32 %v667, 4294901760
    %2726 = vmatpush1.msra.mxu0 %v2725
    %v2727 = vand.u32 %v666, 4294901760
    %2728 = vmatprep.subr.mxu0 %v2727
    %v2729 = vand.u32 %v665, 4294901760
    %2730 = vmatpush1.msra.mxu0 %v2729
    %v2731 = vand.u32 %v664, 4294901760
    %2732 = vmatprep.subr.mxu0 %v2731
    %v2733 = vand.u32 %v663, 4294901760
    %2734 = vmatpush1.msra.mxu0 %v2733
    %v2735 = vand.u32 %v662, 4294901760
    %2736 = vmatprep.subr.mxu0 %v2735
    %v2737 = vand.u32 %v661, 4294901760
    %2738 = vmatpush1.msra.mxu0 %v2737
    %v2739 = vand.u32 %v660, 4294901760
    %2740 = vmatprep.subr.mxu0 %v2739
    %v2741 = vand.u32 %v659, 4294901760
    %2742 = vmatpush1.msra.mxu0 %v2741
    %2743 = vmatprep.subr.mxu0 0.0
    %2744 = vmatpush2.msra.mxu0 0.0
    %2745 = vmatprep.subr.mxu0 0.0
    %2746 = vmatpush2.msra.mxu0 0.0
    %2747 = vmatprep.subr.mxu0 0.0
    %2748 = vmatpush2.msra.mxu0 0.0
    %2749 = vmatprep.subr.mxu0 0.0
    %2750 = vmatpush2.msra.mxu0 0.0
    %2751 = vmatprep.subr.mxu0 0.0
    %2752 = vmatpush2.msra.mxu0 0.0
    %2753 = vmatprep.subr.mxu0 0.0
    %2754 = vmatpush2.msra.mxu0 0.0
    %2755 = vmatprep.subr.mxu0 0.0
    %2756 = vmatpush2.msra.mxu0 0.0
    %2757 = vmatprep.subr.mxu0 0.0
    %2758 = vmatpush2.msra.mxu0 0.0
    %2759 = vmatprep.subr.mxu0 0.0
    %2760 = vmatpush2.msra.mxu0 0.0
    %2761 = vmatprep.subr.mxu0 0.0
    %2762 = vmatpush2.msra.mxu0 0.0
    %2763 = vmatprep.subr.mxu0 0.0
    %2764 = vmatpush2.msra.mxu0 0.0
    %2765 = vmatprep.subr.mxu0 0.0
    %2766 = vmatpush2.msra.mxu0 0.0
    %2767 = vmatprep.subr.mxu0 0.0
    %2768 = vmatpush2.msra.mxu0 0.0
    %2769 = vmatprep.subr.mxu0 0.0
    %2770 = vmatpush2.msra.mxu0 0.0
    %2771 = vmatprep.subr.mxu0 0.0
    %2772 = vmatpush2.msra.mxu0 0.0
    %2773 = vmatprep.subr.mxu0 0.0
    %2774 = vmatpush2.msra.mxu0 0.0
    %2775 = vmatprep.mubr.f32.mxu0 0.0
    %v2776 = vand.u32 %v2134, 4294901760
    %2777 = vmatmul.mubr.f32.gmra.mxu0 %v2776
    %v2778 = vpop.f32.mrf.mxu0
    %v2779 = vadd.f32 %v2691, %v2778
    %v2780 = vpop.f32.mrf.mxu0
    %v2781 = vadd.f32 %v2693, %v2780
    %2782 = vdwg.mxu0
    %v2785 = vrot.slane %v2779, 6
    %v2786 = vrot.slane %v2781, 6
    %v2787 = vrot.slane %v2779, 7
    %v2788 = vrot.slane %v2781, 7
    %v2793 = vadd.f32 %v648, %v2785
    %v2794 = vadd.f32 %v650, %v2786
    %v2795 = vadd.f32 %v655, %v2787
    %v2796 = vadd.f32 %v657, %v2788
    %v2797 = vxor.u32 %v2793, 2147483648
    %v2798 = vxor.u32 %v2794, 2147483648
    %v2799 = vxor.u32 %v2795, 2147483648
    %v2800 = vxor.u32 %v2796, 2147483648
    %v2801 = vmul.f32 %v2797, 1.442695
    %v2802 = vpow.pop %v2801
    %v2803 = vmul.f32 %v2798, 1.442695
    %v2804 = vpow.pop %v2803
    %v2805 = vmul.f32 %v2799, 1.442695
    %v2806 = vpow.pop %v2805
    %v2807 = vmul.f32 %v2800, 1.442695
    %v2808 = vpow.pop %v2807
    %v2809 = vadd.f32 %v2802, 1.0
    %v2810 = vadd.f32 %v2804, 1.0
    %v2811 = vadd.f32 %v2806, 1.0
    %v2812 = vadd.f32 %v2808, 1.0
    %v2813 = vrcp.pop %v2809
    %v2814 = vmul.f32 1.0, %v2813
    %v2815 = vrcp.pop %v2810
    %v2816 = vmul.f32 1.0, %v2815
    %v2817 = vrcp.pop %v2811
    %v2818 = vmul.f32 1.0, %v2817
    %v2819 = vrcp.pop %v2812
    %v2820 = vmul.f32 1.0, %v2819
    %v2821 = vtanh.pop %v2794
    %v2822 = vtanh.pop %v2796
    %v2825 = vrot.slane %v2116, 7
    %v2826 = vrot.slane %v2117, 7
    %v2829 = vmul.f32 %v2814, %v2825
    %v2830 = vmul.f32 %v2818, %v2826
    %2833 = vrot.lane.b32.xlu0 %v2821, 64
    %v2834 = vpop.permute.xlu0 %2833
    %2835 = vrot.lane.b32.xlu0 %v2822, 64
    %v2836 = vpop.permute.xlu0 %2835
    %v2839 = vmul.f32 %v2814, %v2834
    %v2840 = vmul.f32 %v2818, %v2836
    %2843 = vrot.lane.b32.xlu0 %v2839, 64
    %v2844 = vpop.permute.xlu0 %2843
    %2845 = vrot.lane.b32.xlu0 %v2840, 64
    %v2846 = vpop.permute.xlu0 %2845
    %v2849 = vadd.f32 %v2829, %v2844
    %v2850 = vadd.f32 %v2830, %v2846
    %v2851 = vtanh.pop %v2849
    %v2852 = vtanh.pop %v2850
    %2855 = vrot.lane.b32.xlu0 %v2851, 64
    %v2856 = vpop.permute.xlu0 %2855
    %2857 = vrot.lane.b32.xlu0 %v2852, 64
    %v2858 = vpop.permute.xlu0 %2857
    %v2861 = vmul.f32 %v2816, %v2856
    %v2862 = vmul.f32 %v2820, %v2858
    %v2865 = vrot.slane %v2861, 2
    %v2866 = vrot.slane %v2862, 1
    %v2867 = vsel %vm1401, %v2866, %v2865
    %v2868 = vsel %vm675, %v2867, 0
    %2870 = vmatprep.subr.mxu0 0.0
    %2871 = vmatpush1.msra.mxu0 0.0
    %2872 = vmatprep.subr.mxu0 0.0
    %2873 = vmatpush1.msra.mxu0 0.0
    %2874 = vmatprep.subr.mxu0 0.0
    %2875 = vmatpush1.msra.mxu0 0.0
    %2876 = vmatprep.subr.mxu0 0.0
    %2877 = vmatpush1.msra.mxu0 0.0
    %2878 = vmatprep.subr.mxu0 0.0
    %2879 = vmatpush1.msra.mxu0 0.0
    %2880 = vmatprep.subr.mxu0 0.0
    %2881 = vmatpush1.msra.mxu0 0.0
    %2882 = vmatprep.subr.mxu0 0.0
    %2883 = vmatpush1.msra.mxu0 0.0
    %2884 = vmatprep.subr.mxu0 0.0
    %2885 = vmatpush1.msra.mxu0 0.0
    %v2886 = vand.u32 %v674, 4294901760
    %2887 = vmatprep.subr.mxu0 %v2886
    %v2888 = vand.u32 %v673, 4294901760
    %2889 = vmatpush1.msra.mxu0 %v2888
    %v2890 = vand.u32 %v672, 4294901760
    %2891 = vmatprep.subr.mxu0 %v2890
    %v2892 = vand.u32 %v671, 4294901760
    %2893 = vmatpush1.msra.mxu0 %v2892
    %v2894 = vand.u32 %v670, 4294901760
    %2895 = vmatprep.subr.mxu0 %v2894
    %v2896 = vand.u32 %v669, 4294901760
    %2897 = vmatpush1.msra.mxu0 %v2896
    %v2898 = vand.u32 %v668, 4294901760
    %2899 = vmatprep.subr.mxu0 %v2898
    %v2900 = vand.u32 %v667, 4294901760
    %2901 = vmatpush1.msra.mxu0 %v2900
    %v2902 = vand.u32 %v666, 4294901760
    %2903 = vmatprep.subr.mxu0 %v2902
    %v2904 = vand.u32 %v665, 4294901760
    %2905 = vmatpush1.msra.mxu0 %v2904
    %v2906 = vand.u32 %v664, 4294901760
    %2907 = vmatprep.subr.mxu0 %v2906
    %v2908 = vand.u32 %v663, 4294901760
    %2909 = vmatpush1.msra.mxu0 %v2908
    %v2910 = vand.u32 %v662, 4294901760
    %2911 = vmatprep.subr.mxu0 %v2910
    %v2912 = vand.u32 %v661, 4294901760
    %2913 = vmatpush1.msra.mxu0 %v2912
    %v2914 = vand.u32 %v660, 4294901760
    %2915 = vmatprep.subr.mxu0 %v2914
    %v2916 = vand.u32 %v659, 4294901760
    %2917 = vmatpush1.msra.mxu0 %v2916
    %2918 = vmatprep.subr.mxu0 0.0
    %2919 = vmatpush2.msra.mxu0 0.0
    %2920 = vmatprep.subr.mxu0 0.0
    %2921 = vmatpush2.msra.mxu0 0.0
    %2922 = vmatprep.subr.mxu0 0.0
    %2923 = vmatpush2.msra.mxu0 0.0
    %2924 = vmatprep.subr.mxu0 0.0
    %2925 = vmatpush2.msra.mxu0 0.0
    %2926 = vmatprep.subr.mxu0 0.0
    %2927 = vmatpush2.msra.mxu0 0.0
    %2928 = vmatprep.subr.mxu0 0.0
    %2929 = vmatpush2.msra.mxu0 0.0
    %2930 = vmatprep.subr.mxu0 0.0
    %2931 = vmatpush2.msra.mxu0 0.0
    %2932 = vmatprep.subr.mxu0 0.0
    %2933 = vmatpush2.msra.mxu0 0.0
    %2934 = vmatprep.subr.mxu0 0.0
    %2935 = vmatpush2.msra.mxu0 0.0
    %2936 = vmatprep.subr.mxu0 0.0
    %2937 = vmatpush2.msra.mxu0 0.0
    %2938 = vmatprep.subr.mxu0 0.0
    %2939 = vmatpush2.msra.mxu0 0.0
    %2940 = vmatprep.subr.mxu0 0.0
    %2941 = vmatpush2.msra.mxu0 0.0
    %2942 = vmatprep.subr.mxu0 0.0
    %2943 = vmatpush2.msra.mxu0 0.0
    %2944 = vmatprep.subr.mxu0 0.0
    %2945 = vmatpush2.msra.mxu0 0.0
    %2946 = vmatprep.subr.mxu0 0.0
    %2947 = vmatpush2.msra.mxu0 0.0
    %2948 = vmatprep.subr.mxu0 0.0
    %2949 = vmatpush2.msra.mxu0 0.0
    %2950 = vmatprep.mubr.f32.mxu0 0.0
    %v2951 = vand.u32 %v2868, 4294901760
    %v2952 = vsub.f32 %v2868, %v2951
    %v2953 = vand.u32 %v2952, 4294901760
    %v2954 = vsub.f32 %v2952, %v2953
    %v2955 = vand.u32 %v2954, 4294901760
    %2956 = vmatmul.mubr.f32.gmra.mxu0 %v2955
    %v2957 = vpop.f32.mrf.mxu0
    %v2958 = vadd.f32 0.0, %v2957
    %v2959 = vpop.f32.mrf.mxu0
    %v2960 = vadd.f32 0.0, %v2959
    %2961 = vdwg.mxu0
    %2962 = vmatprep.subr.mxu0 0.0
    %2963 = vmatpush1.msra.mxu0 0.0
    %2964 = vmatprep.subr.mxu0 0.0
    %2965 = vmatpush1.msra.mxu0 0.0
    %2966 = vmatprep.subr.mxu0 0.0
    %2967 = vmatpush1.msra.mxu0 0.0
    %2968 = vmatprep.subr.mxu0 0.0
    %2969 = vmatpush1.msra.mxu0 0.0
    %2970 = vmatprep.subr.mxu0 0.0
    %2971 = vmatpush1.msra.mxu0 0.0
    %2972 = vmatprep.subr.mxu0 0.0
    %2973 = vmatpush1.msra.mxu0 0.0
    %2974 = vmatprep.subr.mxu0 0.0
    %2975 = vmatpush1.msra.mxu0 0.0
    %2976 = vmatprep.subr.mxu0 0.0
    %2977 = vmatpush1.msra.mxu0 0.0
    %v2978 = vand.u32 %v674, 4294901760
    %v2979 = vsub.f32 %v674, %v2978
    %v2980 = vand.u32 %v2979, 4294901760
    %v2981 = vsub.f32 %v2979, %v2980
    %v2982 = vand.u32 %v2981, 4294901760
    %2983 = vmatprep.subr.mxu0 %v2982
    %v2984 = vand.u32 %v673, 4294901760
    %v2985 = vsub.f32 %v673, %v2984
    %v2986 = vand.u32 %v2985, 4294901760
    %v2987 = vsub.f32 %v2985, %v2986
    %v2988 = vand.u32 %v2987, 4294901760
    %2989 = vmatpush1.msra.mxu0 %v2988
    %v2990 = vand.u32 %v672, 4294901760
    %v2991 = vsub.f32 %v672, %v2990
    %v2992 = vand.u32 %v2991, 4294901760
    %v2993 = vsub.f32 %v2991, %v2992
    %v2994 = vand.u32 %v2993, 4294901760
    %2995 = vmatprep.subr.mxu0 %v2994
    %v2996 = vand.u32 %v671, 4294901760
    %v2997 = vsub.f32 %v671, %v2996
    %v2998 = vand.u32 %v2997, 4294901760
    %v2999 = vsub.f32 %v2997, %v2998
    %v3000 = vand.u32 %v2999, 4294901760
    %3001 = vmatpush1.msra.mxu0 %v3000
    %v3002 = vand.u32 %v670, 4294901760
    %v3003 = vsub.f32 %v670, %v3002
    %v3004 = vand.u32 %v3003, 4294901760
    %v3005 = vsub.f32 %v3003, %v3004
    %v3006 = vand.u32 %v3005, 4294901760
    %3007 = vmatprep.subr.mxu0 %v3006
    %v3008 = vand.u32 %v669, 4294901760
    %v3009 = vsub.f32 %v669, %v3008
    %v3010 = vand.u32 %v3009, 4294901760
    %v3011 = vsub.f32 %v3009, %v3010
    %v3012 = vand.u32 %v3011, 4294901760
    %3013 = vmatpush1.msra.mxu0 %v3012
    %v3014 = vand.u32 %v668, 4294901760
    %v3015 = vsub.f32 %v668, %v3014
    %v3016 = vand.u32 %v3015, 4294901760
    %v3017 = vsub.f32 %v3015, %v3016
    %v3018 = vand.u32 %v3017, 4294901760
    %3019 = vmatprep.subr.mxu0 %v3018
    %v3020 = vand.u32 %v667, 4294901760
    %v3021 = vsub.f32 %v667, %v3020
    %v3022 = vand.u32 %v3021, 4294901760
    %v3023 = vsub.f32 %v3021, %v3022
    %v3024 = vand.u32 %v3023, 4294901760
    %3025 = vmatpush1.msra.mxu0 %v3024
    %v3026 = vand.u32 %v666, 4294901760
    %v3027 = vsub.f32 %v666, %v3026
    %v3028 = vand.u32 %v3027, 4294901760
    %v3029 = vsub.f32 %v3027, %v3028
    %v3030 = vand.u32 %v3029, 4294901760
    %3031 = vmatprep.subr.mxu0 %v3030
    %v3032 = vand.u32 %v665, 4294901760
    %v3033 = vsub.f32 %v665, %v3032
    %v3034 = vand.u32 %v3033, 4294901760
    %v3035 = vsub.f32 %v3033, %v3034
    %v3036 = vand.u32 %v3035, 4294901760
    %3037 = vmatpush1.msra.mxu0 %v3036
    %v3038 = vand.u32 %v664, 4294901760
    %v3039 = vsub.f32 %v664, %v3038
    %v3040 = vand.u32 %v3039, 4294901760
    %v3041 = vsub.f32 %v3039, %v3040
    %v3042 = vand.u32 %v3041, 4294901760
    %3043 = vmatprep.subr.mxu0 %v3042
    %v3044 = vand.u32 %v663, 4294901760
    %v3045 = vsub.f32 %v663, %v3044
    %v3046 = vand.u32 %v3045, 4294901760
    %v3047 = vsub.f32 %v3045, %v3046
    %v3048 = vand.u32 %v3047, 4294901760
    %3049 = vmatpush1.msra.mxu0 %v3048
    %v3050 = vand.u32 %v662, 4294901760
    %v3051 = vsub.f32 %v662, %v3050
    %v3052 = vand.u32 %v3051, 4294901760
    %v3053 = vsub.f32 %v3051, %v3052
    %v3054 = vand.u32 %v3053, 4294901760
    %3055 = vmatprep.subr.mxu0 %v3054
    %v3056 = vand.u32 %v661, 4294901760
    %v3057 = vsub.f32 %v661, %v3056
    %v3058 = vand.u32 %v3057, 4294901760
    %v3059 = vsub.f32 %v3057, %v3058
    %v3060 = vand.u32 %v3059, 4294901760
    %3061 = vmatpush1.msra.mxu0 %v3060
    %v3062 = vand.u32 %v660, 4294901760
    %v3063 = vsub.f32 %v660, %v3062
    %v3064 = vand.u32 %v3063, 4294901760
    %v3065 = vsub.f32 %v3063, %v3064
    %v3066 = vand.u32 %v3065, 4294901760
    %3067 = vmatprep.subr.mxu0 %v3066
    %v3068 = vand.u32 %v659, 4294901760
    %v3069 = vsub.f32 %v659, %v3068
    %v3070 = vand.u32 %v3069, 4294901760
    %v3071 = vsub.f32 %v3069, %v3070
    %v3072 = vand.u32 %v3071, 4294901760
    %3073 = vmatpush1.msra.mxu0 %v3072
    %3074 = vmatprep.subr.mxu0 0.0
    %3075 = vmatpush2.msra.mxu0 0.0
    %3076 = vmatprep.subr.mxu0 0.0
    %3077 = vmatpush2.msra.mxu0 0.0
    %3078 = vmatprep.subr.mxu0 0.0
    %3079 = vmatpush2.msra.mxu0 0.0
    %3080 = vmatprep.subr.mxu0 0.0
    %3081 = vmatpush2.msra.mxu0 0.0
    %3082 = vmatprep.subr.mxu0 0.0
    %3083 = vmatpush2.msra.mxu0 0.0
    %3084 = vmatprep.subr.mxu0 0.0
    %3085 = vmatpush2.msra.mxu0 0.0
    %3086 = vmatprep.subr.mxu0 0.0
    %3087 = vmatpush2.msra.mxu0 0.0
    %3088 = vmatprep.subr.mxu0 0.0
    %3089 = vmatpush2.msra.mxu0 0.0
    %3090 = vmatprep.subr.mxu0 0.0
    %3091 = vmatpush2.msra.mxu0 0.0
    %3092 = vmatprep.subr.mxu0 0.0
    %3093 = vmatpush2.msra.mxu0 0.0
    %3094 = vmatprep.subr.mxu0 0.0
    %3095 = vmatpush2.msra.mxu0 0.0
    %3096 = vmatprep.subr.mxu0 0.0
    %3097 = vmatpush2.msra.mxu0 0.0
    %3098 = vmatprep.subr.mxu0 0.0
    %3099 = vmatpush2.msra.mxu0 0.0
    %3100 = vmatprep.subr.mxu0 0.0
    %3101 = vmatpush2.msra.mxu0 0.0
    %3102 = vmatprep.subr.mxu0 0.0
    %3103 = vmatpush2.msra.mxu0 0.0
    %3104 = vmatprep.subr.mxu0 0.0
    %3105 = vmatpush2.msra.mxu0 0.0
    %3106 = vmatprep.mubr.f32.mxu0 0.0
    %v3107 = vand.u32 %v2868, 4294901760
    %3108 = vmatmul.mubr.f32.gmra.mxu0 %v3107
    %v3109 = vpop.f32.mrf.mxu0
    %v3110 = vadd.f32 %v2958, %v3109
    %v3111 = vpop.f32.mrf.mxu0
    %v3112 = vadd.f32 %v2960, %v3111
    %3113 = vdwg.mxu0
    %3114 = vmatprep.subr.mxu0 0.0
    %3115 = vmatpush1.msra.mxu0 0.0
    %3116 = vmatprep.subr.mxu0 0.0
    %3117 = vmatpush1.msra.mxu0 0.0
    %3118 = vmatprep.subr.mxu0 0.0
    %3119 = vmatpush1.msra.mxu0 0.0
    %3120 = vmatprep.subr.mxu0 0.0
    %3121 = vmatpush1.msra.mxu0 0.0
    %3122 = vmatprep.subr.mxu0 0.0
    %3123 = vmatpush1.msra.mxu0 0.0
    %3124 = vmatprep.subr.mxu0 0.0
    %3125 = vmatpush1.msra.mxu0 0.0
    %3126 = vmatprep.subr.mxu0 0.0
    %3127 = vmatpush1.msra.mxu0 0.0
    %3128 = vmatprep.subr.mxu0 0.0
    %3129 = vmatpush1.msra.mxu0 0.0
    %v3130 = vand.u32 %v674, 4294901760
    %v3131 = vsub.f32 %v674, %v3130
    %3132 = vmatprep.subr.mxu0 %v3131
    %v3133 = vand.u32 %v673, 4294901760
    %v3134 = vsub.f32 %v673, %v3133
    %3135 = vmatpush1.msra.mxu0 %v3134
    %v3136 = vand.u32 %v672, 4294901760
    %v3137 = vsub.f32 %v672, %v3136
    %3138 = vmatprep.subr.mxu0 %v3137
    %v3139 = vand.u32 %v671, 4294901760
    %v3140 = vsub.f32 %v671, %v3139
    %3141 = vmatpush1.msra.mxu0 %v3140
    %v3142 = vand.u32 %v670, 4294901760
    %v3143 = vsub.f32 %v670, %v3142
    %3144 = vmatprep.subr.mxu0 %v3143
    %v3145 = vand.u32 %v669, 4294901760
    %v3146 = vsub.f32 %v669, %v3145
    %3147 = vmatpush1.msra.mxu0 %v3146
    %v3148 = vand.u32 %v668, 4294901760
    %v3149 = vsub.f32 %v668, %v3148
    %3150 = vmatprep.subr.mxu0 %v3149
    %v3151 = vand.u32 %v667, 4294901760
    %v3152 = vsub.f32 %v667, %v3151
    %3153 = vmatpush1.msra.mxu0 %v3152
    %v3154 = vand.u32 %v666, 4294901760
    %v3155 = vsub.f32 %v666, %v3154
    %3156 = vmatprep.subr.mxu0 %v3155
    %v3157 = vand.u32 %v665, 4294901760
    %v3158 = vsub.f32 %v665, %v3157
    %3159 = vmatpush1.msra.mxu0 %v3158
    %v3160 = vand.u32 %v664, 4294901760
    %v3161 = vsub.f32 %v664, %v3160
    %3162 = vmatprep.subr.mxu0 %v3161
    %v3163 = vand.u32 %v663, 4294901760
    %v3164 = vsub.f32 %v663, %v3163
    %3165 = vmatpush1.msra.mxu0 %v3164
    %v3166 = vand.u32 %v662, 4294901760
    %v3167 = vsub.f32 %v662, %v3166
    %3168 = vmatprep.subr.mxu0 %v3167
    %v3169 = vand.u32 %v661, 4294901760
    %v3170 = vsub.f32 %v661, %v3169
    %3171 = vmatpush1.msra.mxu0 %v3170
    %v3172 = vand.u32 %v660, 4294901760
    %v3173 = vsub.f32 %v660, %v3172
    %3174 = vmatprep.subr.mxu0 %v3173
    %v3175 = vand.u32 %v659, 4294901760
    %v3176 = vsub.f32 %v659, %v3175
    %3177 = vmatpush1.msra.mxu0 %v3176
    %3178 = vmatprep.subr.mxu0 0.0
    %3179 = vmatpush2.msra.mxu0 0.0
    %3180 = vmatprep.subr.mxu0 0.0
    %3181 = vmatpush2.msra.mxu0 0.0
    %3182 = vmatprep.subr.mxu0 0.0
    %3183 = vmatpush2.msra.mxu0 0.0
    %3184 = vmatprep.subr.mxu0 0.0
    %3185 = vmatpush2.msra.mxu0 0.0
    %3186 = vmatprep.subr.mxu0 0.0
    %3187 = vmatpush2.msra.mxu0 0.0
    %3188 = vmatprep.subr.mxu0 0.0
    %3189 = vmatpush2.msra.mxu0 0.0
    %3190 = vmatprep.subr.mxu0 0.0
    %3191 = vmatpush2.msra.mxu0 0.0
    %3192 = vmatprep.subr.mxu0 0.0
    %3193 = vmatpush2.msra.mxu0 0.0
    %3194 = vmatprep.subr.mxu0 0.0
    %3195 = vmatpush2.msra.mxu0 0.0
    %3196 = vmatprep.subr.mxu0 0.0
    %3197 = vmatpush2.msra.mxu0 0.0
    %3198 = vmatprep.subr.mxu0 0.0
    %3199 = vmatpush2.msra.mxu0 0.0
    %3200 = vmatprep.subr.mxu0 0.0
    %3201 = vmatpush2.msra.mxu0 0.0
    %3202 = vmatprep.subr.mxu0 0.0
    %3203 = vmatpush2.msra.mxu0 0.0
    %3204 = vmatprep.subr.mxu0 0.0
    %3205 = vmatpush2.msra.mxu0 0.0
    %3206 = vmatprep.subr.mxu0 0.0
    %3207 = vmatpush2.msra.mxu0 0.0
    %3208 = vmatprep.subr.mxu0 0.0
    %3209 = vmatpush2.msra.mxu0 0.0
    %3210 = vmatprep.mubr.f32.mxu0 0.0
    %v3211 = vand.u32 %v2868, 4294901760
    %v3212 = vsub.f32 %v2868, %v3211
    %3213 = vmatmul.mubr.f32.gmra.mxu0 %v3212
    %v3214 = vpop.f32.mrf.mxu0
    %v3215 = vadd.f32 %v3110, %v3214
    %v3216 = vpop.f32.mrf.mxu0
    %v3217 = vadd.f32 %v3112, %v3216
    %3218 = vdwg.mxu0
    %3219 = vmatprep.subr.mxu0 0.0
    %3220 = vmatpush1.msra.mxu0 0.0
    %3221 = vmatprep.subr.mxu0 0.0
    %3222 = vmatpush1.msra.mxu0 0.0
    %3223 = vmatprep.subr.mxu0 0.0
    %3224 = vmatpush1.msra.mxu0 0.0
    %3225 = vmatprep.subr.mxu0 0.0
    %3226 = vmatpush1.msra.mxu0 0.0
    %3227 = vmatprep.subr.mxu0 0.0
    %3228 = vmatpush1.msra.mxu0 0.0
    %3229 = vmatprep.subr.mxu0 0.0
    %3230 = vmatpush1.msra.mxu0 0.0
    %3231 = vmatprep.subr.mxu0 0.0
    %3232 = vmatpush1.msra.mxu0 0.0
    %3233 = vmatprep.subr.mxu0 0.0
    %3234 = vmatpush1.msra.mxu0 0.0
    %v3235 = vand.u32 %v674, 4294901760
    %3236 = vmatprep.subr.mxu0 %v3235
    %v3237 = vand.u32 %v673, 4294901760
    %3238 = vmatpush1.msra.mxu0 %v3237
    %v3239 = vand.u32 %v672, 4294901760
    %3240 = vmatprep.subr.mxu0 %v3239
    %v3241 = vand.u32 %v671, 4294901760
    %3242 = vmatpush1.msra.mxu0 %v3241
    %v3243 = vand.u32 %v670, 4294901760
    %3244 = vmatprep.subr.mxu0 %v3243
    %v3245 = vand.u32 %v669, 4294901760
    %3246 = vmatpush1.msra.mxu0 %v3245
    %v3247 = vand.u32 %v668, 4294901760
    %3248 = vmatprep.subr.mxu0 %v3247
    %v3249 = vand.u32 %v667, 4294901760
    %3250 = vmatpush1.msra.mxu0 %v3249
    %v3251 = vand.u32 %v666, 4294901760
    %3252 = vmatprep.subr.mxu0 %v3251
    %v3253 = vand.u32 %v665, 4294901760
    %3254 = vmatpush1.msra.mxu0 %v3253
    %v3255 = vand.u32 %v664, 4294901760
    %3256 = vmatprep.subr.mxu0 %v3255
    %v3257 = vand.u32 %v663, 4294901760
    %3258 = vmatpush1.msra.mxu0 %v3257
    %v3259 = vand.u32 %v662, 4294901760
    %3260 = vmatprep.subr.mxu0 %v3259
    %v3261 = vand.u32 %v661, 4294901760
    %3262 = vmatpush1.msra.mxu0 %v3261
    %v3263 = vand.u32 %v660, 4294901760
    %3264 = vmatprep.subr.mxu0 %v3263
    %v3265 = vand.u32 %v659, 4294901760
    %3266 = vmatpush1.msra.mxu0 %v3265
    %3267 = vmatprep.subr.mxu0 0.0
    %3268 = vmatpush2.msra.mxu0 0.0
    %3269 = vmatprep.subr.mxu0 0.0
    %3270 = vmatpush2.msra.mxu0 0.0
    %3271 = vmatprep.subr.mxu0 0.0
    %3272 = vmatpush2.msra.mxu0 0.0
    %3273 = vmatprep.subr.mxu0 0.0
    %3274 = vmatpush2.msra.mxu0 0.0
    %3275 = vmatprep.subr.mxu0 0.0
    %3276 = vmatpush2.msra.mxu0 0.0
    %3277 = vmatprep.subr.mxu0 0.0
    %3278 = vmatpush2.msra.mxu0 0.0
    %3279 = vmatprep.subr.mxu0 0.0
    %3280 = vmatpush2.msra.mxu0 0.0
    %3281 = vmatprep.subr.mxu0 0.0
    %3282 = vmatpush2.msra.mxu0 0.0
    %3283 = vmatprep.subr.mxu0 0.0
    %3284 = vmatpush2.msra.mxu0 0.0
    %3285 = vmatprep.subr.mxu0 0.0
    %3286 = vmatpush2.msra.mxu0 0.0
    %3287 = vmatprep.subr.mxu0 0.0
    %3288 = vmatpush2.msra.mxu0 0.0
    %3289 = vmatprep.subr.mxu0 0.0
    %3290 = vmatpush2.msra.mxu0 0.0
    %3291 = vmatprep.subr.mxu0 0.0
    %3292 = vmatpush2.msra.mxu0 0.0
    %3293 = vmatprep.subr.mxu0 0.0
    %3294 = vmatpush2.msra.mxu0 0.0
    %3295 = vmatprep.subr.mxu0 0.0
    %3296 = vmatpush2.msra.mxu0 0.0
    %3297 = vmatprep.subr.mxu0 0.0
    %3298 = vmatpush2.msra.mxu0 0.0
    %3299 = vmatprep.mubr.f32.mxu0 0.0
    %v3300 = vand.u32 %v2868, 4294901760
    %v3301 = vsub.f32 %v2868, %v3300
    %v3302 = vand.u32 %v3301, 4294901760
    %3303 = vmatmul.mubr.f32.gmra.mxu0 %v3302
    %v3304 = vpop.f32.mrf.mxu0
    %v3305 = vadd.f32 %v3215, %v3304
    %v3306 = vpop.f32.mrf.mxu0
    %v3307 = vadd.f32 %v3217, %v3306
    %3308 = vdwg.mxu0
    %3309 = vmatprep.subr.mxu0 0.0
    %3310 = vmatpush1.msra.mxu0 0.0
    %3311 = vmatprep.subr.mxu0 0.0
    %3312 = vmatpush1.msra.mxu0 0.0
    %3313 = vmatprep.subr.mxu0 0.0
    %3314 = vmatpush1.msra.mxu0 0.0
    %3315 = vmatprep.subr.mxu0 0.0
    %3316 = vmatpush1.msra.mxu0 0.0
    %3317 = vmatprep.subr.mxu0 0.0
    %3318 = vmatpush1.msra.mxu0 0.0
    %3319 = vmatprep.subr.mxu0 0.0
    %3320 = vmatpush1.msra.mxu0 0.0
    %3321 = vmatprep.subr.mxu0 0.0
    %3322 = vmatpush1.msra.mxu0 0.0
    %3323 = vmatprep.subr.mxu0 0.0
    %3324 = vmatpush1.msra.mxu0 0.0
    %v3325 = vand.u32 %v674, 4294901760
    %v3326 = vsub.f32 %v674, %v3325
    %v3327 = vand.u32 %v3326, 4294901760
    %3328 = vmatprep.subr.mxu0 %v3327
    %v3329 = vand.u32 %v673, 4294901760
    %v3330 = vsub.f32 %v673, %v3329
    %v3331 = vand.u32 %v3330, 4294901760
    %3332 = vmatpush1.msra.mxu0 %v3331
    %v3333 = vand.u32 %v672, 4294901760
    %v3334 = vsub.f32 %v672, %v3333
    %v3335 = vand.u32 %v3334, 4294901760
    %3336 = vmatprep.subr.mxu0 %v3335
    %v3337 = vand.u32 %v671, 4294901760
    %v3338 = vsub.f32 %v671, %v3337
    %v3339 = vand.u32 %v3338, 4294901760
    %3340 = vmatpush1.msra.mxu0 %v3339
    %v3341 = vand.u32 %v670, 4294901760
    %v3342 = vsub.f32 %v670, %v3341
    %v3343 = vand.u32 %v3342, 4294901760
    %3344 = vmatprep.subr.mxu0 %v3343
    %v3345 = vand.u32 %v669, 4294901760
    %v3346 = vsub.f32 %v669, %v3345
    %v3347 = vand.u32 %v3346, 4294901760
    %3348 = vmatpush1.msra.mxu0 %v3347
    %v3349 = vand.u32 %v668, 4294901760
    %v3350 = vsub.f32 %v668, %v3349
    %v3351 = vand.u32 %v3350, 4294901760
    %3352 = vmatprep.subr.mxu0 %v3351
    %v3353 = vand.u32 %v667, 4294901760
    %v3354 = vsub.f32 %v667, %v3353
    %v3355 = vand.u32 %v3354, 4294901760
    %3356 = vmatpush1.msra.mxu0 %v3355
    %v3357 = vand.u32 %v666, 4294901760
    %v3358 = vsub.f32 %v666, %v3357
    %v3359 = vand.u32 %v3358, 4294901760
    %3360 = vmatprep.subr.mxu0 %v3359
    %v3361 = vand.u32 %v665, 4294901760
    %v3362 = vsub.f32 %v665, %v3361
    %v3363 = vand.u32 %v3362, 4294901760
    %3364 = vmatpush1.msra.mxu0 %v3363
    %v3365 = vand.u32 %v664, 4294901760
    %v3366 = vsub.f32 %v664, %v3365
    %v3367 = vand.u32 %v3366, 4294901760
    %3368 = vmatprep.subr.mxu0 %v3367
    %v3369 = vand.u32 %v663, 4294901760
    %v3370 = vsub.f32 %v663, %v3369
    %v3371 = vand.u32 %v3370, 4294901760
    %3372 = vmatpush1.msra.mxu0 %v3371
    %v3373 = vand.u32 %v662, 4294901760
    %v3374 = vsub.f32 %v662, %v3373
    %v3375 = vand.u32 %v3374, 4294901760
    %3376 = vmatprep.subr.mxu0 %v3375
    %v3377 = vand.u32 %v661, 4294901760
    %v3378 = vsub.f32 %v661, %v3377
    %v3379 = vand.u32 %v3378, 4294901760
    %3380 = vmatpush1.msra.mxu0 %v3379
    %v3381 = vand.u32 %v660, 4294901760
    %v3382 = vsub.f32 %v660, %v3381
    %v3383 = vand.u32 %v3382, 4294901760
    %3384 = vmatprep.subr.mxu0 %v3383
    %v3385 = vand.u32 %v659, 4294901760
    %v3386 = vsub.f32 %v659, %v3385
    %v3387 = vand.u32 %v3386, 4294901760
    %3388 = vmatpush1.msra.mxu0 %v3387
    %3389 = vmatprep.subr.mxu0 0.0
    %3390 = vmatpush2.msra.mxu0 0.0
    %3391 = vmatprep.subr.mxu0 0.0
    %3392 = vmatpush2.msra.mxu0 0.0
    %3393 = vmatprep.subr.mxu0 0.0
    %3394 = vmatpush2.msra.mxu0 0.0
    %3395 = vmatprep.subr.mxu0 0.0
    %3396 = vmatpush2.msra.mxu0 0.0
    %3397 = vmatprep.subr.mxu0 0.0
    %3398 = vmatpush2.msra.mxu0 0.0
    %3399 = vmatprep.subr.mxu0 0.0
    %3400 = vmatpush2.msra.mxu0 0.0
    %3401 = vmatprep.subr.mxu0 0.0
    %3402 = vmatpush2.msra.mxu0 0.0
    %3403 = vmatprep.subr.mxu0 0.0
    %3404 = vmatpush2.msra.mxu0 0.0
    %3405 = vmatprep.subr.mxu0 0.0
    %3406 = vmatpush2.msra.mxu0 0.0
    %3407 = vmatprep.subr.mxu0 0.0
    %3408 = vmatpush2.msra.mxu0 0.0
    %3409 = vmatprep.subr.mxu0 0.0
    %3410 = vmatpush2.msra.mxu0 0.0
    %3411 = vmatprep.subr.mxu0 0.0
    %3412 = vmatpush2.msra.mxu0 0.0
    %3413 = vmatprep.subr.mxu0 0.0
    %3414 = vmatpush2.msra.mxu0 0.0
    %3415 = vmatprep.subr.mxu0 0.0
    %3416 = vmatpush2.msra.mxu0 0.0
    %3417 = vmatprep.subr.mxu0 0.0
    %3418 = vmatpush2.msra.mxu0 0.0
    %3419 = vmatprep.subr.mxu0 0.0
    %3420 = vmatpush2.msra.mxu0 0.0
    %3421 = vmatprep.mubr.f32.mxu0 0.0
    %v3422 = vand.u32 %v2868, 4294901760
    %3423 = vmatmul.mubr.f32.gmra.mxu0 %v3422
    %v3424 = vpop.f32.mrf.mxu0
    %v3425 = vadd.f32 %v3305, %v3424
    %v3426 = vpop.f32.mrf.mxu0
    %v3427 = vadd.f32 %v3307, %v3426
    %3428 = vdwg.mxu0
    %3429 = vmatprep.subr.mxu0 0.0
    %3430 = vmatpush1.msra.mxu0 0.0
    %3431 = vmatprep.subr.mxu0 0.0
    %3432 = vmatpush1.msra.mxu0 0.0
    %3433 = vmatprep.subr.mxu0 0.0
    %3434 = vmatpush1.msra.mxu0 0.0
    %3435 = vmatprep.subr.mxu0 0.0
    %3436 = vmatpush1.msra.mxu0 0.0
    %3437 = vmatprep.subr.mxu0 0.0
    %3438 = vmatpush1.msra.mxu0 0.0
    %3439 = vmatprep.subr.mxu0 0.0
    %3440 = vmatpush1.msra.mxu0 0.0
    %3441 = vmatprep.subr.mxu0 0.0
    %3442 = vmatpush1.msra.mxu0 0.0
    %3443 = vmatprep.subr.mxu0 0.0
    %3444 = vmatpush1.msra.mxu0 0.0
    %v3445 = vand.u32 %v674, 4294901760
    %3446 = vmatprep.subr.mxu0 %v3445
    %v3447 = vand.u32 %v673, 4294901760
    %3448 = vmatpush1.msra.mxu0 %v3447
    %v3449 = vand.u32 %v672, 4294901760
    %3450 = vmatprep.subr.mxu0 %v3449
    %v3451 = vand.u32 %v671, 4294901760
    %3452 = vmatpush1.msra.mxu0 %v3451
    %v3453 = vand.u32 %v670, 4294901760
    %3454 = vmatprep.subr.mxu0 %v3453
    %v3455 = vand.u32 %v669, 4294901760
    %3456 = vmatpush1.msra.mxu0 %v3455
    %v3457 = vand.u32 %v668, 4294901760
    %3458 = vmatprep.subr.mxu0 %v3457
    %v3459 = vand.u32 %v667, 4294901760
    %3460 = vmatpush1.msra.mxu0 %v3459
    %v3461 = vand.u32 %v666, 4294901760
    %3462 = vmatprep.subr.mxu0 %v3461
    %v3463 = vand.u32 %v665, 4294901760
    %3464 = vmatpush1.msra.mxu0 %v3463
    %v3465 = vand.u32 %v664, 4294901760
    %3466 = vmatprep.subr.mxu0 %v3465
    %v3467 = vand.u32 %v663, 4294901760
    %3468 = vmatpush1.msra.mxu0 %v3467
    %v3469 = vand.u32 %v662, 4294901760
    %3470 = vmatprep.subr.mxu0 %v3469
    %v3471 = vand.u32 %v661, 4294901760
    %3472 = vmatpush1.msra.mxu0 %v3471
    %v3473 = vand.u32 %v660, 4294901760
    %3474 = vmatprep.subr.mxu0 %v3473
    %v3475 = vand.u32 %v659, 4294901760
    %3476 = vmatpush1.msra.mxu0 %v3475
    %3477 = vmatprep.subr.mxu0 0.0
    %3478 = vmatpush2.msra.mxu0 0.0
    %3479 = vmatprep.subr.mxu0 0.0
    %3480 = vmatpush2.msra.mxu0 0.0
    %3481 = vmatprep.subr.mxu0 0.0
    %3482 = vmatpush2.msra.mxu0 0.0
    %3483 = vmatprep.subr.mxu0 0.0
    %3484 = vmatpush2.msra.mxu0 0.0
    %3485 = vmatprep.subr.mxu0 0.0
    %3486 = vmatpush2.msra.mxu0 0.0
    %3487 = vmatprep.subr.mxu0 0.0
    %3488 = vmatpush2.msra.mxu0 0.0
    %3489 = vmatprep.subr.mxu0 0.0
    %3490 = vmatpush2.msra.mxu0 0.0
    %3491 = vmatprep.subr.mxu0 0.0
    %3492 = vmatpush2.msra.mxu0 0.0
    %3493 = vmatprep.subr.mxu0 0.0
    %3494 = vmatpush2.msra.mxu0 0.0
    %3495 = vmatprep.subr.mxu0 0.0
    %3496 = vmatpush2.msra.mxu0 0.0
    %3497 = vmatprep.subr.mxu0 0.0
    %3498 = vmatpush2.msra.mxu0 0.0
    %3499 = vmatprep.subr.mxu0 0.0
    %3500 = vmatpush2.msra.mxu0 0.0
    %3501 = vmatprep.subr.mxu0 0.0
    %3502 = vmatpush2.msra.mxu0 0.0
    %3503 = vmatprep.subr.mxu0 0.0
    %3504 = vmatpush2.msra.mxu0 0.0
    %3505 = vmatprep.subr.mxu0 0.0
    %3506 = vmatpush2.msra.mxu0 0.0
    %3507 = vmatprep.subr.mxu0 0.0
    %3508 = vmatpush2.msra.mxu0 0.0
    %3509 = vmatprep.mubr.f32.mxu0 0.0
    %v3510 = vand.u32 %v2868, 4294901760
    %3511 = vmatmul.mubr.f32.gmra.mxu0 %v3510
    %v3512 = vpop.f32.mrf.mxu0
    %v3513 = vadd.f32 %v3425, %v3512
    %v3514 = vpop.f32.mrf.mxu0
    %v3515 = vadd.f32 %v3427, %v3514
    %3516 = vdwg.mxu0
    %v3519 = vrot.slane %v3513, 5
    %v3520 = vrot.slane %v3515, 5
    %v3521 = vrot.slane %v3513, 6
    %v3522 = vrot.slane %v3515, 6
    %v3527 = vadd.f32 %v648, %v3519
    %v3528 = vadd.f32 %v650, %v3520
    %v3529 = vadd.f32 %v655, %v3521
    %v3530 = vadd.f32 %v657, %v3522
    %v3531 = vxor.u32 %v3527, 2147483648
    %v3532 = vxor.u32 %v3528, 2147483648
    %v3533 = vxor.u32 %v3529, 2147483648
    %v3534 = vxor.u32 %v3530, 2147483648
    %v3535 = vmul.f32 %v3531, 1.442695
    %v3536 = vpow.pop %v3535
    %v3537 = vmul.f32 %v3532, 1.442695
    %v3538 = vpow.pop %v3537
    %v3539 = vmul.f32 %v3533, 1.442695
    %v3540 = vpow.pop %v3539
    %v3541 = vmul.f32 %v3534, 1.442695
    %v3542 = vpow.pop %v3541
    %v3543 = vadd.f32 %v3536, 1.0
    %v3544 = vadd.f32 %v3538, 1.0
    %v3545 = vadd.f32 %v3540, 1.0
    %v3546 = vadd.f32 %v3542, 1.0
    %v3547 = vrcp.pop %v3543
    %v3548 = vmul.f32 1.0, %v3547
    %v3549 = vrcp.pop %v3544
    %v3550 = vmul.f32 1.0, %v3549
    %v3551 = vrcp.pop %v3545
    %v3552 = vmul.f32 1.0, %v3551
    %v3553 = vrcp.pop %v3546
    %v3554 = vmul.f32 1.0, %v3553
    %v3555 = vtanh.pop %v3528
    %v3556 = vtanh.pop %v3530
    %v3559 = vrot.slane %v2849, 7
    %v3560 = vrot.slane %v2850, 7
    %v3563 = vmul.f32 %v3548, %v3559
    %v3564 = vmul.f32 %v3552, %v3560
    %3567 = vrot.lane.b32.xlu0 %v3555, 64
    %v3568 = vpop.permute.xlu0 %3567
    %3569 = vrot.lane.b32.xlu0 %v3556, 64
    %v3570 = vpop.permute.xlu0 %3569
    %v3573 = vmul.f32 %v3548, %v3568
    %v3574 = vmul.f32 %v3552, %v3570
    %3577 = vrot.lane.b32.xlu0 %v3573, 64
    %v3578 = vpop.permute.xlu0 %3577
    %3579 = vrot.lane.b32.xlu0 %v3574, 64
    %v3580 = vpop.permute.xlu0 %3579
    %v3583 = vadd.f32 %v3563, %v3578
    %v3584 = vadd.f32 %v3564, %v3580
    %v3585 = vtanh.pop %v3583
    %v3586 = vtanh.pop %v3584
    %3589 = vrot.lane.b32.xlu0 %v3585, 64
    %v3590 = vpop.permute.xlu0 %3589
    %3591 = vrot.lane.b32.xlu0 %v3586, 64
    %v3592 = vpop.permute.xlu0 %3591
    %v3595 = vmul.f32 %v3550, %v3590
    %v3596 = vmul.f32 %v3554, %v3592
    %v3599 = vrot.slane %v3595, 3
    %v3600 = vrot.slane %v3596, 2
    %v3601 = vsel %vm1401, %v3600, %v3599
    %v3602 = vsel %vm675, %v3601, 0
    %3604 = vmatprep.subr.mxu0 0.0
    %3605 = vmatpush1.msra.mxu0 0.0
    %3606 = vmatprep.subr.mxu0 0.0
    %3607 = vmatpush1.msra.mxu0 0.0
    %3608 = vmatprep.subr.mxu0 0.0
    %3609 = vmatpush1.msra.mxu0 0.0
    %3610 = vmatprep.subr.mxu0 0.0
    %3611 = vmatpush1.msra.mxu0 0.0
    %3612 = vmatprep.subr.mxu0 0.0
    %3613 = vmatpush1.msra.mxu0 0.0
    %3614 = vmatprep.subr.mxu0 0.0
    %3615 = vmatpush1.msra.mxu0 0.0
    %3616 = vmatprep.subr.mxu0 0.0
    %3617 = vmatpush1.msra.mxu0 0.0
    %3618 = vmatprep.subr.mxu0 0.0
    %3619 = vmatpush1.msra.mxu0 0.0
    %v3620 = vand.u32 %v674, 4294901760
    %3621 = vmatprep.subr.mxu0 %v3620
    %v3622 = vand.u32 %v673, 4294901760
    %3623 = vmatpush1.msra.mxu0 %v3622
    %v3624 = vand.u32 %v672, 4294901760
    %3625 = vmatprep.subr.mxu0 %v3624
    %v3626 = vand.u32 %v671, 4294901760
    %3627 = vmatpush1.msra.mxu0 %v3626
    %v3628 = vand.u32 %v670, 4294901760
    %3629 = vmatprep.subr.mxu0 %v3628
    %v3630 = vand.u32 %v669, 4294901760
    %3631 = vmatpush1.msra.mxu0 %v3630
    %v3632 = vand.u32 %v668, 4294901760
    %3633 = vmatprep.subr.mxu0 %v3632
    %v3634 = vand.u32 %v667, 4294901760
    %3635 = vmatpush1.msra.mxu0 %v3634
    %v3636 = vand.u32 %v666, 4294901760
    %3637 = vmatprep.subr.mxu0 %v3636
    %v3638 = vand.u32 %v665, 4294901760
    %3639 = vmatpush1.msra.mxu0 %v3638
    %v3640 = vand.u32 %v664, 4294901760
    %3641 = vmatprep.subr.mxu0 %v3640
    %v3642 = vand.u32 %v663, 4294901760
    %3643 = vmatpush1.msra.mxu0 %v3642
    %v3644 = vand.u32 %v662, 4294901760
    %3645 = vmatprep.subr.mxu0 %v3644
    %v3646 = vand.u32 %v661, 4294901760
    %3647 = vmatpush1.msra.mxu0 %v3646
    %v3648 = vand.u32 %v660, 4294901760
    %3649 = vmatprep.subr.mxu0 %v3648
    %v3650 = vand.u32 %v659, 4294901760
    %3651 = vmatpush1.msra.mxu0 %v3650
    %3652 = vmatprep.subr.mxu0 0.0
    %3653 = vmatpush2.msra.mxu0 0.0
    %3654 = vmatprep.subr.mxu0 0.0
    %3655 = vmatpush2.msra.mxu0 0.0
    %3656 = vmatprep.subr.mxu0 0.0
    %3657 = vmatpush2.msra.mxu0 0.0
    %3658 = vmatprep.subr.mxu0 0.0
    %3659 = vmatpush2.msra.mxu0 0.0
    %3660 = vmatprep.subr.mxu0 0.0
    %3661 = vmatpush2.msra.mxu0 0.0
    %3662 = vmatprep.subr.mxu0 0.0
    %3663 = vmatpush2.msra.mxu0 0.0
    %3664 = vmatprep.subr.mxu0 0.0
    %3665 = vmatpush2.msra.mxu0 0.0
    %3666 = vmatprep.subr.mxu0 0.0
    %3667 = vmatpush2.msra.mxu0 0.0
    %3668 = vmatprep.subr.mxu0 0.0
    %3669 = vmatpush2.msra.mxu0 0.0
    %3670 = vmatprep.subr.mxu0 0.0
    %3671 = vmatpush2.msra.mxu0 0.0
    %3672 = vmatprep.subr.mxu0 0.0
    %3673 = vmatpush2.msra.mxu0 0.0
    %3674 = vmatprep.subr.mxu0 0.0
    %3675 = vmatpush2.msra.mxu0 0.0
    %3676 = vmatprep.subr.mxu0 0.0
    %3677 = vmatpush2.msra.mxu0 0.0
    %3678 = vmatprep.subr.mxu0 0.0
    %3679 = vmatpush2.msra.mxu0 0.0
    %3680 = vmatprep.subr.mxu0 0.0
    %3681 = vmatpush2.msra.mxu0 0.0
    %3682 = vmatprep.subr.mxu0 0.0
    %3683 = vmatpush2.msra.mxu0 0.0
    %3684 = vmatprep.mubr.f32.mxu0 0.0
    %v3685 = vand.u32 %v3602, 4294901760
    %v3686 = vsub.f32 %v3602, %v3685
    %v3687 = vand.u32 %v3686, 4294901760
    %v3688 = vsub.f32 %v3686, %v3687
    %v3689 = vand.u32 %v3688, 4294901760
    %3690 = vmatmul.mubr.f32.gmra.mxu0 %v3689
    %v3691 = vpop.f32.mrf.mxu0
    %v3692 = vadd.f32 0.0, %v3691
    %v3693 = vpop.f32.mrf.mxu0
    %v3694 = vadd.f32 0.0, %v3693
    %3695 = vdwg.mxu0
    %3696 = vmatprep.subr.mxu0 0.0
    %3697 = vmatpush1.msra.mxu0 0.0
    %3698 = vmatprep.subr.mxu0 0.0
    %3699 = vmatpush1.msra.mxu0 0.0
    %3700 = vmatprep.subr.mxu0 0.0
    %3701 = vmatpush1.msra.mxu0 0.0
    %3702 = vmatprep.subr.mxu0 0.0
    %3703 = vmatpush1.msra.mxu0 0.0
    %3704 = vmatprep.subr.mxu0 0.0
    %3705 = vmatpush1.msra.mxu0 0.0
    %3706 = vmatprep.subr.mxu0 0.0
    %3707 = vmatpush1.msra.mxu0 0.0
    %3708 = vmatprep.subr.mxu0 0.0
    %3709 = vmatpush1.msra.mxu0 0.0
    %3710 = vmatprep.subr.mxu0 0.0
    %3711 = vmatpush1.msra.mxu0 0.0
    %v3712 = vand.u32 %v674, 4294901760
    %v3713 = vsub.f32 %v674, %v3712
    %v3714 = vand.u32 %v3713, 4294901760
    %v3715 = vsub.f32 %v3713, %v3714
    %v3716 = vand.u32 %v3715, 4294901760
    %3717 = vmatprep.subr.mxu0 %v3716
    %v3718 = vand.u32 %v673, 4294901760
    %v3719 = vsub.f32 %v673, %v3718
    %v3720 = vand.u32 %v3719, 4294901760
    %v3721 = vsub.f32 %v3719, %v3720
    %v3722 = vand.u32 %v3721, 4294901760
    %3723 = vmatpush1.msra.mxu0 %v3722
    %v3724 = vand.u32 %v672, 4294901760
    %v3725 = vsub.f32 %v672, %v3724
    %v3726 = vand.u32 %v3725, 4294901760
    %v3727 = vsub.f32 %v3725, %v3726
    %v3728 = vand.u32 %v3727, 4294901760
    %3729 = vmatprep.subr.mxu0 %v3728
    %v3730 = vand.u32 %v671, 4294901760
    %v3731 = vsub.f32 %v671, %v3730
    %v3732 = vand.u32 %v3731, 4294901760
    %v3733 = vsub.f32 %v3731, %v3732
    %v3734 = vand.u32 %v3733, 4294901760
    %3735 = vmatpush1.msra.mxu0 %v3734
    %v3736 = vand.u32 %v670, 4294901760
    %v3737 = vsub.f32 %v670, %v3736
    %v3738 = vand.u32 %v3737, 4294901760
    %v3739 = vsub.f32 %v3737, %v3738
    %v3740 = vand.u32 %v3739, 4294901760
    %3741 = vmatprep.subr.mxu0 %v3740
    %v3742 = vand.u32 %v669, 4294901760
    %v3743 = vsub.f32 %v669, %v3742
    %v3744 = vand.u32 %v3743, 4294901760
    %v3745 = vsub.f32 %v3743, %v3744
    %v3746 = vand.u32 %v3745, 4294901760
    %3747 = vmatpush1.msra.mxu0 %v3746
    %v3748 = vand.u32 %v668, 4294901760
    %v3749 = vsub.f32 %v668, %v3748
    %v3750 = vand.u32 %v3749, 4294901760
    %v3751 = vsub.f32 %v3749, %v3750
    %v3752 = vand.u32 %v3751, 4294901760
    %3753 = vmatprep.subr.mxu0 %v3752
    %v3754 = vand.u32 %v667, 4294901760
    %v3755 = vsub.f32 %v667, %v3754
    %v3756 = vand.u32 %v3755, 4294901760
    %v3757 = vsub.f32 %v3755, %v3756
    %v3758 = vand.u32 %v3757, 4294901760
    %3759 = vmatpush1.msra.mxu0 %v3758
    %v3760 = vand.u32 %v666, 4294901760
    %v3761 = vsub.f32 %v666, %v3760
    %v3762 = vand.u32 %v3761, 4294901760
    %v3763 = vsub.f32 %v3761, %v3762
    %v3764 = vand.u32 %v3763, 4294901760
    %3765 = vmatprep.subr.mxu0 %v3764
    %v3766 = vand.u32 %v665, 4294901760
    %v3767 = vsub.f32 %v665, %v3766
    %v3768 = vand.u32 %v3767, 4294901760
    %v3769 = vsub.f32 %v3767, %v3768
    %v3770 = vand.u32 %v3769, 4294901760
    %3771 = vmatpush1.msra.mxu0 %v3770
    %v3772 = vand.u32 %v664, 4294901760
    %v3773 = vsub.f32 %v664, %v3772
    %v3774 = vand.u32 %v3773, 4294901760
    %v3775 = vsub.f32 %v3773, %v3774
    %v3776 = vand.u32 %v3775, 4294901760
    %3777 = vmatprep.subr.mxu0 %v3776
    %v3778 = vand.u32 %v663, 4294901760
    %v3779 = vsub.f32 %v663, %v3778
    %v3780 = vand.u32 %v3779, 4294901760
    %v3781 = vsub.f32 %v3779, %v3780
    %v3782 = vand.u32 %v3781, 4294901760
    %3783 = vmatpush1.msra.mxu0 %v3782
    %v3784 = vand.u32 %v662, 4294901760
    %v3785 = vsub.f32 %v662, %v3784
    %v3786 = vand.u32 %v3785, 4294901760
    %v3787 = vsub.f32 %v3785, %v3786
    %v3788 = vand.u32 %v3787, 4294901760
    %3789 = vmatprep.subr.mxu0 %v3788
    %v3790 = vand.u32 %v661, 4294901760
    %v3791 = vsub.f32 %v661, %v3790
    %v3792 = vand.u32 %v3791, 4294901760
    %v3793 = vsub.f32 %v3791, %v3792
    %v3794 = vand.u32 %v3793, 4294901760
    %3795 = vmatpush1.msra.mxu0 %v3794
    %v3796 = vand.u32 %v660, 4294901760
    %v3797 = vsub.f32 %v660, %v3796
    %v3798 = vand.u32 %v3797, 4294901760
    %v3799 = vsub.f32 %v3797, %v3798
    %v3800 = vand.u32 %v3799, 4294901760
    %3801 = vmatprep.subr.mxu0 %v3800
    %v3802 = vand.u32 %v659, 4294901760
    %v3803 = vsub.f32 %v659, %v3802
    %v3804 = vand.u32 %v3803, 4294901760
    %v3805 = vsub.f32 %v3803, %v3804
    %v3806 = vand.u32 %v3805, 4294901760
    %3807 = vmatpush1.msra.mxu0 %v3806
    %3808 = vmatprep.subr.mxu0 0.0
    %3809 = vmatpush2.msra.mxu0 0.0
    %3810 = vmatprep.subr.mxu0 0.0
    %3811 = vmatpush2.msra.mxu0 0.0
    %3812 = vmatprep.subr.mxu0 0.0
    %3813 = vmatpush2.msra.mxu0 0.0
    %3814 = vmatprep.subr.mxu0 0.0
    %3815 = vmatpush2.msra.mxu0 0.0
    %3816 = vmatprep.subr.mxu0 0.0
    %3817 = vmatpush2.msra.mxu0 0.0
    %3818 = vmatprep.subr.mxu0 0.0
    %3819 = vmatpush2.msra.mxu0 0.0
    %3820 = vmatprep.subr.mxu0 0.0
    %3821 = vmatpush2.msra.mxu0 0.0
    %3822 = vmatprep.subr.mxu0 0.0
    %3823 = vmatpush2.msra.mxu0 0.0
    %3824 = vmatprep.subr.mxu0 0.0
    %3825 = vmatpush2.msra.mxu0 0.0
    %3826 = vmatprep.subr.mxu0 0.0
    %3827 = vmatpush2.msra.mxu0 0.0
    %3828 = vmatprep.subr.mxu0 0.0
    %3829 = vmatpush2.msra.mxu0 0.0
    %3830 = vmatprep.subr.mxu0 0.0
    %3831 = vmatpush2.msra.mxu0 0.0
    %3832 = vmatprep.subr.mxu0 0.0
    %3833 = vmatpush2.msra.mxu0 0.0
    %3834 = vmatprep.subr.mxu0 0.0
    %3835 = vmatpush2.msra.mxu0 0.0
    %3836 = vmatprep.subr.mxu0 0.0
    %3837 = vmatpush2.msra.mxu0 0.0
    %3838 = vmatprep.subr.mxu0 0.0
    %3839 = vmatpush2.msra.mxu0 0.0
    %3840 = vmatprep.mubr.f32.mxu0 0.0
    %v3841 = vand.u32 %v3602, 4294901760
    %3842 = vmatmul.mubr.f32.gmra.mxu0 %v3841
    %v3843 = vpop.f32.mrf.mxu0
    %v3844 = vadd.f32 %v3692, %v3843
    %v3845 = vpop.f32.mrf.mxu0
    %v3846 = vadd.f32 %v3694, %v3845
    %3847 = vdwg.mxu0
    %3848 = vmatprep.subr.mxu0 0.0
    %3849 = vmatpush1.msra.mxu0 0.0
    %3850 = vmatprep.subr.mxu0 0.0
    %3851 = vmatpush1.msra.mxu0 0.0
    %3852 = vmatprep.subr.mxu0 0.0
    %3853 = vmatpush1.msra.mxu0 0.0
    %3854 = vmatprep.subr.mxu0 0.0
    %3855 = vmatpush1.msra.mxu0 0.0
    %3856 = vmatprep.subr.mxu0 0.0
    %3857 = vmatpush1.msra.mxu0 0.0
    %3858 = vmatprep.subr.mxu0 0.0
    %3859 = vmatpush1.msra.mxu0 0.0
    %3860 = vmatprep.subr.mxu0 0.0
    %3861 = vmatpush1.msra.mxu0 0.0
    %3862 = vmatprep.subr.mxu0 0.0
    %3863 = vmatpush1.msra.mxu0 0.0
    %v3864 = vand.u32 %v674, 4294901760
    %v3865 = vsub.f32 %v674, %v3864
    %3866 = vmatprep.subr.mxu0 %v3865
    %v3867 = vand.u32 %v673, 4294901760
    %v3868 = vsub.f32 %v673, %v3867
    %3869 = vmatpush1.msra.mxu0 %v3868
    %v3870 = vand.u32 %v672, 4294901760
    %v3871 = vsub.f32 %v672, %v3870
    %3872 = vmatprep.subr.mxu0 %v3871
    %v3873 = vand.u32 %v671, 4294901760
    %v3874 = vsub.f32 %v671, %v3873
    %3875 = vmatpush1.msra.mxu0 %v3874
    %v3876 = vand.u32 %v670, 4294901760
    %v3877 = vsub.f32 %v670, %v3876
    %3878 = vmatprep.subr.mxu0 %v3877
    %v3879 = vand.u32 %v669, 4294901760
    %v3880 = vsub.f32 %v669, %v3879
    %3881 = vmatpush1.msra.mxu0 %v3880
    %v3882 = vand.u32 %v668, 4294901760
    %v3883 = vsub.f32 %v668, %v3882
    %3884 = vmatprep.subr.mxu0 %v3883
    %v3885 = vand.u32 %v667, 4294901760
    %v3886 = vsub.f32 %v667, %v3885
    %3887 = vmatpush1.msra.mxu0 %v3886
    %v3888 = vand.u32 %v666, 4294901760
    %v3889 = vsub.f32 %v666, %v3888
    %3890 = vmatprep.subr.mxu0 %v3889
    %v3891 = vand.u32 %v665, 4294901760
    %v3892 = vsub.f32 %v665, %v3891
    %3893 = vmatpush1.msra.mxu0 %v3892
    %v3894 = vand.u32 %v664, 4294901760
    %v3895 = vsub.f32 %v664, %v3894
    %3896 = vmatprep.subr.mxu0 %v3895
    %v3897 = vand.u32 %v663, 4294901760
    %v3898 = vsub.f32 %v663, %v3897
    %3899 = vmatpush1.msra.mxu0 %v3898
    %v3900 = vand.u32 %v662, 4294901760
    %v3901 = vsub.f32 %v662, %v3900
    %3902 = vmatprep.subr.mxu0 %v3901
    %v3903 = vand.u32 %v661, 4294901760
    %v3904 = vsub.f32 %v661, %v3903
    %3905 = vmatpush1.msra.mxu0 %v3904
    %v3906 = vand.u32 %v660, 4294901760
    %v3907 = vsub.f32 %v660, %v3906
    %3908 = vmatprep.subr.mxu0 %v3907
    %v3909 = vand.u32 %v659, 4294901760
    %v3910 = vsub.f32 %v659, %v3909
    %3911 = vmatpush1.msra.mxu0 %v3910
    %3912 = vmatprep.subr.mxu0 0.0
    %3913 = vmatpush2.msra.mxu0 0.0
    %3914 = vmatprep.subr.mxu0 0.0
    %3915 = vmatpush2.msra.mxu0 0.0
    %3916 = vmatprep.subr.mxu0 0.0
    %3917 = vmatpush2.msra.mxu0 0.0
    %3918 = vmatprep.subr.mxu0 0.0
    %3919 = vmatpush2.msra.mxu0 0.0
    %3920 = vmatprep.subr.mxu0 0.0
    %3921 = vmatpush2.msra.mxu0 0.0
    %3922 = vmatprep.subr.mxu0 0.0
    %3923 = vmatpush2.msra.mxu0 0.0
    %3924 = vmatprep.subr.mxu0 0.0
    %3925 = vmatpush2.msra.mxu0 0.0
    %3926 = vmatprep.subr.mxu0 0.0
    %3927 = vmatpush2.msra.mxu0 0.0
    %3928 = vmatprep.subr.mxu0 0.0
    %3929 = vmatpush2.msra.mxu0 0.0
    %3930 = vmatprep.subr.mxu0 0.0
    %3931 = vmatpush2.msra.mxu0 0.0
    %3932 = vmatprep.subr.mxu0 0.0
    %3933 = vmatpush2.msra.mxu0 0.0
    %3934 = vmatprep.subr.mxu0 0.0
    %3935 = vmatpush2.msra.mxu0 0.0
    %3936 = vmatprep.subr.mxu0 0.0
    %3937 = vmatpush2.msra.mxu0 0.0
    %3938 = vmatprep.subr.mxu0 0.0
    %3939 = vmatpush2.msra.mxu0 0.0
    %3940 = vmatprep.subr.mxu0 0.0
    %3941 = vmatpush2.msra.mxu0 0.0
    %3942 = vmatprep.subr.mxu0 0.0
    %3943 = vmatpush2.msra.mxu0 0.0
    %3944 = vmatprep.mubr.f32.mxu0 0.0
    %v3945 = vand.u32 %v3602, 4294901760
    %v3946 = vsub.f32 %v3602, %v3945
    %3947 = vmatmul.mubr.f32.gmra.mxu0 %v3946
    %v3948 = vpop.f32.mrf.mxu0
    %v3949 = vadd.f32 %v3844, %v3948
    %v3950 = vpop.f32.mrf.mxu0
    %v3951 = vadd.f32 %v3846, %v3950
    %3952 = vdwg.mxu0
    %3953 = vmatprep.subr.mxu0 0.0
    %3954 = vmatpush1.msra.mxu0 0.0
    %3955 = vmatprep.subr.mxu0 0.0
    %3956 = vmatpush1.msra.mxu0 0.0
    %3957 = vmatprep.subr.mxu0 0.0
    %3958 = vmatpush1.msra.mxu0 0.0
    %3959 = vmatprep.subr.mxu0 0.0
    %3960 = vmatpush1.msra.mxu0 0.0
    %3961 = vmatprep.subr.mxu0 0.0
    %3962 = vmatpush1.msra.mxu0 0.0
    %3963 = vmatprep.subr.mxu0 0.0
    %3964 = vmatpush1.msra.mxu0 0.0
    %3965 = vmatprep.subr.mxu0 0.0
    %3966 = vmatpush1.msra.mxu0 0.0
    %3967 = vmatprep.subr.mxu0 0.0
    %3968 = vmatpush1.msra.mxu0 0.0
    %v3969 = vand.u32 %v674, 4294901760
    %3970 = vmatprep.subr.mxu0 %v3969
    %v3971 = vand.u32 %v673, 4294901760
    %3972 = vmatpush1.msra.mxu0 %v3971
    %v3973 = vand.u32 %v672, 4294901760
    %3974 = vmatprep.subr.mxu0 %v3973
    %v3975 = vand.u32 %v671, 4294901760
    %3976 = vmatpush1.msra.mxu0 %v3975
    %v3977 = vand.u32 %v670, 4294901760
    %3978 = vmatprep.subr.mxu0 %v3977
    %v3979 = vand.u32 %v669, 4294901760
    %3980 = vmatpush1.msra.mxu0 %v3979
    %v3981 = vand.u32 %v668, 4294901760
    %3982 = vmatprep.subr.mxu0 %v3981
    %v3983 = vand.u32 %v667, 4294901760
    %3984 = vmatpush1.msra.mxu0 %v3983
    %v3985 = vand.u32 %v666, 4294901760
    %3986 = vmatprep.subr.mxu0 %v3985
    %v3987 = vand.u32 %v665, 4294901760
    %3988 = vmatpush1.msra.mxu0 %v3987
    %v3989 = vand.u32 %v664, 4294901760
    %3990 = vmatprep.subr.mxu0 %v3989
    %v3991 = vand.u32 %v663, 4294901760
    %3992 = vmatpush1.msra.mxu0 %v3991
    %v3993 = vand.u32 %v662, 4294901760
    %3994 = vmatprep.subr.mxu0 %v3993
    %v3995 = vand.u32 %v661, 4294901760
    %3996 = vmatpush1.msra.mxu0 %v3995
    %v3997 = vand.u32 %v660, 4294901760
    %3998 = vmatprep.subr.mxu0 %v3997
    %v3999 = vand.u32 %v659, 4294901760
    %4000 = vmatpush1.msra.mxu0 %v3999
    %4001 = vmatprep.subr.mxu0 0.0
    %4002 = vmatpush2.msra.mxu0 0.0
    %4003 = vmatprep.subr.mxu0 0.0
    %4004 = vmatpush2.msra.mxu0 0.0
    %4005 = vmatprep.subr.mxu0 0.0
    %4006 = vmatpush2.msra.mxu0 0.0
    %4007 = vmatprep.subr.mxu0 0.0
    %4008 = vmatpush2.msra.mxu0 0.0
    %4009 = vmatprep.subr.mxu0 0.0
    %4010 = vmatpush2.msra.mxu0 0.0
    %4011 = vmatprep.subr.mxu0 0.0
    %4012 = vmatpush2.msra.mxu0 0.0
    %4013 = vmatprep.subr.mxu0 0.0
    %4014 = vmatpush2.msra.mxu0 0.0
    %4015 = vmatprep.subr.mxu0 0.0
    %4016 = vmatpush2.msra.mxu0 0.0
    %4017 = vmatprep.subr.mxu0 0.0
    %4018 = vmatpush2.msra.mxu0 0.0
    %4019 = vmatprep.subr.mxu0 0.0
    %4020 = vmatpush2.msra.mxu0 0.0
    %4021 = vmatprep.subr.mxu0 0.0
    %4022 = vmatpush2.msra.mxu0 0.0
    %4023 = vmatprep.subr.mxu0 0.0
    %4024 = vmatpush2.msra.mxu0 0.0
    %4025 = vmatprep.subr.mxu0 0.0
    %4026 = vmatpush2.msra.mxu0 0.0
    %4027 = vmatprep.subr.mxu0 0.0
    %4028 = vmatpush2.msra.mxu0 0.0
    %4029 = vmatprep.subr.mxu0 0.0
    %4030 = vmatpush2.msra.mxu0 0.0
    %4031 = vmatprep.subr.mxu0 0.0
    %4032 = vmatpush2.msra.mxu0 0.0
    %4033 = vmatprep.mubr.f32.mxu0 0.0
    %v4034 = vand.u32 %v3602, 4294901760
    %v4035 = vsub.f32 %v3602, %v4034
    %v4036 = vand.u32 %v4035, 4294901760
    %4037 = vmatmul.mubr.f32.gmra.mxu0 %v4036
    %v4038 = vpop.f32.mrf.mxu0
    %v4039 = vadd.f32 %v3949, %v4038
    %v4040 = vpop.f32.mrf.mxu0
    %v4041 = vadd.f32 %v3951, %v4040
    %4042 = vdwg.mxu0
    %4043 = vmatprep.subr.mxu0 0.0
    %4044 = vmatpush1.msra.mxu0 0.0
    %4045 = vmatprep.subr.mxu0 0.0
    %4046 = vmatpush1.msra.mxu0 0.0
    %4047 = vmatprep.subr.mxu0 0.0
    %4048 = vmatpush1.msra.mxu0 0.0
    %4049 = vmatprep.subr.mxu0 0.0
    %4050 = vmatpush1.msra.mxu0 0.0
    %4051 = vmatprep.subr.mxu0 0.0
    %4052 = vmatpush1.msra.mxu0 0.0
    %4053 = vmatprep.subr.mxu0 0.0
    %4054 = vmatpush1.msra.mxu0 0.0
    %4055 = vmatprep.subr.mxu0 0.0
    %4056 = vmatpush1.msra.mxu0 0.0
    %4057 = vmatprep.subr.mxu0 0.0
    %4058 = vmatpush1.msra.mxu0 0.0
    %v4059 = vand.u32 %v674, 4294901760
    %v4060 = vsub.f32 %v674, %v4059
    %v4061 = vand.u32 %v4060, 4294901760
    %4062 = vmatprep.subr.mxu0 %v4061
    %v4063 = vand.u32 %v673, 4294901760
    %v4064 = vsub.f32 %v673, %v4063
    %v4065 = vand.u32 %v4064, 4294901760
    %4066 = vmatpush1.msra.mxu0 %v4065
    %v4067 = vand.u32 %v672, 4294901760
    %v4068 = vsub.f32 %v672, %v4067
    %v4069 = vand.u32 %v4068, 4294901760
    %4070 = vmatprep.subr.mxu0 %v4069
    %v4071 = vand.u32 %v671, 4294901760
    %v4072 = vsub.f32 %v671, %v4071
    %v4073 = vand.u32 %v4072, 4294901760
    %4074 = vmatpush1.msra.mxu0 %v4073
    %v4075 = vand.u32 %v670, 4294901760
    %v4076 = vsub.f32 %v670, %v4075
    %v4077 = vand.u32 %v4076, 4294901760
    %4078 = vmatprep.subr.mxu0 %v4077
    %v4079 = vand.u32 %v669, 4294901760
    %v4080 = vsub.f32 %v669, %v4079
    %v4081 = vand.u32 %v4080, 4294901760
    %4082 = vmatpush1.msra.mxu0 %v4081
    %v4083 = vand.u32 %v668, 4294901760
    %v4084 = vsub.f32 %v668, %v4083
    %v4085 = vand.u32 %v4084, 4294901760
    %4086 = vmatprep.subr.mxu0 %v4085
    %v4087 = vand.u32 %v667, 4294901760
    %v4088 = vsub.f32 %v667, %v4087
    %v4089 = vand.u32 %v4088, 4294901760
    %4090 = vmatpush1.msra.mxu0 %v4089
    %v4091 = vand.u32 %v666, 4294901760
    %v4092 = vsub.f32 %v666, %v4091
    %v4093 = vand.u32 %v4092, 4294901760
    %4094 = vmatprep.subr.mxu0 %v4093
    %v4095 = vand.u32 %v665, 4294901760
    %v4096 = vsub.f32 %v665, %v4095
    %v4097 = vand.u32 %v4096, 4294901760
    %4098 = vmatpush1.msra.mxu0 %v4097
    %v4099 = vand.u32 %v664, 4294901760
    %v4100 = vsub.f32 %v664, %v4099
    %v4101 = vand.u32 %v4100, 4294901760
    %4102 = vmatprep.subr.mxu0 %v4101
    %v4103 = vand.u32 %v663, 4294901760
    %v4104 = vsub.f32 %v663, %v4103
    %v4105 = vand.u32 %v4104, 4294901760
    %4106 = vmatpush1.msra.mxu0 %v4105
    %v4107 = vand.u32 %v662, 4294901760
    %v4108 = vsub.f32 %v662, %v4107
    %v4109 = vand.u32 %v4108, 4294901760
    %4110 = vmatprep.subr.mxu0 %v4109
    %v4111 = vand.u32 %v661, 4294901760
    %v4112 = vsub.f32 %v661, %v4111
    %v4113 = vand.u32 %v4112, 4294901760
    %4114 = vmatpush1.msra.mxu0 %v4113
    %v4115 = vand.u32 %v660, 4294901760
    %v4116 = vsub.f32 %v660, %v4115
    %v4117 = vand.u32 %v4116, 4294901760
    %4118 = vmatprep.subr.mxu0 %v4117
    %v4119 = vand.u32 %v659, 4294901760
    %v4120 = vsub.f32 %v659, %v4119
    %v4121 = vand.u32 %v4120, 4294901760
    %4122 = vmatpush1.msra.mxu0 %v4121
    %4123 = vmatprep.subr.mxu0 0.0
    %4124 = vmatpush2.msra.mxu0 0.0
    %4125 = vmatprep.subr.mxu0 0.0
    %4126 = vmatpush2.msra.mxu0 0.0
    %4127 = vmatprep.subr.mxu0 0.0
    %4128 = vmatpush2.msra.mxu0 0.0
    %4129 = vmatprep.subr.mxu0 0.0
    %4130 = vmatpush2.msra.mxu0 0.0
    %4131 = vmatprep.subr.mxu0 0.0
    %4132 = vmatpush2.msra.mxu0 0.0
    %4133 = vmatprep.subr.mxu0 0.0
    %4134 = vmatpush2.msra.mxu0 0.0
    %4135 = vmatprep.subr.mxu0 0.0
    %4136 = vmatpush2.msra.mxu0 0.0
    %4137 = vmatprep.subr.mxu0 0.0
    %4138 = vmatpush2.msra.mxu0 0.0
    %4139 = vmatprep.subr.mxu0 0.0
    %4140 = vmatpush2.msra.mxu0 0.0
    %4141 = vmatprep.subr.mxu0 0.0
    %4142 = vmatpush2.msra.mxu0 0.0
    %4143 = vmatprep.subr.mxu0 0.0
    %4144 = vmatpush2.msra.mxu0 0.0
    %4145 = vmatprep.subr.mxu0 0.0
    %4146 = vmatpush2.msra.mxu0 0.0
    %4147 = vmatprep.subr.mxu0 0.0
    %4148 = vmatpush2.msra.mxu0 0.0
    %4149 = vmatprep.subr.mxu0 0.0
    %4150 = vmatpush2.msra.mxu0 0.0
    %4151 = vmatprep.subr.mxu0 0.0
    %4152 = vmatpush2.msra.mxu0 0.0
    %4153 = vmatprep.subr.mxu0 0.0
    %4154 = vmatpush2.msra.mxu0 0.0
    %4155 = vmatprep.mubr.f32.mxu0 0.0
    %v4156 = vand.u32 %v3602, 4294901760
    %4157 = vmatmul.mubr.f32.gmra.mxu0 %v4156
    %v4158 = vpop.f32.mrf.mxu0
    %v4159 = vadd.f32 %v4039, %v4158
    %v4160 = vpop.f32.mrf.mxu0
    %v4161 = vadd.f32 %v4041, %v4160
    %4162 = vdwg.mxu0
    %4163 = vmatprep.subr.mxu0 0.0
    %4164 = vmatpush1.msra.mxu0 0.0
    %4165 = vmatprep.subr.mxu0 0.0
    %4166 = vmatpush1.msra.mxu0 0.0
    %4167 = vmatprep.subr.mxu0 0.0
    %4168 = vmatpush1.msra.mxu0 0.0
    %4169 = vmatprep.subr.mxu0 0.0
    %4170 = vmatpush1.msra.mxu0 0.0
    %4171 = vmatprep.subr.mxu0 0.0
    %4172 = vmatpush1.msra.mxu0 0.0
    %4173 = vmatprep.subr.mxu0 0.0
    %4174 = vmatpush1.msra.mxu0 0.0
    %4175 = vmatprep.subr.mxu0 0.0
    %4176 = vmatpush1.msra.mxu0 0.0
    %4177 = vmatprep.subr.mxu0 0.0
    %4178 = vmatpush1.msra.mxu0 0.0
    %v4179 = vand.u32 %v674, 4294901760
    %4180 = vmatprep.subr.mxu0 %v4179
    %v4181 = vand.u32 %v673, 4294901760
    %4182 = vmatpush1.msra.mxu0 %v4181
    %v4183 = vand.u32 %v672, 4294901760
    %4184 = vmatprep.subr.mxu0 %v4183
    %v4185 = vand.u32 %v671, 4294901760
    %4186 = vmatpush1.msra.mxu0 %v4185
    %v4187 = vand.u32 %v670, 4294901760
    %4188 = vmatprep.subr.mxu0 %v4187
    %v4189 = vand.u32 %v669, 4294901760
    %4190 = vmatpush1.msra.mxu0 %v4189
    %v4191 = vand.u32 %v668, 4294901760
    %4192 = vmatprep.subr.mxu0 %v4191
    %v4193 = vand.u32 %v667, 4294901760
    %4194 = vmatpush1.msra.mxu0 %v4193
    %v4195 = vand.u32 %v666, 4294901760
    %4196 = vmatprep.subr.mxu0 %v4195
    %v4197 = vand.u32 %v665, 4294901760
    %4198 = vmatpush1.msra.mxu0 %v4197
    %v4199 = vand.u32 %v664, 4294901760
    %4200 = vmatprep.subr.mxu0 %v4199
    %v4201 = vand.u32 %v663, 4294901760
    %4202 = vmatpush1.msra.mxu0 %v4201
    %v4203 = vand.u32 %v662, 4294901760
    %4204 = vmatprep.subr.mxu0 %v4203
    %v4205 = vand.u32 %v661, 4294901760
    %4206 = vmatpush1.msra.mxu0 %v4205
    %v4207 = vand.u32 %v660, 4294901760
    %4208 = vmatprep.subr.mxu0 %v4207
    %v4209 = vand.u32 %v659, 4294901760
    %4210 = vmatpush1.msra.mxu0 %v4209
    %4211 = vmatprep.subr.mxu0 0.0
    %4212 = vmatpush2.msra.mxu0 0.0
    %4213 = vmatprep.subr.mxu0 0.0
    %4214 = vmatpush2.msra.mxu0 0.0
    %4215 = vmatprep.subr.mxu0 0.0
    %4216 = vmatpush2.msra.mxu0 0.0
    %4217 = vmatprep.subr.mxu0 0.0
    %4218 = vmatpush2.msra.mxu0 0.0
    %4219 = vmatprep.subr.mxu0 0.0
    %4220 = vmatpush2.msra.mxu0 0.0
    %4221 = vmatprep.subr.mxu0 0.0
    %4222 = vmatpush2.msra.mxu0 0.0
    %4223 = vmatprep.subr.mxu0 0.0
    %4224 = vmatpush2.msra.mxu0 0.0
    %4225 = vmatprep.subr.mxu0 0.0
    %4226 = vmatpush2.msra.mxu0 0.0
    %4227 = vmatprep.subr.mxu0 0.0
    %4228 = vmatpush2.msra.mxu0 0.0
    %4229 = vmatprep.subr.mxu0 0.0
    %4230 = vmatpush2.msra.mxu0 0.0
    %4231 = vmatprep.subr.mxu0 0.0
    %4232 = vmatpush2.msra.mxu0 0.0
    %4233 = vmatprep.subr.mxu0 0.0
    %4234 = vmatpush2.msra.mxu0 0.0
    %4235 = vmatprep.subr.mxu0 0.0
    %4236 = vmatpush2.msra.mxu0 0.0
    %4237 = vmatprep.subr.mxu0 0.0
    %4238 = vmatpush2.msra.mxu0 0.0
    %4239 = vmatprep.subr.mxu0 0.0
    %4240 = vmatpush2.msra.mxu0 0.0
    %4241 = vmatprep.subr.mxu0 0.0
    %4242 = vmatpush2.msra.mxu0 0.0
    %4243 = vmatprep.mubr.f32.mxu0 0.0
    %v4244 = vand.u32 %v3602, 4294901760
    %4245 = vmatmul.mubr.f32.gmra.mxu0 %v4244
    %v4246 = vpop.f32.mrf.mxu0
    %v4247 = vadd.f32 %v4159, %v4246
    %v4248 = vpop.f32.mrf.mxu0
    %v4249 = vadd.f32 %v4161, %v4248
    %4250 = vdwg.mxu0
    %v4253 = vrot.slane %v4247, 4
    %v4254 = vrot.slane %v4249, 4
    %v4255 = vrot.slane %v4247, 5
    %v4256 = vrot.slane %v4249, 5
    %v4261 = vadd.f32 %v648, %v4253
    %v4262 = vadd.f32 %v650, %v4254
    %v4263 = vadd.f32 %v655, %v4255
    %v4264 = vadd.f32 %v657, %v4256
    %v4265 = vxor.u32 %v4261, 2147483648
    %v4266 = vxor.u32 %v4262, 2147483648
    %v4267 = vxor.u32 %v4263, 2147483648
    %v4268 = vxor.u32 %v4264, 2147483648
    %v4269 = vmul.f32 %v4265, 1.442695
    %v4270 = vpow.pop %v4269
    %v4271 = vmul.f32 %v4266, 1.442695
    %v4272 = vpow.pop %v4271
    %v4273 = vmul.f32 %v4267, 1.442695
    %v4274 = vpow.pop %v4273
    %v4275 = vmul.f32 %v4268, 1.442695
    %v4276 = vpow.pop %v4275
    %v4277 = vadd.f32 %v4270, 1.0
    %v4278 = vadd.f32 %v4272, 1.0
    %v4279 = vadd.f32 %v4274, 1.0
    %v4280 = vadd.f32 %v4276, 1.0
    %v4281 = vrcp.pop %v4277
    %v4282 = vmul.f32 1.0, %v4281
    %v4283 = vrcp.pop %v4278
    %v4284 = vmul.f32 1.0, %v4283
    %v4285 = vrcp.pop %v4279
    %v4286 = vmul.f32 1.0, %v4285
    %v4287 = vrcp.pop %v4280
    %v4288 = vmul.f32 1.0, %v4287
    %v4289 = vtanh.pop %v4262
    %v4290 = vtanh.pop %v4264
    %v4293 = vrot.slane %v3583, 7
    %v4294 = vrot.slane %v3584, 7
    %v4297 = vmul.f32 %v4282, %v4293
    %v4298 = vmul.f32 %v4286, %v4294
    %4301 = vrot.lane.b32.xlu0 %v4289, 64
    %v4302 = vpop.permute.xlu0 %4301
    %4303 = vrot.lane.b32.xlu0 %v4290, 64
    %v4304 = vpop.permute.xlu0 %4303
    %v4307 = vmul.f32 %v4282, %v4302
    %v4308 = vmul.f32 %v4286, %v4304
    %4311 = vrot.lane.b32.xlu0 %v4307, 64
    %v4312 = vpop.permute.xlu0 %4311
    %4313 = vrot.lane.b32.xlu0 %v4308, 64
    %v4314 = vpop.permute.xlu0 %4313
    %v4317 = vadd.f32 %v4297, %v4312
    %v4318 = vadd.f32 %v4298, %v4314
    %v4319 = vtanh.pop %v4317
    %v4320 = vtanh.pop %v4318
    %4323 = vrot.lane.b32.xlu0 %v4319, 64
    %v4324 = vpop.permute.xlu0 %4323
    %4325 = vrot.lane.b32.xlu0 %v4320, 64
    %v4326 = vpop.permute.xlu0 %4325
    %v4329 = vmul.f32 %v4284, %v4324
    %v4330 = vmul.f32 %v4288, %v4326
    %v4333 = vrot.slane %v4329, 4
    %v4334 = vrot.slane %v4330, 3
    %v4335 = vsel %vm1401, %v4334, %v4333
    %v4336 = vsel %vm675, %v4335, 0
    %4338 = vmatprep.subr.mxu0 0.0
    %4339 = vmatpush1.msra.mxu0 0.0
    %4340 = vmatprep.subr.mxu0 0.0
    %4341 = vmatpush1.msra.mxu0 0.0
    %4342 = vmatprep.subr.mxu0 0.0
    %4343 = vmatpush1.msra.mxu0 0.0
    %4344 = vmatprep.subr.mxu0 0.0
    %4345 = vmatpush1.msra.mxu0 0.0
    %4346 = vmatprep.subr.mxu0 0.0
    %4347 = vmatpush1.msra.mxu0 0.0
    %4348 = vmatprep.subr.mxu0 0.0
    %4349 = vmatpush1.msra.mxu0 0.0
    %4350 = vmatprep.subr.mxu0 0.0
    %4351 = vmatpush1.msra.mxu0 0.0
    %4352 = vmatprep.subr.mxu0 0.0
    %4353 = vmatpush1.msra.mxu0 0.0
    %v4354 = vand.u32 %v674, 4294901760
    %4355 = vmatprep.subr.mxu0 %v4354
    %v4356 = vand.u32 %v673, 4294901760
    %4357 = vmatpush1.msra.mxu0 %v4356
    %v4358 = vand.u32 %v672, 4294901760
    %4359 = vmatprep.subr.mxu0 %v4358
    %v4360 = vand.u32 %v671, 4294901760
    %4361 = vmatpush1.msra.mxu0 %v4360
    %v4362 = vand.u32 %v670, 4294901760
    %4363 = vmatprep.subr.mxu0 %v4362
    %v4364 = vand.u32 %v669, 4294901760
    %4365 = vmatpush1.msra.mxu0 %v4364
    %v4366 = vand.u32 %v668, 4294901760
    %4367 = vmatprep.subr.mxu0 %v4366
    %v4368 = vand.u32 %v667, 4294901760
    %4369 = vmatpush1.msra.mxu0 %v4368
    %v4370 = vand.u32 %v666, 4294901760
    %4371 = vmatprep.subr.mxu0 %v4370
    %v4372 = vand.u32 %v665, 4294901760
    %4373 = vmatpush1.msra.mxu0 %v4372
    %v4374 = vand.u32 %v664, 4294901760
    %4375 = vmatprep.subr.mxu0 %v4374
    %v4376 = vand.u32 %v663, 4294901760
    %4377 = vmatpush1.msra.mxu0 %v4376
    %v4378 = vand.u32 %v662, 4294901760
    %4379 = vmatprep.subr.mxu0 %v4378
    %v4380 = vand.u32 %v661, 4294901760
    %4381 = vmatpush1.msra.mxu0 %v4380
    %v4382 = vand.u32 %v660, 4294901760
    %4383 = vmatprep.subr.mxu0 %v4382
    %v4384 = vand.u32 %v659, 4294901760
    %4385 = vmatpush1.msra.mxu0 %v4384
    %4386 = vmatprep.subr.mxu0 0.0
    %4387 = vmatpush2.msra.mxu0 0.0
    %4388 = vmatprep.subr.mxu0 0.0
    %4389 = vmatpush2.msra.mxu0 0.0
    %4390 = vmatprep.subr.mxu0 0.0
    %4391 = vmatpush2.msra.mxu0 0.0
    %4392 = vmatprep.subr.mxu0 0.0
    %4393 = vmatpush2.msra.mxu0 0.0
    %4394 = vmatprep.subr.mxu0 0.0
    %4395 = vmatpush2.msra.mxu0 0.0
    %4396 = vmatprep.subr.mxu0 0.0
    %4397 = vmatpush2.msra.mxu0 0.0
    %4398 = vmatprep.subr.mxu0 0.0
    %4399 = vmatpush2.msra.mxu0 0.0
    %4400 = vmatprep.subr.mxu0 0.0
    %4401 = vmatpush2.msra.mxu0 0.0
    %4402 = vmatprep.subr.mxu0 0.0
    %4403 = vmatpush2.msra.mxu0 0.0
    %4404 = vmatprep.subr.mxu0 0.0
    %4405 = vmatpush2.msra.mxu0 0.0
    %4406 = vmatprep.subr.mxu0 0.0
    %4407 = vmatpush2.msra.mxu0 0.0
    %4408 = vmatprep.subr.mxu0 0.0
    %4409 = vmatpush2.msra.mxu0 0.0
    %4410 = vmatprep.subr.mxu0 0.0
    %4411 = vmatpush2.msra.mxu0 0.0
    %4412 = vmatprep.subr.mxu0 0.0
    %4413 = vmatpush2.msra.mxu0 0.0
    %4414 = vmatprep.subr.mxu0 0.0
    %4415 = vmatpush2.msra.mxu0 0.0
    %4416 = vmatprep.subr.mxu0 0.0
    %4417 = vmatpush2.msra.mxu0 0.0
    %4418 = vmatprep.mubr.f32.mxu0 0.0
    %v4419 = vand.u32 %v4336, 4294901760
    %v4420 = vsub.f32 %v4336, %v4419
    %v4421 = vand.u32 %v4420, 4294901760
    %v4422 = vsub.f32 %v4420, %v4421
    %v4423 = vand.u32 %v4422, 4294901760
    %4424 = vmatmul.mubr.f32.gmra.mxu0 %v4423
    %v4425 = vpop.f32.mrf.mxu0
    %v4426 = vadd.f32 0.0, %v4425
    %v4427 = vpop.f32.mrf.mxu0
    %v4428 = vadd.f32 0.0, %v4427
    %4429 = vdwg.mxu0
    %4430 = vmatprep.subr.mxu0 0.0
    %4431 = vmatpush1.msra.mxu0 0.0
    %4432 = vmatprep.subr.mxu0 0.0
    %4433 = vmatpush1.msra.mxu0 0.0
    %4434 = vmatprep.subr.mxu0 0.0
    %4435 = vmatpush1.msra.mxu0 0.0
    %4436 = vmatprep.subr.mxu0 0.0
    %4437 = vmatpush1.msra.mxu0 0.0
    %4438 = vmatprep.subr.mxu0 0.0
    %4439 = vmatpush1.msra.mxu0 0.0
    %4440 = vmatprep.subr.mxu0 0.0
    %4441 = vmatpush1.msra.mxu0 0.0
    %4442 = vmatprep.subr.mxu0 0.0
    %4443 = vmatpush1.msra.mxu0 0.0
    %4444 = vmatprep.subr.mxu0 0.0
    %4445 = vmatpush1.msra.mxu0 0.0
    %v4446 = vand.u32 %v674, 4294901760
    %v4447 = vsub.f32 %v674, %v4446
    %v4448 = vand.u32 %v4447, 4294901760
    %v4449 = vsub.f32 %v4447, %v4448
    %v4450 = vand.u32 %v4449, 4294901760
    %4451 = vmatprep.subr.mxu0 %v4450
    %v4452 = vand.u32 %v673, 4294901760
    %v4453 = vsub.f32 %v673, %v4452
    %v4454 = vand.u32 %v4453, 4294901760
    %v4455 = vsub.f32 %v4453, %v4454
    %v4456 = vand.u32 %v4455, 4294901760
    %4457 = vmatpush1.msra.mxu0 %v4456
    %v4458 = vand.u32 %v672, 4294901760
    %v4459 = vsub.f32 %v672, %v4458
    %v4460 = vand.u32 %v4459, 4294901760
    %v4461 = vsub.f32 %v4459, %v4460
    %v4462 = vand.u32 %v4461, 4294901760
    %4463 = vmatprep.subr.mxu0 %v4462
    %v4464 = vand.u32 %v671, 4294901760
    %v4465 = vsub.f32 %v671, %v4464
    %v4466 = vand.u32 %v4465, 4294901760
    %v4467 = vsub.f32 %v4465, %v4466
    %v4468 = vand.u32 %v4467, 4294901760
    %4469 = vmatpush1.msra.mxu0 %v4468
    %v4470 = vand.u32 %v670, 4294901760
    %v4471 = vsub.f32 %v670, %v4470
    %v4472 = vand.u32 %v4471, 4294901760
    %v4473 = vsub.f32 %v4471, %v4472
    %v4474 = vand.u32 %v4473, 4294901760
    %4475 = vmatprep.subr.mxu0 %v4474
    %v4476 = vand.u32 %v669, 4294901760
    %v4477 = vsub.f32 %v669, %v4476
    %v4478 = vand.u32 %v4477, 4294901760
    %v4479 = vsub.f32 %v4477, %v4478
    %v4480 = vand.u32 %v4479, 4294901760
    %4481 = vmatpush1.msra.mxu0 %v4480
    %v4482 = vand.u32 %v668, 4294901760
    %v4483 = vsub.f32 %v668, %v4482
    %v4484 = vand.u32 %v4483, 4294901760
    %v4485 = vsub.f32 %v4483, %v4484
    %v4486 = vand.u32 %v4485, 4294901760
    %4487 = vmatprep.subr.mxu0 %v4486
    %v4488 = vand.u32 %v667, 4294901760
    %v4489 = vsub.f32 %v667, %v4488
    %v4490 = vand.u32 %v4489, 4294901760
    %v4491 = vsub.f32 %v4489, %v4490
    %v4492 = vand.u32 %v4491, 4294901760
    %4493 = vmatpush1.msra.mxu0 %v4492
    %v4494 = vand.u32 %v666, 4294901760
    %v4495 = vsub.f32 %v666, %v4494
    %v4496 = vand.u32 %v4495, 4294901760
    %v4497 = vsub.f32 %v4495, %v4496
    %v4498 = vand.u32 %v4497, 4294901760
    %4499 = vmatprep.subr.mxu0 %v4498
    %v4500 = vand.u32 %v665, 4294901760
    %v4501 = vsub.f32 %v665, %v4500
    %v4502 = vand.u32 %v4501, 4294901760
    %v4503 = vsub.f32 %v4501, %v4502
    %v4504 = vand.u32 %v4503, 4294901760
    %4505 = vmatpush1.msra.mxu0 %v4504
    %v4506 = vand.u32 %v664, 4294901760
    %v4507 = vsub.f32 %v664, %v4506
    %v4508 = vand.u32 %v4507, 4294901760
    %v4509 = vsub.f32 %v4507, %v4508
    %v4510 = vand.u32 %v4509, 4294901760
    %4511 = vmatprep.subr.mxu0 %v4510
    %v4512 = vand.u32 %v663, 4294901760
    %v4513 = vsub.f32 %v663, %v4512
    %v4514 = vand.u32 %v4513, 4294901760
    %v4515 = vsub.f32 %v4513, %v4514
    %v4516 = vand.u32 %v4515, 4294901760
    %4517 = vmatpush1.msra.mxu0 %v4516
    %v4518 = vand.u32 %v662, 4294901760
    %v4519 = vsub.f32 %v662, %v4518
    %v4520 = vand.u32 %v4519, 4294901760
    %v4521 = vsub.f32 %v4519, %v4520
    %v4522 = vand.u32 %v4521, 4294901760
    %4523 = vmatprep.subr.mxu0 %v4522
    %v4524 = vand.u32 %v661, 4294901760
    %v4525 = vsub.f32 %v661, %v4524
    %v4526 = vand.u32 %v4525, 4294901760
    %v4527 = vsub.f32 %v4525, %v4526
    %v4528 = vand.u32 %v4527, 4294901760
    %4529 = vmatpush1.msra.mxu0 %v4528
    %v4530 = vand.u32 %v660, 4294901760
    %v4531 = vsub.f32 %v660, %v4530
    %v4532 = vand.u32 %v4531, 4294901760
    %v4533 = vsub.f32 %v4531, %v4532
    %v4534 = vand.u32 %v4533, 4294901760
    %4535 = vmatprep.subr.mxu0 %v4534
    %v4536 = vand.u32 %v659, 4294901760
    %v4537 = vsub.f32 %v659, %v4536
    %v4538 = vand.u32 %v4537, 4294901760
    %v4539 = vsub.f32 %v4537, %v4538
    %v4540 = vand.u32 %v4539, 4294901760
    %4541 = vmatpush1.msra.mxu0 %v4540
    %4542 = vmatprep.subr.mxu0 0.0
    %4543 = vmatpush2.msra.mxu0 0.0
    %4544 = vmatprep.subr.mxu0 0.0
    %4545 = vmatpush2.msra.mxu0 0.0
    %4546 = vmatprep.subr.mxu0 0.0
    %4547 = vmatpush2.msra.mxu0 0.0
    %4548 = vmatprep.subr.mxu0 0.0
    %4549 = vmatpush2.msra.mxu0 0.0
    %4550 = vmatprep.subr.mxu0 0.0
    %4551 = vmatpush2.msra.mxu0 0.0
    %4552 = vmatprep.subr.mxu0 0.0
    %4553 = vmatpush2.msra.mxu0 0.0
    %4554 = vmatprep.subr.mxu0 0.0
    %4555 = vmatpush2.msra.mxu0 0.0
    %4556 = vmatprep.subr.mxu0 0.0
    %4557 = vmatpush2.msra.mxu0 0.0
    %4558 = vmatprep.subr.mxu0 0.0
    %4559 = vmatpush2.msra.mxu0 0.0
    %4560 = vmatprep.subr.mxu0 0.0
    %4561 = vmatpush2.msra.mxu0 0.0
    %4562 = vmatprep.subr.mxu0 0.0
    %4563 = vmatpush2.msra.mxu0 0.0
    %4564 = vmatprep.subr.mxu0 0.0
    %4565 = vmatpush2.msra.mxu0 0.0
    %4566 = vmatprep.subr.mxu0 0.0
    %4567 = vmatpush2.msra.mxu0 0.0
    %4568 = vmatprep.subr.mxu0 0.0
    %4569 = vmatpush2.msra.mxu0 0.0
    %4570 = vmatprep.subr.mxu0 0.0
    %4571 = vmatpush2.msra.mxu0 0.0
    %4572 = vmatprep.subr.mxu0 0.0
    %4573 = vmatpush2.msra.mxu0 0.0
    %4574 = vmatprep.mubr.f32.mxu0 0.0
    %v4575 = vand.u32 %v4336, 4294901760
    %4576 = vmatmul.mubr.f32.gmra.mxu0 %v4575
    %v4577 = vpop.f32.mrf.mxu0
    %v4578 = vadd.f32 %v4426, %v4577
    %v4579 = vpop.f32.mrf.mxu0
    %v4580 = vadd.f32 %v4428, %v4579
    %4581 = vdwg.mxu0
    %4582 = vmatprep.subr.mxu0 0.0
    %4583 = vmatpush1.msra.mxu0 0.0
    %4584 = vmatprep.subr.mxu0 0.0
    %4585 = vmatpush1.msra.mxu0 0.0
    %4586 = vmatprep.subr.mxu0 0.0
    %4587 = vmatpush1.msra.mxu0 0.0
    %4588 = vmatprep.subr.mxu0 0.0
    %4589 = vmatpush1.msra.mxu0 0.0
    %4590 = vmatprep.subr.mxu0 0.0
    %4591 = vmatpush1.msra.mxu0 0.0
    %4592 = vmatprep.subr.mxu0 0.0
    %4593 = vmatpush1.msra.mxu0 0.0
    %4594 = vmatprep.subr.mxu0 0.0
    %4595 = vmatpush1.msra.mxu0 0.0
    %4596 = vmatprep.subr.mxu0 0.0
    %4597 = vmatpush1.msra.mxu0 0.0
    %v4598 = vand.u32 %v674, 4294901760
    %v4599 = vsub.f32 %v674, %v4598
    %4600 = vmatprep.subr.mxu0 %v4599
    %v4601 = vand.u32 %v673, 4294901760
    %v4602 = vsub.f32 %v673, %v4601
    %4603 = vmatpush1.msra.mxu0 %v4602
    %v4604 = vand.u32 %v672, 4294901760
    %v4605 = vsub.f32 %v672, %v4604
    %4606 = vmatprep.subr.mxu0 %v4605
    %v4607 = vand.u32 %v671, 4294901760
    %v4608 = vsub.f32 %v671, %v4607
    %4609 = vmatpush1.msra.mxu0 %v4608
    %v4610 = vand.u32 %v670, 4294901760
    %v4611 = vsub.f32 %v670, %v4610
    %4612 = vmatprep.subr.mxu0 %v4611
    %v4613 = vand.u32 %v669, 4294901760
    %v4614 = vsub.f32 %v669, %v4613
    %4615 = vmatpush1.msra.mxu0 %v4614
    %v4616 = vand.u32 %v668, 4294901760
    %v4617 = vsub.f32 %v668, %v4616
    %4618 = vmatprep.subr.mxu0 %v4617
    %v4619 = vand.u32 %v667, 4294901760
    %v4620 = vsub.f32 %v667, %v4619
    %4621 = vmatpush1.msra.mxu0 %v4620
    %v4622 = vand.u32 %v666, 4294901760
    %v4623 = vsub.f32 %v666, %v4622
    %4624 = vmatprep.subr.mxu0 %v4623
    %v4625 = vand.u32 %v665, 4294901760
    %v4626 = vsub.f32 %v665, %v4625
    %4627 = vmatpush1.msra.mxu0 %v4626
    %v4628 = vand.u32 %v664, 4294901760
    %v4629 = vsub.f32 %v664, %v4628
    %4630 = vmatprep.subr.mxu0 %v4629
    %v4631 = vand.u32 %v663, 4294901760
    %v4632 = vsub.f32 %v663, %v4631
    %4633 = vmatpush1.msra.mxu0 %v4632
    %v4634 = vand.u32 %v662, 4294901760
    %v4635 = vsub.f32 %v662, %v4634
    %4636 = vmatprep.subr.mxu0 %v4635
    %v4637 = vand.u32 %v661, 4294901760
    %v4638 = vsub.f32 %v661, %v4637
    %4639 = vmatpush1.msra.mxu0 %v4638
    %v4640 = vand.u32 %v660, 4294901760
    %v4641 = vsub.f32 %v660, %v4640
    %4642 = vmatprep.subr.mxu0 %v4641
    %v4643 = vand.u32 %v659, 4294901760
    %v4644 = vsub.f32 %v659, %v4643
    %4645 = vmatpush1.msra.mxu0 %v4644
    %4646 = vmatprep.subr.mxu0 0.0
    %4647 = vmatpush2.msra.mxu0 0.0
    %4648 = vmatprep.subr.mxu0 0.0
    %4649 = vmatpush2.msra.mxu0 0.0
    %4650 = vmatprep.subr.mxu0 0.0
    %4651 = vmatpush2.msra.mxu0 0.0
    %4652 = vmatprep.subr.mxu0 0.0
    %4653 = vmatpush2.msra.mxu0 0.0
    %4654 = vmatprep.subr.mxu0 0.0
    %4655 = vmatpush2.msra.mxu0 0.0
    %4656 = vmatprep.subr.mxu0 0.0
    %4657 = vmatpush2.msra.mxu0 0.0
    %4658 = vmatprep.subr.mxu0 0.0
    %4659 = vmatpush2.msra.mxu0 0.0
    %4660 = vmatprep.subr.mxu0 0.0
    %4661 = vmatpush2.msra.mxu0 0.0
    %4662 = vmatprep.subr.mxu0 0.0
    %4663 = vmatpush2.msra.mxu0 0.0
    %4664 = vmatprep.subr.mxu0 0.0
    %4665 = vmatpush2.msra.mxu0 0.0
    %4666 = vmatprep.subr.mxu0 0.0
    %4667 = vmatpush2.msra.mxu0 0.0
    %4668 = vmatprep.subr.mxu0 0.0
    %4669 = vmatpush2.msra.mxu0 0.0
    %4670 = vmatprep.subr.mxu0 0.0
    %4671 = vmatpush2.msra.mxu0 0.0
    %4672 = vmatprep.subr.mxu0 0.0
    %4673 = vmatpush2.msra.mxu0 0.0
    %4674 = vmatprep.subr.mxu0 0.0
    %4675 = vmatpush2.msra.mxu0 0.0
    %4676 = vmatprep.subr.mxu0 0.0
    %4677 = vmatpush2.msra.mxu0 0.0
    %4678 = vmatprep.mubr.f32.mxu0 0.0
    %v4679 = vand.u32 %v4336, 4294901760
    %v4680 = vsub.f32 %v4336, %v4679
    %4681 = vmatmul.mubr.f32.gmra.mxu0 %v4680
    %v4682 = vpop.f32.mrf.mxu0
    %v4683 = vadd.f32 %v4578, %v4682
    %v4684 = vpop.f32.mrf.mxu0
    %v4685 = vadd.f32 %v4580, %v4684
    %4686 = vdwg.mxu0
    %4687 = vmatprep.subr.mxu0 0.0
    %4688 = vmatpush1.msra.mxu0 0.0
    %4689 = vmatprep.subr.mxu0 0.0
    %4690 = vmatpush1.msra.mxu0 0.0
    %4691 = vmatprep.subr.mxu0 0.0
    %4692 = vmatpush1.msra.mxu0 0.0
    %4693 = vmatprep.subr.mxu0 0.0
    %4694 = vmatpush1.msra.mxu0 0.0
    %4695 = vmatprep.subr.mxu0 0.0
    %4696 = vmatpush1.msra.mxu0 0.0
    %4697 = vmatprep.subr.mxu0 0.0
    %4698 = vmatpush1.msra.mxu0 0.0
    %4699 = vmatprep.subr.mxu0 0.0
    %4700 = vmatpush1.msra.mxu0 0.0
    %4701 = vmatprep.subr.mxu0 0.0
    %4702 = vmatpush1.msra.mxu0 0.0
    %v4703 = vand.u32 %v674, 4294901760
    %4704 = vmatprep.subr.mxu0 %v4703
    %v4705 = vand.u32 %v673, 4294901760
    %4706 = vmatpush1.msra.mxu0 %v4705
    %v4707 = vand.u32 %v672, 4294901760
    %4708 = vmatprep.subr.mxu0 %v4707
    %v4709 = vand.u32 %v671, 4294901760
    %4710 = vmatpush1.msra.mxu0 %v4709
    %v4711 = vand.u32 %v670, 4294901760
    %4712 = vmatprep.subr.mxu0 %v4711
    %v4713 = vand.u32 %v669, 4294901760
    %4714 = vmatpush1.msra.mxu0 %v4713
    %v4715 = vand.u32 %v668, 4294901760
    %4716 = vmatprep.subr.mxu0 %v4715
    %v4717 = vand.u32 %v667, 4294901760
    %4718 = vmatpush1.msra.mxu0 %v4717
    %v4719 = vand.u32 %v666, 4294901760
    %4720 = vmatprep.subr.mxu0 %v4719
    %v4721 = vand.u32 %v665, 4294901760
    %4722 = vmatpush1.msra.mxu0 %v4721
    %v4723 = vand.u32 %v664, 4294901760
    %4724 = vmatprep.subr.mxu0 %v4723
    %v4725 = vand.u32 %v663, 4294901760
    %4726 = vmatpush1.msra.mxu0 %v4725
    %v4727 = vand.u32 %v662, 4294901760
    %4728 = vmatprep.subr.mxu0 %v4727
    %v4729 = vand.u32 %v661, 4294901760
    %4730 = vmatpush1.msra.mxu0 %v4729
    %v4731 = vand.u32 %v660, 4294901760
    %4732 = vmatprep.subr.mxu0 %v4731
    %v4733 = vand.u32 %v659, 4294901760
    %4734 = vmatpush1.msra.mxu0 %v4733
    %4735 = vmatprep.subr.mxu0 0.0
    %4736 = vmatpush2.msra.mxu0 0.0
    %4737 = vmatprep.subr.mxu0 0.0
    %4738 = vmatpush2.msra.mxu0 0.0
    %4739 = vmatprep.subr.mxu0 0.0
    %4740 = vmatpush2.msra.mxu0 0.0
    %4741 = vmatprep.subr.mxu0 0.0
    %4742 = vmatpush2.msra.mxu0 0.0
    %4743 = vmatprep.subr.mxu0 0.0
    %4744 = vmatpush2.msra.mxu0 0.0
    %4745 = vmatprep.subr.mxu0 0.0
    %4746 = vmatpush2.msra.mxu0 0.0
    %4747 = vmatprep.subr.mxu0 0.0
    %4748 = vmatpush2.msra.mxu0 0.0
    %4749 = vmatprep.subr.mxu0 0.0
    %4750 = vmatpush2.msra.mxu0 0.0
    %4751 = vmatprep.subr.mxu0 0.0
    %4752 = vmatpush2.msra.mxu0 0.0
    %4753 = vmatprep.subr.mxu0 0.0
    %4754 = vmatpush2.msra.mxu0 0.0
    %4755 = vmatprep.subr.mxu0 0.0
    %4756 = vmatpush2.msra.mxu0 0.0
    %4757 = vmatprep.subr.mxu0 0.0
    %4758 = vmatpush2.msra.mxu0 0.0
    %4759 = vmatprep.subr.mxu0 0.0
    %4760 = vmatpush2.msra.mxu0 0.0
    %4761 = vmatprep.subr.mxu0 0.0
    %4762 = vmatpush2.msra.mxu0 0.0
    %4763 = vmatprep.subr.mxu0 0.0
    %4764 = vmatpush2.msra.mxu0 0.0
    %4765 = vmatprep.subr.mxu0 0.0
    %4766 = vmatpush2.msra.mxu0 0.0
    %4767 = vmatprep.mubr.f32.mxu0 0.0
    %v4768 = vand.u32 %v4336, 4294901760
    %v4769 = vsub.f32 %v4336, %v4768
    %v4770 = vand.u32 %v4769, 4294901760
    %4771 = vmatmul.mubr.f32.gmra.mxu0 %v4770
    %v4772 = vpop.f32.mrf.mxu0
    %v4773 = vadd.f32 %v4683, %v4772
    %v4774 = vpop.f32.mrf.mxu0
    %v4775 = vadd.f32 %v4685, %v4774
    %4776 = vdwg.mxu0
    %4777 = vmatprep.subr.mxu0 0.0
    %4778 = vmatpush1.msra.mxu0 0.0
    %4779 = vmatprep.subr.mxu0 0.0
    %4780 = vmatpush1.msra.mxu0 0.0
    %4781 = vmatprep.subr.mxu0 0.0
    %4782 = vmatpush1.msra.mxu0 0.0
    %4783 = vmatprep.subr.mxu0 0.0
    %4784 = vmatpush1.msra.mxu0 0.0
    %4785 = vmatprep.subr.mxu0 0.0
    %4786 = vmatpush1.msra.mxu0 0.0
    %4787 = vmatprep.subr.mxu0 0.0
    %4788 = vmatpush1.msra.mxu0 0.0
    %4789 = vmatprep.subr.mxu0 0.0
    %4790 = vmatpush1.msra.mxu0 0.0
    %4791 = vmatprep.subr.mxu0 0.0
    %4792 = vmatpush1.msra.mxu0 0.0
    %v4793 = vand.u32 %v674, 4294901760
    %v4794 = vsub.f32 %v674, %v4793
    %v4795 = vand.u32 %v4794, 4294901760
    %4796 = vmatprep.subr.mxu0 %v4795
    %v4797 = vand.u32 %v673, 4294901760
    %v4798 = vsub.f32 %v673, %v4797
    %v4799 = vand.u32 %v4798, 4294901760
    %4800 = vmatpush1.msra.mxu0 %v4799
    %v4801 = vand.u32 %v672, 4294901760
    %v4802 = vsub.f32 %v672, %v4801
    %v4803 = vand.u32 %v4802, 4294901760
    %4804 = vmatprep.subr.mxu0 %v4803
    %v4805 = vand.u32 %v671, 4294901760
    %v4806 = vsub.f32 %v671, %v4805
    %v4807 = vand.u32 %v4806, 4294901760
    %4808 = vmatpush1.msra.mxu0 %v4807
    %v4809 = vand.u32 %v670, 4294901760
    %v4810 = vsub.f32 %v670, %v4809
    %v4811 = vand.u32 %v4810, 4294901760
    %4812 = vmatprep.subr.mxu0 %v4811
    %v4813 = vand.u32 %v669, 4294901760
    %v4814 = vsub.f32 %v669, %v4813
    %v4815 = vand.u32 %v4814, 4294901760
    %4816 = vmatpush1.msra.mxu0 %v4815
    %v4817 = vand.u32 %v668, 4294901760
    %v4818 = vsub.f32 %v668, %v4817
    %v4819 = vand.u32 %v4818, 4294901760
    %4820 = vmatprep.subr.mxu0 %v4819
    %v4821 = vand.u32 %v667, 4294901760
    %v4822 = vsub.f32 %v667, %v4821
    %v4823 = vand.u32 %v4822, 4294901760
    %4824 = vmatpush1.msra.mxu0 %v4823
    %v4825 = vand.u32 %v666, 4294901760
    %v4826 = vsub.f32 %v666, %v4825
    %v4827 = vand.u32 %v4826, 4294901760
    %4828 = vmatprep.subr.mxu0 %v4827
    %v4829 = vand.u32 %v665, 4294901760
    %v4830 = vsub.f32 %v665, %v4829
    %v4831 = vand.u32 %v4830, 4294901760
    %4832 = vmatpush1.msra.mxu0 %v4831
    %v4833 = vand.u32 %v664, 4294901760
    %v4834 = vsub.f32 %v664, %v4833
    %v4835 = vand.u32 %v4834, 4294901760
    %4836 = vmatprep.subr.mxu0 %v4835
    %v4837 = vand.u32 %v663, 4294901760
    %v4838 = vsub.f32 %v663, %v4837
    %v4839 = vand.u32 %v4838, 4294901760
    %4840 = vmatpush1.msra.mxu0 %v4839
    %v4841 = vand.u32 %v662, 4294901760
    %v4842 = vsub.f32 %v662, %v4841
    %v4843 = vand.u32 %v4842, 4294901760
    %4844 = vmatprep.subr.mxu0 %v4843
    %v4845 = vand.u32 %v661, 4294901760
    %v4846 = vsub.f32 %v661, %v4845
    %v4847 = vand.u32 %v4846, 4294901760
    %4848 = vmatpush1.msra.mxu0 %v4847
    %v4849 = vand.u32 %v660, 4294901760
    %v4850 = vsub.f32 %v660, %v4849
    %v4851 = vand.u32 %v4850, 4294901760
    %4852 = vmatprep.subr.mxu0 %v4851
    %v4853 = vand.u32 %v659, 4294901760
    %v4854 = vsub.f32 %v659, %v4853
    %v4855 = vand.u32 %v4854, 4294901760
    %4856 = vmatpush1.msra.mxu0 %v4855
    %4857 = vmatprep.subr.mxu0 0.0
    %4858 = vmatpush2.msra.mxu0 0.0
    %4859 = vmatprep.subr.mxu0 0.0
    %4860 = vmatpush2.msra.mxu0 0.0
    %4861 = vmatprep.subr.mxu0 0.0
    %4862 = vmatpush2.msra.mxu0 0.0
    %4863 = vmatprep.subr.mxu0 0.0
    %4864 = vmatpush2.msra.mxu0 0.0
    %4865 = vmatprep.subr.mxu0 0.0
    %4866 = vmatpush2.msra.mxu0 0.0
    %4867 = vmatprep.subr.mxu0 0.0
    %4868 = vmatpush2.msra.mxu0 0.0
    %4869 = vmatprep.subr.mxu0 0.0
    %4870 = vmatpush2.msra.mxu0 0.0
    %4871 = vmatprep.subr.mxu0 0.0
    %4872 = vmatpush2.msra.mxu0 0.0
    %4873 = vmatprep.subr.mxu0 0.0
    %4874 = vmatpush2.msra.mxu0 0.0
    %4875 = vmatprep.subr.mxu0 0.0
    %4876 = vmatpush2.msra.mxu0 0.0
    %4877 = vmatprep.subr.mxu0 0.0
    %4878 = vmatpush2.msra.mxu0 0.0
    %4879 = vmatprep.subr.mxu0 0.0
    %4880 = vmatpush2.msra.mxu0 0.0
    %4881 = vmatprep.subr.mxu0 0.0
    %4882 = vmatpush2.msra.mxu0 0.0
    %4883 = vmatprep.subr.mxu0 0.0
    %4884 = vmatpush2.msra.mxu0 0.0
    %4885 = vmatprep.subr.mxu0 0.0
    %4886 = vmatpush2.msra.mxu0 0.0
    %4887 = vmatprep.subr.mxu0 0.0
    %4888 = vmatpush2.msra.mxu0 0.0
    %4889 = vmatprep.mubr.f32.mxu0 0.0
    %v4890 = vand.u32 %v4336, 4294901760
    %4891 = vmatmul.mubr.f32.gmra.mxu0 %v4890
    %v4892 = vpop.f32.mrf.mxu0
    %v4893 = vadd.f32 %v4773, %v4892
    %v4894 = vpop.f32.mrf.mxu0
    %v4895 = vadd.f32 %v4775, %v4894
    %4896 = vdwg.mxu0
    %4897 = vmatprep.subr.mxu0 0.0
    %4898 = vmatpush1.msra.mxu0 0.0
    %4899 = vmatprep.subr.mxu0 0.0
    %4900 = vmatpush1.msra.mxu0 0.0
    %4901 = vmatprep.subr.mxu0 0.0
    %4902 = vmatpush1.msra.mxu0 0.0
    %4903 = vmatprep.subr.mxu0 0.0
    %4904 = vmatpush1.msra.mxu0 0.0
    %4905 = vmatprep.subr.mxu0 0.0
    %4906 = vmatpush1.msra.mxu0 0.0
    %4907 = vmatprep.subr.mxu0 0.0
    %4908 = vmatpush1.msra.mxu0 0.0
    %4909 = vmatprep.subr.mxu0 0.0
    %4910 = vmatpush1.msra.mxu0 0.0
    %4911 = vmatprep.subr.mxu0 0.0
    %4912 = vmatpush1.msra.mxu0 0.0
    %v4913 = vand.u32 %v674, 4294901760
    %4914 = vmatprep.subr.mxu0 %v4913
    %v4915 = vand.u32 %v673, 4294901760
    %4916 = vmatpush1.msra.mxu0 %v4915
    %v4917 = vand.u32 %v672, 4294901760
    %4918 = vmatprep.subr.mxu0 %v4917
    %v4919 = vand.u32 %v671, 4294901760
    %4920 = vmatpush1.msra.mxu0 %v4919
    %v4921 = vand.u32 %v670, 4294901760
    %4922 = vmatprep.subr.mxu0 %v4921
    %v4923 = vand.u32 %v669, 4294901760
    %4924 = vmatpush1.msra.mxu0 %v4923
    %v4925 = vand.u32 %v668, 4294901760
    %4926 = vmatprep.subr.mxu0 %v4925
    %v4927 = vand.u32 %v667, 4294901760
    %4928 = vmatpush1.msra.mxu0 %v4927
    %v4929 = vand.u32 %v666, 4294901760
    %4930 = vmatprep.subr.mxu0 %v4929
    %v4931 = vand.u32 %v665, 4294901760
    %4932 = vmatpush1.msra.mxu0 %v4931
    %v4933 = vand.u32 %v664, 4294901760
    %4934 = vmatprep.subr.mxu0 %v4933
    %v4935 = vand.u32 %v663, 4294901760
    %4936 = vmatpush1.msra.mxu0 %v4935
    %v4937 = vand.u32 %v662, 4294901760
    %4938 = vmatprep.subr.mxu0 %v4937
    %v4939 = vand.u32 %v661, 4294901760
    %4940 = vmatpush1.msra.mxu0 %v4939
    %v4941 = vand.u32 %v660, 4294901760
    %4942 = vmatprep.subr.mxu0 %v4941
    %v4943 = vand.u32 %v659, 4294901760
    %4944 = vmatpush1.msra.mxu0 %v4943
    %4945 = vmatprep.subr.mxu0 0.0
    %4946 = vmatpush2.msra.mxu0 0.0
    %4947 = vmatprep.subr.mxu0 0.0
    %4948 = vmatpush2.msra.mxu0 0.0
    %4949 = vmatprep.subr.mxu0 0.0
    %4950 = vmatpush2.msra.mxu0 0.0
    %4951 = vmatprep.subr.mxu0 0.0
    %4952 = vmatpush2.msra.mxu0 0.0
    %4953 = vmatprep.subr.mxu0 0.0
    %4954 = vmatpush2.msra.mxu0 0.0
    %4955 = vmatprep.subr.mxu0 0.0
    %4956 = vmatpush2.msra.mxu0 0.0
    %4957 = vmatprep.subr.mxu0 0.0
    %4958 = vmatpush2.msra.mxu0 0.0
    %4959 = vmatprep.subr.mxu0 0.0
    %4960 = vmatpush2.msra.mxu0 0.0
    %4961 = vmatprep.subr.mxu0 0.0
    %4962 = vmatpush2.msra.mxu0 0.0
    %4963 = vmatprep.subr.mxu0 0.0
    %4964 = vmatpush2.msra.mxu0 0.0
    %4965 = vmatprep.subr.mxu0 0.0
    %4966 = vmatpush2.msra.mxu0 0.0
    %4967 = vmatprep.subr.mxu0 0.0
    %4968 = vmatpush2.msra.mxu0 0.0
    %4969 = vmatprep.subr.mxu0 0.0
    %4970 = vmatpush2.msra.mxu0 0.0
    %4971 = vmatprep.subr.mxu0 0.0
    %4972 = vmatpush2.msra.mxu0 0.0
    %4973 = vmatprep.subr.mxu0 0.0
    %4974 = vmatpush2.msra.mxu0 0.0
    %4975 = vmatprep.subr.mxu0 0.0
    %4976 = vmatpush2.msra.mxu0 0.0
    %4977 = vmatprep.mubr.f32.mxu0 0.0
    %v4978 = vand.u32 %v4336, 4294901760
    %4979 = vmatmul.mubr.f32.gmra.mxu0 %v4978
    %v4980 = vpop.f32.mrf.mxu0
    %v4981 = vadd.f32 %v4893, %v4980
    %v4982 = vpop.f32.mrf.mxu0
    %v4983 = vadd.f32 %v4895, %v4982
    %4984 = vdwg.mxu0
    %v4987 = vrot.slane %v4981, 3
    %v4988 = vrot.slane %v4983, 3
    %v4989 = vrot.slane %v4981, 4
    %v4990 = vrot.slane %v4983, 4
    %v4995 = vadd.f32 %v648, %v4987
    %v4996 = vadd.f32 %v650, %v4988
    %v4997 = vadd.f32 %v655, %v4989
    %v4998 = vadd.f32 %v657, %v4990
    %v4999 = vxor.u32 %v4995, 2147483648
    %v5000 = vxor.u32 %v4996, 2147483648
    %v5001 = vxor.u32 %v4997, 2147483648
    %v5002 = vxor.u32 %v4998, 2147483648
    %v5003 = vmul.f32 %v4999, 1.442695
    %v5004 = vpow.pop %v5003
    %v5005 = vmul.f32 %v5000, 1.442695
    %v5006 = vpow.pop %v5005
    %v5007 = vmul.f32 %v5001, 1.442695
    %v5008 = vpow.pop %v5007
    %v5009 = vmul.f32 %v5002, 1.442695
    %v5010 = vpow.pop %v5009
    %v5011 = vadd.f32 %v5004, 1.0
    %v5012 = vadd.f32 %v5006, 1.0
    %v5013 = vadd.f32 %v5008, 1.0
    %v5014 = vadd.f32 %v5010, 1.0
    %v5015 = vrcp.pop %v5011
    %v5016 = vmul.f32 1.0, %v5015
    %v5017 = vrcp.pop %v5012
    %v5018 = vmul.f32 1.0, %v5017
    %v5019 = vrcp.pop %v5013
    %v5020 = vmul.f32 1.0, %v5019
    %v5021 = vrcp.pop %v5014
    %v5022 = vmul.f32 1.0, %v5021
    %v5023 = vtanh.pop %v4996
    %v5024 = vtanh.pop %v4998
    %v5027 = vrot.slane %v4317, 7
    %v5028 = vrot.slane %v4318, 7
    %v5031 = vmul.f32 %v5016, %v5027
    %v5032 = vmul.f32 %v5020, %v5028
    %5035 = vrot.lane.b32.xlu0 %v5023, 64
    %v5036 = vpop.permute.xlu0 %5035
    %5037 = vrot.lane.b32.xlu0 %v5024, 64
    %v5038 = vpop.permute.xlu0 %5037
    %v5041 = vmul.f32 %v5016, %v5036
    %v5042 = vmul.f32 %v5020, %v5038
    %5045 = vrot.lane.b32.xlu0 %v5041, 64
    %v5046 = vpop.permute.xlu0 %5045
    %5047 = vrot.lane.b32.xlu0 %v5042, 64
    %v5048 = vpop.permute.xlu0 %5047
    %v5051 = vadd.f32 %v5031, %v5046
    %v5052 = vadd.f32 %v5032, %v5048
    %v5053 = vtanh.pop %v5051
    %v5054 = vtanh.pop %v5052
    %5057 = vrot.lane.b32.xlu0 %v5053, 64
    %v5058 = vpop.permute.xlu0 %5057
    %5059 = vrot.lane.b32.xlu0 %v5054, 64
    %v5060 = vpop.permute.xlu0 %5059
    %v5063 = vmul.f32 %v5018, %v5058
    %v5064 = vmul.f32 %v5022, %v5060
    %v5067 = vrot.slane %v5063, 5
    %v5068 = vrot.slane %v5064, 4
    %v5069 = vsel %vm1401, %v5068, %v5067
    %v5070 = vsel %vm675, %v5069, 0
    %5072 = vmatprep.subr.mxu0 0.0
    %5073 = vmatpush1.msra.mxu0 0.0
    %5074 = vmatprep.subr.mxu0 0.0
    %5075 = vmatpush1.msra.mxu0 0.0
    %5076 = vmatprep.subr.mxu0 0.0
    %5077 = vmatpush1.msra.mxu0 0.0
    %5078 = vmatprep.subr.mxu0 0.0
    %5079 = vmatpush1.msra.mxu0 0.0
    %5080 = vmatprep.subr.mxu0 0.0
    %5081 = vmatpush1.msra.mxu0 0.0
    %5082 = vmatprep.subr.mxu0 0.0
    %5083 = vmatpush1.msra.mxu0 0.0
    %5084 = vmatprep.subr.mxu0 0.0
    %5085 = vmatpush1.msra.mxu0 0.0
    %5086 = vmatprep.subr.mxu0 0.0
    %5087 = vmatpush1.msra.mxu0 0.0
    %v5088 = vand.u32 %v674, 4294901760
    %5089 = vmatprep.subr.mxu0 %v5088
    %v5090 = vand.u32 %v673, 4294901760
    %5091 = vmatpush1.msra.mxu0 %v5090
    %v5092 = vand.u32 %v672, 4294901760
    %5093 = vmatprep.subr.mxu0 %v5092
    %v5094 = vand.u32 %v671, 4294901760
    %5095 = vmatpush1.msra.mxu0 %v5094
    %v5096 = vand.u32 %v670, 4294901760
    %5097 = vmatprep.subr.mxu0 %v5096
    %v5098 = vand.u32 %v669, 4294901760
    %5099 = vmatpush1.msra.mxu0 %v5098
    %v5100 = vand.u32 %v668, 4294901760
    %5101 = vmatprep.subr.mxu0 %v5100
    %v5102 = vand.u32 %v667, 4294901760
    %5103 = vmatpush1.msra.mxu0 %v5102
    %v5104 = vand.u32 %v666, 4294901760
    %5105 = vmatprep.subr.mxu0 %v5104
    %v5106 = vand.u32 %v665, 4294901760
    %5107 = vmatpush1.msra.mxu0 %v5106
    %v5108 = vand.u32 %v664, 4294901760
    %5109 = vmatprep.subr.mxu0 %v5108
    %v5110 = vand.u32 %v663, 4294901760
    %5111 = vmatpush1.msra.mxu0 %v5110
    %v5112 = vand.u32 %v662, 4294901760
    %5113 = vmatprep.subr.mxu0 %v5112
    %v5114 = vand.u32 %v661, 4294901760
    %5115 = vmatpush1.msra.mxu0 %v5114
    %v5116 = vand.u32 %v660, 4294901760
    %5117 = vmatprep.subr.mxu0 %v5116
    %v5118 = vand.u32 %v659, 4294901760
    %5119 = vmatpush1.msra.mxu0 %v5118
    %5120 = vmatprep.subr.mxu0 0.0
    %5121 = vmatpush2.msra.mxu0 0.0
    %5122 = vmatprep.subr.mxu0 0.0
    %5123 = vmatpush2.msra.mxu0 0.0
    %5124 = vmatprep.subr.mxu0 0.0
    %5125 = vmatpush2.msra.mxu0 0.0
    %5126 = vmatprep.subr.mxu0 0.0
    %5127 = vmatpush2.msra.mxu0 0.0
    %5128 = vmatprep.subr.mxu0 0.0
    %5129 = vmatpush2.msra.mxu0 0.0
    %5130 = vmatprep.subr.mxu0 0.0
    %5131 = vmatpush2.msra.mxu0 0.0
    %5132 = vmatprep.subr.mxu0 0.0
    %5133 = vmatpush2.msra.mxu0 0.0
    %5134 = vmatprep.subr.mxu0 0.0
    %5135 = vmatpush2.msra.mxu0 0.0
    %5136 = vmatprep.subr.mxu0 0.0
    %5137 = vmatpush2.msra.mxu0 0.0
    %5138 = vmatprep.subr.mxu0 0.0
    %5139 = vmatpush2.msra.mxu0 0.0
    %5140 = vmatprep.subr.mxu0 0.0
    %5141 = vmatpush2.msra.mxu0 0.0
    %5142 = vmatprep.subr.mxu0 0.0
    %5143 = vmatpush2.msra.mxu0 0.0
    %5144 = vmatprep.subr.mxu0 0.0
    %5145 = vmatpush2.msra.mxu0 0.0
    %5146 = vmatprep.subr.mxu0 0.0
    %5147 = vmatpush2.msra.mxu0 0.0
    %5148 = vmatprep.subr.mxu0 0.0
    %5149 = vmatpush2.msra.mxu0 0.0
    %5150 = vmatprep.subr.mxu0 0.0
    %5151 = vmatpush2.msra.mxu0 0.0
    %5152 = vmatprep.mubr.f32.mxu0 0.0
    %v5153 = vand.u32 %v5070, 4294901760
    %v5154 = vsub.f32 %v5070, %v5153
    %v5155 = vand.u32 %v5154, 4294901760
    %v5156 = vsub.f32 %v5154, %v5155
    %v5157 = vand.u32 %v5156, 4294901760
    %5158 = vmatmul.mubr.f32.gmra.mxu0 %v5157
    %v5159 = vpop.f32.mrf.mxu0
    %v5160 = vadd.f32 0.0, %v5159
    %v5161 = vpop.f32.mrf.mxu0
    %v5162 = vadd.f32 0.0, %v5161
    %5163 = vdwg.mxu0
    %5164 = vmatprep.subr.mxu0 0.0
    %5165 = vmatpush1.msra.mxu0 0.0
    %5166 = vmatprep.subr.mxu0 0.0
    %5167 = vmatpush1.msra.mxu0 0.0
    %5168 = vmatprep.subr.mxu0 0.0
    %5169 = vmatpush1.msra.mxu0 0.0
    %5170 = vmatprep.subr.mxu0 0.0
    %5171 = vmatpush1.msra.mxu0 0.0
    %5172 = vmatprep.subr.mxu0 0.0
    %5173 = vmatpush1.msra.mxu0 0.0
    %5174 = vmatprep.subr.mxu0 0.0
    %5175 = vmatpush1.msra.mxu0 0.0
    %5176 = vmatprep.subr.mxu0 0.0
    %5177 = vmatpush1.msra.mxu0 0.0
    %5178 = vmatprep.subr.mxu0 0.0
    %5179 = vmatpush1.msra.mxu0 0.0
    %v5180 = vand.u32 %v674, 4294901760
    %v5181 = vsub.f32 %v674, %v5180
    %v5182 = vand.u32 %v5181, 4294901760
    %v5183 = vsub.f32 %v5181, %v5182
    %v5184 = vand.u32 %v5183, 4294901760
    %5185 = vmatprep.subr.mxu0 %v5184
    %v5186 = vand.u32 %v673, 4294901760
    %v5187 = vsub.f32 %v673, %v5186
    %v5188 = vand.u32 %v5187, 4294901760
    %v5189 = vsub.f32 %v5187, %v5188
    %v5190 = vand.u32 %v5189, 4294901760
    %5191 = vmatpush1.msra.mxu0 %v5190
    %v5192 = vand.u32 %v672, 4294901760
    %v5193 = vsub.f32 %v672, %v5192
    %v5194 = vand.u32 %v5193, 4294901760
    %v5195 = vsub.f32 %v5193, %v5194
    %v5196 = vand.u32 %v5195, 4294901760
    %5197 = vmatprep.subr.mxu0 %v5196
    %v5198 = vand.u32 %v671, 4294901760
    %v5199 = vsub.f32 %v671, %v5198
    %v5200 = vand.u32 %v5199, 4294901760
    %v5201 = vsub.f32 %v5199, %v5200
    %v5202 = vand.u32 %v5201, 4294901760
    %5203 = vmatpush1.msra.mxu0 %v5202
    %v5204 = vand.u32 %v670, 4294901760
    %v5205 = vsub.f32 %v670, %v5204
    %v5206 = vand.u32 %v5205, 4294901760
    %v5207 = vsub.f32 %v5205, %v5206
    %v5208 = vand.u32 %v5207, 4294901760
    %5209 = vmatprep.subr.mxu0 %v5208
    %v5210 = vand.u32 %v669, 4294901760
    %v5211 = vsub.f32 %v669, %v5210
    %v5212 = vand.u32 %v5211, 4294901760
    %v5213 = vsub.f32 %v5211, %v5212
    %v5214 = vand.u32 %v5213, 4294901760
    %5215 = vmatpush1.msra.mxu0 %v5214
    %v5216 = vand.u32 %v668, 4294901760
    %v5217 = vsub.f32 %v668, %v5216
    %v5218 = vand.u32 %v5217, 4294901760
    %v5219 = vsub.f32 %v5217, %v5218
    %v5220 = vand.u32 %v5219, 4294901760
    %5221 = vmatprep.subr.mxu0 %v5220
    %v5222 = vand.u32 %v667, 4294901760
    %v5223 = vsub.f32 %v667, %v5222
    %v5224 = vand.u32 %v5223, 4294901760
    %v5225 = vsub.f32 %v5223, %v5224
    %v5226 = vand.u32 %v5225, 4294901760
    %5227 = vmatpush1.msra.mxu0 %v5226
    %v5228 = vand.u32 %v666, 4294901760
    %v5229 = vsub.f32 %v666, %v5228
    %v5230 = vand.u32 %v5229, 4294901760
    %v5231 = vsub.f32 %v5229, %v5230
    %v5232 = vand.u32 %v5231, 4294901760
    %5233 = vmatprep.subr.mxu0 %v5232
    %v5234 = vand.u32 %v665, 4294901760
    %v5235 = vsub.f32 %v665, %v5234
    %v5236 = vand.u32 %v5235, 4294901760
    %v5237 = vsub.f32 %v5235, %v5236
    %v5238 = vand.u32 %v5237, 4294901760
    %5239 = vmatpush1.msra.mxu0 %v5238
    %v5240 = vand.u32 %v664, 4294901760
    %v5241 = vsub.f32 %v664, %v5240
    %v5242 = vand.u32 %v5241, 4294901760
    %v5243 = vsub.f32 %v5241, %v5242
    %v5244 = vand.u32 %v5243, 4294901760
    %5245 = vmatprep.subr.mxu0 %v5244
    %v5246 = vand.u32 %v663, 4294901760
    %v5247 = vsub.f32 %v663, %v5246
    %v5248 = vand.u32 %v5247, 4294901760
    %v5249 = vsub.f32 %v5247, %v5248
    %v5250 = vand.u32 %v5249, 4294901760
    %5251 = vmatpush1.msra.mxu0 %v5250
    %v5252 = vand.u32 %v662, 4294901760
    %v5253 = vsub.f32 %v662, %v5252
    %v5254 = vand.u32 %v5253, 4294901760
    %v5255 = vsub.f32 %v5253, %v5254
    %v5256 = vand.u32 %v5255, 4294901760
    %5257 = vmatprep.subr.mxu0 %v5256
    %v5258 = vand.u32 %v661, 4294901760
    %v5259 = vsub.f32 %v661, %v5258
    %v5260 = vand.u32 %v5259, 4294901760
    %v5261 = vsub.f32 %v5259, %v5260
    %v5262 = vand.u32 %v5261, 4294901760
    %5263 = vmatpush1.msra.mxu0 %v5262
    %v5264 = vand.u32 %v660, 4294901760
    %v5265 = vsub.f32 %v660, %v5264
    %v5266 = vand.u32 %v5265, 4294901760
    %v5267 = vsub.f32 %v5265, %v5266
    %v5268 = vand.u32 %v5267, 4294901760
    %5269 = vmatprep.subr.mxu0 %v5268
    %v5270 = vand.u32 %v659, 4294901760
    %v5271 = vsub.f32 %v659, %v5270
    %v5272 = vand.u32 %v5271, 4294901760
    %v5273 = vsub.f32 %v5271, %v5272
    %v5274 = vand.u32 %v5273, 4294901760
    %5275 = vmatpush1.msra.mxu0 %v5274
    %5276 = vmatprep.subr.mxu0 0.0
    %5277 = vmatpush2.msra.mxu0 0.0
    %5278 = vmatprep.subr.mxu0 0.0
    %5279 = vmatpush2.msra.mxu0 0.0
    %5280 = vmatprep.subr.mxu0 0.0
    %5281 = vmatpush2.msra.mxu0 0.0
    %5282 = vmatprep.subr.mxu0 0.0
    %5283 = vmatpush2.msra.mxu0 0.0
    %5284 = vmatprep.subr.mxu0 0.0
    %5285 = vmatpush2.msra.mxu0 0.0
    %5286 = vmatprep.subr.mxu0 0.0
    %5287 = vmatpush2.msra.mxu0 0.0
    %5288 = vmatprep.subr.mxu0 0.0
    %5289 = vmatpush2.msra.mxu0 0.0
    %5290 = vmatprep.subr.mxu0 0.0
    %5291 = vmatpush2.msra.mxu0 0.0
    %5292 = vmatprep.subr.mxu0 0.0
    %5293 = vmatpush2.msra.mxu0 0.0
    %5294 = vmatprep.subr.mxu0 0.0
    %5295 = vmatpush2.msra.mxu0 0.0
    %5296 = vmatprep.subr.mxu0 0.0
    %5297 = vmatpush2.msra.mxu0 0.0
    %5298 = vmatprep.subr.mxu0 0.0
    %5299 = vmatpush2.msra.mxu0 0.0
    %5300 = vmatprep.subr.mxu0 0.0
    %5301 = vmatpush2.msra.mxu0 0.0
    %5302 = vmatprep.subr.mxu0 0.0
    %5303 = vmatpush2.msra.mxu0 0.0
    %5304 = vmatprep.subr.mxu0 0.0
    %5305 = vmatpush2.msra.mxu0 0.0
    %5306 = vmatprep.subr.mxu0 0.0
    %5307 = vmatpush2.msra.mxu0 0.0
    %5308 = vmatprep.mubr.f32.mxu0 0.0
    %v5309 = vand.u32 %v5070, 4294901760
    %5310 = vmatmul.mubr.f32.gmra.mxu0 %v5309
    %v5311 = vpop.f32.mrf.mxu0
    %v5312 = vadd.f32 %v5160, %v5311
    %v5313 = vpop.f32.mrf.mxu0
    %v5314 = vadd.f32 %v5162, %v5313
    %5315 = vdwg.mxu0
    %5316 = vmatprep.subr.mxu0 0.0
    %5317 = vmatpush1.msra.mxu0 0.0
    %5318 = vmatprep.subr.mxu0 0.0
    %5319 = vmatpush1.msra.mxu0 0.0
    %5320 = vmatprep.subr.mxu0 0.0
    %5321 = vmatpush1.msra.mxu0 0.0
    %5322 = vmatprep.subr.mxu0 0.0
    %5323 = vmatpush1.msra.mxu0 0.0
    %5324 = vmatprep.subr.mxu0 0.0
    %5325 = vmatpush1.msra.mxu0 0.0
    %5326 = vmatprep.subr.mxu0 0.0
    %5327 = vmatpush1.msra.mxu0 0.0
    %5328 = vmatprep.subr.mxu0 0.0
    %5329 = vmatpush1.msra.mxu0 0.0
    %5330 = vmatprep.subr.mxu0 0.0
    %5331 = vmatpush1.msra.mxu0 0.0
    %v5332 = vand.u32 %v674, 4294901760
    %v5333 = vsub.f32 %v674, %v5332
    %5334 = vmatprep.subr.mxu0 %v5333
    %v5335 = vand.u32 %v673, 4294901760
    %v5336 = vsub.f32 %v673, %v5335
    %5337 = vmatpush1.msra.mxu0 %v5336
    %v5338 = vand.u32 %v672, 4294901760
    %v5339 = vsub.f32 %v672, %v5338
    %5340 = vmatprep.subr.mxu0 %v5339
    %v5341 = vand.u32 %v671, 4294901760
    %v5342 = vsub.f32 %v671, %v5341
    %5343 = vmatpush1.msra.mxu0 %v5342
    %v5344 = vand.u32 %v670, 4294901760
    %v5345 = vsub.f32 %v670, %v5344
    %5346 = vmatprep.subr.mxu0 %v5345
    %v5347 = vand.u32 %v669, 4294901760
    %v5348 = vsub.f32 %v669, %v5347
    %5349 = vmatpush1.msra.mxu0 %v5348
    %v5350 = vand.u32 %v668, 4294901760
    %v5351 = vsub.f32 %v668, %v5350
    %5352 = vmatprep.subr.mxu0 %v5351
    %v5353 = vand.u32 %v667, 4294901760
    %v5354 = vsub.f32 %v667, %v5353
    %5355 = vmatpush1.msra.mxu0 %v5354
    %v5356 = vand.u32 %v666, 4294901760
    %v5357 = vsub.f32 %v666, %v5356
    %5358 = vmatprep.subr.mxu0 %v5357
    %v5359 = vand.u32 %v665, 4294901760
    %v5360 = vsub.f32 %v665, %v5359
    %5361 = vmatpush1.msra.mxu0 %v5360
    %v5362 = vand.u32 %v664, 4294901760
    %v5363 = vsub.f32 %v664, %v5362
    %5364 = vmatprep.subr.mxu0 %v5363
    %v5365 = vand.u32 %v663, 4294901760
    %v5366 = vsub.f32 %v663, %v5365
    %5367 = vmatpush1.msra.mxu0 %v5366
    %v5368 = vand.u32 %v662, 4294901760
    %v5369 = vsub.f32 %v662, %v5368
    %5370 = vmatprep.subr.mxu0 %v5369
    %v5371 = vand.u32 %v661, 4294901760
    %v5372 = vsub.f32 %v661, %v5371
    %5373 = vmatpush1.msra.mxu0 %v5372
    %v5374 = vand.u32 %v660, 4294901760
    %v5375 = vsub.f32 %v660, %v5374
    %5376 = vmatprep.subr.mxu0 %v5375
    %v5377 = vand.u32 %v659, 4294901760
    %v5378 = vsub.f32 %v659, %v5377
    %5379 = vmatpush1.msra.mxu0 %v5378
    %5380 = vmatprep.subr.mxu0 0.0
    %5381 = vmatpush2.msra.mxu0 0.0
    %5382 = vmatprep.subr.mxu0 0.0
    %5383 = vmatpush2.msra.mxu0 0.0
    %5384 = vmatprep.subr.mxu0 0.0
    %5385 = vmatpush2.msra.mxu0 0.0
    %5386 = vmatprep.subr.mxu0 0.0
    %5387 = vmatpush2.msra.mxu0 0.0
    %5388 = vmatprep.subr.mxu0 0.0
    %5389 = vmatpush2.msra.mxu0 0.0
    %5390 = vmatprep.subr.mxu0 0.0
    %5391 = vmatpush2.msra.mxu0 0.0
    %5392 = vmatprep.subr.mxu0 0.0
    %5393 = vmatpush2.msra.mxu0 0.0
    %5394 = vmatprep.subr.mxu0 0.0
    %5395 = vmatpush2.msra.mxu0 0.0
    %5396 = vmatprep.subr.mxu0 0.0
    %5397 = vmatpush2.msra.mxu0 0.0
    %5398 = vmatprep.subr.mxu0 0.0
    %5399 = vmatpush2.msra.mxu0 0.0
    %5400 = vmatprep.subr.mxu0 0.0
    %5401 = vmatpush2.msra.mxu0 0.0
    %5402 = vmatprep.subr.mxu0 0.0
    %5403 = vmatpush2.msra.mxu0 0.0
    %5404 = vmatprep.subr.mxu0 0.0
    %5405 = vmatpush2.msra.mxu0 0.0
    %5406 = vmatprep.subr.mxu0 0.0
    %5407 = vmatpush2.msra.mxu0 0.0
    %5408 = vmatprep.subr.mxu0 0.0
    %5409 = vmatpush2.msra.mxu0 0.0
    %5410 = vmatprep.subr.mxu0 0.0
    %5411 = vmatpush2.msra.mxu0 0.0
    %5412 = vmatprep.mubr.f32.mxu0 0.0
    %v5413 = vand.u32 %v5070, 4294901760
    %v5414 = vsub.f32 %v5070, %v5413
    %5415 = vmatmul.mubr.f32.gmra.mxu0 %v5414
    %v5416 = vpop.f32.mrf.mxu0
    %v5417 = vadd.f32 %v5312, %v5416
    %v5418 = vpop.f32.mrf.mxu0
    %v5419 = vadd.f32 %v5314, %v5418
    %5420 = vdwg.mxu0
    %5421 = vmatprep.subr.mxu0 0.0
    %5422 = vmatpush1.msra.mxu0 0.0
    %5423 = vmatprep.subr.mxu0 0.0
    %5424 = vmatpush1.msra.mxu0 0.0
    %5425 = vmatprep.subr.mxu0 0.0
    %5426 = vmatpush1.msra.mxu0 0.0
    %5427 = vmatprep.subr.mxu0 0.0
    %5428 = vmatpush1.msra.mxu0 0.0
    %5429 = vmatprep.subr.mxu0 0.0
    %5430 = vmatpush1.msra.mxu0 0.0
    %5431 = vmatprep.subr.mxu0 0.0
    %5432 = vmatpush1.msra.mxu0 0.0
    %5433 = vmatprep.subr.mxu0 0.0
    %5434 = vmatpush1.msra.mxu0 0.0
    %5435 = vmatprep.subr.mxu0 0.0
    %5436 = vmatpush1.msra.mxu0 0.0
    %v5437 = vand.u32 %v674, 4294901760
    %5438 = vmatprep.subr.mxu0 %v5437
    %v5439 = vand.u32 %v673, 4294901760
    %5440 = vmatpush1.msra.mxu0 %v5439
    %v5441 = vand.u32 %v672, 4294901760
    %5442 = vmatprep.subr.mxu0 %v5441
    %v5443 = vand.u32 %v671, 4294901760
    %5444 = vmatpush1.msra.mxu0 %v5443
    %v5445 = vand.u32 %v670, 4294901760
    %5446 = vmatprep.subr.mxu0 %v5445
    %v5447 = vand.u32 %v669, 4294901760
    %5448 = vmatpush1.msra.mxu0 %v5447
    %v5449 = vand.u32 %v668, 4294901760
    %5450 = vmatprep.subr.mxu0 %v5449
    %v5451 = vand.u32 %v667, 4294901760
    %5452 = vmatpush1.msra.mxu0 %v5451
    %v5453 = vand.u32 %v666, 4294901760
    %5454 = vmatprep.subr.mxu0 %v5453
    %v5455 = vand.u32 %v665, 4294901760
    %5456 = vmatpush1.msra.mxu0 %v5455
    %v5457 = vand.u32 %v664, 4294901760
    %5458 = vmatprep.subr.mxu0 %v5457
    %v5459 = vand.u32 %v663, 4294901760
    %5460 = vmatpush1.msra.mxu0 %v5459
    %v5461 = vand.u32 %v662, 4294901760
    %5462 = vmatprep.subr.mxu0 %v5461
    %v5463 = vand.u32 %v661, 4294901760
    %5464 = vmatpush1.msra.mxu0 %v5463
    %v5465 = vand.u32 %v660, 4294901760
    %5466 = vmatprep.subr.mxu0 %v5465
    %v5467 = vand.u32 %v659, 4294901760
    %5468 = vmatpush1.msra.mxu0 %v5467
    %5469 = vmatprep.subr.mxu0 0.0
    %5470 = vmatpush2.msra.mxu0 0.0
    %5471 = vmatprep.subr.mxu0 0.0
    %5472 = vmatpush2.msra.mxu0 0.0
    %5473 = vmatprep.subr.mxu0 0.0
    %5474 = vmatpush2.msra.mxu0 0.0
    %5475 = vmatprep.subr.mxu0 0.0
    %5476 = vmatpush2.msra.mxu0 0.0
    %5477 = vmatprep.subr.mxu0 0.0
    %5478 = vmatpush2.msra.mxu0 0.0
    %5479 = vmatprep.subr.mxu0 0.0
    %5480 = vmatpush2.msra.mxu0 0.0
    %5481 = vmatprep.subr.mxu0 0.0
    %5482 = vmatpush2.msra.mxu0 0.0
    %5483 = vmatprep.subr.mxu0 0.0
    %5484 = vmatpush2.msra.mxu0 0.0
    %5485 = vmatprep.subr.mxu0 0.0
    %5486 = vmatpush2.msra.mxu0 0.0
    %5487 = vmatprep.subr.mxu0 0.0
    %5488 = vmatpush2.msra.mxu0 0.0
    %5489 = vmatprep.subr.mxu0 0.0
    %5490 = vmatpush2.msra.mxu0 0.0
    %5491 = vmatprep.subr.mxu0 0.0
    %5492 = vmatpush2.msra.mxu0 0.0
    %5493 = vmatprep.subr.mxu0 0.0
    %5494 = vmatpush2.msra.mxu0 0.0
    %5495 = vmatprep.subr.mxu0 0.0
    %5496 = vmatpush2.msra.mxu0 0.0
    %5497 = vmatprep.subr.mxu0 0.0
    %5498 = vmatpush2.msra.mxu0 0.0
    %5499 = vmatprep.subr.mxu0 0.0
    %5500 = vmatpush2.msra.mxu0 0.0
    %5501 = vmatprep.mubr.f32.mxu0 0.0
    %v5502 = vand.u32 %v5070, 4294901760
    %v5503 = vsub.f32 %v5070, %v5502
    %v5504 = vand.u32 %v5503, 4294901760
    %5505 = vmatmul.mubr.f32.gmra.mxu0 %v5504
    %v5506 = vpop.f32.mrf.mxu0
    %v5507 = vadd.f32 %v5417, %v5506
    %v5508 = vpop.f32.mrf.mxu0
    %v5509 = vadd.f32 %v5419, %v5508
    %5510 = vdwg.mxu0
    %5511 = vmatprep.subr.mxu0 0.0
    %5512 = vmatpush1.msra.mxu0 0.0
    %5513 = vmatprep.subr.mxu0 0.0
    %5514 = vmatpush1.msra.mxu0 0.0
    %5515 = vmatprep.subr.mxu0 0.0
    %5516 = vmatpush1.msra.mxu0 0.0
    %5517 = vmatprep.subr.mxu0 0.0
    %5518 = vmatpush1.msra.mxu0 0.0
    %5519 = vmatprep.subr.mxu0 0.0
    %5520 = vmatpush1.msra.mxu0 0.0
    %5521 = vmatprep.subr.mxu0 0.0
    %5522 = vmatpush1.msra.mxu0 0.0
    %5523 = vmatprep.subr.mxu0 0.0
    %5524 = vmatpush1.msra.mxu0 0.0
    %5525 = vmatprep.subr.mxu0 0.0
    %5526 = vmatpush1.msra.mxu0 0.0
    %v5527 = vand.u32 %v674, 4294901760
    %v5528 = vsub.f32 %v674, %v5527
    %v5529 = vand.u32 %v5528, 4294901760
    %5530 = vmatprep.subr.mxu0 %v5529
    %v5531 = vand.u32 %v673, 4294901760
    %v5532 = vsub.f32 %v673, %v5531
    %v5533 = vand.u32 %v5532, 4294901760
    %5534 = vmatpush1.msra.mxu0 %v5533
    %v5535 = vand.u32 %v672, 4294901760
    %v5536 = vsub.f32 %v672, %v5535
    %v5537 = vand.u32 %v5536, 4294901760
    %5538 = vmatprep.subr.mxu0 %v5537
    %v5539 = vand.u32 %v671, 4294901760
    %v5540 = vsub.f32 %v671, %v5539
    %v5541 = vand.u32 %v5540, 4294901760
    %5542 = vmatpush1.msra.mxu0 %v5541
    %v5543 = vand.u32 %v670, 4294901760
    %v5544 = vsub.f32 %v670, %v5543
    %v5545 = vand.u32 %v5544, 4294901760
    %5546 = vmatprep.subr.mxu0 %v5545
    %v5547 = vand.u32 %v669, 4294901760
    %v5548 = vsub.f32 %v669, %v5547
    %v5549 = vand.u32 %v5548, 4294901760
    %5550 = vmatpush1.msra.mxu0 %v5549
    %v5551 = vand.u32 %v668, 4294901760
    %v5552 = vsub.f32 %v668, %v5551
    %v5553 = vand.u32 %v5552, 4294901760
    %5554 = vmatprep.subr.mxu0 %v5553
    %v5555 = vand.u32 %v667, 4294901760
    %v5556 = vsub.f32 %v667, %v5555
    %v5557 = vand.u32 %v5556, 4294901760
    %5558 = vmatpush1.msra.mxu0 %v5557
    %v5559 = vand.u32 %v666, 4294901760
    %v5560 = vsub.f32 %v666, %v5559
    %v5561 = vand.u32 %v5560, 4294901760
    %5562 = vmatprep.subr.mxu0 %v5561
    %v5563 = vand.u32 %v665, 4294901760
    %v5564 = vsub.f32 %v665, %v5563
    %v5565 = vand.u32 %v5564, 4294901760
    %5566 = vmatpush1.msra.mxu0 %v5565
    %v5567 = vand.u32 %v664, 4294901760
    %v5568 = vsub.f32 %v664, %v5567
    %v5569 = vand.u32 %v5568, 4294901760
    %5570 = vmatprep.subr.mxu0 %v5569
    %v5571 = vand.u32 %v663, 4294901760
    %v5572 = vsub.f32 %v663, %v5571
    %v5573 = vand.u32 %v5572, 4294901760
    %5574 = vmatpush1.msra.mxu0 %v5573
    %v5575 = vand.u32 %v662, 4294901760
    %v5576 = vsub.f32 %v662, %v5575
    %v5577 = vand.u32 %v5576, 4294901760
    %5578 = vmatprep.subr.mxu0 %v5577
    %v5579 = vand.u32 %v661, 4294901760
    %v5580 = vsub.f32 %v661, %v5579
    %v5581 = vand.u32 %v5580, 4294901760
    %5582 = vmatpush1.msra.mxu0 %v5581
    %v5583 = vand.u32 %v660, 4294901760
    %v5584 = vsub.f32 %v660, %v5583
    %v5585 = vand.u32 %v5584, 4294901760
    %5586 = vmatprep.subr.mxu0 %v5585
    %v5587 = vand.u32 %v659, 4294901760
    %v5588 = vsub.f32 %v659, %v5587
    %v5589 = vand.u32 %v5588, 4294901760
    %5590 = vmatpush1.msra.mxu0 %v5589
    %5591 = vmatprep.subr.mxu0 0.0
    %5592 = vmatpush2.msra.mxu0 0.0
    %5593 = vmatprep.subr.mxu0 0.0
    %5594 = vmatpush2.msra.mxu0 0.0
    %5595 = vmatprep.subr.mxu0 0.0
    %5596 = vmatpush2.msra.mxu0 0.0
    %5597 = vmatprep.subr.mxu0 0.0
    %5598 = vmatpush2.msra.mxu0 0.0
    %5599 = vmatprep.subr.mxu0 0.0
    %5600 = vmatpush2.msra.mxu0 0.0
    %5601 = vmatprep.subr.mxu0 0.0
    %5602 = vmatpush2.msra.mxu0 0.0
    %5603 = vmatprep.subr.mxu0 0.0
    %5604 = vmatpush2.msra.mxu0 0.0
    %5605 = vmatprep.subr.mxu0 0.0
    %5606 = vmatpush2.msra.mxu0 0.0
    %5607 = vmatprep.subr.mxu0 0.0
    %5608 = vmatpush2.msra.mxu0 0.0
    %5609 = vmatprep.subr.mxu0 0.0
    %5610 = vmatpush2.msra.mxu0 0.0
    %5611 = vmatprep.subr.mxu0 0.0
    %5612 = vmatpush2.msra.mxu0 0.0
    %5613 = vmatprep.subr.mxu0 0.0
    %5614 = vmatpush2.msra.mxu0 0.0
    %5615 = vmatprep.subr.mxu0 0.0
    %5616 = vmatpush2.msra.mxu0 0.0
    %5617 = vmatprep.subr.mxu0 0.0
    %5618 = vmatpush2.msra.mxu0 0.0
    %5619 = vmatprep.subr.mxu0 0.0
    %5620 = vmatpush2.msra.mxu0 0.0
    %5621 = vmatprep.subr.mxu0 0.0
    %5622 = vmatpush2.msra.mxu0 0.0
    %5623 = vmatprep.mubr.f32.mxu0 0.0
    %v5624 = vand.u32 %v5070, 4294901760
    %5625 = vmatmul.mubr.f32.gmra.mxu0 %v5624
    %v5626 = vpop.f32.mrf.mxu0
    %v5627 = vadd.f32 %v5507, %v5626
    %v5628 = vpop.f32.mrf.mxu0
    %v5629 = vadd.f32 %v5509, %v5628
    %5630 = vdwg.mxu0
    %5631 = vmatprep.subr.mxu0 0.0
    %5632 = vmatpush1.msra.mxu0 0.0
    %5633 = vmatprep.subr.mxu0 0.0
    %5634 = vmatpush1.msra.mxu0 0.0
    %5635 = vmatprep.subr.mxu0 0.0
    %5636 = vmatpush1.msra.mxu0 0.0
    %5637 = vmatprep.subr.mxu0 0.0
    %5638 = vmatpush1.msra.mxu0 0.0
    %5639 = vmatprep.subr.mxu0 0.0
    %5640 = vmatpush1.msra.mxu0 0.0
    %5641 = vmatprep.subr.mxu0 0.0
    %5642 = vmatpush1.msra.mxu0 0.0
    %5643 = vmatprep.subr.mxu0 0.0
    %5644 = vmatpush1.msra.mxu0 0.0
    %5645 = vmatprep.subr.mxu0 0.0
    %5646 = vmatpush1.msra.mxu0 0.0
    %v5647 = vand.u32 %v674, 4294901760
    %5648 = vmatprep.subr.mxu0 %v5647
    %v5649 = vand.u32 %v673, 4294901760
    %5650 = vmatpush1.msra.mxu0 %v5649
    %v5651 = vand.u32 %v672, 4294901760
    %5652 = vmatprep.subr.mxu0 %v5651
    %v5653 = vand.u32 %v671, 4294901760
    %5654 = vmatpush1.msra.mxu0 %v5653
    %v5655 = vand.u32 %v670, 4294901760
    %5656 = vmatprep.subr.mxu0 %v5655
    %v5657 = vand.u32 %v669, 4294901760
    %5658 = vmatpush1.msra.mxu0 %v5657
    %v5659 = vand.u32 %v668, 4294901760
    %5660 = vmatprep.subr.mxu0 %v5659
    %v5661 = vand.u32 %v667, 4294901760
    %5662 = vmatpush1.msra.mxu0 %v5661
    %v5663 = vand.u32 %v666, 4294901760
    %5664 = vmatprep.subr.mxu0 %v5663
    %v5665 = vand.u32 %v665, 4294901760
    %5666 = vmatpush1.msra.mxu0 %v5665
    %v5667 = vand.u32 %v664, 4294901760
    %5668 = vmatprep.subr.mxu0 %v5667
    %v5669 = vand.u32 %v663, 4294901760
    %5670 = vmatpush1.msra.mxu0 %v5669
    %v5671 = vand.u32 %v662, 4294901760
    %5672 = vmatprep.subr.mxu0 %v5671
    %v5673 = vand.u32 %v661, 4294901760
    %5674 = vmatpush1.msra.mxu0 %v5673
    %v5675 = vand.u32 %v660, 4294901760
    %5676 = vmatprep.subr.mxu0 %v5675
    %v5677 = vand.u32 %v659, 4294901760
    %5678 = vmatpush1.msra.mxu0 %v5677
    %5679 = vmatprep.subr.mxu0 0.0
    %5680 = vmatpush2.msra.mxu0 0.0
    %5681 = vmatprep.subr.mxu0 0.0
    %5682 = vmatpush2.msra.mxu0 0.0
    %5683 = vmatprep.subr.mxu0 0.0
    %5684 = vmatpush2.msra.mxu0 0.0
    %5685 = vmatprep.subr.mxu0 0.0
    %5686 = vmatpush2.msra.mxu0 0.0
    %5687 = vmatprep.subr.mxu0 0.0
    %5688 = vmatpush2.msra.mxu0 0.0
    %5689 = vmatprep.subr.mxu0 0.0
    %5690 = vmatpush2.msra.mxu0 0.0
    %5691 = vmatprep.subr.mxu0 0.0
    %5692 = vmatpush2.msra.mxu0 0.0
    %5693 = vmatprep.subr.mxu0 0.0
    %5694 = vmatpush2.msra.mxu0 0.0
    %5695 = vmatprep.subr.mxu0 0.0
    %5696 = vmatpush2.msra.mxu0 0.0
    %5697 = vmatprep.subr.mxu0 0.0
    %5698 = vmatpush2.msra.mxu0 0.0
    %5699 = vmatprep.subr.mxu0 0.0
    %5700 = vmatpush2.msra.mxu0 0.0
    %5701 = vmatprep.subr.mxu0 0.0
    %5702 = vmatpush2.msra.mxu0 0.0
    %5703 = vmatprep.subr.mxu0 0.0
    %5704 = vmatpush2.msra.mxu0 0.0
    %5705 = vmatprep.subr.mxu0 0.0
    %5706 = vmatpush2.msra.mxu0 0.0
    %5707 = vmatprep.subr.mxu0 0.0
    %5708 = vmatpush2.msra.mxu0 0.0
    %5709 = vmatprep.subr.mxu0 0.0
    %5710 = vmatpush2.msra.mxu0 0.0
    %5711 = vmatprep.mubr.f32.mxu0 0.0
    %v5712 = vand.u32 %v5070, 4294901760
    %5713 = vmatmul.mubr.f32.gmra.mxu0 %v5712
    %v5714 = vpop.f32.mrf.mxu0
    %v5715 = vadd.f32 %v5627, %v5714
    %v5716 = vpop.f32.mrf.mxu0
    %v5717 = vadd.f32 %v5629, %v5716
    %5718 = vdwg.mxu0
    %v5721 = vrot.slane %v5715, 2
    %v5722 = vrot.slane %v5717, 2
    %v5723 = vrot.slane %v5715, 3
    %v5724 = vrot.slane %v5717, 3
    %v5729 = vadd.f32 %v648, %v5721
    %v5730 = vadd.f32 %v650, %v5722
    %v5731 = vadd.f32 %v655, %v5723
    %v5732 = vadd.f32 %v657, %v5724
    %v5733 = vxor.u32 %v5729, 2147483648
    %v5734 = vxor.u32 %v5730, 2147483648
    %v5735 = vxor.u32 %v5731, 2147483648
    %v5736 = vxor.u32 %v5732, 2147483648
    %v5737 = vmul.f32 %v5733, 1.442695
    %v5738 = vpow.pop %v5737
    %v5739 = vmul.f32 %v5734, 1.442695
    %v5740 = vpow.pop %v5739
    %v5741 = vmul.f32 %v5735, 1.442695
    %v5742 = vpow.pop %v5741
    %v5743 = vmul.f32 %v5736, 1.442695
    %v5744 = vpow.pop %v5743
    %v5745 = vadd.f32 %v5738, 1.0
    %v5746 = vadd.f32 %v5740, 1.0
    %v5747 = vadd.f32 %v5742, 1.0
    %v5748 = vadd.f32 %v5744, 1.0
    %v5749 = vrcp.pop %v5745
    %v5750 = vmul.f32 1.0, %v5749
    %v5751 = vrcp.pop %v5746
    %v5752 = vmul.f32 1.0, %v5751
    %v5753 = vrcp.pop %v5747
    %v5754 = vmul.f32 1.0, %v5753
    %v5755 = vrcp.pop %v5748
    %v5756 = vmul.f32 1.0, %v5755
    %v5757 = vtanh.pop %v5730
    %v5758 = vtanh.pop %v5732
    %v5761 = vrot.slane %v5051, 7
    %v5762 = vrot.slane %v5052, 7
    %v5765 = vmul.f32 %v5750, %v5761
    %v5766 = vmul.f32 %v5754, %v5762
    %5769 = vrot.lane.b32.xlu0 %v5757, 64
    %v5770 = vpop.permute.xlu0 %5769
    %5771 = vrot.lane.b32.xlu0 %v5758, 64
    %v5772 = vpop.permute.xlu0 %5771
    %v5775 = vmul.f32 %v5750, %v5770
    %v5776 = vmul.f32 %v5754, %v5772
    %5779 = vrot.lane.b32.xlu0 %v5775, 64
    %v5780 = vpop.permute.xlu0 %5779
    %5781 = vrot.lane.b32.xlu0 %v5776, 64
    %v5782 = vpop.permute.xlu0 %5781
    %v5785 = vadd.f32 %v5765, %v5780
    %v5786 = vadd.f32 %v5766, %v5782
    %v5787 = vtanh.pop %v5785
    %v5788 = vtanh.pop %v5786
    %5791 = vrot.lane.b32.xlu0 %v5787, 64
    %v5792 = vpop.permute.xlu0 %5791
    %5793 = vrot.lane.b32.xlu0 %v5788, 64
    %v5794 = vpop.permute.xlu0 %5793
    %v5797 = vmul.f32 %v5752, %v5792
    %v5798 = vmul.f32 %v5756, %v5794
    %v5801 = vrot.slane %v5797, 6
    %v5802 = vrot.slane %v5798, 5
    %v5803 = vsel %vm1401, %v5802, %v5801
    %v5804 = vsel %vm675, %v5803, 0
    %5806 = vmatprep.subr.mxu0 0.0
    %5807 = vmatpush1.msra.mxu0 0.0
    %5808 = vmatprep.subr.mxu0 0.0
    %5809 = vmatpush1.msra.mxu0 0.0
    %5810 = vmatprep.subr.mxu0 0.0
    %5811 = vmatpush1.msra.mxu0 0.0
    %5812 = vmatprep.subr.mxu0 0.0
    %5813 = vmatpush1.msra.mxu0 0.0
    %5814 = vmatprep.subr.mxu0 0.0
    %5815 = vmatpush1.msra.mxu0 0.0
    %5816 = vmatprep.subr.mxu0 0.0
    %5817 = vmatpush1.msra.mxu0 0.0
    %5818 = vmatprep.subr.mxu0 0.0
    %5819 = vmatpush1.msra.mxu0 0.0
    %5820 = vmatprep.subr.mxu0 0.0
    %5821 = vmatpush1.msra.mxu0 0.0
    %v5822 = vand.u32 %v674, 4294901760
    %5823 = vmatprep.subr.mxu0 %v5822
    %v5824 = vand.u32 %v673, 4294901760
    %5825 = vmatpush1.msra.mxu0 %v5824
    %v5826 = vand.u32 %v672, 4294901760
    %5827 = vmatprep.subr.mxu0 %v5826
    %v5828 = vand.u32 %v671, 4294901760
    %5829 = vmatpush1.msra.mxu0 %v5828
    %v5830 = vand.u32 %v670, 4294901760
    %5831 = vmatprep.subr.mxu0 %v5830
    %v5832 = vand.u32 %v669, 4294901760
    %5833 = vmatpush1.msra.mxu0 %v5832
    %v5834 = vand.u32 %v668, 4294901760
    %5835 = vmatprep.subr.mxu0 %v5834
    %v5836 = vand.u32 %v667, 4294901760
    %5837 = vmatpush1.msra.mxu0 %v5836
    %v5838 = vand.u32 %v666, 4294901760
    %5839 = vmatprep.subr.mxu0 %v5838
    %v5840 = vand.u32 %v665, 4294901760
    %5841 = vmatpush1.msra.mxu0 %v5840
    %v5842 = vand.u32 %v664, 4294901760
    %5843 = vmatprep.subr.mxu0 %v5842
    %v5844 = vand.u32 %v663, 4294901760
    %5845 = vmatpush1.msra.mxu0 %v5844
    %v5846 = vand.u32 %v662, 4294901760
    %5847 = vmatprep.subr.mxu0 %v5846
    %v5848 = vand.u32 %v661, 4294901760
    %5849 = vmatpush1.msra.mxu0 %v5848
    %v5850 = vand.u32 %v660, 4294901760
    %5851 = vmatprep.subr.mxu0 %v5850
    %v5852 = vand.u32 %v659, 4294901760
    %5853 = vmatpush1.msra.mxu0 %v5852
    %5854 = vmatprep.subr.mxu0 0.0
    %5855 = vmatpush2.msra.mxu0 0.0
    %5856 = vmatprep.subr.mxu0 0.0
    %5857 = vmatpush2.msra.mxu0 0.0
    %5858 = vmatprep.subr.mxu0 0.0
    %5859 = vmatpush2.msra.mxu0 0.0
    %5860 = vmatprep.subr.mxu0 0.0
    %5861 = vmatpush2.msra.mxu0 0.0
    %5862 = vmatprep.subr.mxu0 0.0
    %5863 = vmatpush2.msra.mxu0 0.0
    %5864 = vmatprep.subr.mxu0 0.0
    %5865 = vmatpush2.msra.mxu0 0.0
    %5866 = vmatprep.subr.mxu0 0.0
    %5867 = vmatpush2.msra.mxu0 0.0
    %5868 = vmatprep.subr.mxu0 0.0
    %5869 = vmatpush2.msra.mxu0 0.0
    %5870 = vmatprep.subr.mxu0 0.0
    %5871 = vmatpush2.msra.mxu0 0.0
    %5872 = vmatprep.subr.mxu0 0.0
    %5873 = vmatpush2.msra.mxu0 0.0
    %5874 = vmatprep.subr.mxu0 0.0
    %5875 = vmatpush2.msra.mxu0 0.0
    %5876 = vmatprep.subr.mxu0 0.0
    %5877 = vmatpush2.msra.mxu0 0.0
    %5878 = vmatprep.subr.mxu0 0.0
    %5879 = vmatpush2.msra.mxu0 0.0
    %5880 = vmatprep.subr.mxu0 0.0
    %5881 = vmatpush2.msra.mxu0 0.0
    %5882 = vmatprep.subr.mxu0 0.0
    %5883 = vmatpush2.msra.mxu0 0.0
    %5884 = vmatprep.subr.mxu0 0.0
    %5885 = vmatpush2.msra.mxu0 0.0
    %5886 = vmatprep.mubr.f32.mxu0 0.0
    %v5887 = vand.u32 %v5804, 4294901760
    %v5888 = vsub.f32 %v5804, %v5887
    %v5889 = vand.u32 %v5888, 4294901760
    %v5890 = vsub.f32 %v5888, %v5889
    %v5891 = vand.u32 %v5890, 4294901760
    %5892 = vmatmul.mubr.f32.gmra.mxu0 %v5891
    %v5893 = vpop.f32.mrf.mxu0
    %v5894 = vadd.f32 0.0, %v5893
    %v5895 = vpop.f32.mrf.mxu0
    %v5896 = vadd.f32 0.0, %v5895
    %5897 = vdwg.mxu0
    %5898 = vmatprep.subr.mxu0 0.0
    %5899 = vmatpush1.msra.mxu0 0.0
    %5900 = vmatprep.subr.mxu0 0.0
    %5901 = vmatpush1.msra.mxu0 0.0
    %5902 = vmatprep.subr.mxu0 0.0
    %5903 = vmatpush1.msra.mxu0 0.0
    %5904 = vmatprep.subr.mxu0 0.0
    %5905 = vmatpush1.msra.mxu0 0.0
    %5906 = vmatprep.subr.mxu0 0.0
    %5907 = vmatpush1.msra.mxu0 0.0
    %5908 = vmatprep.subr.mxu0 0.0
    %5909 = vmatpush1.msra.mxu0 0.0
    %5910 = vmatprep.subr.mxu0 0.0
    %5911 = vmatpush1.msra.mxu0 0.0
    %5912 = vmatprep.subr.mxu0 0.0
    %5913 = vmatpush1.msra.mxu0 0.0
    %v5914 = vand.u32 %v674, 4294901760
    %v5915 = vsub.f32 %v674, %v5914
    %v5916 = vand.u32 %v5915, 4294901760
    %v5917 = vsub.f32 %v5915, %v5916
    %v5918 = vand.u32 %v5917, 4294901760
    %5919 = vmatprep.subr.mxu0 %v5918
    %v5920 = vand.u32 %v673, 4294901760
    %v5921 = vsub.f32 %v673, %v5920
    %v5922 = vand.u32 %v5921, 4294901760
    %v5923 = vsub.f32 %v5921, %v5922
    %v5924 = vand.u32 %v5923, 4294901760
    %5925 = vmatpush1.msra.mxu0 %v5924
    %v5926 = vand.u32 %v672, 4294901760
    %v5927 = vsub.f32 %v672, %v5926
    %v5928 = vand.u32 %v5927, 4294901760
    %v5929 = vsub.f32 %v5927, %v5928
    %v5930 = vand.u32 %v5929, 4294901760
    %5931 = vmatprep.subr.mxu0 %v5930
    %v5932 = vand.u32 %v671, 4294901760
    %v5933 = vsub.f32 %v671, %v5932
    %v5934 = vand.u32 %v5933, 4294901760
    %v5935 = vsub.f32 %v5933, %v5934
    %v5936 = vand.u32 %v5935, 4294901760
    %5937 = vmatpush1.msra.mxu0 %v5936
    %v5938 = vand.u32 %v670, 4294901760
    %v5939 = vsub.f32 %v670, %v5938
    %v5940 = vand.u32 %v5939, 4294901760
    %v5941 = vsub.f32 %v5939, %v5940
    %v5942 = vand.u32 %v5941, 4294901760
    %5943 = vmatprep.subr.mxu0 %v5942
    %v5944 = vand.u32 %v669, 4294901760
    %v5945 = vsub.f32 %v669, %v5944
    %v5946 = vand.u32 %v5945, 4294901760
    %v5947 = vsub.f32 %v5945, %v5946
    %v5948 = vand.u32 %v5947, 4294901760
    %5949 = vmatpush1.msra.mxu0 %v5948
    %v5950 = vand.u32 %v668, 4294901760
    %v5951 = vsub.f32 %v668, %v5950
    %v5952 = vand.u32 %v5951, 4294901760
    %v5953 = vsub.f32 %v5951, %v5952
    %v5954 = vand.u32 %v5953, 4294901760
    %5955 = vmatprep.subr.mxu0 %v5954
    %v5956 = vand.u32 %v667, 4294901760
    %v5957 = vsub.f32 %v667, %v5956
    %v5958 = vand.u32 %v5957, 4294901760
    %v5959 = vsub.f32 %v5957, %v5958
    %v5960 = vand.u32 %v5959, 4294901760
    %5961 = vmatpush1.msra.mxu0 %v5960
    %v5962 = vand.u32 %v666, 4294901760
    %v5963 = vsub.f32 %v666, %v5962
    %v5964 = vand.u32 %v5963, 4294901760
    %v5965 = vsub.f32 %v5963, %v5964
    %v5966 = vand.u32 %v5965, 4294901760
    %5967 = vmatprep.subr.mxu0 %v5966
    %v5968 = vand.u32 %v665, 4294901760
    %v5969 = vsub.f32 %v665, %v5968
    %v5970 = vand.u32 %v5969, 4294901760
    %v5971 = vsub.f32 %v5969, %v5970
    %v5972 = vand.u32 %v5971, 4294901760
    %5973 = vmatpush1.msra.mxu0 %v5972
    %v5974 = vand.u32 %v664, 4294901760
    %v5975 = vsub.f32 %v664, %v5974
    %v5976 = vand.u32 %v5975, 4294901760
    %v5977 = vsub.f32 %v5975, %v5976
    %v5978 = vand.u32 %v5977, 4294901760
    %5979 = vmatprep.subr.mxu0 %v5978
    %v5980 = vand.u32 %v663, 4294901760
    %v5981 = vsub.f32 %v663, %v5980
    %v5982 = vand.u32 %v5981, 4294901760
    %v5983 = vsub.f32 %v5981, %v5982
    %v5984 = vand.u32 %v5983, 4294901760
    %5985 = vmatpush1.msra.mxu0 %v5984
    %v5986 = vand.u32 %v662, 4294901760
    %v5987 = vsub.f32 %v662, %v5986
    %v5988 = vand.u32 %v5987, 4294901760
    %v5989 = vsub.f32 %v5987, %v5988
    %v5990 = vand.u32 %v5989, 4294901760
    %5991 = vmatprep.subr.mxu0 %v5990
    %v5992 = vand.u32 %v661, 4294901760
    %v5993 = vsub.f32 %v661, %v5992
    %v5994 = vand.u32 %v5993, 4294901760
    %v5995 = vsub.f32 %v5993, %v5994
    %v5996 = vand.u32 %v5995, 4294901760
    %5997 = vmatpush1.msra.mxu0 %v5996
    %v5998 = vand.u32 %v660, 4294901760
    %v5999 = vsub.f32 %v660, %v5998
    %v6000 = vand.u32 %v5999, 4294901760
    %v6001 = vsub.f32 %v5999, %v6000
    %v6002 = vand.u32 %v6001, 4294901760
    %6003 = vmatprep.subr.mxu0 %v6002
    %v6004 = vand.u32 %v659, 4294901760
    %v6005 = vsub.f32 %v659, %v6004
    %v6006 = vand.u32 %v6005, 4294901760
    %v6007 = vsub.f32 %v6005, %v6006
    %v6008 = vand.u32 %v6007, 4294901760
    %6009 = vmatpush1.msra.mxu0 %v6008
    %6010 = vmatprep.subr.mxu0 0.0
    %6011 = vmatpush2.msra.mxu0 0.0
    %6012 = vmatprep.subr.mxu0 0.0
    %6013 = vmatpush2.msra.mxu0 0.0
    %6014 = vmatprep.subr.mxu0 0.0
    %6015 = vmatpush2.msra.mxu0 0.0
    %6016 = vmatprep.subr.mxu0 0.0
    %6017 = vmatpush2.msra.mxu0 0.0
    %6018 = vmatprep.subr.mxu0 0.0
    %6019 = vmatpush2.msra.mxu0 0.0
    %6020 = vmatprep.subr.mxu0 0.0
    %6021 = vmatpush2.msra.mxu0 0.0
    %6022 = vmatprep.subr.mxu0 0.0
    %6023 = vmatpush2.msra.mxu0 0.0
    %6024 = vmatprep.subr.mxu0 0.0
    %6025 = vmatpush2.msra.mxu0 0.0
    %6026 = vmatprep.subr.mxu0 0.0
    %6027 = vmatpush2.msra.mxu0 0.0
    %6028 = vmatprep.subr.mxu0 0.0
    %6029 = vmatpush2.msra.mxu0 0.0
    %6030 = vmatprep.subr.mxu0 0.0
    %6031 = vmatpush2.msra.mxu0 0.0
    %6032 = vmatprep.subr.mxu0 0.0
    %6033 = vmatpush2.msra.mxu0 0.0
    %6034 = vmatprep.subr.mxu0 0.0
    %6035 = vmatpush2.msra.mxu0 0.0
    %6036 = vmatprep.subr.mxu0 0.0
    %6037 = vmatpush2.msra.mxu0 0.0
    %6038 = vmatprep.subr.mxu0 0.0
    %6039 = vmatpush2.msra.mxu0 0.0
    %6040 = vmatprep.subr.mxu0 0.0
    %6041 = vmatpush2.msra.mxu0 0.0
    %6042 = vmatprep.mubr.f32.mxu0 0.0
    %v6043 = vand.u32 %v5804, 4294901760
    %6044 = vmatmul.mubr.f32.gmra.mxu0 %v6043
    %v6045 = vpop.f32.mrf.mxu0
    %v6046 = vadd.f32 %v5894, %v6045
    %v6047 = vpop.f32.mrf.mxu0
    %v6048 = vadd.f32 %v5896, %v6047
    %6049 = vdwg.mxu0
    %6050 = vmatprep.subr.mxu0 0.0
    %6051 = vmatpush1.msra.mxu0 0.0
    %6052 = vmatprep.subr.mxu0 0.0
    %6053 = vmatpush1.msra.mxu0 0.0
    %6054 = vmatprep.subr.mxu0 0.0
    %6055 = vmatpush1.msra.mxu0 0.0
    %6056 = vmatprep.subr.mxu0 0.0
    %6057 = vmatpush1.msra.mxu0 0.0
    %6058 = vmatprep.subr.mxu0 0.0
    %6059 = vmatpush1.msra.mxu0 0.0
    %6060 = vmatprep.subr.mxu0 0.0
    %6061 = vmatpush1.msra.mxu0 0.0
    %6062 = vmatprep.subr.mxu0 0.0
    %6063 = vmatpush1.msra.mxu0 0.0
    %6064 = vmatprep.subr.mxu0 0.0
    %6065 = vmatpush1.msra.mxu0 0.0
    %v6066 = vand.u32 %v674, 4294901760
    %v6067 = vsub.f32 %v674, %v6066
    %6068 = vmatprep.subr.mxu0 %v6067
    %v6069 = vand.u32 %v673, 4294901760
    %v6070 = vsub.f32 %v673, %v6069
    %6071 = vmatpush1.msra.mxu0 %v6070
    %v6072 = vand.u32 %v672, 4294901760
    %v6073 = vsub.f32 %v672, %v6072
    %6074 = vmatprep.subr.mxu0 %v6073
    %v6075 = vand.u32 %v671, 4294901760
    %v6076 = vsub.f32 %v671, %v6075
    %6077 = vmatpush1.msra.mxu0 %v6076
    %v6078 = vand.u32 %v670, 4294901760
    %v6079 = vsub.f32 %v670, %v6078
    %6080 = vmatprep.subr.mxu0 %v6079
    %v6081 = vand.u32 %v669, 4294901760
    %v6082 = vsub.f32 %v669, %v6081
    %6083 = vmatpush1.msra.mxu0 %v6082
    %v6084 = vand.u32 %v668, 4294901760
    %v6085 = vsub.f32 %v668, %v6084
    %6086 = vmatprep.subr.mxu0 %v6085
    %v6087 = vand.u32 %v667, 4294901760
    %v6088 = vsub.f32 %v667, %v6087
    %6089 = vmatpush1.msra.mxu0 %v6088
    %v6090 = vand.u32 %v666, 4294901760
    %v6091 = vsub.f32 %v666, %v6090
    %6092 = vmatprep.subr.mxu0 %v6091
    %v6093 = vand.u32 %v665, 4294901760
    %v6094 = vsub.f32 %v665, %v6093
    %6095 = vmatpush1.msra.mxu0 %v6094
    %v6096 = vand.u32 %v664, 4294901760
    %v6097 = vsub.f32 %v664, %v6096
    %6098 = vmatprep.subr.mxu0 %v6097
    %v6099 = vand.u32 %v663, 4294901760
    %v6100 = vsub.f32 %v663, %v6099
    %6101 = vmatpush1.msra.mxu0 %v6100
    %v6102 = vand.u32 %v662, 4294901760
    %v6103 = vsub.f32 %v662, %v6102
    %6104 = vmatprep.subr.mxu0 %v6103
    %v6105 = vand.u32 %v661, 4294901760
    %v6106 = vsub.f32 %v661, %v6105
    %6107 = vmatpush1.msra.mxu0 %v6106
    %v6108 = vand.u32 %v660, 4294901760
    %v6109 = vsub.f32 %v660, %v6108
    %6110 = vmatprep.subr.mxu0 %v6109
    %v6111 = vand.u32 %v659, 4294901760
    %v6112 = vsub.f32 %v659, %v6111
    %6113 = vmatpush1.msra.mxu0 %v6112
    %6114 = vmatprep.subr.mxu0 0.0
    %6115 = vmatpush2.msra.mxu0 0.0
    %6116 = vmatprep.subr.mxu0 0.0
    %6117 = vmatpush2.msra.mxu0 0.0
    %6118 = vmatprep.subr.mxu0 0.0
    %6119 = vmatpush2.msra.mxu0 0.0
    %6120 = vmatprep.subr.mxu0 0.0
    %6121 = vmatpush2.msra.mxu0 0.0
    %6122 = vmatprep.subr.mxu0 0.0
    %6123 = vmatpush2.msra.mxu0 0.0
    %6124 = vmatprep.subr.mxu0 0.0
    %6125 = vmatpush2.msra.mxu0 0.0
    %6126 = vmatprep.subr.mxu0 0.0
    %6127 = vmatpush2.msra.mxu0 0.0
    %6128 = vmatprep.subr.mxu0 0.0
    %6129 = vmatpush2.msra.mxu0 0.0
    %6130 = vmatprep.subr.mxu0 0.0
    %6131 = vmatpush2.msra.mxu0 0.0
    %6132 = vmatprep.subr.mxu0 0.0
    %6133 = vmatpush2.msra.mxu0 0.0
    %6134 = vmatprep.subr.mxu0 0.0
    %6135 = vmatpush2.msra.mxu0 0.0
    %6136 = vmatprep.subr.mxu0 0.0
    %6137 = vmatpush2.msra.mxu0 0.0
    %6138 = vmatprep.subr.mxu0 0.0
    %6139 = vmatpush2.msra.mxu0 0.0
    %6140 = vmatprep.subr.mxu0 0.0
    %6141 = vmatpush2.msra.mxu0 0.0
    %6142 = vmatprep.subr.mxu0 0.0
    %6143 = vmatpush2.msra.mxu0 0.0
    %6144 = vmatprep.subr.mxu0 0.0
    %6145 = vmatpush2.msra.mxu0 0.0
    %6146 = vmatprep.mubr.f32.mxu0 0.0
    %v6147 = vand.u32 %v5804, 4294901760
    %v6148 = vsub.f32 %v5804, %v6147
    %6149 = vmatmul.mubr.f32.gmra.mxu0 %v6148
    %v6150 = vpop.f32.mrf.mxu0
    %v6151 = vadd.f32 %v6046, %v6150
    %v6152 = vpop.f32.mrf.mxu0
    %v6153 = vadd.f32 %v6048, %v6152
    %6154 = vdwg.mxu0
    %6155 = vmatprep.subr.mxu0 0.0
    %6156 = vmatpush1.msra.mxu0 0.0
    %6157 = vmatprep.subr.mxu0 0.0
    %6158 = vmatpush1.msra.mxu0 0.0
    %6159 = vmatprep.subr.mxu0 0.0
    %6160 = vmatpush1.msra.mxu0 0.0
    %6161 = vmatprep.subr.mxu0 0.0
    %6162 = vmatpush1.msra.mxu0 0.0
    %6163 = vmatprep.subr.mxu0 0.0
    %6164 = vmatpush1.msra.mxu0 0.0
    %6165 = vmatprep.subr.mxu0 0.0
    %6166 = vmatpush1.msra.mxu0 0.0
    %6167 = vmatprep.subr.mxu0 0.0
    %6168 = vmatpush1.msra.mxu0 0.0
    %6169 = vmatprep.subr.mxu0 0.0
    %6170 = vmatpush1.msra.mxu0 0.0
    %v6171 = vand.u32 %v674, 4294901760
    %6172 = vmatprep.subr.mxu0 %v6171
    %v6173 = vand.u32 %v673, 4294901760
    %6174 = vmatpush1.msra.mxu0 %v6173
    %v6175 = vand.u32 %v672, 4294901760
    %6176 = vmatprep.subr.mxu0 %v6175
    %v6177 = vand.u32 %v671, 4294901760
    %6178 = vmatpush1.msra.mxu0 %v6177
    %v6179 = vand.u32 %v670, 4294901760
    %6180 = vmatprep.subr.mxu0 %v6179
    %v6181 = vand.u32 %v669, 4294901760
    %6182 = vmatpush1.msra.mxu0 %v6181
    %v6183 = vand.u32 %v668, 4294901760
    %6184 = vmatprep.subr.mxu0 %v6183
    %v6185 = vand.u32 %v667, 4294901760
    %6186 = vmatpush1.msra.mxu0 %v6185
    %v6187 = vand.u32 %v666, 4294901760
    %6188 = vmatprep.subr.mxu0 %v6187
    %v6189 = vand.u32 %v665, 4294901760
    %6190 = vmatpush1.msra.mxu0 %v6189
    %v6191 = vand.u32 %v664, 4294901760
    %6192 = vmatprep.subr.mxu0 %v6191
    %v6193 = vand.u32 %v663, 4294901760
    %6194 = vmatpush1.msra.mxu0 %v6193
    %v6195 = vand.u32 %v662, 4294901760
    %6196 = vmatprep.subr.mxu0 %v6195
    %v6197 = vand.u32 %v661, 4294901760
    %6198 = vmatpush1.msra.mxu0 %v6197
    %v6199 = vand.u32 %v660, 4294901760
    %6200 = vmatprep.subr.mxu0 %v6199
    %v6201 = vand.u32 %v659, 4294901760
    %6202 = vmatpush1.msra.mxu0 %v6201
    %6203 = vmatprep.subr.mxu0 0.0
    %6204 = vmatpush2.msra.mxu0 0.0
    %6205 = vmatprep.subr.mxu0 0.0
    %6206 = vmatpush2.msra.mxu0 0.0
    %6207 = vmatprep.subr.mxu0 0.0
    %6208 = vmatpush2.msra.mxu0 0.0
    %6209 = vmatprep.subr.mxu0 0.0
    %6210 = vmatpush2.msra.mxu0 0.0
    %6211 = vmatprep.subr.mxu0 0.0
    %6212 = vmatpush2.msra.mxu0 0.0
    %6213 = vmatprep.subr.mxu0 0.0
    %6214 = vmatpush2.msra.mxu0 0.0
    %6215 = vmatprep.subr.mxu0 0.0
    %6216 = vmatpush2.msra.mxu0 0.0
    %6217 = vmatprep.subr.mxu0 0.0
    %6218 = vmatpush2.msra.mxu0 0.0
    %6219 = vmatprep.subr.mxu0 0.0
    %6220 = vmatpush2.msra.mxu0 0.0
    %6221 = vmatprep.subr.mxu0 0.0
    %6222 = vmatpush2.msra.mxu0 0.0
    %6223 = vmatprep.subr.mxu0 0.0
    %6224 = vmatpush2.msra.mxu0 0.0
    %6225 = vmatprep.subr.mxu0 0.0
    %6226 = vmatpush2.msra.mxu0 0.0
    %6227 = vmatprep.subr.mxu0 0.0
    %6228 = vmatpush2.msra.mxu0 0.0
    %6229 = vmatprep.subr.mxu0 0.0
    %6230 = vmatpush2.msra.mxu0 0.0
    %6231 = vmatprep.subr.mxu0 0.0
    %6232 = vmatpush2.msra.mxu0 0.0
    %6233 = vmatprep.subr.mxu0 0.0
    %6234 = vmatpush2.msra.mxu0 0.0
    %6235 = vmatprep.mubr.f32.mxu0 0.0
    %v6236 = vand.u32 %v5804, 4294901760
    %v6237 = vsub.f32 %v5804, %v6236
    %v6238 = vand.u32 %v6237, 4294901760
    %6239 = vmatmul.mubr.f32.gmra.mxu0 %v6238
    %v6240 = vpop.f32.mrf.mxu0
    %v6241 = vadd.f32 %v6151, %v6240
    %v6242 = vpop.f32.mrf.mxu0
    %v6243 = vadd.f32 %v6153, %v6242
    %6244 = vdwg.mxu0
    %6245 = vmatprep.subr.mxu0 0.0
    %6246 = vmatpush1.msra.mxu0 0.0
    %6247 = vmatprep.subr.mxu0 0.0
    %6248 = vmatpush1.msra.mxu0 0.0
    %6249 = vmatprep.subr.mxu0 0.0
    %6250 = vmatpush1.msra.mxu0 0.0
    %6251 = vmatprep.subr.mxu0 0.0
    %6252 = vmatpush1.msra.mxu0 0.0
    %6253 = vmatprep.subr.mxu0 0.0
    %6254 = vmatpush1.msra.mxu0 0.0
    %6255 = vmatprep.subr.mxu0 0.0
    %6256 = vmatpush1.msra.mxu0 0.0
    %6257 = vmatprep.subr.mxu0 0.0
    %6258 = vmatpush1.msra.mxu0 0.0
    %6259 = vmatprep.subr.mxu0 0.0
    %6260 = vmatpush1.msra.mxu0 0.0
    %v6261 = vand.u32 %v674, 4294901760
    %v6262 = vsub.f32 %v674, %v6261
    %v6263 = vand.u32 %v6262, 4294901760
    %6264 = vmatprep.subr.mxu0 %v6263
    %v6265 = vand.u32 %v673, 4294901760
    %v6266 = vsub.f32 %v673, %v6265
    %v6267 = vand.u32 %v6266, 4294901760
    %6268 = vmatpush1.msra.mxu0 %v6267
    %v6269 = vand.u32 %v672, 4294901760
    %v6270 = vsub.f32 %v672, %v6269
    %v6271 = vand.u32 %v6270, 4294901760
    %6272 = vmatprep.subr.mxu0 %v6271
    %v6273 = vand.u32 %v671, 4294901760
    %v6274 = vsub.f32 %v671, %v6273
    %v6275 = vand.u32 %v6274, 4294901760
    %6276 = vmatpush1.msra.mxu0 %v6275
    %v6277 = vand.u32 %v670, 4294901760
    %v6278 = vsub.f32 %v670, %v6277
    %v6279 = vand.u32 %v6278, 4294901760
    %6280 = vmatprep.subr.mxu0 %v6279
    %v6281 = vand.u32 %v669, 4294901760
    %v6282 = vsub.f32 %v669, %v6281
    %v6283 = vand.u32 %v6282, 4294901760
    %6284 = vmatpush1.msra.mxu0 %v6283
    %v6285 = vand.u32 %v668, 4294901760
    %v6286 = vsub.f32 %v668, %v6285
    %v6287 = vand.u32 %v6286, 4294901760
    %6288 = vmatprep.subr.mxu0 %v6287
    %v6289 = vand.u32 %v667, 4294901760
    %v6290 = vsub.f32 %v667, %v6289
    %v6291 = vand.u32 %v6290, 4294901760
    %6292 = vmatpush1.msra.mxu0 %v6291
    %v6293 = vand.u32 %v666, 4294901760
    %v6294 = vsub.f32 %v666, %v6293
    %v6295 = vand.u32 %v6294, 4294901760
    %6296 = vmatprep.subr.mxu0 %v6295
    %v6297 = vand.u32 %v665, 4294901760
    %v6298 = vsub.f32 %v665, %v6297
    %v6299 = vand.u32 %v6298, 4294901760
    %6300 = vmatpush1.msra.mxu0 %v6299
    %v6301 = vand.u32 %v664, 4294901760
    %v6302 = vsub.f32 %v664, %v6301
    %v6303 = vand.u32 %v6302, 4294901760
    %6304 = vmatprep.subr.mxu0 %v6303
    %v6305 = vand.u32 %v663, 4294901760
    %v6306 = vsub.f32 %v663, %v6305
    %v6307 = vand.u32 %v6306, 4294901760
    %6308 = vmatpush1.msra.mxu0 %v6307
    %v6309 = vand.u32 %v662, 4294901760
    %v6310 = vsub.f32 %v662, %v6309
    %v6311 = vand.u32 %v6310, 4294901760
    %6312 = vmatprep.subr.mxu0 %v6311
    %v6313 = vand.u32 %v661, 4294901760
    %v6314 = vsub.f32 %v661, %v6313
    %v6315 = vand.u32 %v6314, 4294901760
    %6316 = vmatpush1.msra.mxu0 %v6315
    %v6317 = vand.u32 %v660, 4294901760
    %v6318 = vsub.f32 %v660, %v6317
    %v6319 = vand.u32 %v6318, 4294901760
    %6320 = vmatprep.subr.mxu0 %v6319
    %v6321 = vand.u32 %v659, 4294901760
    %v6322 = vsub.f32 %v659, %v6321
    %v6323 = vand.u32 %v6322, 4294901760
    %6324 = vmatpush1.msra.mxu0 %v6323
    %6325 = vmatprep.subr.mxu0 0.0
    %6326 = vmatpush2.msra.mxu0 0.0
    %6327 = vmatprep.subr.mxu0 0.0
    %6328 = vmatpush2.msra.mxu0 0.0
    %6329 = vmatprep.subr.mxu0 0.0
    %6330 = vmatpush2.msra.mxu0 0.0
    %6331 = vmatprep.subr.mxu0 0.0
    %6332 = vmatpush2.msra.mxu0 0.0
    %6333 = vmatprep.subr.mxu0 0.0
    %6334 = vmatpush2.msra.mxu0 0.0
    %6335 = vmatprep.subr.mxu0 0.0
    %6336 = vmatpush2.msra.mxu0 0.0
    %6337 = vmatprep.subr.mxu0 0.0
    %6338 = vmatpush2.msra.mxu0 0.0
    %6339 = vmatprep.subr.mxu0 0.0
    %6340 = vmatpush2.msra.mxu0 0.0
    %6341 = vmatprep.subr.mxu0 0.0
    %6342 = vmatpush2.msra.mxu0 0.0
    %6343 = vmatprep.subr.mxu0 0.0
    %6344 = vmatpush2.msra.mxu0 0.0
    %6345 = vmatprep.subr.mxu0 0.0
    %6346 = vmatpush2.msra.mxu0 0.0
    %6347 = vmatprep.subr.mxu0 0.0
    %6348 = vmatpush2.msra.mxu0 0.0
    %6349 = vmatprep.subr.mxu0 0.0
    %6350 = vmatpush2.msra.mxu0 0.0
    %6351 = vmatprep.subr.mxu0 0.0
    %6352 = vmatpush2.msra.mxu0 0.0
    %6353 = vmatprep.subr.mxu0 0.0
    %6354 = vmatpush2.msra.mxu0 0.0
    %6355 = vmatprep.subr.mxu0 0.0
    %6356 = vmatpush2.msra.mxu0 0.0
    %6357 = vmatprep.mubr.f32.mxu0 0.0
    %v6358 = vand.u32 %v5804, 4294901760
    %6359 = vmatmul.mubr.f32.gmra.mxu0 %v6358
    %v6360 = vpop.f32.mrf.mxu0
    %v6361 = vadd.f32 %v6241, %v6360
    %v6362 = vpop.f32.mrf.mxu0
    %v6363 = vadd.f32 %v6243, %v6362
    %6364 = vdwg.mxu0
    %6365 = vmatprep.subr.mxu0 0.0
    %6366 = vmatpush1.msra.mxu0 0.0
    %6367 = vmatprep.subr.mxu0 0.0
    %6368 = vmatpush1.msra.mxu0 0.0
    %6369 = vmatprep.subr.mxu0 0.0
    %6370 = vmatpush1.msra.mxu0 0.0
    %6371 = vmatprep.subr.mxu0 0.0
    %6372 = vmatpush1.msra.mxu0 0.0
    %6373 = vmatprep.subr.mxu0 0.0
    %6374 = vmatpush1.msra.mxu0 0.0
    %6375 = vmatprep.subr.mxu0 0.0
    %6376 = vmatpush1.msra.mxu0 0.0
    %6377 = vmatprep.subr.mxu0 0.0
    %6378 = vmatpush1.msra.mxu0 0.0
    %6379 = vmatprep.subr.mxu0 0.0
    %6380 = vmatpush1.msra.mxu0 0.0
    %v6381 = vand.u32 %v674, 4294901760
    %6382 = vmatprep.subr.mxu0 %v6381
    %v6383 = vand.u32 %v673, 4294901760
    %6384 = vmatpush1.msra.mxu0 %v6383
    %v6385 = vand.u32 %v672, 4294901760
    %6386 = vmatprep.subr.mxu0 %v6385
    %v6387 = vand.u32 %v671, 4294901760
    %6388 = vmatpush1.msra.mxu0 %v6387
    %v6389 = vand.u32 %v670, 4294901760
    %6390 = vmatprep.subr.mxu0 %v6389
    %v6391 = vand.u32 %v669, 4294901760
    %6392 = vmatpush1.msra.mxu0 %v6391
    %v6393 = vand.u32 %v668, 4294901760
    %6394 = vmatprep.subr.mxu0 %v6393
    %v6395 = vand.u32 %v667, 4294901760
    %6396 = vmatpush1.msra.mxu0 %v6395
    %v6397 = vand.u32 %v666, 4294901760
    %6398 = vmatprep.subr.mxu0 %v6397
    %v6399 = vand.u32 %v665, 4294901760
    %6400 = vmatpush1.msra.mxu0 %v6399
    %v6401 = vand.u32 %v664, 4294901760
    %6402 = vmatprep.subr.mxu0 %v6401
    %v6403 = vand.u32 %v663, 4294901760
    %6404 = vmatpush1.msra.mxu0 %v6403
    %v6405 = vand.u32 %v662, 4294901760
    %6406 = vmatprep.subr.mxu0 %v6405
    %v6407 = vand.u32 %v661, 4294901760
    %6408 = vmatpush1.msra.mxu0 %v6407
    %v6409 = vand.u32 %v660, 4294901760
    %6410 = vmatprep.subr.mxu0 %v6409
    %v6411 = vand.u32 %v659, 4294901760
    %6412 = vmatpush1.msra.mxu0 %v6411
    %6413 = vmatprep.subr.mxu0 0.0
    %6414 = vmatpush2.msra.mxu0 0.0
    %6415 = vmatprep.subr.mxu0 0.0
    %6416 = vmatpush2.msra.mxu0 0.0
    %6417 = vmatprep.subr.mxu0 0.0
    %6418 = vmatpush2.msra.mxu0 0.0
    %6419 = vmatprep.subr.mxu0 0.0
    %6420 = vmatpush2.msra.mxu0 0.0
    %6421 = vmatprep.subr.mxu0 0.0
    %6422 = vmatpush2.msra.mxu0 0.0
    %6423 = vmatprep.subr.mxu0 0.0
    %6424 = vmatpush2.msra.mxu0 0.0
    %6425 = vmatprep.subr.mxu0 0.0
    %6426 = vmatpush2.msra.mxu0 0.0
    %6427 = vmatprep.subr.mxu0 0.0
    %6428 = vmatpush2.msra.mxu0 0.0
    %6429 = vmatprep.subr.mxu0 0.0
    %6430 = vmatpush2.msra.mxu0 0.0
    %6431 = vmatprep.subr.mxu0 0.0
    %6432 = vmatpush2.msra.mxu0 0.0
    %6433 = vmatprep.subr.mxu0 0.0
    %6434 = vmatpush2.msra.mxu0 0.0
    %6435 = vmatprep.subr.mxu0 0.0
    %6436 = vmatpush2.msra.mxu0 0.0
    %6437 = vmatprep.subr.mxu0 0.0
    %6438 = vmatpush2.msra.mxu0 0.0
    %6439 = vmatprep.subr.mxu0 0.0
    %6440 = vmatpush2.msra.mxu0 0.0
    %6441 = vmatprep.subr.mxu0 0.0
    %6442 = vmatpush2.msra.mxu0 0.0
    %6443 = vmatprep.subr.mxu0 0.0
    %6444 = vmatpush2.msra.mxu0 0.0
    %6445 = vmatprep.mubr.f32.mxu0 0.0
    %v6446 = vand.u32 %v5804, 4294901760
    %6447 = vmatmul.mubr.f32.gmra.mxu0 %v6446
    %v6448 = vpop.f32.mrf.mxu0
    %v6449 = vadd.f32 %v6361, %v6448
    %v6450 = vpop.f32.mrf.mxu0
    %v6451 = vadd.f32 %v6363, %v6450
    %6452 = vdwg.mxu0
    %v6455 = vrot.slane %v6449, 1
    %v6456 = vrot.slane %v6451, 1
    %v6457 = vrot.slane %v6449, 2
    %v6458 = vrot.slane %v6451, 2
    %v6463 = vadd.f32 %v648, %v6455
    %v6464 = vadd.f32 %v650, %v6456
    %v6465 = vadd.f32 %v655, %v6457
    %v6466 = vadd.f32 %v657, %v6458
    %v6467 = vxor.u32 %v6463, 2147483648
    %v6468 = vxor.u32 %v6464, 2147483648
    %v6469 = vxor.u32 %v6465, 2147483648
    %v6470 = vxor.u32 %v6466, 2147483648
    %v6471 = vmul.f32 %v6467, 1.442695
    %v6472 = vpow.pop %v6471
    %v6473 = vmul.f32 %v6468, 1.442695
    %v6474 = vpow.pop %v6473
    %v6475 = vmul.f32 %v6469, 1.442695
    %v6476 = vpow.pop %v6475
    %v6477 = vmul.f32 %v6470, 1.442695
    %v6478 = vpow.pop %v6477
    %v6479 = vadd.f32 %v6472, 1.0
    %v6480 = vadd.f32 %v6474, 1.0
    %v6481 = vadd.f32 %v6476, 1.0
    %v6482 = vadd.f32 %v6478, 1.0
    %v6483 = vrcp.pop %v6479
    %v6484 = vmul.f32 1.0, %v6483
    %v6485 = vrcp.pop %v6480
    %v6486 = vmul.f32 1.0, %v6485
    %v6487 = vrcp.pop %v6481
    %v6488 = vmul.f32 1.0, %v6487
    %v6489 = vrcp.pop %v6482
    %v6490 = vmul.f32 1.0, %v6489
    %v6491 = vtanh.pop %v6464
    %v6492 = vtanh.pop %v6466
    %v6495 = vrot.slane %v5785, 7
    %v6496 = vrot.slane %v5786, 7
    %v6499 = vmul.f32 %v6484, %v6495
    %v6500 = vmul.f32 %v6488, %v6496
    %6503 = vrot.lane.b32.xlu0 %v6491, 64
    %v6504 = vpop.permute.xlu0 %6503
    %6505 = vrot.lane.b32.xlu0 %v6492, 64
    %v6506 = vpop.permute.xlu0 %6505
    %v6509 = vmul.f32 %v6484, %v6504
    %v6510 = vmul.f32 %v6488, %v6506
    %6513 = vrot.lane.b32.xlu0 %v6509, 64
    %v6514 = vpop.permute.xlu0 %6513
    %6515 = vrot.lane.b32.xlu0 %v6510, 64
    %v6516 = vpop.permute.xlu0 %6515
    %v6519 = vadd.f32 %v6499, %v6514
    %v6520 = vadd.f32 %v6500, %v6516
    %v6521 = vtanh.pop %v6519
    %v6522 = vtanh.pop %v6520
    %6525 = vrot.lane.b32.xlu0 %v6521, 64
    %v6526 = vpop.permute.xlu0 %6525
    %6527 = vrot.lane.b32.xlu0 %v6522, 64
    %v6528 = vpop.permute.xlu0 %6527
    %v6531 = vmul.f32 %v6486, %v6526
    %v6532 = vmul.f32 %v6490, %v6528
    %vm6533 = vcmask 1040384
    %v6534 = vsel %vm6533, %v1396, %v2128
    %v6535 = vsel %vm6533, %v1397, %v2129
    %vm6536 = vcmask 1041408
    %v6537 = vsel %vm6536, %v6534, %v2861
    %v6538 = vsel %vm6536, %v6535, %v2862
    %vm6539 = vcmask 1042432
    %v6540 = vsel %vm6539, %v6537, %v3595
    %v6541 = vsel %vm6539, %v6538, %v3596
    %vm6542 = vcmask 1043456
    %v6543 = vsel %vm6542, %v6540, %v4329
    %v6544 = vsel %vm6542, %v6541, %v4330
    %vm6545 = vcmask 1044480
    %v6546 = vsel %vm6545, %v6543, %v5063
    %v6547 = vsel %vm6545, %v6544, %v5064
    %vm6548 = vcmask 1045504
    %v6549 = vsel %vm6548, %v6546, %v5797
    %v6550 = vsel %vm6548, %v6547, %v5798
    %vm6551 = vcmask 1046528
    %v6552 = vsel %vm6551, %v6549, %v6531
    %v6553 = vsel %vm6551, %v6550, %v6532
    %v6556 = vrot.slane %v6531, 7
    %v6557 = vrot.slane %v6532, 7
    %v6560 = vrot.slane %v5797, 5
    %v6563 = vrot.slane %v5063, 3
    %v6564 = vrot.slane %v5064, 3
    %v6567 = vrot.slane %v4329, 1
    %v6568 = vrot.slane %v4330, 1
    %v6571 = vrot.slane %v3595, 7
    %v6572 = vrot.slane %v3596, 7
    %v6575 = vrot.slane %v2861, 5
    %v6576 = vrot.slane %v2862, 5
    %v6579 = vrot.slane %v2128, 3
    %v6580 = vrot.slane %v2129, 3
    %v6583 = vrot.slane %v1396, 1
    %v6584 = vrot.slane %v1397, 1
    %v6587 = vsel %vm6533, %v6556, %v6560
    %v6588 = vsel %vm6533, %v6557, %v5802
    %v6589 = vsel %vm6536, %v6587, %v6563
    %v6590 = vsel %vm6536, %v6588, %v6564
    %v6591 = vsel %vm6539, %v6589, %v6567
    %v6592 = vsel %vm6539, %v6590, %v6568
    %v6593 = vsel %vm6542, %v6591, %v6571
    %v6594 = vsel %vm6542, %v6592, %v6572
    %v6595 = vsel %vm6545, %v6593, %v6575
    %v6596 = vsel %vm6545, %v6594, %v6576
    %v6597 = vsel %vm6548, %v6595, %v6579
    %v6598 = vsel %vm6548, %v6596, %v6580
    %v6599 = vsel %vm6551, %v6597, %v6583
    %v6600 = vsel %vm6551, %v6598, %v6584
    %v6601 = vld [vmem:[%s4] sm:$0xff]
    %v6602 = vld [vmem:[%s4 + $0x8] sm:$0xff]
    %v6603 = vld [vmem:[%s4 + $0x10] sm:$0xff]
    %v6604 = vld [vmem:[%s4 + $0x18] sm:$0xff]
    %v6605 = vld [vmem:[%s4 + $0x20] sm:$0xff]
    %v6606 = vld [vmem:[%s4 + $0x28] sm:$0xff]
    %v6607 = vld [vmem:[%s4 + $0x30] sm:$0xff]
    %v6608 = vld [vmem:[%s4 + $0x38] sm:$0xff]
    %6611 = vrot.lane.b32.xlu0 %v6599, 96
    %v6612 = vpop.permute.xlu0 %6611
    %6613 = vrot.lane.b32.xlu0 %v6600, 96
    %v6614 = vpop.permute.xlu0 %6613
    %v6615 = vsel %vm60, %v6612, 0
    %v6617 = vsel %vm60, %v6614, 0
    %6619 = vmatprep.subr.mxu0 0.0
    %6620 = vmatpush1.msra.mxu0 0.0
    %6621 = vmatprep.subr.mxu0 0.0
    %6622 = vmatpush1.msra.mxu0 0.0
    %6623 = vmatprep.subr.mxu0 0.0
    %6624 = vmatpush1.msra.mxu0 0.0
    %6625 = vmatprep.subr.mxu0 0.0
    %6626 = vmatpush1.msra.mxu0 0.0
    %6627 = vmatprep.subr.mxu0 0.0
    %6628 = vmatpush1.msra.mxu0 0.0
    %6629 = vmatprep.subr.mxu0 0.0
    %6630 = vmatpush1.msra.mxu0 0.0
    %6631 = vmatprep.subr.mxu0 0.0
    %6632 = vmatpush1.msra.mxu0 0.0
    %6633 = vmatprep.subr.mxu0 0.0
    %6634 = vmatpush1.msra.mxu0 0.0
    %6635 = vmatprep.subr.mxu0 0.0
    %6636 = vmatpush1.msra.mxu0 0.0
    %6637 = vmatprep.subr.mxu0 0.0
    %6638 = vmatpush1.msra.mxu0 0.0
    %6639 = vmatprep.subr.mxu0 0.0
    %6640 = vmatpush1.msra.mxu0 0.0
    %6641 = vmatprep.subr.mxu0 0.0
    %6642 = vmatpush1.msra.mxu0 0.0
    %6643 = vmatprep.subr.mxu0 0.0
    %v6644 = vand.u32 %v6608, 4294901760
    %6645 = vmatpush1.msra.mxu0 %v6644
    %6646 = vmatprep.subr.mxu0 0.0
    %v6647 = vand.u32 %v6607, 4294901760
    %6648 = vmatpush1.msra.mxu0 %v6647
    %6649 = vmatprep.subr.mxu0 0.0
    %v6650 = vand.u32 %v6606, 4294901760
    %6651 = vmatpush1.msra.mxu0 %v6650
    %6652 = vmatprep.subr.mxu0 0.0
    %v6653 = vand.u32 %v6605, 4294901760
    %6654 = vmatpush1.msra.mxu0 %v6653
    %6655 = vmatprep.subr.mxu0 0.0
    %6656 = vmatpush2.msra.mxu0 0.0
    %6657 = vmatprep.subr.mxu0 0.0
    %6658 = vmatpush2.msra.mxu0 0.0
    %6659 = vmatprep.subr.mxu0 0.0
    %6660 = vmatpush2.msra.mxu0 0.0
    %6661 = vmatprep.subr.mxu0 0.0
    %6662 = vmatpush2.msra.mxu0 0.0
    %6663 = vmatprep.subr.mxu0 0.0
    %6664 = vmatpush2.msra.mxu0 0.0
    %6665 = vmatprep.subr.mxu0 0.0
    %6666 = vmatpush2.msra.mxu0 0.0
    %6667 = vmatprep.subr.mxu0 0.0
    %6668 = vmatpush2.msra.mxu0 0.0
    %6669 = vmatprep.subr.mxu0 0.0
    %6670 = vmatpush2.msra.mxu0 0.0
    %6671 = vmatprep.subr.mxu0 0.0
    %6672 = vmatpush2.msra.mxu0 0.0
    %6673 = vmatprep.subr.mxu0 0.0
    %6674 = vmatpush2.msra.mxu0 0.0
    %6675 = vmatprep.subr.mxu0 0.0
    %6676 = vmatpush2.msra.mxu0 0.0
    %6677 = vmatprep.subr.mxu0 0.0
    %6678 = vmatpush2.msra.mxu0 0.0
    %6679 = vmatprep.subr.mxu0 0.0
    %6680 = vmatpush2.msra.mxu0 0.0
    %6681 = vmatprep.subr.mxu0 0.0
    %6682 = vmatpush2.msra.mxu0 0.0
    %6683 = vmatprep.subr.mxu0 0.0
    %6684 = vmatpush2.msra.mxu0 0.0
    %6685 = vmatprep.subr.mxu0 0.0
    %6686 = vmatpush2.msra.mxu0 0.0
    %6687 = vmatprep.mubr.f32.mxu0 0.0
    %v6688 = vand.u32 %v6615, 4294901760
    %v6689 = vsub.f32 %v6615, %v6688
    %v6690 = vand.u32 %v6689, 4294901760
    %v6691 = vsub.f32 %v6689, %v6690
    %v6692 = vand.u32 %v6691, 4294901760
    %6693 = vmatmul.mubr.f32.gmra.mxu0 %v6692
    %v6694 = vpop.f32.mrf.mxu0
    %v6695 = vadd.f32 0.0, %v6694
    %v6696 = vpop.f32.mrf.mxu0
    %6697 = vmatprep.mubr.f32.mxu0 0.0
    %v6698 = vand.u32 %v6617, 4294901760
    %v6699 = vsub.f32 %v6617, %v6698
    %v6700 = vand.u32 %v6699, 4294901760
    %v6701 = vsub.f32 %v6699, %v6700
    %v6702 = vand.u32 %v6701, 4294901760
    %6703 = vmatmul.mubr.f32.gmra.mxu0 %v6702
    %v6704 = vpop.f32.mrf.mxu0
    %v6705 = vadd.f32 0.0, %v6704
    %v6706 = vpop.f32.mrf.mxu0
    %6707 = vdwg.mxu0
    %6708 = vmatprep.subr.mxu0 0.0
    %6709 = vmatpush1.msra.mxu0 0.0
    %6710 = vmatprep.subr.mxu0 0.0
    %6711 = vmatpush1.msra.mxu0 0.0
    %6712 = vmatprep.subr.mxu0 0.0
    %6713 = vmatpush1.msra.mxu0 0.0
    %6714 = vmatprep.subr.mxu0 0.0
    %6715 = vmatpush1.msra.mxu0 0.0
    %6716 = vmatprep.subr.mxu0 0.0
    %6717 = vmatpush1.msra.mxu0 0.0
    %6718 = vmatprep.subr.mxu0 0.0
    %6719 = vmatpush1.msra.mxu0 0.0
    %6720 = vmatprep.subr.mxu0 0.0
    %6721 = vmatpush1.msra.mxu0 0.0
    %6722 = vmatprep.subr.mxu0 0.0
    %6723 = vmatpush1.msra.mxu0 0.0
    %6724 = vmatprep.subr.mxu0 0.0
    %6725 = vmatpush1.msra.mxu0 0.0
    %6726 = vmatprep.subr.mxu0 0.0
    %6727 = vmatpush1.msra.mxu0 0.0
    %6728 = vmatprep.subr.mxu0 0.0
    %6729 = vmatpush1.msra.mxu0 0.0
    %6730 = vmatprep.subr.mxu0 0.0
    %6731 = vmatpush1.msra.mxu0 0.0
    %6732 = vmatprep.subr.mxu0 0.0
    %v6733 = vand.u32 %v6608, 4294901760
    %v6734 = vsub.f32 %v6608, %v6733
    %v6735 = vand.u32 %v6734, 4294901760
    %v6736 = vsub.f32 %v6734, %v6735
    %v6737 = vand.u32 %v6736, 4294901760
    %6738 = vmatpush1.msra.mxu0 %v6737
    %6739 = vmatprep.subr.mxu0 0.0
    %v6740 = vand.u32 %v6607, 4294901760
    %v6741 = vsub.f32 %v6607, %v6740
    %v6742 = vand.u32 %v6741, 4294901760
    %v6743 = vsub.f32 %v6741, %v6742
    %v6744 = vand.u32 %v6743, 4294901760
    %6745 = vmatpush1.msra.mxu0 %v6744
    %6746 = vmatprep.subr.mxu0 0.0
    %v6747 = vand.u32 %v6606, 4294901760
    %v6748 = vsub.f32 %v6606, %v6747
    %v6749 = vand.u32 %v6748, 4294901760
    %v6750 = vsub.f32 %v6748, %v6749
    %v6751 = vand.u32 %v6750, 4294901760
    %6752 = vmatpush1.msra.mxu0 %v6751
    %6753 = vmatprep.subr.mxu0 0.0
    %v6754 = vand.u32 %v6605, 4294901760
    %v6755 = vsub.f32 %v6605, %v6754
    %v6756 = vand.u32 %v6755, 4294901760
    %v6757 = vsub.f32 %v6755, %v6756
    %v6758 = vand.u32 %v6757, 4294901760
    %6759 = vmatpush1.msra.mxu0 %v6758
    %6760 = vmatprep.subr.mxu0 0.0
    %6761 = vmatpush2.msra.mxu0 0.0
    %6762 = vmatprep.subr.mxu0 0.0
    %6763 = vmatpush2.msra.mxu0 0.0
    %6764 = vmatprep.subr.mxu0 0.0
    %6765 = vmatpush2.msra.mxu0 0.0
    %6766 = vmatprep.subr.mxu0 0.0
    %6767 = vmatpush2.msra.mxu0 0.0
    %6768 = vmatprep.subr.mxu0 0.0
    %6769 = vmatpush2.msra.mxu0 0.0
    %6770 = vmatprep.subr.mxu0 0.0
    %6771 = vmatpush2.msra.mxu0 0.0
    %6772 = vmatprep.subr.mxu0 0.0
    %6773 = vmatpush2.msra.mxu0 0.0
    %6774 = vmatprep.subr.mxu0 0.0
    %6775 = vmatpush2.msra.mxu0 0.0
    %6776 = vmatprep.subr.mxu0 0.0
    %6777 = vmatpush2.msra.mxu0 0.0
    %6778 = vmatprep.subr.mxu0 0.0
    %6779 = vmatpush2.msra.mxu0 0.0
    %6780 = vmatprep.subr.mxu0 0.0
    %6781 = vmatpush2.msra.mxu0 0.0
    %6782 = vmatprep.subr.mxu0 0.0
    %6783 = vmatpush2.msra.mxu0 0.0
    %6784 = vmatprep.subr.mxu0 0.0
    %6785 = vmatpush2.msra.mxu0 0.0
    %6786 = vmatprep.subr.mxu0 0.0
    %6787 = vmatpush2.msra.mxu0 0.0
    %6788 = vmatprep.subr.mxu0 0.0
    %6789 = vmatpush2.msra.mxu0 0.0
    %6790 = vmatprep.subr.mxu0 0.0
    %6791 = vmatpush2.msra.mxu0 0.0
    %6792 = vmatprep.mubr.f32.mxu0 0.0
    %v6793 = vand.u32 %v6615, 4294901760
    %6794 = vmatmul.mubr.f32.gmra.mxu0 %v6793
    %v6795 = vpop.f32.mrf.mxu0
    %v6796 = vadd.f32 %v6695, %v6795
    %v6797 = vpop.f32.mrf.mxu0
    %6798 = vmatprep.mubr.f32.mxu0 0.0
    %v6799 = vand.u32 %v6617, 4294901760
    %6800 = vmatmul.mubr.f32.gmra.mxu0 %v6799
    %v6801 = vpop.f32.mrf.mxu0
    %v6802 = vadd.f32 %v6705, %v6801
    %v6803 = vpop.f32.mrf.mxu0
    %6804 = vdwg.mxu0
    %6805 = vmatprep.subr.mxu0 0.0
    %6806 = vmatpush1.msra.mxu0 0.0
    %6807 = vmatprep.subr.mxu0 0.0
    %6808 = vmatpush1.msra.mxu0 0.0
    %6809 = vmatprep.subr.mxu0 0.0
    %6810 = vmatpush1.msra.mxu0 0.0
    %6811 = vmatprep.subr.mxu0 0.0
    %6812 = vmatpush1.msra.mxu0 0.0
    %6813 = vmatprep.subr.mxu0 0.0
    %6814 = vmatpush1.msra.mxu0 0.0
    %6815 = vmatprep.subr.mxu0 0.0
    %6816 = vmatpush1.msra.mxu0 0.0
    %6817 = vmatprep.subr.mxu0 0.0
    %6818 = vmatpush1.msra.mxu0 0.0
    %6819 = vmatprep.subr.mxu0 0.0
    %6820 = vmatpush1.msra.mxu0 0.0
    %6821 = vmatprep.subr.mxu0 0.0
    %6822 = vmatpush1.msra.mxu0 0.0
    %6823 = vmatprep.subr.mxu0 0.0
    %6824 = vmatpush1.msra.mxu0 0.0
    %6825 = vmatprep.subr.mxu0 0.0
    %6826 = vmatpush1.msra.mxu0 0.0
    %6827 = vmatprep.subr.mxu0 0.0
    %6828 = vmatpush1.msra.mxu0 0.0
    %6829 = vmatprep.subr.mxu0 0.0
    %v6830 = vand.u32 %v6608, 4294901760
    %v6831 = vsub.f32 %v6608, %v6830
    %6832 = vmatpush1.msra.mxu0 %v6831
    %6833 = vmatprep.subr.mxu0 0.0
    %v6834 = vand.u32 %v6607, 4294901760
    %v6835 = vsub.f32 %v6607, %v6834
    %6836 = vmatpush1.msra.mxu0 %v6835
    %6837 = vmatprep.subr.mxu0 0.0
    %v6838 = vand.u32 %v6606, 4294901760
    %v6839 = vsub.f32 %v6606, %v6838
    %6840 = vmatpush1.msra.mxu0 %v6839
    %6841 = vmatprep.subr.mxu0 0.0
    %v6842 = vand.u32 %v6605, 4294901760
    %v6843 = vsub.f32 %v6605, %v6842
    %6844 = vmatpush1.msra.mxu0 %v6843
    %6845 = vmatprep.subr.mxu0 0.0
    %6846 = vmatpush2.msra.mxu0 0.0
    %6847 = vmatprep.subr.mxu0 0.0
    %6848 = vmatpush2.msra.mxu0 0.0
    %6849 = vmatprep.subr.mxu0 0.0
    %6850 = vmatpush2.msra.mxu0 0.0
    %6851 = vmatprep.subr.mxu0 0.0
    %6852 = vmatpush2.msra.mxu0 0.0
    %6853 = vmatprep.subr.mxu0 0.0
    %6854 = vmatpush2.msra.mxu0 0.0
    %6855 = vmatprep.subr.mxu0 0.0
    %6856 = vmatpush2.msra.mxu0 0.0
    %6857 = vmatprep.subr.mxu0 0.0
    %6858 = vmatpush2.msra.mxu0 0.0
    %6859 = vmatprep.subr.mxu0 0.0
    %6860 = vmatpush2.msra.mxu0 0.0
    %6861 = vmatprep.subr.mxu0 0.0
    %6862 = vmatpush2.msra.mxu0 0.0
    %6863 = vmatprep.subr.mxu0 0.0
    %6864 = vmatpush2.msra.mxu0 0.0
    %6865 = vmatprep.subr.mxu0 0.0
    %6866 = vmatpush2.msra.mxu0 0.0
    %6867 = vmatprep.subr.mxu0 0.0
    %6868 = vmatpush2.msra.mxu0 0.0
    %6869 = vmatprep.subr.mxu0 0.0
    %6870 = vmatpush2.msra.mxu0 0.0
    %6871 = vmatprep.subr.mxu0 0.0
    %6872 = vmatpush2.msra.mxu0 0.0
    %6873 = vmatprep.subr.mxu0 0.0
    %6874 = vmatpush2.msra.mxu0 0.0
    %6875 = vmatprep.subr.mxu0 0.0
    %6876 = vmatpush2.msra.mxu0 0.0
    %6877 = vmatprep.mubr.f32.mxu0 0.0
    %v6878 = vand.u32 %v6615, 4294901760
    %v6879 = vsub.f32 %v6615, %v6878
    %6880 = vmatmul.mubr.f32.gmra.mxu0 %v6879
    %v6881 = vpop.f32.mrf.mxu0
    %v6882 = vadd.f32 %v6796, %v6881
    %v6883 = vpop.f32.mrf.mxu0
    %6884 = vmatprep.mubr.f32.mxu0 0.0
    %v6885 = vand.u32 %v6617, 4294901760
    %v6886 = vsub.f32 %v6617, %v6885
    %6887 = vmatmul.mubr.f32.gmra.mxu0 %v6886
    %v6888 = vpop.f32.mrf.mxu0
    %v6889 = vadd.f32 %v6802, %v6888
    %v6890 = vpop.f32.mrf.mxu0
    %6891 = vdwg.mxu0
    %6892 = vmatprep.subr.mxu0 0.0
    %6893 = vmatpush1.msra.mxu0 0.0
    %6894 = vmatprep.subr.mxu0 0.0
    %6895 = vmatpush1.msra.mxu0 0.0
    %6896 = vmatprep.subr.mxu0 0.0
    %6897 = vmatpush1.msra.mxu0 0.0
    %6898 = vmatprep.subr.mxu0 0.0
    %6899 = vmatpush1.msra.mxu0 0.0
    %6900 = vmatprep.subr.mxu0 0.0
    %6901 = vmatpush1.msra.mxu0 0.0
    %6902 = vmatprep.subr.mxu0 0.0
    %6903 = vmatpush1.msra.mxu0 0.0
    %6904 = vmatprep.subr.mxu0 0.0
    %6905 = vmatpush1.msra.mxu0 0.0
    %6906 = vmatprep.subr.mxu0 0.0
    %6907 = vmatpush1.msra.mxu0 0.0
    %6908 = vmatprep.subr.mxu0 0.0
    %6909 = vmatpush1.msra.mxu0 0.0
    %6910 = vmatprep.subr.mxu0 0.0
    %6911 = vmatpush1.msra.mxu0 0.0
    %6912 = vmatprep.subr.mxu0 0.0
    %6913 = vmatpush1.msra.mxu0 0.0
    %6914 = vmatprep.subr.mxu0 0.0
    %6915 = vmatpush1.msra.mxu0 0.0
    %6916 = vmatprep.subr.mxu0 0.0
    %v6917 = vand.u32 %v6608, 4294901760
    %6918 = vmatpush1.msra.mxu0 %v6917
    %6919 = vmatprep.subr.mxu0 0.0
    %v6920 = vand.u32 %v6607, 4294901760
    %6921 = vmatpush1.msra.mxu0 %v6920
    %6922 = vmatprep.subr.mxu0 0.0
    %v6923 = vand.u32 %v6606, 4294901760
    %6924 = vmatpush1.msra.mxu0 %v6923
    %6925 = vmatprep.subr.mxu0 0.0
    %v6926 = vand.u32 %v6605, 4294901760
    %6927 = vmatpush1.msra.mxu0 %v6926
    %6928 = vmatprep.subr.mxu0 0.0
    %6929 = vmatpush2.msra.mxu0 0.0
    %6930 = vmatprep.subr.mxu0 0.0
    %6931 = vmatpush2.msra.mxu0 0.0
    %6932 = vmatprep.subr.mxu0 0.0
    %6933 = vmatpush2.msra.mxu0 0.0
    %6934 = vmatprep.subr.mxu0 0.0
    %6935 = vmatpush2.msra.mxu0 0.0
    %6936 = vmatprep.subr.mxu0 0.0
    %6937 = vmatpush2.msra.mxu0 0.0
    %6938 = vmatprep.subr.mxu0 0.0
    %6939 = vmatpush2.msra.mxu0 0.0
    %6940 = vmatprep.subr.mxu0 0.0
    %6941 = vmatpush2.msra.mxu0 0.0
    %6942 = vmatprep.subr.mxu0 0.0
    %6943 = vmatpush2.msra.mxu0 0.0
    %6944 = vmatprep.subr.mxu0 0.0
    %6945 = vmatpush2.msra.mxu0 0.0
    %6946 = vmatprep.subr.mxu0 0.0
    %6947 = vmatpush2.msra.mxu0 0.0
    %6948 = vmatprep.subr.mxu0 0.0
    %6949 = vmatpush2.msra.mxu0 0.0
    %6950 = vmatprep.subr.mxu0 0.0
    %6951 = vmatpush2.msra.mxu0 0.0
    %6952 = vmatprep.subr.mxu0 0.0
    %6953 = vmatpush2.msra.mxu0 0.0
    %6954 = vmatprep.subr.mxu0 0.0
    %6955 = vmatpush2.msra.mxu0 0.0
    %6956 = vmatprep.subr.mxu0 0.0
    %6957 = vmatpush2.msra.mxu0 0.0
    %6958 = vmatprep.subr.mxu0 0.0
    %6959 = vmatpush2.msra.mxu0 0.0
    %6960 = vmatprep.mubr.f32.mxu0 0.0
    %v6961 = vand.u32 %v6615, 4294901760
    %v6962 = vsub.f32 %v6615, %v6961
    %v6963 = vand.u32 %v6962, 4294901760
    %6964 = vmatmul.mubr.f32.gmra.mxu0 %v6963
    %v6965 = vpop.f32.mrf.mxu0
    %v6966 = vadd.f32 %v6882, %v6965
    %v6967 = vpop.f32.mrf.mxu0
    %6968 = vmatprep.mubr.f32.mxu0 0.0
    %v6969 = vand.u32 %v6617, 4294901760
    %v6970 = vsub.f32 %v6617, %v6969
    %v6971 = vand.u32 %v6970, 4294901760
    %6972 = vmatmul.mubr.f32.gmra.mxu0 %v6971
    %v6973 = vpop.f32.mrf.mxu0
    %v6974 = vadd.f32 %v6889, %v6973
    %v6975 = vpop.f32.mrf.mxu0
    %6976 = vdwg.mxu0
    %6977 = vmatprep.subr.mxu0 0.0
    %6978 = vmatpush1.msra.mxu0 0.0
    %6979 = vmatprep.subr.mxu0 0.0
    %6980 = vmatpush1.msra.mxu0 0.0
    %6981 = vmatprep.subr.mxu0 0.0
    %6982 = vmatpush1.msra.mxu0 0.0
    %6983 = vmatprep.subr.mxu0 0.0
    %6984 = vmatpush1.msra.mxu0 0.0
    %6985 = vmatprep.subr.mxu0 0.0
    %6986 = vmatpush1.msra.mxu0 0.0
    %6987 = vmatprep.subr.mxu0 0.0
    %6988 = vmatpush1.msra.mxu0 0.0
    %6989 = vmatprep.subr.mxu0 0.0
    %6990 = vmatpush1.msra.mxu0 0.0
    %6991 = vmatprep.subr.mxu0 0.0
    %6992 = vmatpush1.msra.mxu0 0.0
    %6993 = vmatprep.subr.mxu0 0.0
    %6994 = vmatpush1.msra.mxu0 0.0
    %6995 = vmatprep.subr.mxu0 0.0
    %6996 = vmatpush1.msra.mxu0 0.0
    %6997 = vmatprep.subr.mxu0 0.0
    %6998 = vmatpush1.msra.mxu0 0.0
    %6999 = vmatprep.subr.mxu0 0.0
    %7000 = vmatpush1.msra.mxu0 0.0
    %7001 = vmatprep.subr.mxu0 0.0
    %v7002 = vand.u32 %v6608, 4294901760
    %v7003 = vsub.f32 %v6608, %v7002
    %v7004 = vand.u32 %v7003, 4294901760
    %7005 = vmatpush1.msra.mxu0 %v7004
    %7006 = vmatprep.subr.mxu0 0.0
    %v7007 = vand.u32 %v6607, 4294901760
    %v7008 = vsub.f32 %v6607, %v7007
    %v7009 = vand.u32 %v7008, 4294901760
    %7010 = vmatpush1.msra.mxu0 %v7009
    %7011 = vmatprep.subr.mxu0 0.0
    %v7012 = vand.u32 %v6606, 4294901760
    %v7013 = vsub.f32 %v6606, %v7012
    %v7014 = vand.u32 %v7013, 4294901760
    %7015 = vmatpush1.msra.mxu0 %v7014
    %7016 = vmatprep.subr.mxu0 0.0
    %v7017 = vand.u32 %v6605, 4294901760
    %v7018 = vsub.f32 %v6605, %v7017
    %v7019 = vand.u32 %v7018, 4294901760
    %7020 = vmatpush1.msra.mxu0 %v7019
    %7021 = vmatprep.subr.mxu0 0.0
    %7022 = vmatpush2.msra.mxu0 0.0
    %7023 = vmatprep.subr.mxu0 0.0
    %7024 = vmatpush2.msra.mxu0 0.0
    %7025 = vmatprep.subr.mxu0 0.0
    %7026 = vmatpush2.msra.mxu0 0.0
    %7027 = vmatprep.subr.mxu0 0.0
    %7028 = vmatpush2.msra.mxu0 0.0
    %7029 = vmatprep.subr.mxu0 0.0
    %7030 = vmatpush2.msra.mxu0 0.0
    %7031 = vmatprep.subr.mxu0 0.0
    %7032 = vmatpush2.msra.mxu0 0.0
    %7033 = vmatprep.subr.mxu0 0.0
    %7034 = vmatpush2.msra.mxu0 0.0
    %7035 = vmatprep.subr.mxu0 0.0
    %7036 = vmatpush2.msra.mxu0 0.0
    %7037 = vmatprep.subr.mxu0 0.0
    %7038 = vmatpush2.msra.mxu0 0.0
    %7039 = vmatprep.subr.mxu0 0.0
    %7040 = vmatpush2.msra.mxu0 0.0
    %7041 = vmatprep.subr.mxu0 0.0
    %7042 = vmatpush2.msra.mxu0 0.0
    %7043 = vmatprep.subr.mxu0 0.0
    %7044 = vmatpush2.msra.mxu0 0.0
    %7045 = vmatprep.subr.mxu0 0.0
    %7046 = vmatpush2.msra.mxu0 0.0
    %7047 = vmatprep.subr.mxu0 0.0
    %7048 = vmatpush2.msra.mxu0 0.0
    %7049 = vmatprep.subr.mxu0 0.0
    %7050 = vmatpush2.msra.mxu0 0.0
    %7051 = vmatprep.subr.mxu0 0.0
    %7052 = vmatpush2.msra.mxu0 0.0
    %7053 = vmatprep.mubr.f32.mxu0 0.0
    %v7054 = vand.u32 %v6615, 4294901760
    %7055 = vmatmul.mubr.f32.gmra.mxu0 %v7054
    %v7056 = vpop.f32.mrf.mxu0
    %v7057 = vadd.f32 %v6966, %v7056
    %v7058 = vpop.f32.mrf.mxu0
    %7059 = vmatprep.mubr.f32.mxu0 0.0
    %v7060 = vand.u32 %v6617, 4294901760
    %7061 = vmatmul.mubr.f32.gmra.mxu0 %v7060
    %v7062 = vpop.f32.mrf.mxu0
    %v7063 = vadd.f32 %v6974, %v7062
    %v7064 = vpop.f32.mrf.mxu0
    %7065 = vdwg.mxu0
    %7066 = vmatprep.subr.mxu0 0.0
    %7067 = vmatpush1.msra.mxu0 0.0
    %7068 = vmatprep.subr.mxu0 0.0
    %7069 = vmatpush1.msra.mxu0 0.0
    %7070 = vmatprep.subr.mxu0 0.0
    %7071 = vmatpush1.msra.mxu0 0.0
    %7072 = vmatprep.subr.mxu0 0.0
    %7073 = vmatpush1.msra.mxu0 0.0
    %7074 = vmatprep.subr.mxu0 0.0
    %7075 = vmatpush1.msra.mxu0 0.0
    %7076 = vmatprep.subr.mxu0 0.0
    %7077 = vmatpush1.msra.mxu0 0.0
    %7078 = vmatprep.subr.mxu0 0.0
    %7079 = vmatpush1.msra.mxu0 0.0
    %7080 = vmatprep.subr.mxu0 0.0
    %7081 = vmatpush1.msra.mxu0 0.0
    %7082 = vmatprep.subr.mxu0 0.0
    %7083 = vmatpush1.msra.mxu0 0.0
    %7084 = vmatprep.subr.mxu0 0.0
    %7085 = vmatpush1.msra.mxu0 0.0
    %7086 = vmatprep.subr.mxu0 0.0
    %7087 = vmatpush1.msra.mxu0 0.0
    %7088 = vmatprep.subr.mxu0 0.0
    %7089 = vmatpush1.msra.mxu0 0.0
    %7090 = vmatprep.subr.mxu0 0.0
    %v7091 = vand.u32 %v6608, 4294901760
    %7092 = vmatpush1.msra.mxu0 %v7091
    %7093 = vmatprep.subr.mxu0 0.0
    %v7094 = vand.u32 %v6607, 4294901760
    %7095 = vmatpush1.msra.mxu0 %v7094
    %7096 = vmatprep.subr.mxu0 0.0
    %v7097 = vand.u32 %v6606, 4294901760
    %7098 = vmatpush1.msra.mxu0 %v7097
    %7099 = vmatprep.subr.mxu0 0.0
    %v7100 = vand.u32 %v6605, 4294901760
    %7101 = vmatpush1.msra.mxu0 %v7100
    %7102 = vmatprep.subr.mxu0 0.0
    %7103 = vmatpush2.msra.mxu0 0.0
    %7104 = vmatprep.subr.mxu0 0.0
    %7105 = vmatpush2.msra.mxu0 0.0
    %7106 = vmatprep.subr.mxu0 0.0
    %7107 = vmatpush2.msra.mxu0 0.0
    %7108 = vmatprep.subr.mxu0 0.0
    %7109 = vmatpush2.msra.mxu0 0.0
    %7110 = vmatprep.subr.mxu0 0.0
    %7111 = vmatpush2.msra.mxu0 0.0
    %7112 = vmatprep.subr.mxu0 0.0
    %7113 = vmatpush2.msra.mxu0 0.0
    %7114 = vmatprep.subr.mxu0 0.0
    %7115 = vmatpush2.msra.mxu0 0.0
    %7116 = vmatprep.subr.mxu0 0.0
    %7117 = vmatpush2.msra.mxu0 0.0
    %7118 = vmatprep.subr.mxu0 0.0
    %7119 = vmatpush2.msra.mxu0 0.0
    %7120 = vmatprep.subr.mxu0 0.0
    %7121 = vmatpush2.msra.mxu0 0.0
    %7122 = vmatprep.subr.mxu0 0.0
    %7123 = vmatpush2.msra.mxu0 0.0
    %7124 = vmatprep.subr.mxu0 0.0
    %7125 = vmatpush2.msra.mxu0 0.0
    %7126 = vmatprep.subr.mxu0 0.0
    %7127 = vmatpush2.msra.mxu0 0.0
    %7128 = vmatprep.subr.mxu0 0.0
    %7129 = vmatpush2.msra.mxu0 0.0
    %7130 = vmatprep.subr.mxu0 0.0
    %7131 = vmatpush2.msra.mxu0 0.0
    %7132 = vmatprep.subr.mxu0 0.0
    %7133 = vmatpush2.msra.mxu0 0.0
    %7134 = vmatprep.mubr.f32.mxu0 0.0
    %v7135 = vand.u32 %v6615, 4294901760
    %7136 = vmatmul.mubr.f32.gmra.mxu0 %v7135
    %v7137 = vpop.f32.mrf.mxu0
    %v7138 = vadd.f32 %v7057, %v7137
    %v7139 = vpop.f32.mrf.mxu0
    %7140 = vmatprep.mubr.f32.mxu0 0.0
    %v7141 = vand.u32 %v6617, 4294901760
    %7142 = vmatmul.mubr.f32.gmra.mxu0 %v7141
    %v7143 = vpop.f32.mrf.mxu0
    %v7144 = vadd.f32 %v7063, %v7143
    %v7145 = vpop.f32.mrf.mxu0
    %7146 = vdwg.mxu0
    %v7148 = vsel %vm60, %v6552, 0
    %v7151 = vsel %vm60, %v6553, 0
    %7153 = vmatprep.subr.mxu0 0.0
    %7154 = vmatpush1.msra.mxu0 0.0
    %7155 = vmatprep.subr.mxu0 0.0
    %7156 = vmatpush1.msra.mxu0 0.0
    %7157 = vmatprep.subr.mxu0 0.0
    %7158 = vmatpush1.msra.mxu0 0.0
    %7159 = vmatprep.subr.mxu0 0.0
    %7160 = vmatpush1.msra.mxu0 0.0
    %7161 = vmatprep.subr.mxu0 0.0
    %7162 = vmatpush1.msra.mxu0 0.0
    %7163 = vmatprep.subr.mxu0 0.0
    %7164 = vmatpush1.msra.mxu0 0.0
    %7165 = vmatprep.subr.mxu0 0.0
    %7166 = vmatpush1.msra.mxu0 0.0
    %7167 = vmatprep.subr.mxu0 0.0
    %7168 = vmatpush1.msra.mxu0 0.0
    %7169 = vmatprep.subr.mxu0 0.0
    %7170 = vmatpush1.msra.mxu0 0.0
    %7171 = vmatprep.subr.mxu0 0.0
    %7172 = vmatpush1.msra.mxu0 0.0
    %7173 = vmatprep.subr.mxu0 0.0
    %7174 = vmatpush1.msra.mxu0 0.0
    %7175 = vmatprep.subr.mxu0 0.0
    %7176 = vmatpush1.msra.mxu0 0.0
    %7177 = vmatprep.subr.mxu0 0.0
    %v7178 = vand.u32 %v6604, 4294901760
    %7179 = vmatpush1.msra.mxu0 %v7178
    %7180 = vmatprep.subr.mxu0 0.0
    %v7181 = vand.u32 %v6603, 4294901760
    %7182 = vmatpush1.msra.mxu0 %v7181
    %7183 = vmatprep.subr.mxu0 0.0
    %v7184 = vand.u32 %v6602, 4294901760
    %7185 = vmatpush1.msra.mxu0 %v7184
    %7186 = vmatprep.subr.mxu0 0.0
    %v7187 = vand.u32 %v6601, 4294901760
    %7188 = vmatpush1.msra.mxu0 %v7187
    %7189 = vmatprep.subr.mxu0 0.0
    %7190 = vmatpush2.msra.mxu0 0.0
    %7191 = vmatprep.subr.mxu0 0.0
    %7192 = vmatpush2.msra.mxu0 0.0
    %7193 = vmatprep.subr.mxu0 0.0
    %7194 = vmatpush2.msra.mxu0 0.0
    %7195 = vmatprep.subr.mxu0 0.0
    %7196 = vmatpush2.msra.mxu0 0.0
    %7197 = vmatprep.subr.mxu0 0.0
    %7198 = vmatpush2.msra.mxu0 0.0
    %7199 = vmatprep.subr.mxu0 0.0
    %7200 = vmatpush2.msra.mxu0 0.0
    %7201 = vmatprep.subr.mxu0 0.0
    %7202 = vmatpush2.msra.mxu0 0.0
    %7203 = vmatprep.subr.mxu0 0.0
    %7204 = vmatpush2.msra.mxu0 0.0
    %7205 = vmatprep.subr.mxu0 0.0
    %7206 = vmatpush2.msra.mxu0 0.0
    %7207 = vmatprep.subr.mxu0 0.0
    %7208 = vmatpush2.msra.mxu0 0.0
    %7209 = vmatprep.subr.mxu0 0.0
    %7210 = vmatpush2.msra.mxu0 0.0
    %7211 = vmatprep.subr.mxu0 0.0
    %7212 = vmatpush2.msra.mxu0 0.0
    %7213 = vmatprep.subr.mxu0 0.0
    %7214 = vmatpush2.msra.mxu0 0.0
    %7215 = vmatprep.subr.mxu0 0.0
    %7216 = vmatpush2.msra.mxu0 0.0
    %7217 = vmatprep.subr.mxu0 0.0
    %7218 = vmatpush2.msra.mxu0 0.0
    %7219 = vmatprep.subr.mxu0 0.0
    %7220 = vmatpush2.msra.mxu0 0.0
    %7221 = vmatprep.mubr.f32.mxu0 0.0
    %v7222 = vand.u32 %v7148, 4294901760
    %v7223 = vsub.f32 %v7148, %v7222
    %v7224 = vand.u32 %v7223, 4294901760
    %v7225 = vsub.f32 %v7223, %v7224
    %v7226 = vand.u32 %v7225, 4294901760
    %7227 = vmatmul.mubr.f32.gmra.mxu0 %v7226
    %v7228 = vpop.f32.mrf.mxu0
    %v7229 = vadd.f32 %v7138, %v7228
    %v7230 = vpop.f32.mrf.mxu0
    %7231 = vmatprep.mubr.f32.mxu0 0.0
    %v7232 = vand.u32 %v7151, 4294901760
    %v7233 = vsub.f32 %v7151, %v7232
    %v7234 = vand.u32 %v7233, 4294901760
    %v7235 = vsub.f32 %v7233, %v7234
    %v7236 = vand.u32 %v7235, 4294901760
    %7237 = vmatmul.mubr.f32.gmra.mxu0 %v7236
    %v7238 = vpop.f32.mrf.mxu0
    %v7239 = vadd.f32 %v7144, %v7238
    %v7240 = vpop.f32.mrf.mxu0
    %7241 = vdwg.mxu0
    %7242 = vmatprep.subr.mxu0 0.0
    %7243 = vmatpush1.msra.mxu0 0.0
    %7244 = vmatprep.subr.mxu0 0.0
    %7245 = vmatpush1.msra.mxu0 0.0
    %7246 = vmatprep.subr.mxu0 0.0
    %7247 = vmatpush1.msra.mxu0 0.0
    %7248 = vmatprep.subr.mxu0 0.0
    %7249 = vmatpush1.msra.mxu0 0.0
    %7250 = vmatprep.subr.mxu0 0.0
    %7251 = vmatpush1.msra.mxu0 0.0
    %7252 = vmatprep.subr.mxu0 0.0
    %7253 = vmatpush1.msra.mxu0 0.0
    %7254 = vmatprep.subr.mxu0 0.0
    %7255 = vmatpush1.msra.mxu0 0.0
    %7256 = vmatprep.subr.mxu0 0.0
    %7257 = vmatpush1.msra.mxu0 0.0
    %7258 = vmatprep.subr.mxu0 0.0
    %7259 = vmatpush1.msra.mxu0 0.0
    %7260 = vmatprep.subr.mxu0 0.0
    %7261 = vmatpush1.msra.mxu0 0.0
    %7262 = vmatprep.subr.mxu0 0.0
    %7263 = vmatpush1.msra.mxu0 0.0
    %7264 = vmatprep.subr.mxu0 0.0
    %7265 = vmatpush1.msra.mxu0 0.0
    %7266 = vmatprep.subr.mxu0 0.0
    %v7267 = vand.u32 %v6604, 4294901760
    %v7268 = vsub.f32 %v6604, %v7267
    %v7269 = vand.u32 %v7268, 4294901760
    %v7270 = vsub.f32 %v7268, %v7269
    %v7271 = vand.u32 %v7270, 4294901760
    %7272 = vmatpush1.msra.mxu0 %v7271
    %7273 = vmatprep.subr.mxu0 0.0
    %v7274 = vand.u32 %v6603, 4294901760
    %v7275 = vsub.f32 %v6603, %v7274
    %v7276 = vand.u32 %v7275, 4294901760
    %v7277 = vsub.f32 %v7275, %v7276
    %v7278 = vand.u32 %v7277, 4294901760
    %7279 = vmatpush1.msra.mxu0 %v7278
    %7280 = vmatprep.subr.mxu0 0.0
    %v7281 = vand.u32 %v6602, 4294901760
    %v7282 = vsub.f32 %v6602, %v7281
    %v7283 = vand.u32 %v7282, 4294901760
    %v7284 = vsub.f32 %v7282, %v7283
    %v7285 = vand.u32 %v7284, 4294901760
    %7286 = vmatpush1.msra.mxu0 %v7285
    %7287 = vmatprep.subr.mxu0 0.0
    %v7288 = vand.u32 %v6601, 4294901760
    %v7289 = vsub.f32 %v6601, %v7288
    %v7290 = vand.u32 %v7289, 4294901760
    %v7291 = vsub.f32 %v7289, %v7290
    %v7292 = vand.u32 %v7291, 4294901760
    %7293 = vmatpush1.msra.mxu0 %v7292
    %7294 = vmatprep.subr.mxu0 0.0
    %7295 = vmatpush2.msra.mxu0 0.0
    %7296 = vmatprep.subr.mxu0 0.0
    %7297 = vmatpush2.msra.mxu0 0.0
    %7298 = vmatprep.subr.mxu0 0.0
    %7299 = vmatpush2.msra.mxu0 0.0
    %7300 = vmatprep.subr.mxu0 0.0
    %7301 = vmatpush2.msra.mxu0 0.0
    %7302 = vmatprep.subr.mxu0 0.0
    %7303 = vmatpush2.msra.mxu0 0.0
    %7304 = vmatprep.subr.mxu0 0.0
    %7305 = vmatpush2.msra.mxu0 0.0
    %7306 = vmatprep.subr.mxu0 0.0
    %7307 = vmatpush2.msra.mxu0 0.0
    %7308 = vmatprep.subr.mxu0 0.0
    %7309 = vmatpush2.msra.mxu0 0.0
    %7310 = vmatprep.subr.mxu0 0.0
    %7311 = vmatpush2.msra.mxu0 0.0
    %7312 = vmatprep.subr.mxu0 0.0
    %7313 = vmatpush2.msra.mxu0 0.0
    %7314 = vmatprep.subr.mxu0 0.0
    %7315 = vmatpush2.msra.mxu0 0.0
    %7316 = vmatprep.subr.mxu0 0.0
    %7317 = vmatpush2.msra.mxu0 0.0
    %7318 = vmatprep.subr.mxu0 0.0
    %7319 = vmatpush2.msra.mxu0 0.0
    %7320 = vmatprep.subr.mxu0 0.0
    %7321 = vmatpush2.msra.mxu0 0.0
    %7322 = vmatprep.subr.mxu0 0.0
    %7323 = vmatpush2.msra.mxu0 0.0
    %7324 = vmatprep.subr.mxu0 0.0
    %7325 = vmatpush2.msra.mxu0 0.0
    %7326 = vmatprep.mubr.f32.mxu0 0.0
    %v7327 = vand.u32 %v7148, 4294901760
    %7328 = vmatmul.mubr.f32.gmra.mxu0 %v7327
    %v7329 = vpop.f32.mrf.mxu0
    %v7330 = vadd.f32 %v7229, %v7329
    %v7331 = vpop.f32.mrf.mxu0
    %7332 = vmatprep.mubr.f32.mxu0 0.0
    %v7333 = vand.u32 %v7151, 4294901760
    %7334 = vmatmul.mubr.f32.gmra.mxu0 %v7333
    %v7335 = vpop.f32.mrf.mxu0
    %v7336 = vadd.f32 %v7239, %v7335
    %v7337 = vpop.f32.mrf.mxu0
    %7338 = vdwg.mxu0
    %7339 = vmatprep.subr.mxu0 0.0
    %7340 = vmatpush1.msra.mxu0 0.0
    %7341 = vmatprep.subr.mxu0 0.0
    %7342 = vmatpush1.msra.mxu0 0.0
    %7343 = vmatprep.subr.mxu0 0.0
    %7344 = vmatpush1.msra.mxu0 0.0
    %7345 = vmatprep.subr.mxu0 0.0
    %7346 = vmatpush1.msra.mxu0 0.0
    %7347 = vmatprep.subr.mxu0 0.0
    %7348 = vmatpush1.msra.mxu0 0.0
    %7349 = vmatprep.subr.mxu0 0.0
    %7350 = vmatpush1.msra.mxu0 0.0
    %7351 = vmatprep.subr.mxu0 0.0
    %7352 = vmatpush1.msra.mxu0 0.0
    %7353 = vmatprep.subr.mxu0 0.0
    %7354 = vmatpush1.msra.mxu0 0.0
    %7355 = vmatprep.subr.mxu0 0.0
    %7356 = vmatpush1.msra.mxu0 0.0
    %7357 = vmatprep.subr.mxu0 0.0
    %7358 = vmatpush1.msra.mxu0 0.0
    %7359 = vmatprep.subr.mxu0 0.0
    %7360 = vmatpush1.msra.mxu0 0.0
    %7361 = vmatprep.subr.mxu0 0.0
    %7362 = vmatpush1.msra.mxu0 0.0
    %7363 = vmatprep.subr.mxu0 0.0
    %v7364 = vand.u32 %v6604, 4294901760
    %v7365 = vsub.f32 %v6604, %v7364
    %7366 = vmatpush1.msra.mxu0 %v7365
    %7367 = vmatprep.subr.mxu0 0.0
    %v7368 = vand.u32 %v6603, 4294901760
    %v7369 = vsub.f32 %v6603, %v7368
    %7370 = vmatpush1.msra.mxu0 %v7369
    %7371 = vmatprep.subr.mxu0 0.0
    %v7372 = vand.u32 %v6602, 4294901760
    %v7373 = vsub.f32 %v6602, %v7372
    %7374 = vmatpush1.msra.mxu0 %v7373
    %7375 = vmatprep.subr.mxu0 0.0
    %v7376 = vand.u32 %v6601, 4294901760
    %v7377 = vsub.f32 %v6601, %v7376
    %7378 = vmatpush1.msra.mxu0 %v7377
    %7379 = vmatprep.subr.mxu0 0.0
    %7380 = vmatpush2.msra.mxu0 0.0
    %7381 = vmatprep.subr.mxu0 0.0
    %7382 = vmatpush2.msra.mxu0 0.0
    %7383 = vmatprep.subr.mxu0 0.0
    %7384 = vmatpush2.msra.mxu0 0.0
    %7385 = vmatprep.subr.mxu0 0.0
    %7386 = vmatpush2.msra.mxu0 0.0
    %7387 = vmatprep.subr.mxu0 0.0
    %7388 = vmatpush2.msra.mxu0 0.0
    %7389 = vmatprep.subr.mxu0 0.0
    %7390 = vmatpush2.msra.mxu0 0.0
    %7391 = vmatprep.subr.mxu0 0.0
    %7392 = vmatpush2.msra.mxu0 0.0
    %7393 = vmatprep.subr.mxu0 0.0
    %7394 = vmatpush2.msra.mxu0 0.0
    %7395 = vmatprep.subr.mxu0 0.0
    %7396 = vmatpush2.msra.mxu0 0.0
    %7397 = vmatprep.subr.mxu0 0.0
    %7398 = vmatpush2.msra.mxu0 0.0
    %7399 = vmatprep.subr.mxu0 0.0
    %7400 = vmatpush2.msra.mxu0 0.0
    %7401 = vmatprep.subr.mxu0 0.0
    %7402 = vmatpush2.msra.mxu0 0.0
    %7403 = vmatprep.subr.mxu0 0.0
    %7404 = vmatpush2.msra.mxu0 0.0
    %7405 = vmatprep.subr.mxu0 0.0
    %7406 = vmatpush2.msra.mxu0 0.0
    %7407 = vmatprep.subr.mxu0 0.0
    %7408 = vmatpush2.msra.mxu0 0.0
    %7409 = vmatprep.subr.mxu0 0.0
    %7410 = vmatpush2.msra.mxu0 0.0
    %7411 = vmatprep.mubr.f32.mxu0 0.0
    %v7412 = vand.u32 %v7148, 4294901760
    %v7413 = vsub.f32 %v7148, %v7412
    %7414 = vmatmul.mubr.f32.gmra.mxu0 %v7413
    %v7415 = vpop.f32.mrf.mxu0
    %v7416 = vadd.f32 %v7330, %v7415
    %v7417 = vpop.f32.mrf.mxu0
    %7418 = vmatprep.mubr.f32.mxu0 0.0
    %v7419 = vand.u32 %v7151, 4294901760
    %v7420 = vsub.f32 %v7151, %v7419
    %7421 = vmatmul.mubr.f32.gmra.mxu0 %v7420
    %v7422 = vpop.f32.mrf.mxu0
    %v7423 = vadd.f32 %v7336, %v7422
    %v7424 = vpop.f32.mrf.mxu0
    %7425 = vdwg.mxu0
    %7426 = vmatprep.subr.mxu0 0.0
    %7427 = vmatpush1.msra.mxu0 0.0
    %7428 = vmatprep.subr.mxu0 0.0
    %7429 = vmatpush1.msra.mxu0 0.0
    %7430 = vmatprep.subr.mxu0 0.0
    %7431 = vmatpush1.msra.mxu0 0.0
    %7432 = vmatprep.subr.mxu0 0.0
    %7433 = vmatpush1.msra.mxu0 0.0
    %7434 = vmatprep.subr.mxu0 0.0
    %7435 = vmatpush1.msra.mxu0 0.0
    %7436 = vmatprep.subr.mxu0 0.0
    %7437 = vmatpush1.msra.mxu0 0.0
    %7438 = vmatprep.subr.mxu0 0.0
    %7439 = vmatpush1.msra.mxu0 0.0
    %7440 = vmatprep.subr.mxu0 0.0
    %7441 = vmatpush1.msra.mxu0 0.0
    %7442 = vmatprep.subr.mxu0 0.0
    %7443 = vmatpush1.msra.mxu0 0.0
    %7444 = vmatprep.subr.mxu0 0.0
    %7445 = vmatpush1.msra.mxu0 0.0
    %7446 = vmatprep.subr.mxu0 0.0
    %7447 = vmatpush1.msra.mxu0 0.0
    %7448 = vmatprep.subr.mxu0 0.0
    %7449 = vmatpush1.msra.mxu0 0.0
    %7450 = vmatprep.subr.mxu0 0.0
    %v7451 = vand.u32 %v6604, 4294901760
    %7452 = vmatpush1.msra.mxu0 %v7451
    %7453 = vmatprep.subr.mxu0 0.0
    %v7454 = vand.u32 %v6603, 4294901760
    %7455 = vmatpush1.msra.mxu0 %v7454
    %7456 = vmatprep.subr.mxu0 0.0
    %v7457 = vand.u32 %v6602, 4294901760
    %7458 = vmatpush1.msra.mxu0 %v7457
    %7459 = vmatprep.subr.mxu0 0.0
    %v7460 = vand.u32 %v6601, 4294901760
    %7461 = vmatpush1.msra.mxu0 %v7460
    %7462 = vmatprep.subr.mxu0 0.0
    %7463 = vmatpush2.msra.mxu0 0.0
    %7464 = vmatprep.subr.mxu0 0.0
    %7465 = vmatpush2.msra.mxu0 0.0
    %7466 = vmatprep.subr.mxu0 0.0
    %7467 = vmatpush2.msra.mxu0 0.0
    %7468 = vmatprep.subr.mxu0 0.0
    %7469 = vmatpush2.msra.mxu0 0.0
    %7470 = vmatprep.subr.mxu0 0.0
    %7471 = vmatpush2.msra.mxu0 0.0
    %7472 = vmatprep.subr.mxu0 0.0
    %7473 = vmatpush2.msra.mxu0 0.0
    %7474 = vmatprep.subr.mxu0 0.0
    %7475 = vmatpush2.msra.mxu0 0.0
    %7476 = vmatprep.subr.mxu0 0.0
    %7477 = vmatpush2.msra.mxu0 0.0
    %7478 = vmatprep.subr.mxu0 0.0
    %7479 = vmatpush2.msra.mxu0 0.0
    %7480 = vmatprep.subr.mxu0 0.0
    %7481 = vmatpush2.msra.mxu0 0.0
    %7482 = vmatprep.subr.mxu0 0.0
    %7483 = vmatpush2.msra.mxu0 0.0
    %7484 = vmatprep.subr.mxu0 0.0
    %7485 = vmatpush2.msra.mxu0 0.0
    %7486 = vmatprep.subr.mxu0 0.0
    %7487 = vmatpush2.msra.mxu0 0.0
    %7488 = vmatprep.subr.mxu0 0.0
    %7489 = vmatpush2.msra.mxu0 0.0
    %7490 = vmatprep.subr.mxu0 0.0
    %7491 = vmatpush2.msra.mxu0 0.0
    %7492 = vmatprep.subr.mxu0 0.0
    %7493 = vmatpush2.msra.mxu0 0.0
    %7494 = vmatprep.mubr.f32.mxu0 0.0
    %v7495 = vand.u32 %v7148, 4294901760
    %v7496 = vsub.f32 %v7148, %v7495
    %v7497 = vand.u32 %v7496, 4294901760
    %7498 = vmatmul.mubr.f32.gmra.mxu0 %v7497
    %v7499 = vpop.f32.mrf.mxu0
    %v7500 = vadd.f32 %v7416, %v7499
    %v7501 = vpop.f32.mrf.mxu0
    %7502 = vmatprep.mubr.f32.mxu0 0.0
    %v7503 = vand.u32 %v7151, 4294901760
    %v7504 = vsub.f32 %v7151, %v7503
    %v7505 = vand.u32 %v7504, 4294901760
    %7506 = vmatmul.mubr.f32.gmra.mxu0 %v7505
    %v7507 = vpop.f32.mrf.mxu0
    %v7508 = vadd.f32 %v7423, %v7507
    %v7509 = vpop.f32.mrf.mxu0
    %7510 = vdwg.mxu0
    %7511 = vmatprep.subr.mxu0 0.0
    %7512 = vmatpush1.msra.mxu0 0.0
    %7513 = vmatprep.subr.mxu0 0.0
    %7514 = vmatpush1.msra.mxu0 0.0
    %7515 = vmatprep.subr.mxu0 0.0
    %7516 = vmatpush1.msra.mxu0 0.0
    %7517 = vmatprep.subr.mxu0 0.0
    %7518 = vmatpush1.msra.mxu0 0.0
    %7519 = vmatprep.subr.mxu0 0.0
    %7520 = vmatpush1.msra.mxu0 0.0
    %7521 = vmatprep.subr.mxu0 0.0
    %7522 = vmatpush1.msra.mxu0 0.0
    %7523 = vmatprep.subr.mxu0 0.0
    %7524 = vmatpush1.msra.mxu0 0.0
    %7525 = vmatprep.subr.mxu0 0.0
    %7526 = vmatpush1.msra.mxu0 0.0
    %7527 = vmatprep.subr.mxu0 0.0
    %7528 = vmatpush1.msra.mxu0 0.0
    %7529 = vmatprep.subr.mxu0 0.0
    %7530 = vmatpush1.msra.mxu0 0.0
    %7531 = vmatprep.subr.mxu0 0.0
    %7532 = vmatpush1.msra.mxu0 0.0
    %7533 = vmatprep.subr.mxu0 0.0
    %7534 = vmatpush1.msra.mxu0 0.0
    %7535 = vmatprep.subr.mxu0 0.0
    %v7536 = vand.u32 %v6604, 4294901760
    %v7537 = vsub.f32 %v6604, %v7536
    %v7538 = vand.u32 %v7537, 4294901760
    %7539 = vmatpush1.msra.mxu0 %v7538
    %7540 = vmatprep.subr.mxu0 0.0
    %v7541 = vand.u32 %v6603, 4294901760
    %v7542 = vsub.f32 %v6603, %v7541
    %v7543 = vand.u32 %v7542, 4294901760
    %7544 = vmatpush1.msra.mxu0 %v7543
    %7545 = vmatprep.subr.mxu0 0.0
    %v7546 = vand.u32 %v6602, 4294901760
    %v7547 = vsub.f32 %v6602, %v7546
    %v7548 = vand.u32 %v7547, 4294901760
    %7549 = vmatpush1.msra.mxu0 %v7548
    %7550 = vmatprep.subr.mxu0 0.0
    %v7551 = vand.u32 %v6601, 4294901760
    %v7552 = vsub.f32 %v6601, %v7551
    %v7553 = vand.u32 %v7552, 4294901760
    %7554 = vmatpush1.msra.mxu0 %v7553
    %7555 = vmatprep.subr.mxu0 0.0
    %7556 = vmatpush2.msra.mxu0 0.0
    %7557 = vmatprep.subr.mxu0 0.0
    %7558 = vmatpush2.msra.mxu0 0.0
    %7559 = vmatprep.subr.mxu0 0.0
    %7560 = vmatpush2.msra.mxu0 0.0
    %7561 = vmatprep.subr.mxu0 0.0
    %7562 = vmatpush2.msra.mxu0 0.0
    %7563 = vmatprep.subr.mxu0 0.0
    %7564 = vmatpush2.msra.mxu0 0.0
    %7565 = vmatprep.subr.mxu0 0.0
    %7566 = vmatpush2.msra.mxu0 0.0
    %7567 = vmatprep.subr.mxu0 0.0
    %7568 = vmatpush2.msra.mxu0 0.0
    %7569 = vmatprep.subr.mxu0 0.0
    %7570 = vmatpush2.msra.mxu0 0.0
    %7571 = vmatprep.subr.mxu0 0.0
    %7572 = vmatpush2.msra.mxu0 0.0
    %7573 = vmatprep.subr.mxu0 0.0
    %7574 = vmatpush2.msra.mxu0 0.0
    %7575 = vmatprep.subr.mxu0 0.0
    %7576 = vmatpush2.msra.mxu0 0.0
    %7577 = vmatprep.subr.mxu0 0.0
    %7578 = vmatpush2.msra.mxu0 0.0
    %7579 = vmatprep.subr.mxu0 0.0
    %7580 = vmatpush2.msra.mxu0 0.0
    %7581 = vmatprep.subr.mxu0 0.0
    %7582 = vmatpush2.msra.mxu0 0.0
    %7583 = vmatprep.subr.mxu0 0.0
    %7584 = vmatpush2.msra.mxu0 0.0
    %7585 = vmatprep.subr.mxu0 0.0
    %7586 = vmatpush2.msra.mxu0 0.0
    %7587 = vmatprep.mubr.f32.mxu0 0.0
    %v7588 = vand.u32 %v7148, 4294901760
    %7589 = vmatmul.mubr.f32.gmra.mxu0 %v7588
    %v7590 = vpop.f32.mrf.mxu0
    %v7591 = vadd.f32 %v7500, %v7590
    %v7592 = vpop.f32.mrf.mxu0
    %7593 = vmatprep.mubr.f32.mxu0 0.0
    %v7594 = vand.u32 %v7151, 4294901760
    %7595 = vmatmul.mubr.f32.gmra.mxu0 %v7594
    %v7596 = vpop.f32.mrf.mxu0
    %v7597 = vadd.f32 %v7508, %v7596
    %v7598 = vpop.f32.mrf.mxu0
    %7599 = vdwg.mxu0
    %7600 = vmatprep.subr.mxu0 0.0
    %7601 = vmatpush1.msra.mxu0 0.0
    %7602 = vmatprep.subr.mxu0 0.0
    %7603 = vmatpush1.msra.mxu0 0.0
    %7604 = vmatprep.subr.mxu0 0.0
    %7605 = vmatpush1.msra.mxu0 0.0
    %7606 = vmatprep.subr.mxu0 0.0
    %7607 = vmatpush1.msra.mxu0 0.0
    %7608 = vmatprep.subr.mxu0 0.0
    %7609 = vmatpush1.msra.mxu0 0.0
    %7610 = vmatprep.subr.mxu0 0.0
    %7611 = vmatpush1.msra.mxu0 0.0
    %7612 = vmatprep.subr.mxu0 0.0
    %7613 = vmatpush1.msra.mxu0 0.0
    %7614 = vmatprep.subr.mxu0 0.0
    %7615 = vmatpush1.msra.mxu0 0.0
    %7616 = vmatprep.subr.mxu0 0.0
    %7617 = vmatpush1.msra.mxu0 0.0
    %7618 = vmatprep.subr.mxu0 0.0
    %7619 = vmatpush1.msra.mxu0 0.0
    %7620 = vmatprep.subr.mxu0 0.0
    %7621 = vmatpush1.msra.mxu0 0.0
    %7622 = vmatprep.subr.mxu0 0.0
    %7623 = vmatpush1.msra.mxu0 0.0
    %7624 = vmatprep.subr.mxu0 0.0
    %v7625 = vand.u32 %v6604, 4294901760
    %7626 = vmatpush1.msra.mxu0 %v7625
    %7627 = vmatprep.subr.mxu0 0.0
    %v7628 = vand.u32 %v6603, 4294901760
    %7629 = vmatpush1.msra.mxu0 %v7628
    %7630 = vmatprep.subr.mxu0 0.0
    %v7631 = vand.u32 %v6602, 4294901760
    %7632 = vmatpush1.msra.mxu0 %v7631
    %7633 = vmatprep.subr.mxu0 0.0
    %v7634 = vand.u32 %v6601, 4294901760
    %7635 = vmatpush1.msra.mxu0 %v7634
    %7636 = vmatprep.subr.mxu0 0.0
    %7637 = vmatpush2.msra.mxu0 0.0
    %7638 = vmatprep.subr.mxu0 0.0
    %7639 = vmatpush2.msra.mxu0 0.0
    %7640 = vmatprep.subr.mxu0 0.0
    %7641 = vmatpush2.msra.mxu0 0.0
    %7642 = vmatprep.subr.mxu0 0.0
    %7643 = vmatpush2.msra.mxu0 0.0
    %7644 = vmatprep.subr.mxu0 0.0
    %7645 = vmatpush2.msra.mxu0 0.0
    %7646 = vmatprep.subr.mxu0 0.0
    %7647 = vmatpush2.msra.mxu0 0.0
    %7648 = vmatprep.subr.mxu0 0.0
    %7649 = vmatpush2.msra.mxu0 0.0
    %7650 = vmatprep.subr.mxu0 0.0
    %7651 = vmatpush2.msra.mxu0 0.0
    %7652 = vmatprep.subr.mxu0 0.0
    %7653 = vmatpush2.msra.mxu0 0.0
    %7654 = vmatprep.subr.mxu0 0.0
    %7655 = vmatpush2.msra.mxu0 0.0
    %7656 = vmatprep.subr.mxu0 0.0
    %7657 = vmatpush2.msra.mxu0 0.0
    %7658 = vmatprep.subr.mxu0 0.0
    %7659 = vmatpush2.msra.mxu0 0.0
    %7660 = vmatprep.subr.mxu0 0.0
    %7661 = vmatpush2.msra.mxu0 0.0
    %7662 = vmatprep.subr.mxu0 0.0
    %7663 = vmatpush2.msra.mxu0 0.0
    %7664 = vmatprep.subr.mxu0 0.0
    %7665 = vmatpush2.msra.mxu0 0.0
    %7666 = vmatprep.subr.mxu0 0.0
    %7667 = vmatpush2.msra.mxu0 0.0
    %7668 = vmatprep.mubr.f32.mxu0 0.0
    %v7669 = vand.u32 %v7148, 4294901760
    %7670 = vmatmul.mubr.f32.gmra.mxu0 %v7669
    %v7671 = vpop.f32.mrf.mxu0
    %v7672 = vadd.f32 %v7591, %v7671
    %v7673 = vpop.f32.mrf.mxu0
    %7674 = vmatprep.mubr.f32.mxu0 0.0
    %v7675 = vand.u32 %v7151, 4294901760
    %7676 = vmatmul.mubr.f32.gmra.mxu0 %v7675
    %v7677 = vpop.f32.mrf.mxu0
    %v7678 = vadd.f32 %v7597, %v7677
    %v7679 = vpop.f32.mrf.mxu0
    %7680 = vdwg.mxu0
    %v7681 = vld [vmem:[%s5] sm:$0x1]
    %v7683 = vlaneseq
    %v7684 = vshrl.u32 %v7683, 7
    %v7685 = vsub.s32 0, %v7684
    %v7686 = vrot.slane %v7681, %v7685
    %v7688 = vadd.f32 %v7672, %v7686
    %v7689 = vadd.f32 %v7678, %v7686
    %vm7690 = vcmask 130048
    %7691 = vst.msk [vmem:[#allocation5] sm:$0xff] %vm7690, %v7688
    %7692 = vst.msk [vmem:[#allocation5 + $0x8] sm:$0xff] %vm7690, %v7689
    // Predicated region
    $region30: #{tpu_custom_call.1} parent=1 // pred_check
      _
    $region31: #{tpu_custom_call.1} parent=1 // pred_check_branch
      %7694 = sbr.rel (0) target = $region33
    $region32: #{tpu_custom_call.1} parent=1 // pred_region
      %s7696 = ssub.s32 256, 256
      %7697 = vsyncadd [#allocation4], %s7696
      %s7698 = sshll.u32 [#allocation5], 4
      %s7699 = int_to_ptr.vmem [resolvable:$true] %s7698
      %7704 = dma.vmem_to_hbm [thread:$0]  %s7699, 256, %s6, [#allocation4], 128, 128, 8
    $region33: #{tpu_custom_call.1} parent=1 // pred_fallthru
      _
    // Predicated region
    $region34: #{tpu_custom_call.1} parent=1 // pred_check
      _
    $region35: #{tpu_custom_call.1} parent=1 // pred_check_branch
      %7706 = sbr.rel (0) target = $region37
    $region36: #{tpu_custom_call.1} parent=1 // pred_region
      %7707 = dma.done [#allocation4], 256
    $region37: #{tpu_custom_call.1} parent=1 // pred_fallthru
      _
    %7708 = vsyncpa [#allocation3], 1
    %7709 = vsyncpa [#allocation4], 1

</llo_original>
